<compile_context>
chip_gen: v7x
topology: tpu7x:2x2x1
jax: 0.10.0
libtpu: 0.0.40
codegen_flags: <defaults>
</compile_context>

<pallas_src>
import jax
import jax.numpy as jnp
from jax.experimental import pallas as pl
from jax.experimental.pallas import tpu as pltpu

_DIMS = (1024, 512, 256, 128)   # 1024 -> 512 -> 256 -> 128 -> (6 or 1, padded to _OUT_PAD)
_OUT_PAD = 8                    # padded width of the final layer (coors 3 + sigma 3 fit; rot uses col 0)
_TM_DEFAULT = 512               # batch-tile rows (multiple of 8); re-derived per call for tiny B


def _round_up(x, m):
    return (x + m - 1) // m * m


def _point_head_kernel(x_ref,                    # (TM, 1024)   bf16
                       w1_ref, s1_ref, t1_ref,   # (1024, 512) bf16, (1, 512) f32 x2
                       w2_ref, s2_ref, t2_ref,   # (512, 256)  bf16, (1, 256) f32 x2
                       w3_ref, s3_ref, t3_ref,   # (256, 128)  bf16, (1, 128) f32 x2
                       w4_ref, b4_ref,           # (128, 8)    bf16, (1, 8)   f32
                       out_ref):                 # (TM, 8)     f32
    # Layers 1-3: Linear(no bias) -> folded BN -> ReLU  (bf16 operands, f32 MXU accumulate).
    a = jnp.dot(x_ref[...], w1_ref[...], preferred_element_type=jnp.float32)
    a = jnp.maximum(a * s1_ref[...] + t1_ref[...], 0.0).astype(jnp.bfloat16)

    a = jnp.dot(a, w2_ref[...], preferred_element_type=jnp.float32)
    a = jnp.maximum(a * s2_ref[...] + t2_ref[...], 0.0).astype(jnp.bfloat16)

    a = jnp.dot(a, w3_ref[...], preferred_element_type=jnp.float32)
    a = jnp.maximum(a * s3_ref[...] + t3_ref[...], 0.0).astype(jnp.bfloat16)

    # Final Linear (+bias), padded to _OUT_PAD output columns.
    out_ref[...] = (jnp.dot(a, w4_ref[...], preferred_element_type=jnp.float32)
                    + b4_ref[...])


def _build_point_head_call(num_heads, b_pad, tm, semantics):
    F, H1, H2, H3 = _DIMS
    nb = b_pad // tm
    grid = (num_heads, nb)   # heads OUTER: weight block indices are constant across B tiles

    in_specs = [
        pl.BlockSpec((tm, F), lambda h, b: (b, 0)),                  # feats (shared by heads)
        pl.BlockSpec((None, F, H1), lambda h, b: (h, 0, 0)),         # w1  (bf16)
        pl.BlockSpec((None, 1, H1), lambda h, b: (h, 0, 0)),         # s1
        pl.BlockSpec((None, 1, H1), lambda h, b: (h, 0, 0)),         # t1
        pl.BlockSpec((None, H1, H2), lambda h, b: (h, 0, 0)),        # w2  (bf16)
        pl.BlockSpec((None, 1, H2), lambda h, b: (h, 0, 0)),         # s2
        pl.BlockSpec((None, 1, H2), lambda h, b: (h, 0, 0)),         # t2
        pl.BlockSpec((None, H2, H3), lambda h, b: (h, 0, 0)),        # w3  (bf16)
        pl.BlockSpec((None, 1, H3), lambda h, b: (h, 0, 0)),         # s3
        pl.BlockSpec((None, 1, H3), lambda h, b: (h, 0, 0)),         # t3
        pl.BlockSpec((None, H3, _OUT_PAD), lambda h, b: (h, 0, 0)),  # w4  (bf16, padded)
        pl.BlockSpec((None, 1, _OUT_PAD), lambda h, b: (h, 0, 0)),   # b4  (f32, padded)
    ]
    out_specs = pl.BlockSpec((None, tm, _OUT_PAD), lambda h, b: (h, b, 0))

    # Advisory cost estimate: memory-bound; weights streamed once per head (VMEM-resident
    # across B tiles), feats re-read once per head, narrow f32 output.
    w_elems = F * H1 + H1 * H2 + H2 * H3 + H3 * _OUT_PAD
    flops = 2 * b_pad * w_elems * num_heads
    bytes_accessed = num_heads * (2 * w_elems
                                  + 4 * (2 * H1 + 2 * H2 + 2 * H3 + _OUT_PAD)
                                  + 2 * b_pad * F
                                  + 4 * b_pad * _OUT_PAD)

    return pl.pallas_call(
        _point_head_kernel,
        out_shape=jax.ShapeDtypeStruct((num_heads, b_pad, _OUT_PAD), jnp.float32),
        grid_spec=pltpu.PrefetchScalarGridSpec(
            num_scalar_prefetch=0,
            grid=grid,
            in_specs=in_specs,
            out_specs=out_specs,
        ),
        compiler_params=pltpu.CompilerParams(dimension_semantics=semantics),
        cost_estimate=pl.CostEstimate(flops=flops, transcendentals=0,
                                      bytes_accessed=bytes_accessed),
    )


def _run_point_heads(feats, P, num_heads, tm=_TM_DEFAULT):
    """feats: (B, 1024) f32.  P: stacked per-head params.  Returns (num_heads, B, 8) f32."""
    B, F = feats.shape
    assert F == _DIMS[0]
    tm = min(tm, _round_up(B, 8))          # small batches: one small tile, no waste
    b_pad = _round_up(B, tm)

    x = feats.astype(jnp.bfloat16)         # cast once in the wrapper (halves feats traffic)
    if b_pad != B:
        x = jnp.pad(x, ((0, b_pad - B), (0, 0)))

    args = (x,
            P['w1'], P['s1'], P['t1'],
            P['w2'], P['s2'], P['t2'],
            P['w3'], P['s3'], P['t3'],
            P['w4'], P['b4'])

    # Prefer a real per-TensorCore split of the B-tile axis (v7x has 2 TCs); fall back to
    # plain PARALLEL semantics if this jax/libtpu/chip combination rejects CORE_PARALLEL.
    semantics_choices = (
        (pltpu.PARALLEL, pltpu.CORE_PARALLEL),
        (pltpu.PARALLEL, pltpu.PARALLEL),
    )
    err = None
    for semantics in semantics_choices:
        try:
            call = _build_point_head_call(num_heads, b_pad, tm, semantics)
            out = jax.block_until_ready(call(*args))
            return out[:, :B, :]
        except Exception as e:              # lowering/compile rejection -> try next semantics
            err = e
    raise err


def _fold_bn(gamma, beta, running_mean, running_var, eps=1e-3):
    """Fold eval-mode BatchNorm (eps=1e-3, as in the PyTorch module) into (1,H) scale/shift."""
    scale = gamma / jnp.sqrt(running_var + eps)
    shift = beta - running_mean * scale
    return scale[None, :].astype(jnp.float32), shift[None, :].astype(jnp.float32)


def _init_one_head(key, out_dim):
    """Synthetic per-head params: 3x [Linear(no bias)+BN] + final Linear, bf16 weights."""
    p = {}
    k = key
    in_dim = _DIMS[0]
    for li, hdim in enumerate(_DIMS[1:], start=1):
        k, kw, kg, kb, km, kv = jax.random.split(k, 6)
        w = jax.random.normal(kw, (in_dim, hdim), jnp.float32) / jnp.sqrt(in_dim)
        gamma = 1.0 + 0.1 * jax.random.normal(kg, (hdim,), jnp.float32)
        beta = 0.1 * jax.random.normal(kb, (hdim,), jnp.float32)
        rmean = 0.1 * jax.random.normal(km, (hdim,), jnp.float32)
        rvar = jnp.abs(1.0 + 0.1 * jax.random.normal(kv, (hdim,), jnp.float32))
        s, t = _fold_bn(gamma, beta, rmean, rvar, eps=1e-3)
        p[f'w{li}'] = w.astype(jnp.bfloat16)
        p[f's{li}'] = s
        p[f't{li}'] = t
        in_dim = hdim
    k, kw, kb = jax.random.split(k, 3)
    w4 = jax.random.normal(kw, (in_dim, out_dim), jnp.float32) / jnp.sqrt(in_dim)
    b4 = 0.01 * jax.random.normal(kb, (out_dim,), jnp.float32)
    # Pad the tiny final layer (6 or 1 -> _OUT_PAD columns, zeros elsewhere).
    w4p = jnp.zeros((in_dim, _OUT_PAD), jnp.float32).at[:, :out_dim].set(w4)
    b4p = jnp.zeros((1, _OUT_PAD), jnp.float32).at[:, :out_dim].set(b4)
    p['w4'] = w4p.astype(jnp.bfloat16)
    p['b4'] = b4p
    return p


def _stack_heads(head_param_dicts):
    keys = head_param_dicts[0].keys()
    return {k: jnp.stack([hp[k] for hp in head_param_dicts], axis=0) for k in keys}


def _reference_forward(feats, P, num_heads):
    """Pure-JAX mirror of the kernel math (same bf16 casts) for validation."""
    x = feats.astype(jnp.bfloat16)
    outs = []
    for h in range(num_heads):
        a = jnp.dot(x, P['w1'][h], preferred_element_type=jnp.float32)
        a = jnp.maximum(a * P['s1'][h] + P['t1'][h], 0.0).astype(jnp.bfloat16)
        a = jnp.dot(a, P['w2'][h], preferred_element_type=jnp.float32)
        a = jnp.maximum(a * P['s2'][h] + P['t2'][h], 0.0).astype(jnp.bfloat16)
        a = jnp.dot(a, P['w3'][h], preferred_element_type=jnp.float32)
        a = jnp.maximum(a * P['s3'][h] + P['t3'][h], 0.0).astype(jnp.bfloat16)
        outs.append(jnp.dot(a, P['w4'][h], preferred_element_type=jnp.float32) + P['b4'][h])
    return jnp.stack(outs, axis=0)


class PointHeadPallas:
    """JAX/Pallas counterpart of PointHead.forward (inference semantics).

    regression_head: 1024 -> 512 -> 256 -> 128 -> 6  (BN folded, eval mode)
    rotation_head  : 1024 -> 512 -> 256 -> 128 -> 1  (only if use_rot)
    Both heads run fused in a single pallas_call; grid = (heads, B-tiles).
    feats.detach() for the rotation head is a no-op in a pure forward pass.
    """

    def __init__(self, use_rot=False, key=jax.random.PRNGKey(42)):
        self.use_rot = use_rot
        k_reg, k_rot = jax.random.split(key)
        heads = [_init_one_head(k_reg, 6)]
        if use_rot:
            heads.append(_init_one_head(k_rot, 1))
        self.num_heads = len(heads)
        self.params = _stack_heads(heads)

    def __call__(self, feats):
        out = _run_point_heads(feats, self.params, self.num_heads)   # (H, B, 8)
        res = out[0]
        results = {'coors': res[:, :3], 'sigma': res[:, 3:6]}
        if self.use_rot:
            results['rotation'] = out[1, :, :1]
        return results


if __name__ == "__main__":
    key = jax.random.PRNGKey(0)
    B = 8
    feats = jax.random.normal(key, (B, 1024), jnp.float32)

    head = PointHeadPallas(use_rot=True)
    results = head(feats)
    jax.block_until_ready(results)

    assert results['coors'].shape == (B, 3)
    assert results['sigma'].shape == (B, 3)
    assert results['rotation'].shape == (B, 1)

    # Validate against a pure-JAX mirror of the same math.
    ref = _reference_forward(feats, head.params, head.num_heads)
    assert jnp.allclose(results['coors'], ref[0][:, :3], rtol=2e-2, atol=2e-2)
    assert jnp.allclose(results['sigma'], ref[0][:, 3:6], rtol=2e-2, atol=2e-2)
    assert jnp.allclose(results['rotation'], ref[1][:, :1], rtol=2e-2, atol=2e-2)
    assert all(bool(jnp.all(jnp.isfinite(v))) for v in results.values())
    print("KERNEL_OK")
</pallas_src>

<mosaic_0001>
module attributes {stable_mosaic.version = 11 : i64} {
  func.func @_point_head_kernel(%arg0: i32, %arg1: i32, %arg2: memref<8x1024xbf16, #tpu.memory_space<vmem>>, %arg3: memref<1x1024x512xbf16, #tpu.memory_space<vmem>>, %arg4: memref<1x1x512xf32, #tpu.memory_space<vmem>>, %arg5: memref<1x1x512xf32, #tpu.memory_space<vmem>>, %arg6: memref<1x512x256xbf16, #tpu.memory_space<vmem>>, %arg7: memref<1x1x256xf32, #tpu.memory_space<vmem>>, %arg8: memref<1x1x256xf32, #tpu.memory_space<vmem>>, %arg9: memref<1x256x128xbf16, #tpu.memory_space<vmem>>, %arg10: memref<1x1x128xf32, #tpu.memory_space<vmem>>, %arg11: memref<1x1x128xf32, #tpu.memory_space<vmem>>, %arg12: memref<1x128x8xbf16, #tpu.memory_space<vmem>>, %arg13: memref<1x1x8xf32, #tpu.memory_space<vmem>>, %arg14: memref<1x8x8xf32, #tpu.memory_space<vmem>>) attributes {dimension_semantics = [#tpu.dimension_semantics<parallel>, #tpu.dimension_semantics<core_parallel>], iteration_bounds = array<i64: 2, 1>, scalar_prefetch = 0 : i64, scratch_operands = 0 : i64, tpu.core_type = #tpu.core_type<tc>, window_params = [{transform_indices = @transform_0, window_bounds = array<i64: 8, 1024>}, {transform_indices = @transform_1, window_bounds = array<i64: 1, 1024, 512>}, {transform_indices = @transform_2, window_bounds = array<i64: 1, 1, 512>}, {transform_indices = @transform_3, window_bounds = array<i64: 1, 1, 512>}, {transform_indices = @transform_4, window_bounds = array<i64: 1, 512, 256>}, {transform_indices = @transform_5, window_bounds = array<i64: 1, 1, 256>}, {transform_indices = @transform_6, window_bounds = array<i64: 1, 1, 256>}, {transform_indices = @transform_7, window_bounds = array<i64: 1, 256, 128>}, {transform_indices = @transform_8, window_bounds = array<i64: 1, 1, 128>}, {transform_indices = @transform_9, window_bounds = array<i64: 1, 1, 128>}, {transform_indices = @transform_10, window_bounds = array<i64: 1, 128, 8>}, {transform_indices = @transform_11, window_bounds = array<i64: 1, 1, 8>}, {transform_indices = @transform_12, window_bounds = array<i64: 1, 8, 8>}]} {
    %c0 = arith.constant 0 : index
    %c0_0 = arith.constant 0 : index
    %0 = vector.load %arg2[%c0, %c0_0] : memref<8x1024xbf16, #tpu.memory_space<vmem>>, vector<8x1024xbf16>
    %c0_1 = arith.constant 0 : index
    %c0_2 = arith.constant 0 : index
    %c0_3 = arith.constant 0 : index
    %1 = vector.load %arg3[%c0_1, %c0_2, %c0_3] : memref<1x1024x512xbf16, #tpu.memory_space<vmem>>, vector<1x1024x512xbf16>
    %2 = vector.shape_cast %1 : vector<1x1024x512xbf16> to vector<1024x512xbf16>
    %cst = arith.constant dense<0.000000e+00> : vector<8x512xf32>
    %3 = tpu.matmul %0, %2, %cst {dimension_numbers = #tpu.dot_dimension_numbers<[1], [0], [0], [1], [0, 0, 1, 1], [], []>} : vector<8x1024xbf16>, vector<1024x512xbf16>, vector<8x512xf32> -> vector<8x512xf32>
    %c0_4 = arith.constant 0 : index
    %c0_5 = arith.constant 0 : index
    %c0_6 = arith.constant 0 : index
    %4 = vector.load %arg4[%c0_4, %c0_5, %c0_6] : memref<1x1x512xf32, #tpu.memory_space<vmem>>, vector<1x1x512xf32>
    %5 = vector.shape_cast %4 : vector<1x1x512xf32> to vector<1x512xf32>
    %6 = vector.broadcast %5 : vector<1x512xf32> to vector<8x512xf32>
    %7 = arith.mulf %3, %6 : vector<8x512xf32>
    %c0_7 = arith.constant 0 : index
    %c0_8 = arith.constant 0 : index
    %c0_9 = arith.constant 0 : index
    %8 = vector.load %arg5[%c0_7, %c0_8, %c0_9] : memref<1x1x512xf32, #tpu.memory_space<vmem>>, vector<1x1x512xf32>
    %9 = vector.shape_cast %8 : vector<1x1x512xf32> to vector<1x512xf32>
    %10 = vector.broadcast %9 : vector<1x512xf32> to vector<8x512xf32>
    %11 = arith.addf %7, %10 : vector<8x512xf32>
    %cst_10 = arith.constant 0.000000e+00 : f32
    %12 = vector.broadcast %cst_10 : f32 to vector<8x512xf32>
    %13 = arith.maximumf %11, %12 : vector<8x512xf32>
    %14 = arith.truncf %13 : vector<8x512xf32> to vector<8x512xbf16>
    %c0_11 = arith.constant 0 : index
    %c0_12 = arith.constant 0 : index
    %c0_13 = arith.constant 0 : index
    %15 = vector.load %arg6[%c0_11, %c0_12, %c0_13] : memref<1x512x256xbf16, #tpu.memory_space<vmem>>, vector<1x512x256xbf16>
    %16 = vector.shape_cast %15 : vector<1x512x256xbf16> to vector<512x256xbf16>
    %cst_14 = arith.constant dense<0.000000e+00> : vector<8x256xf32>
    %17 = tpu.matmul %14, %16, %cst_14 {dimension_numbers = #tpu.dot_dimension_numbers<[1], [0], [0], [1], [0, 0, 1, 1], [], []>} : vector<8x512xbf16>, vector<512x256xbf16>, vector<8x256xf32> -> vector<8x256xf32>
    %c0_15 = arith.constant 0 : index
    %c0_16 = arith.constant 0 : index
    %c0_17 = arith.constant 0 : index
    %18 = vector.load %arg7[%c0_15, %c0_16, %c0_17] : memref<1x1x256xf32, #tpu.memory_space<vmem>>, vector<1x1x256xf32>
    %19 = vector.shape_cast %18 : vector<1x1x256xf32> to vector<1x256xf32>
    %20 = vector.broadcast %19 : vector<1x256xf32> to vector<8x256xf32>
    %21 = arith.mulf %17, %20 : vector<8x256xf32>
    %c0_18 = arith.constant 0 : index
    %c0_19 = arith.constant 0 : index
    %c0_20 = arith.constant 0 : index
    %22 = vector.load %arg8[%c0_18, %c0_19, %c0_20] : memref<1x1x256xf32, #tpu.memory_space<vmem>>, vector<1x1x256xf32>
    %23 = vector.shape_cast %22 : vector<1x1x256xf32> to vector<1x256xf32>
    %24 = vector.broadcast %23 : vector<1x256xf32> to vector<8x256xf32>
    %25 = arith.addf %21, %24 : vector<8x256xf32>
    %cst_21 = arith.constant 0.000000e+00 : f32
    %26 = vector.broadcast %cst_21 : f32 to vector<8x256xf32>
    %27 = arith.maximumf %25, %26 : vector<8x256xf32>
    %28 = arith.truncf %27 : vector<8x256xf32> to vector<8x256xbf16>
    %c0_22 = arith.constant 0 : index
    %c0_23 = arith.constant 0 : index
    %c0_24 = arith.constant 0 : index
    %29 = vector.load %arg9[%c0_22, %c0_23, %c0_24] : memref<1x256x128xbf16, #tpu.memory_space<vmem>>, vector<1x256x128xbf16>
    %30 = vector.shape_cast %29 : vector<1x256x128xbf16> to vector<256x128xbf16>
    %cst_25 = arith.constant dense<0.000000e+00> : vector<8x128xf32>
    %31 = tpu.matmul %28, %30, %cst_25 {dimension_numbers = #tpu.dot_dimension_numbers<[1], [0], [0], [1], [0, 0, 1, 1], [], []>} : vector<8x256xbf16>, vector<256x128xbf16>, vector<8x128xf32> -> vector<8x128xf32>
    %c0_26 = arith.constant 0 : index
    %c0_27 = arith.constant 0 : index
    %c0_28 = arith.constant 0 : index
    %32 = vector.load %arg10[%c0_26, %c0_27, %c0_28] : memref<1x1x128xf32, #tpu.memory_space<vmem>>, vector<1x1x128xf32>
    %33 = vector.shape_cast %32 : vector<1x1x128xf32> to vector<1x128xf32>
    %34 = vector.broadcast %33 : vector<1x128xf32> to vector<8x128xf32>
    %35 = arith.mulf %31, %34 : vector<8x128xf32>
    %c0_29 = arith.constant 0 : index
    %c0_30 = arith.constant 0 : index
    %c0_31 = arith.constant 0 : index
    %36 = vector.load %arg11[%c0_29, %c0_30, %c0_31] : memref<1x1x128xf32, #tpu.memory_space<vmem>>, vector<1x1x128xf32>
    %37 = vector.shape_cast %36 : vector<1x1x128xf32> to vector<1x128xf32>
    %38 = vector.broadcast %37 : vector<1x128xf32> to vector<8x128xf32>
    %39 = arith.addf %35, %38 : vector<8x128xf32>
    %cst_32 = arith.constant 0.000000e+00 : f32
    %40 = vector.broadcast %cst_32 : f32 to vector<8x128xf32>
    %41 = arith.maximumf %39, %40 : vector<8x128xf32>
    %42 = arith.truncf %41 : vector<8x128xf32> to vector<8x128xbf16>
    %c0_33 = arith.constant 0 : index
    %c0_34 = arith.constant 0 : index
    %c0_35 = arith.constant 0 : index
    %43 = vector.load %arg12[%c0_33, %c0_34, %c0_35] : memref<1x128x8xbf16, #tpu.memory_space<vmem>>, vector<1x128x8xbf16>
    %44 = vector.shape_cast %43 : vector<1x128x8xbf16> to vector<128x8xbf16>
    %cst_36 = arith.constant dense<0.000000e+00> : vector<8x8xf32>
    %45 = tpu.matmul %42, %44, %cst_36 {dimension_numbers = #tpu.dot_dimension_numbers<[1], [0], [0], [1], [0, 0, 1, 1], [], []>} : vector<8x128xbf16>, vector<128x8xbf16>, vector<8x8xf32> -> vector<8x8xf32>
    %c0_37 = arith.constant 0 : index
    %c0_38 = arith.constant 0 : index
    %c0_39 = arith.constant 0 : index
    %46 = vector.load %arg13[%c0_37, %c0_38, %c0_39] : memref<1x1x8xf32, #tpu.memory_space<vmem>>, vector<1x1x8xf32>
    %47 = vector.shape_cast %46 : vector<1x1x8xf32> to vector<1x8xf32>
    %48 = vector.broadcast %47 : vector<1x8xf32> to vector<8x8xf32>
    %49 = arith.addf %45, %48 : vector<8x8xf32>
    %c0_40 = arith.constant 0 : index
    %c0_41 = arith.constant 0 : index
    %c0_42 = arith.constant 0 : index
    %50 = vector.load %arg14[%c0_40, %c0_41, %c0_42] : memref<1x8x8xf32, #tpu.memory_space<vmem>>, vector<1x8x8xf32>
    %51 = vector.shape_cast %50 : vector<1x8x8xf32> to vector<8x8xf32>
    %52 = vector.shape_cast %49 : vector<8x8xf32> to vector<1x8x8xf32>
    tpu.vector_store %arg14[%c0_40, %c0_41, %c0_42], %52 {strides = array<i32>} : memref<1x8x8xf32, #tpu.memory_space<vmem>>, vector<1x8x8xf32>,
    return
  }
  func.func @transform_0(%arg0: i32, %arg1: i32) -> (i32, i32) {
    %c0_i32 = arith.constant 0 : i32
    %c0_i32_0 = arith.constant 0 : i32
    return %arg1, %c0_i32 : i32, i32
  }
  func.func @transform_1(%arg0: i32, %arg1: i32) -> (i32, i32, i32) {
    %c0_i32 = arith.constant 0 : i32
    %c0_i32_0 = arith.constant 0 : i32
    %c0_i32_1 = arith.constant 0 : i32
    return %arg0, %c0_i32, %c0_i32_0 : i32, i32, i32
  }
  func.func @transform_2(%arg0: i32, %arg1: i32) -> (i32, i32, i32) {
    %c0_i32 = arith.constant 0 : i32
    %c0_i32_0 = arith.constant 0 : i32
    %c0_i32_1 = arith.constant 0 : i32
    return %arg0, %c0_i32, %c0_i32_0 : i32, i32, i32
  }
  func.func @transform_3(%arg0: i32, %arg1: i32) -> (i32, i32, i32) {
    %c0_i32 = arith.constant 0 : i32
    %c0_i32_0 = arith.constant 0 : i32
    %c0_i32_1 = arith.constant 0 : i32
    return %arg0, %c0_i32, %c0_i32_0 : i32, i32, i32
  }
  func.func @transform_4(%arg0: i32, %arg1: i32) -> (i32, i32, i32) {
    %c0_i32 = arith.constant 0 : i32
    %c0_i32_0 = arith.constant 0 : i32
    %c0_i32_1 = arith.constant 0 : i32
    return %arg0, %c0_i32, %c0_i32_0 : i32, i32, i32
  }
  func.func @transform_5(%arg0: i32, %arg1: i32) -> (i32, i32, i32) {
    %c0_i32 = arith.constant 0 : i32
    %c0_i32_0 = arith.constant 0 : i32
    %c0_i32_1 = arith.constant 0 : i32
    return %arg0, %c0_i32, %c0_i32_0 : i32, i32, i32
  }
  func.func @transform_6(%arg0: i32, %arg1: i32) -> (i32, i32, i32) {
    %c0_i32 = arith.constant 0 : i32
    %c0_i32_0 = arith.constant 0 : i32
    %c0_i32_1 = arith.constant 0 : i32
    return %arg0, %c0_i32, %c0_i32_0 : i32, i32, i32
  }
  func.func @transform_7(%arg0: i32, %arg1: i32) -> (i32, i32, i32) {
    %c0_i32 = arith.constant 0 : i32
    %c0_i32_0 = arith.constant 0 : i32
    %c0_i32_1 = arith.constant 0 : i32
    return %arg0, %c0_i32, %c0_i32_0 : i32, i32, i32
  }
  func.func @transform_8(%arg0: i32, %arg1: i32) -> (i32, i32, i32) {
    %c0_i32 = arith.constant 0 : i32
    %c0_i32_0 = arith.constant 0 : i32
    %c0_i32_1 = arith.constant 0 : i32
    return %arg0, %c0_i32, %c0_i32_0 : i32, i32, i32
  }
  func.func @transform_9(%arg0: i32, %arg1: i32) -> (i32, i32, i32) {
    %c0_i32 = arith.constant 0 : i32
    %c0_i32_0 = arith.constant 0 : i32
    %c0_i32_1 = arith.constant 0 : i32
    return %arg0, %c0_i32, %c0_i32_0 : i32, i32, i32
  }
  func.func @transform_10(%arg0: i32, %arg1: i32) -> (i32, i32, i32) {
    %c0_i32 = arith.constant 0 : i32
    %c0_i32_0 = arith.constant 0 : i32
    %c0_i32_1 = arith.constant 0 : i32
    return %arg0, %c0_i32, %c0_i32_0 : i32, i32, i32
  }
  func.func @transform_11(%arg0: i32, %arg1: i32) -> (i32, i32, i32) {
    %c0_i32 = arith.constant 0 : i32
    %c0_i32_0 = arith.constant 0 : i32
    %c0_i32_1 = arith.constant 0 : i32
    return %arg0, %c0_i32, %c0_i32_0 : i32, i32, i32
  }
  func.func @transform_12(%arg0: i32, %arg1: i32) -> (i32, i32, i32) {
    %c0_i32 = arith.constant 0 : i32
    %c0_i32_0 = arith.constant 0 : i32
    return %arg0, %arg1, %c0_i32 : i32, i32, i32
  }
}

module attributes {stable_mosaic.version = 11 : i64} {
  func.func @_point_head_kernel(%arg0: i32, %arg1: i32, %arg2: memref<8x1024xbf16, #tpu.memory_space<vmem>>, %arg3: memref<1x1024x512xbf16, #tpu.memory_space<vmem>>, %arg4: memref<1x1x512xf32, #tpu.memory_space<vmem>>, %arg5: memref<1x1x512xf32, #tpu.memory_space<vmem>>, %arg6: memref<1x512x256xbf16, #tpu.memory_space<vmem>>, %arg7: memref<1x1x256xf32, #tpu.memory_space<vmem>>, %arg8: memref<1x1x256xf32, #tpu.memory_space<vmem>>, %arg9: memref<1x256x128xbf16, #tpu.memory_space<vmem>>, %arg10: memref<1x1x128xf32, #tpu.memory_space<vmem>>, %arg11: memref<1x1x128xf32, #tpu.memory_space<vmem>>, %arg12: memref<1x128x8xbf16, #tpu.memory_space<vmem>>, %arg13: memref<1x1x8xf32, #tpu.memory_space<vmem>>, %arg14: memref<1x8x8xf32, #tpu.memory_space<vmem>>) attributes {dimension_semantics = [#tpu.dimension_semantics<parallel>, #tpu.dimension_semantics<parallel>], iteration_bounds = array<i64: 2, 1>, scalar_prefetch = 0 : i64, scratch_operands = 0 : i64, tpu.core_type = #tpu.core_type<tc>, window_params = [{transform_indices = @transform_0, window_bounds = array<i64: 8, 1024>}, {transform_indices = @transform_1, window_bounds = array<i64: 1, 1024, 512>}, {transform_indices = @transform_2, window_bounds = array<i64: 1, 1, 512>}, {transform_indices = @transform_3, window_bounds = array<i64: 1, 1, 512>}, {transform_indices = @transform_4, window_bounds = array<i64: 1, 512, 256>}, {transform_indices = @transform_5, window_bounds = array<i64: 1, 1, 256>}, {transform_indices = @transform_6, window_bounds = array<i64: 1, 1, 256>}, {transform_indices = @transform_7, window_bounds = array<i64: 1, 256, 128>}, {transform_indices = @transform_8, window_bounds = array<i64: 1, 1, 128>}, {transform_indices = @transform_9, window_bounds = array<i64: 1, 1, 128>}, {transform_indices = @transform_10, window_bounds = array<i64: 1, 128, 8>}, {transform_indices = @transform_11, window_bounds = array<i64: 1, 1, 8>}, {transform_indices = @transform_12, window_bounds = array<i64: 1, 8, 8>}]} {
    %c0 = arith.constant 0 : index
    %c0_0 = arith.constant 0 : index
    %0 = vector.load %arg2[%c0, %c0_0] : memref<8x1024xbf16, #tpu.memory_space<vmem>>, vector<8x1024xbf16>
    %c0_1 = arith.constant 0 : index
    %c0_2 = arith.constant 0 : index
    %c0_3 = arith.constant 0 : index
    %1 = vector.load %arg3[%c0_1, %c0_2, %c0_3] : memref<1x1024x512xbf16, #tpu.memory_space<vmem>>, vector<1x1024x512xbf16>
    %2 = vector.shape_cast %1 : vector<1x1024x512xbf16> to vector<1024x512xbf16>
    %cst = arith.constant dense<0.000000e+00> : vector<8x512xf32>
    %3 = tpu.matmul %0, %2, %cst {dimension_numbers = #tpu.dot_dimension_numbers<[1], [0], [0], [1], [0, 0, 1, 1], [], []>} : vector<8x1024xbf16>, vector<1024x512xbf16>, vector<8x512xf32> -> vector<8x512xf32>
    %c0_4 = arith.constant 0 : index
    %c0_5 = arith.constant 0 : index
    %c0_6 = arith.constant 0 : index
    %4 = vector.load %arg4[%c0_4, %c0_5, %c0_6] : memref<1x1x512xf32, #tpu.memory_space<vmem>>, vector<1x1x512xf32>
    %5 = vector.shape_cast %4 : vector<1x1x512xf32> to vector<1x512xf32>
    %6 = vector.broadcast %5 : vector<1x512xf32> to vector<8x512xf32>
    %7 = arith.mulf %3, %6 : vector<8x512xf32>
    %c0_7 = arith.constant 0 : index
    %c0_8 = arith.constant 0 : index
    %c0_9 = arith.constant 0 : index
    %8 = vector.load %arg5[%c0_7, %c0_8, %c0_9] : memref<1x1x512xf32, #tpu.memory_space<vmem>>, vector<1x1x512xf32>
    %9 = vector.shape_cast %8 : vector<1x1x512xf32> to vector<1x512xf32>
    %10 = vector.broadcast %9 : vector<1x512xf32> to vector<8x512xf32>
    %11 = arith.addf %7, %10 : vector<8x512xf32>
    %cst_10 = arith.constant 0.000000e+00 : f32
    %12 = vector.broadcast %cst_10 : f32 to vector<8x512xf32>
    %13 = arith.maximumf %11, %12 : vector<8x512xf32>
    %14 = arith.truncf %13 : vector<8x512xf32> to vector<8x512xbf16>
    %c0_11 = arith.constant 0 : index
    %c0_12 = arith.constant 0 : index
    %c0_13 = arith.constant 0 : index
    %15 = vector.load %arg6[%c0_11, %c0_12, %c0_13] : memref<1x512x256xbf16, #tpu.memory_space<vmem>>, vector<1x512x256xbf16>
    %16 = vector.shape_cast %15 : vector<1x512x256xbf16> to vector<512x256xbf16>
    %cst_14 = arith.constant dense<0.000000e+00> : vector<8x256xf32>
    %17 = tpu.matmul %14, %16, %cst_14 {dimension_numbers = #tpu.dot_dimension_numbers<[1], [0], [0], [1], [0, 0, 1, 1], [], []>} : vector<8x512xbf16>, vector<512x256xbf16>, vector<8x256xf32> -> vector<8x256xf32>
    %c0_15 = arith.constant 0 : index
    %c0_16 = arith.constant 0 : index
    %c0_17 = arith.constant 0 : index
    %18 = vector.load %arg7[%c0_15, %c0_16, %c0_17] : memref<1x1x256xf32, #tpu.memory_space<vmem>>, vector<1x1x256xf32>
    %19 = vector.shape_cast %18 : vector<1x1x256xf32> to vector<1x256xf32>
    %20 = vector.broadcast %19 : vector<1x256xf32> to vector<8x256xf32>
    %21 = arith.mulf %17, %20 : vector<8x256xf32>
    %c0_18 = arith.constant 0 : index
    %c0_19 = arith.constant 0 : index
    %c0_20 = arith.constant 0 : index
    %22 = vector.load %arg8[%c0_18, %c0_19, %c0_20] : memref<1x1x256xf32, #tpu.memory_space<vmem>>, vector<1x1x256xf32>
    %23 = vector.shape_cast %22 : vector<1x1x256xf32> to vector<1x256xf32>
    %24 = vector.broadcast %23 : vector<1x256xf32> to vector<8x256xf32>
    %25 = arith.addf %21, %24 : vector<8x256xf32>
    %cst_21 = arith.constant 0.000000e+00 : f32
    %26 = vector.broadcast %cst_21 : f32 to vector<8x256xf32>
    %27 = arith.maximumf %25, %26 : vector<8x256xf32>
    %28 = arith.truncf %27 : vector<8x256xf32> to vector<8x256xbf16>
    %c0_22 = arith.constant 0 : index
    %c0_23 = arith.constant 0 : index
    %c0_24 = arith.constant 0 : index
    %29 = vector.load %arg9[%c0_22, %c0_23, %c0_24] : memref<1x256x128xbf16, #tpu.memory_space<vmem>>, vector<1x256x128xbf16>
    %30 = vector.shape_cast %29 : vector<1x256x128xbf16> to vector<256x128xbf16>
    %cst_25 = arith.constant dense<0.000000e+00> : vector<8x128xf32>
    %31 = tpu.matmul %28, %30, %cst_25 {dimension_numbers = #tpu.dot_dimension_numbers<[1], [0], [0], [1], [0, 0, 1, 1], [], []>} : vector<8x256xbf16>, vector<256x128xbf16>, vector<8x128xf32> -> vector<8x128xf32>
    %c0_26 = arith.constant 0 : index
    %c0_27 = arith.constant 0 : index
    %c0_28 = arith.constant 0 : index
    %32 = vector.load %arg10[%c0_26, %c0_27, %c0_28] : memref<1x1x128xf32, #tpu.memory_space<vmem>>, vector<1x1x128xf32>
    %33 = vector.shape_cast %32 : vector<1x1x128xf32> to vector<1x128xf32>
    %34 = vector.broadcast %33 : vector<1x128xf32> to vector<8x128xf32>
    %35 = arith.mulf %31, %34 : vector<8x128xf32>
    %c0_29 = arith.constant 0 : index
    %c0_30 = arith.constant 0 : index
    %c0_31 = arith.constant 0 : index
    %36 = vector.load %arg11[%c0_29, %c0_30, %c0_31] : memref<1x1x128xf32, #tpu.memory_space<vmem>>, vector<1x1x128xf32>
    %37 = vector.shape_cast %36 : vector<1x1x128xf32> to vector<1x128xf32>
    %38 = vector.broadcast %37 : vector<1x128xf32> to vector<8x128xf32>
    %39 = arith.addf %35, %38 : vector<8x128xf32>
    %cst_32 = arith.constant 0.000000e+00 : f32
    %40 = vector.broadcast %cst_32 : f32 to vector<8x128xf32>
    %41 = arith.maximumf %39, %40 : vector<8x128xf32>
    %42 = arith.truncf %41 : vector<8x128xf32> to vector<8x128xbf16>
    %c0_33 = arith.constant 0 : index
    %c0_34 = arith.constant 0 : index
    %c0_35 = arith.constant 0 : index
    %43 = vector.load %arg12[%c0_33, %c0_34, %c0_35] : memref<1x128x8xbf16, #tpu.memory_space<vmem>>, vector<1x128x8xbf16>
    %44 = vector.shape_cast %43 : vector<1x128x8xbf16> to vector<128x8xbf16>
    %cst_36 = arith.constant dense<0.000000e+00> : vector<8x8xf32>
    %45 = tpu.matmul %42, %44, %cst_36 {dimension_numbers = #tpu.dot_dimension_numbers<[1], [0], [0], [1], [0, 0, 1, 1], [], []>} : vector<8x128xbf16>, vector<128x8xbf16>, vector<8x8xf32> -> vector<8x8xf32>
    %c0_37 = arith.constant 0 : index
    %c0_38 = arith.constant 0 : index
    %c0_39 = arith.constant 0 : index
    %46 = vector.load %arg13[%c0_37, %c0_38, %c0_39] : memref<1x1x8xf32, #tpu.memory_space<vmem>>, vector<1x1x8xf32>
    %47 = vector.shape_cast %46 : vector<1x1x8xf32> to vector<1x8xf32>
    %48 = vector.broadcast %47 : vector<1x8xf32> to vector<8x8xf32>
    %49 = arith.addf %45, %48 : vector<8x8xf32>
    %c0_40 = arith.constant 0 : index
    %c0_41 = arith.constant 0 : index
    %c0_42 = arith.constant 0 : index
    %50 = vector.load %arg14[%c0_40, %c0_41, %c0_42] : memref<1x8x8xf32, #tpu.memory_space<vmem>>, vector<1x8x8xf32>
    %51 = vector.shape_cast %50 : vector<1x8x8xf32> to vector<8x8xf32>
    %52 = vector.shape_cast %49 : vector<8x8xf32> to vector<1x8x8xf32>
    tpu.vector_store %arg14[%c0_40, %c0_41, %c0_42], %52 {strides = array<i32>} : memref<1x8x8xf32, #tpu.memory_space<vmem>>, vector<1x8x8xf32>,
    return
  }
  func.func @transform_0(%arg0: i32, %arg1: i32) -> (i32, i32) {
    %c0_i32 = arith.constant 0 : i32
    %c0_i32_0 = arith.constant 0 : i32
    return %arg1, %c0_i32 : i32, i32
  }
  func.func @transform_1(%arg0: i32, %arg1: i32) -> (i32, i32, i32) {
    %c0_i32 = arith.constant 0 : i32
    %c0_i32_0 = arith.constant 0 : i32
    %c0_i32_1 = arith.constant 0 : i32
    return %arg0, %c0_i32, %c0_i32_0 : i32, i32, i32
  }
  func.func @transform_2(%arg0: i32, %arg1: i32) -> (i32, i32, i32) {
    %c0_i32 = arith.constant 0 : i32
    %c0_i32_0 = arith.constant 0 : i32
    %c0_i32_1 = arith.constant 0 : i32
    return %arg0, %c0_i32, %c0_i32_0 : i32, i32, i32
  }
  func.func @transform_3(%arg0: i32, %arg1: i32) -> (i32, i32, i32) {
    %c0_i32 = arith.constant 0 : i32
    %c0_i32_0 = arith.constant 0 : i32
    %c0_i32_1 = arith.constant 0 : i32
    return %arg0, %c0_i32, %c0_i32_0 : i32, i32, i32
  }
  func.func @transform_4(%arg0: i32, %arg1: i32) -> (i32, i32, i32) {
    %c0_i32 = arith.constant 0 : i32
    %c0_i32_0 = arith.constant 0 : i32
    %c0_i32_1 = arith.constant 0 : i32
    return %arg0, %c0_i32, %c0_i32_0 : i32, i32, i32
  }
  func.func @transform_5(%arg0: i32, %arg1: i32) -> (i32, i32, i32) {
    %c0_i32 = arith.constant 0 : i32
    %c0_i32_0 = arith.constant 0 : i32
    %c0_i32_1 = arith.constant 0 : i32
    return %arg0, %c0_i32, %c0_i32_0 : i32, i32, i32
  }
  func.func @transform_6(%arg0: i32, %arg1: i32) -> (i32, i32, i32) {
    %c0_i32 = arith.constant 0 : i32
    %c0_i32_0 = arith.constant 0 : i32
    %c0_i32_1 = arith.constant 0 : i32
    return %arg0, %c0_i32, %c0_i32_0 : i32, i32, i32
  }
  func.func @transform_7(%arg0: i32, %arg1: i32) -> (i32, i32, i32) {
    %c0_i32 = arith.constant 0 : i32
    %c0_i32_0 = arith.constant 0 : i32
    %c0_i32_1 = arith.constant 0 : i32
    return %arg0, %c0_i32, %c0_i32_0 : i32, i32, i32
  }
  func.func @transform_8(%arg0: i32, %arg1: i32) -> (i32, i32, i32) {
    %c0_i32 = arith.constant 0 : i32
    %c0_i32_0 = arith.constant 0 : i32
    %c0_i32_1 = arith.constant 0 : i32
    return %arg0, %c0_i32, %c0_i32_0 : i32, i32, i32
  }
  func.func @transform_9(%arg0: i32, %arg1: i32) -> (i32, i32, i32) {
    %c0_i32 = arith.constant 0 : i32
    %c0_i32_0 = arith.constant 0 : i32
    %c0_i32_1 = arith.constant 0 : i32
    return %arg0, %c0_i32, %c0_i32_0 : i32, i32, i32
  }
  func.func @transform_10(%arg0: i32, %arg1: i32) -> (i32, i32, i32) {
    %c0_i32 = arith.constant 0 : i32
    %c0_i32_0 = arith.constant 0 : i32
    %c0_i32_1 = arith.constant 0 : i32
    return %arg0, %c0_i32, %c0_i32_0 : i32, i32, i32
  }
  func.func @transform_11(%arg0: i32, %arg1: i32) -> (i32, i32, i32) {
    %c0_i32 = arith.constant 0 : i32
    %c0_i32_0 = arith.constant 0 : i32
    %c0_i32_1 = arith.constant 0 : i32
    return %arg0, %c0_i32, %c0_i32_0 : i32, i32, i32
  }
  func.func @transform_12(%arg0: i32, %arg1: i32) -> (i32, i32, i32) {
    %c0_i32 = arith.constant 0 : i32
    %c0_i32_0 = arith.constant 0 : i32
    return %arg0, %arg1, %c0_i32 : i32, i32, i32
  }
}

</mosaic_0001>

<llo_original>
// kernel: tpu_custom_call.1
$region0: #{tpu_custom_call.1}
  #allocation0 [shape = 'u32[]', space=smem, size = 0x4, offset = 0x4, fixed_abs, tag = 'smem constant byte address 0x4 - core index']
  #allocation1 [shape = 'u32[144,128]{1,0:T(1,128)}', space=vmem, size = 0x12000, scoped, tag = 'internal scratch']
  %s0 = inlined_call_operand.hbm [shape: bf16[8,1024], index: 0, kind: input, shape index: {}]
  %s1 = inlined_call_operand.hbm [shape: bf16[2,1024,512], index: 1, kind: input, shape index: {}]
  %s2 = inlined_call_operand.hbm [shape: f32[2,1,512], index: 2, kind: input, shape index: {}]
  %s3 = inlined_call_operand.hbm [shape: f32[2,1,512], index: 3, kind: input, shape index: {}]
  %s4 = inlined_call_operand.hbm [shape: bf16[2,512,256], index: 4, kind: input, shape index: {}]
  %s5 = inlined_call_operand.hbm [shape: f32[2,1,256], index: 5, kind: input, shape index: {}]
  %s6 = inlined_call_operand.hbm [shape: f32[2,1,256], index: 6, kind: input, shape index: {}]
  %s7 = inlined_call_operand.hbm [shape: bf16[2,256,128], index: 7, kind: input, shape index: {}]
  %s8 = inlined_call_operand.hbm [shape: f32[2,1,128], index: 8, kind: input, shape index: {}]
  %s9 = inlined_call_operand.hbm [shape: f32[2,1,128], index: 9, kind: input, shape index: {}]
  %s10 = inlined_call_operand.vmem [shape: bf16[2,128,8], index: 10, kind: input, shape index: {}]
  %s11 = inlined_call_operand.hbm [shape: f32[2,1,8], index: 11, kind: input, shape index: {}]
  %s12 = inlined_call_operand.hbm [shape: f32[2,8,8], index: 12, kind: output, shape index: {}]
  %s13 = sld [smem:[#allocation0]]
  $region125: #{tpu_custom_call.1} parent=0
    _
  %s15 = ssub.s32 1, %s13
  %s16 = scalar_select 0, %s15, %s13
  $region1: #{tpu_custom_call.1} parent=0
    #allocation2 [shape = 'u8[16384]{0}', space=vmem, size = 0x4000, scoped, tag = 'input window, operand 0, single buffered']
    #allocation3 [shape = 's32[2]{0}', space=sflag, size = 0x8, scoped, tag = 'scoped memory for tpu_custom_call.1']
    #allocation4 [shape = 's32[2]{0}', space=sflag, size = 0x8, scoped, tag = 'scoped memory for tpu_custom_call.1']
    #allocation5 [shape = 'u8[2097152]{0}', space=vmem, size = 0x200000, scoped, tag = 'input window, operand 1']
    #allocation6 [shape = 's32[2]{0}', space=sflag, size = 0x8, scoped, tag = 'scoped memory for tpu_custom_call.1']
    #allocation7 [shape = 'u8[4096]{0}', space=vmem, size = 0x1000, scoped, tag = 'input window, operand 2']
    #allocation8 [shape = 'u8[4096]{0}', space=vmem, size = 0x1000, scoped, tag = 'input window, operand 3']
    #allocation9 [shape = 's32[2]{0}', space=sflag, size = 0x8, scoped, tag = 'scoped memory for tpu_custom_call.1']
    #allocation10 [shape = 'u8[524288]{0}', space=vmem, size = 0x80000, scoped, tag = 'input window, operand 4']
    #allocation11 [shape = 'u8[2048]{0}', space=vmem, size = 0x800, scoped, tag = 'input window, operand 5']
    #allocation12 [shape = 's32[2]{0}', space=sflag, size = 0x8, scoped, tag = 'scoped memory for tpu_custom_call.1']
    #allocation13 [shape = 'u8[2048]{0}', space=vmem, size = 0x800, scoped, tag = 'input window, operand 6']
    #allocation14 [shape = 'u8[131072]{0}', space=vmem, size = 0x20000, scoped, tag = 'input window, operand 7']
    #allocation15 [shape = 's32[2]{0}', space=sflag, size = 0x8, scoped, tag = 'scoped memory for tpu_custom_call.1']
    #allocation16 [shape = 'u8[1024]{0}', space=vmem, size = 0x400, scoped, tag = 'input window, operand 8']
    #allocation17 [shape = 'u8[1024]{0}', space=vmem, size = 0x400, scoped, tag = 'input window, operand 9']
    #allocation18 [shape = 's32[2]{0}', space=sflag, size = 0x8, scoped, tag = 'scoped memory for tpu_custom_call.1']
    #allocation19 [shape = 'u8[1024]{0}', space=vmem, size = 0x400, scoped, tag = 'input window, operand 11']
    #allocation20 [shape = 'u8[8192]{0}', space=vmem, size = 0x2000, scoped, tag = 'output window, operand 0']
    %17 = vsyncpa [#allocation3], 0
    %18 = vsyncpa [#allocation6], 0
    %s19 = scalar_lea.sflag [#allocation6], 1
    %20 = vsyncpa %s19, 0
    %21 = vsyncpa [#allocation9], 0
    %s22 = scalar_lea.sflag [#allocation9], 1
    %23 = vsyncpa %s22, 0
    %24 = vsyncpa [#allocation12], 0
    %s25 = scalar_lea.sflag [#allocation12], 1
    %26 = vsyncpa %s25, 0
    %27 = vsyncpa [#allocation15], 0
    %s28 = scalar_lea.sflag [#allocation15], 1
    %29 = vsyncpa %s28, 0
    %30 = vsyncpa [#allocation18], 0
    %s31 = scalar_lea.sflag [#allocation18], 1
    %32 = vsyncpa %s31, 0
    %33 = vsyncpa [#allocation4], 0
    %s34 = scalar_lea.sflag [#allocation4], 1
    %35 = vsyncpa %s34, 0
    loop: start=0, step=1, limit=4
    $region2: #{tpu_custom_call.1} parent=1 // loop_pre_header
      _
    $region3: #{tpu_custom_call.1} parent=1 // loop_header
      %s37 = sphi 0, %s41
      %p38 = scmp.ge.s32.totalorder %s37, 4
      %s44 = sphi 0, %s56
      %s45 = sphi 0, %s52
      %s46 = sphi 0, %s44
      %s47 = sphi 0, %s45
      %s48 = sphi 0, %s46
      %s49 = sphi 0, %s47
      %s61 = sphi 0, %s63
      %s64 = sphi 0, %s61
      %s65 = sphi 0, %s64
      %s81 = sphi 0, %s65
      %s89 = sphi 0, %s91
      %s92 = sphi 0, %s89
      %s93 = sphi 0, %s92
      %s109 = sphi 0, %s93
      %s117 = sphi 0, %s119
      %s120 = sphi 0, %s117
      %s121 = sphi 0, %s120
      %s137 = sphi 0, %s121
      %s145 = sphi 0, %s147
      %s148 = sphi 0, %s145
      %s149 = sphi 0, %s148
      %s165 = sphi 0, %s149
      %s173 = sphi 0, %s175
      %s176 = sphi 0, %s173
      %s177 = sphi 0, %s176
      %s193 = sphi 0, %s177
      %s201 = sphi 0, %s203
      %s204 = sphi 0, %s201
      %s205 = sphi 0, %s204
      %s221 = sphi 0, %s205
      %s229 = sphi 0, %s231
      %s232 = sphi 0, %s229
      %s233 = sphi 0, %s232
      %s249 = sphi 0, %s233
      %s257 = sphi 0, %s259
      %s260 = sphi 0, %s257
      %s261 = sphi 0, %s260
      %s277 = sphi 0, %s261
      %s285 = sphi 0, %s287
      %s288 = sphi 0, %s285
      %s289 = sphi 0, %s288
      %s305 = sphi 0, %s289
      %s313 = sphi 0, %s315
      %s316 = sphi 0, %s313
      %s317 = sphi 0, %s316
      %s333 = sphi 0, %s317
      %s341 = sphi 0, %s343
      %s344 = sphi 0, %s341
      %s345 = sphi 0, %s344
      %s361 = sphi 0, %s345
      %s369 = sphi 0, %s371
      %s372 = sphi 0, %s369
      %s373 = sphi 0, %s372
      %s389 = sphi 0, %s373
      %s399 = sphi 0, %s401
      %s402 = sphi 0, %s399
      %s403 = sphi 0, %s402
      %s419 = sphi 0, %s403
    $region4: #{tpu_custom_call.1} parent=1 // loop_header_branch
      %40 = sbr.rel (%p38) target = $region8
    $region5: #{tpu_custom_call.1} parent=1 // loop_body
      %s42 = ssub.s32 %s37, 1
      %s43 = ssub.s32 %s37, 2
      %s50 = sadd.s32 1, %s45
      %p51 = scmp.ge.s32.totalorder %s50, 1
      %s52 = scalar_select %p51, 0, %s50
      %s53 = sadd.s32 1, %s44
      %s54 = scalar_select %p51, %s53, %s44
      %p55 = scmp.ge.s32.totalorder %s54, 2
      %s56 = scalar_select %p55, 0, %s54
      %s57 = sadd.s32 %s45, %s16
      %s58 = sadd.s32 %s52, %s16
      %s59 = ssub.s32 %s57, %s58
      %p60 = scmp.eq.s32.totalorder %s59, 0
      %s62 = sadd.s32 %s61, 1
      %s63 = scalar_select %p60, %s61, %s62
      %p66 = pneg %p60
      %p67 = scmp.eq.s32.totalorder %s37, 1
      %p68 = por %p66, %p67
      %p69 = scmp.ne.s32.totalorder %s61, %s64
      %p70 = scmp.eq.s32.totalorder %s37, 0
      %p71 = por %p69, %p70
      %p72 = scmp.ne.s32.totalorder %s61, %s64
      %p73 = scmp.eq.s32.totalorder %s42, 1
      %p74 = por %p72, %p73
      %p75 = scmp.ne.s32.totalorder %s64, %s65
      %p76 = scmp.eq.s32.totalorder %s42, 0
      %p77 = por %p75, %p76
      %p78 = scmp.ne.s32.totalorder %s64, %s65
      %p79 = scmp.eq.s32.totalorder %s43, 1
      %p80 = por %p78, %p79
      %p82 = scmp.ne.s32.totalorder %s65, %s81
      %p83 = scmp.eq.s32.totalorder %s43, 0
      %p84 = por %p82, %p83
      %s85 = sadd.s32 %s45, %s16
      %s86 = sadd.s32 %s52, %s16
      %s87 = ssub.s32 %s44, %s56
      %p88 = scmp.eq.s32.totalorder %s87, 0
      %s90 = sadd.s32 %s89, 1
      %s91 = scalar_select %p88, %s89, %s90
      %p94 = pneg %p88
      %p95 = scmp.eq.s32.totalorder %s37, 1
      %p96 = por %p94, %p95
      %p97 = scmp.ne.s32.totalorder %s89, %s92
      %p98 = scmp.eq.s32.totalorder %s37, 0
      %p99 = por %p97, %p98
      %p100 = scmp.ne.s32.totalorder %s89, %s92
      %p101 = scmp.eq.s32.totalorder %s42, 1
      %p102 = por %p100, %p101
      %p103 = scmp.ne.s32.totalorder %s92, %s93
      %p104 = scmp.eq.s32.totalorder %s42, 0
      %p105 = por %p103, %p104
      %p106 = scmp.ne.s32.totalorder %s92, %s93
      %p107 = scmp.eq.s32.totalorder %s43, 1
      %p108 = por %p106, %p107
      %p110 = scmp.ne.s32.totalorder %s93, %s109
      %p111 = scmp.eq.s32.totalorder %s43, 0
      %p112 = por %p110, %p111
      %s113 = sadd.s32 %s45, %s16
      %s114 = sadd.s32 %s52, %s16
      %s115 = ssub.s32 %s44, %s56
      %p116 = scmp.eq.s32.totalorder %s115, 0
      %s118 = sadd.s32 %s117, 1
      %s119 = scalar_select %p116, %s117, %s118
      %p122 = pneg %p116
      %p123 = scmp.eq.s32.totalorder %s37, 1
      %p124 = por %p122, %p123
      %p125 = scmp.ne.s32.totalorder %s117, %s120
      %p126 = scmp.eq.s32.totalorder %s37, 0
      %p127 = por %p125, %p126
      %p128 = scmp.ne.s32.totalorder %s117, %s120
      %p129 = scmp.eq.s32.totalorder %s42, 1
      %p130 = por %p128, %p129
      %p131 = scmp.ne.s32.totalorder %s120, %s121
      %p132 = scmp.eq.s32.totalorder %s42, 0
      %p133 = por %p131, %p132
      %p134 = scmp.ne.s32.totalorder %s120, %s121
      %p135 = scmp.eq.s32.totalorder %s43, 1
      %p136 = por %p134, %p135
      %p138 = scmp.ne.s32.totalorder %s121, %s137
      %p139 = scmp.eq.s32.totalorder %s43, 0
      %p140 = por %p138, %p139
      %s141 = sadd.s32 %s45, %s16
      %s142 = sadd.s32 %s52, %s16
      %s143 = ssub.s32 %s44, %s56
      %p144 = scmp.eq.s32.totalorder %s143, 0
      %s146 = sadd.s32 %s145, 1
      %s147 = scalar_select %p144, %s145, %s146
      %p150 = pneg %p144
      %p151 = scmp.eq.s32.totalorder %s37, 1
      %p152 = por %p150, %p151
      %p153 = scmp.ne.s32.totalorder %s145, %s148
      %p154 = scmp.eq.s32.totalorder %s37, 0
      %p155 = por %p153, %p154
      %p156 = scmp.ne.s32.totalorder %s145, %s148
      %p157 = scmp.eq.s32.totalorder %s42, 1
      %p158 = por %p156, %p157
      %p159 = scmp.ne.s32.totalorder %s148, %s149
      %p160 = scmp.eq.s32.totalorder %s42, 0
      %p161 = por %p159, %p160
      %p162 = scmp.ne.s32.totalorder %s148, %s149
      %p163 = scmp.eq.s32.totalorder %s43, 1
      %p164 = por %p162, %p163
      %p166 = scmp.ne.s32.totalorder %s149, %s165
      %p167 = scmp.eq.s32.totalorder %s43, 0
      %p168 = por %p166, %p167
      %s169 = sadd.s32 %s45, %s16
      %s170 = sadd.s32 %s52, %s16
      %s171 = ssub.s32 %s44, %s56
      %p172 = scmp.eq.s32.totalorder %s171, 0
      %s174 = sadd.s32 %s173, 1
      %s175 = scalar_select %p172, %s173, %s174
      %p178 = pneg %p172
      %p179 = scmp.eq.s32.totalorder %s37, 1
      %p180 = por %p178, %p179
      %p181 = scmp.ne.s32.totalorder %s173, %s176
      %p182 = scmp.eq.s32.totalorder %s37, 0
      %p183 = por %p181, %p182
      %p184 = scmp.ne.s32.totalorder %s173, %s176
      %p185 = scmp.eq.s32.totalorder %s42, 1
      %p186 = por %p184, %p185
      %p187 = scmp.ne.s32.totalorder %s176, %s177
      %p188 = scmp.eq.s32.totalorder %s42, 0
      %p189 = por %p187, %p188
      %p190 = scmp.ne.s32.totalorder %s176, %s177
      %p191 = scmp.eq.s32.totalorder %s43, 1
      %p192 = por %p190, %p191
      %p194 = scmp.ne.s32.totalorder %s177, %s193
      %p195 = scmp.eq.s32.totalorder %s43, 0
      %p196 = por %p194, %p195
      %s197 = sadd.s32 %s45, %s16
      %s198 = sadd.s32 %s52, %s16
      %s199 = ssub.s32 %s44, %s56
      %p200 = scmp.eq.s32.totalorder %s199, 0
      %s202 = sadd.s32 %s201, 1
      %s203 = scalar_select %p200, %s201, %s202
      %p206 = pneg %p200
      %p207 = scmp.eq.s32.totalorder %s37, 1
      %p208 = por %p206, %p207
      %p209 = scmp.ne.s32.totalorder %s201, %s204
      %p210 = scmp.eq.s32.totalorder %s37, 0
      %p211 = por %p209, %p210
      %p212 = scmp.ne.s32.totalorder %s201, %s204
      %p213 = scmp.eq.s32.totalorder %s42, 1
      %p214 = por %p212, %p213
      %p215 = scmp.ne.s32.totalorder %s204, %s205
      %p216 = scmp.eq.s32.totalorder %s42, 0
      %p217 = por %p215, %p216
      %p218 = scmp.ne.s32.totalorder %s204, %s205
      %p219 = scmp.eq.s32.totalorder %s43, 1
      %p220 = por %p218, %p219
      %p222 = scmp.ne.s32.totalorder %s205, %s221
      %p223 = scmp.eq.s32.totalorder %s43, 0
      %p224 = por %p222, %p223
      %s225 = sadd.s32 %s45, %s16
      %s226 = sadd.s32 %s52, %s16
      %s227 = ssub.s32 %s44, %s56
      %p228 = scmp.eq.s32.totalorder %s227, 0
      %s230 = sadd.s32 %s229, 1
      %s231 = scalar_select %p228, %s229, %s230
      %p234 = pneg %p228
      %p235 = scmp.eq.s32.totalorder %s37, 1
      %p236 = por %p234, %p235
      %p237 = scmp.ne.s32.totalorder %s229, %s232
      %p238 = scmp.eq.s32.totalorder %s37, 0
      %p239 = por %p237, %p238
      %p240 = scmp.ne.s32.totalorder %s229, %s232
      %p241 = scmp.eq.s32.totalorder %s42, 1
      %p242 = por %p240, %p241
      %p243 = scmp.ne.s32.totalorder %s232, %s233
      %p244 = scmp.eq.s32.totalorder %s42, 0
      %p245 = por %p243, %p244
      %p246 = scmp.ne.s32.totalorder %s232, %s233
      %p247 = scmp.eq.s32.totalorder %s43, 1
      %p248 = por %p246, %p247
      %p250 = scmp.ne.s32.totalorder %s233, %s249
      %p251 = scmp.eq.s32.totalorder %s43, 0
      %p252 = por %p250, %p251
      %s253 = sadd.s32 %s45, %s16
      %s254 = sadd.s32 %s52, %s16
      %s255 = ssub.s32 %s44, %s56
      %p256 = scmp.eq.s32.totalorder %s255, 0
      %s258 = sadd.s32 %s257, 1
      %s259 = scalar_select %p256, %s257, %s258
      %p262 = pneg %p256
      %p263 = scmp.eq.s32.totalorder %s37, 1
      %p264 = por %p262, %p263
      %p265 = scmp.ne.s32.totalorder %s257, %s260
      %p266 = scmp.eq.s32.totalorder %s37, 0
      %p267 = por %p265, %p266
      %p268 = scmp.ne.s32.totalorder %s257, %s260
      %p269 = scmp.eq.s32.totalorder %s42, 1
      %p270 = por %p268, %p269
      %p271 = scmp.ne.s32.totalorder %s260, %s261
      %p272 = scmp.eq.s32.totalorder %s42, 0
      %p273 = por %p271, %p272
      %p274 = scmp.ne.s32.totalorder %s260, %s261
      %p275 = scmp.eq.s32.totalorder %s43, 1
      %p276 = por %p274, %p275
      %p278 = scmp.ne.s32.totalorder %s261, %s277
      %p279 = scmp.eq.s32.totalorder %s43, 0
      %p280 = por %p278, %p279
      %s281 = sadd.s32 %s45, %s16
      %s282 = sadd.s32 %s52, %s16
      %s283 = ssub.s32 %s44, %s56
      %p284 = scmp.eq.s32.totalorder %s283, 0
      %s286 = sadd.s32 %s285, 1
      %s287 = scalar_select %p284, %s285, %s286
      %p290 = pneg %p284
      %p291 = scmp.eq.s32.totalorder %s37, 1
      %p292 = por %p290, %p291
      %p293 = scmp.ne.s32.totalorder %s285, %s288
      %p294 = scmp.eq.s32.totalorder %s37, 0
      %p295 = por %p293, %p294
      %p296 = scmp.ne.s32.totalorder %s285, %s288
      %p297 = scmp.eq.s32.totalorder %s42, 1
      %p298 = por %p296, %p297
      %p299 = scmp.ne.s32.totalorder %s288, %s289
      %p300 = scmp.eq.s32.totalorder %s42, 0
      %p301 = por %p299, %p300
      %p302 = scmp.ne.s32.totalorder %s288, %s289
      %p303 = scmp.eq.s32.totalorder %s43, 1
      %p304 = por %p302, %p303
      %p306 = scmp.ne.s32.totalorder %s289, %s305
      %p307 = scmp.eq.s32.totalorder %s43, 0
      %p308 = por %p306, %p307
      %s309 = sadd.s32 %s45, %s16
      %s310 = sadd.s32 %s52, %s16
      %s311 = ssub.s32 %s44, %s56
      %p312 = scmp.eq.s32.totalorder %s311, 0
      %s314 = sadd.s32 %s313, 1
      %s315 = scalar_select %p312, %s313, %s314
      %p318 = pneg %p312
      %p319 = scmp.eq.s32.totalorder %s37, 1
      %p320 = por %p318, %p319
      %p321 = scmp.ne.s32.totalorder %s313, %s316
      %p322 = scmp.eq.s32.totalorder %s37, 0
      %p323 = por %p321, %p322
      %p324 = scmp.ne.s32.totalorder %s313, %s316
      %p325 = scmp.eq.s32.totalorder %s42, 1
      %p326 = por %p324, %p325
      %p327 = scmp.ne.s32.totalorder %s316, %s317
      %p328 = scmp.eq.s32.totalorder %s42, 0
      %p329 = por %p327, %p328
      %p330 = scmp.ne.s32.totalorder %s316, %s317
      %p331 = scmp.eq.s32.totalorder %s43, 1
      %p332 = por %p330, %p331
      %p334 = scmp.ne.s32.totalorder %s317, %s333
      %p335 = scmp.eq.s32.totalorder %s43, 0
      %p336 = por %p334, %p335
      %s337 = sadd.s32 %s45, %s16
      %s338 = sadd.s32 %s52, %s16
      %s339 = ssub.s32 %s44, %s56
      %p340 = scmp.eq.s32.totalorder %s339, 0
      %s342 = sadd.s32 %s341, 1
      %s343 = scalar_select %p340, %s341, %s342
      %p346 = pneg %p340
      %p347 = scmp.eq.s32.totalorder %s37, 1
      %p348 = por %p346, %p347
      %p349 = scmp.ne.s32.totalorder %s341, %s344
      %p350 = scmp.eq.s32.totalorder %s37, 0
      %p351 = por %p349, %p350
      %p352 = scmp.ne.s32.totalorder %s341, %s344
      %p353 = scmp.eq.s32.totalorder %s42, 1
      %p354 = por %p352, %p353
      %p355 = scmp.ne.s32.totalorder %s344, %s345
      %p356 = scmp.eq.s32.totalorder %s42, 0
      %p357 = por %p355, %p356
      %p358 = scmp.ne.s32.totalorder %s344, %s345
      %p359 = scmp.eq.s32.totalorder %s43, 1
      %p360 = por %p358, %p359
      %p362 = scmp.ne.s32.totalorder %s345, %s361
      %p363 = scmp.eq.s32.totalorder %s43, 0
      %p364 = por %p362, %p363
      %s365 = sadd.s32 %s45, %s16
      %s366 = sadd.s32 %s52, %s16
      %s367 = ssub.s32 %s44, %s56
      %p368 = scmp.eq.s32.totalorder %s367, 0
      %s370 = sadd.s32 %s369, 1
      %s371 = scalar_select %p368, %s369, %s370
      %p374 = pneg %p368
      %p375 = scmp.eq.s32.totalorder %s37, 1
      %p376 = por %p374, %p375
      %p377 = scmp.ne.s32.totalorder %s369, %s372
      %p378 = scmp.eq.s32.totalorder %s37, 0
      %p379 = por %p377, %p378
      %p380 = scmp.ne.s32.totalorder %s369, %s372
      %p381 = scmp.eq.s32.totalorder %s42, 1
      %p382 = por %p380, %p381
      %p383 = scmp.ne.s32.totalorder %s372, %s373
      %p384 = scmp.eq.s32.totalorder %s42, 0
      %p385 = por %p383, %p384
      %p386 = scmp.ne.s32.totalorder %s372, %s373
      %p387 = scmp.eq.s32.totalorder %s43, 1
      %p388 = por %p386, %p387
      %p390 = scmp.ne.s32.totalorder %s373, %s389
      %p391 = scmp.eq.s32.totalorder %s43, 0
      %p392 = por %p390, %p391
      %s393 = sadd.s32 %s45, %s16
      %s394 = sadd.s32 %s52, %s16
      %s395 = ssub.s32 %s44, %s56
      %s396 = ssub.s32 %s393, %s394
      %s397 = sor.u32 %s395, %s396
      %p398 = scmp.eq.s32.totalorder %s397, 0
      %s400 = sadd.s32 %s399, 1
      %s401 = scalar_select %p398, %s399, %s400
      %p404 = pneg %p398
      %p405 = scmp.eq.s32.totalorder %s37, 1
      %p406 = por %p404, %p405
      %p407 = scmp.ne.s32.totalorder %s399, %s402
      %p408 = scmp.eq.s32.totalorder %s37, 0
      %p409 = por %p407, %p408
      %p410 = scmp.ne.s32.totalorder %s399, %s402
      %p411 = scmp.eq.s32.totalorder %s42, 1
      %p412 = por %p410, %p411
      %p413 = scmp.ne.s32.totalorder %s402, %s403
      %p414 = scmp.eq.s32.totalorder %s42, 0
      %p415 = por %p413, %p414
      %p416 = scmp.ne.s32.totalorder %s402, %s403
      %p417 = scmp.eq.s32.totalorder %s43, 1
      %p418 = por %p416, %p417
      %p420 = scmp.ne.s32.totalorder %s403, %s419
      %p421 = scmp.eq.s32.totalorder %s43, 0
      %p422 = por %p420, %p421
      %p423 = scmp.le.s32.totalorder 1, %s37
      %p424 = scmp.lt.s32.totalorder %s37, 3
      %p425 = pnand %p423, %p424
      %p426 = pneg %p425
      // Predicated region
      $region9: #{tpu_custom_call.1} parent=5 // pred_check
        _
      $region10: #{tpu_custom_call.1} parent=5 // pred_check_branch
        %428 = sbr.rel (%p425) target = $region12
      $region11: #{tpu_custom_call.1} parent=5 // pred_region
        %s429 = ssub.s32 %s37, 1
        // Predicated region
        $region13: #{tpu_custom_call.1} parent=11 // pred_check
          %p430 = pneg %p77
        $region14: #{tpu_custom_call.1} parent=11 // pred_check_branch
          %432 = sbr.rel (%p430) target = $region16
        $region15: #{tpu_custom_call.1} parent=11 // pred_region
          %s433 = sadd.s32 %s47, %s16
          %s435 = ssub.s32 512, 512
          %436 = vsyncadd [#allocation3], %s435
          %s437 = smul.addr %s433, 8
          %s438 = smul.addr %s437, 64
          %s439 = scalar_lea.hbm %s0, %s438
          %s441 = sshll.u32 [#allocation2], 4
          %s442 = int_to_ptr.vmem [resolvable:$true] %s441
          %444 = dma.hbm_to_vmem [thread:$0]  %s439, 512, %s442, [#allocation3]
        $region16: #{tpu_custom_call.1} parent=11 // pred_fallthru
          _
      $region12: #{tpu_custom_call.1} parent=5 // pred_fallthru
        _
      %p445 = scmp.lt.s32.totalorder %s37, 2
      // Predicated region
      $region17: #{tpu_custom_call.1} parent=5 // pred_check
        %p446 = pneg %p445
      $region18: #{tpu_custom_call.1} parent=5 // pred_check_branch
        %448 = sbr.rel (%p446) target = $region20
      $region19: #{tpu_custom_call.1} parent=5 // pred_region
        // Predicated region
        $region21: #{tpu_custom_call.1} parent=19 // pred_check
          %p449 = pneg %p99
        $region22: #{tpu_custom_call.1} parent=19 // pred_check_branch
          %451 = sbr.rel (%p449) target = $region24
        $region23: #{tpu_custom_call.1} parent=19 // pred_region
          %s452 = sand.u32 %s37, 1
          %s453 = scalar_lea.sflag [#allocation6], %s452
          %s454 = sand.u32 %s89, 1
          %s455 = smul.addr %s454, 2048
          %s456 = scalar_lea.vmem [#allocation5], %s455
          %s457 = sadd.s32 %s45, %s16
          %s459 = ssub.s32 32768, 32768
          %460 = vsyncadd %s453, %s459
          %s461 = smul.addr %s44, 512
          %s462 = smul.addr %s461, 64
          %s463 = scalar_lea.hbm %s1, %s462
          %s464 = sshll.u32 %s456, 4
          %s465 = int_to_ptr.vmem [resolvable:$true] %s464
          %470 = dma.hbm_to_vmem [thread:$0]  %s463, 32768, %s465, %s453, 256, 256, 16
        $region24: #{tpu_custom_call.1} parent=19 // pred_fallthru
          _
        // Predicated region
        $region25: #{tpu_custom_call.1} parent=19 // pred_check
          %p471 = pneg %p127
        $region26: #{tpu_custom_call.1} parent=19 // pred_check_branch
          %473 = sbr.rel (%p471) target = $region28
        $region27: #{tpu_custom_call.1} parent=19 // pred_region
          %s474 = sand.u32 %s37, 1
          %s475 = scalar_lea.sflag [#allocation6], %s474
          %s476 = sand.u32 %s117, 1
          %s477 = smul.addr %s476, 4
          %s478 = scalar_lea.vmem [#allocation7], %s477
          %s479 = sadd.s32 %s45, %s16
          %s481 = ssub.s32 64, 64
          %482 = vsyncadd %s475, %s481
          %s483 = smul.addr %s44, 4
          %s484 = smul.addr %s483, 16
          %s485 = scalar_lea.hbm %s2, %s484
          %s487 = sshll.u32 %s478, 4
          %s488 = int_to_ptr.vmem [resolvable:$true] %s487
          %490 = dma.hbm_to_vmem [thread:$0]  %s485, 64, %s488, %s475
        $region28: #{tpu_custom_call.1} parent=19 // pred_fallthru
          _
        // Predicated region
        $region29: #{tpu_custom_call.1} parent=19 // pred_check
          %p491 = pneg %p155
        $region30: #{tpu_custom_call.1} parent=19 // pred_check_branch
          %493 = sbr.rel (%p491) target = $region32
        $region31: #{tpu_custom_call.1} parent=19 // pred_region
          %s494 = sand.u32 %s37, 1
          %s495 = scalar_lea.sflag [#allocation9], %s494
          %s496 = sand.u32 %s145, 1
          %s497 = smul.addr %s496, 4
          %s498 = scalar_lea.vmem [#allocation8], %s497
          %s499 = sadd.s32 %s45, %s16
          %s501 = ssub.s32 64, 64
          %502 = vsyncadd %s495, %s501
          %s503 = smul.addr %s44, 4
          %s504 = smul.addr %s503, 16
          %s505 = scalar_lea.hbm %s3, %s504
          %s507 = sshll.u32 %s498, 4
          %s508 = int_to_ptr.vmem [resolvable:$true] %s507
          %510 = dma.hbm_to_vmem [thread:$0]  %s505, 64, %s508, %s495
        $region32: #{tpu_custom_call.1} parent=19 // pred_fallthru
          _
        // Predicated region
        $region33: #{tpu_custom_call.1} parent=19 // pred_check
          %p511 = pneg %p183
        $region34: #{tpu_custom_call.1} parent=19 // pred_check_branch
          %513 = sbr.rel (%p511) target = $region36
        $region35: #{tpu_custom_call.1} parent=19 // pred_region
          %s514 = sand.u32 %s37, 1
          %s515 = scalar_lea.sflag [#allocation9], %s514
          %s516 = sand.u32 %s173, 1
          %s517 = smul.addr %s516, 512
          %s518 = scalar_lea.vmem [#allocation10], %s517
          %s519 = sadd.s32 %s45, %s16
          %s521 = ssub.s32 8192, 8192
          %522 = vsyncadd %s515, %s521
          %s523 = smul.addr %s44, 128
          %s524 = smul.addr %s523, 64
          %s525 = scalar_lea.hbm %s4, %s524
          %s526 = sshll.u32 %s518, 4
          %s527 = int_to_ptr.vmem [resolvable:$true] %s526
          %532 = dma.hbm_to_vmem [thread:$0]  %s525, 8192, %s527, %s515, 128, 128, 8
        $region36: #{tpu_custom_call.1} parent=19 // pred_fallthru
          _
        // Predicated region
        $region37: #{tpu_custom_call.1} parent=19 // pred_check
          %p533 = pneg %p211
        $region38: #{tpu_custom_call.1} parent=19 // pred_check_branch
          %535 = sbr.rel (%p533) target = $region40
        $region39: #{tpu_custom_call.1} parent=19 // pred_region
          %s536 = sand.u32 %s37, 1
          %s537 = scalar_lea.sflag [#allocation12], %s536
          %s538 = sand.u32 %s201, 1
          %s539 = smul.addr %s538, 2
          %s540 = scalar_lea.vmem [#allocation11], %s539
          %s541 = sadd.s32 %s45, %s16
          %s543 = ssub.s32 32, 32
          %544 = vsyncadd %s537, %s543
          %s545 = smul.addr %s44, 2
          %s546 = smul.addr %s545, 16
          %s547 = scalar_lea.hbm %s5, %s546
          %s549 = sshll.u32 %s540, 4
          %s550 = int_to_ptr.vmem [resolvable:$true] %s549
          %552 = dma.hbm_to_vmem [thread:$0]  %s547, 32, %s550, %s537
        $region40: #{tpu_custom_call.1} parent=19 // pred_fallthru
          _
        // Predicated region
        $region41: #{tpu_custom_call.1} parent=19 // pred_check
          %p553 = pneg %p239
        $region42: #{tpu_custom_call.1} parent=19 // pred_check_branch
          %555 = sbr.rel (%p553) target = $region44
        $region43: #{tpu_custom_call.1} parent=19 // pred_region
          %s556 = sand.u32 %s37, 1
          %s557 = scalar_lea.sflag [#allocation12], %s556
          %s558 = sand.u32 %s229, 1
          %s559 = smul.addr %s558, 2
          %s560 = scalar_lea.vmem [#allocation13], %s559
          %s561 = sadd.s32 %s45, %s16
          %s563 = ssub.s32 32, 32
          %564 = vsyncadd %s557, %s563
          %s565 = smul.addr %s44, 2
          %s566 = smul.addr %s565, 16
          %s567 = scalar_lea.hbm %s6, %s566
          %s569 = sshll.u32 %s560, 4
          %s570 = int_to_ptr.vmem [resolvable:$true] %s569
          %572 = dma.hbm_to_vmem [thread:$0]  %s567, 32, %s570, %s557
        $region44: #{tpu_custom_call.1} parent=19 // pred_fallthru
          _
        // Predicated region
        $region45: #{tpu_custom_call.1} parent=19 // pred_check
          %p573 = pneg %p267
        $region46: #{tpu_custom_call.1} parent=19 // pred_check_branch
          %575 = sbr.rel (%p573) target = $region48
        $region47: #{tpu_custom_call.1} parent=19 // pred_region
          %s576 = sand.u32 %s37, 1
          %s577 = scalar_lea.sflag [#allocation15], %s576
          %s578 = sand.u32 %s257, 1
          %s579 = smul.addr %s578, 128
          %s580 = scalar_lea.vmem [#allocation14], %s579
          %s581 = sadd.s32 %s45, %s16
          %s583 = ssub.s32 2048, 2048
          %584 = vsyncadd %s577, %s583
          %s585 = smul.addr %s44, 32
          %s586 = smul.addr %s585, 64
          %s587 = scalar_lea.hbm %s7, %s586
          %s588 = sshll.u32 %s580, 4
          %s589 = int_to_ptr.vmem [resolvable:$true] %s588
          %594 = dma.hbm_to_vmem [thread:$0]  %s587, 2048, %s589, %s577, 64, 64, 4
        $region48: #{tpu_custom_call.1} parent=19 // pred_fallthru
          _
        // Predicated region
        $region49: #{tpu_custom_call.1} parent=19 // pred_check
          %p595 = pneg %p295
        $region50: #{tpu_custom_call.1} parent=19 // pred_check_branch
          %597 = sbr.rel (%p595) target = $region52
        $region51: #{tpu_custom_call.1} parent=19 // pred_region
          %s598 = sand.u32 %s37, 1
          %s599 = scalar_lea.sflag [#allocation15], %s598
          %s600 = sand.u32 %s285, 1
          %s601 = scalar_lea.vmem [#allocation16], %s600
          %s602 = sadd.s32 %s45, %s16
          %s604 = ssub.s32 16, 16
          %605 = vsyncadd %s599, %s604
          %s606 = smul.addr %s44, 16
          %s607 = scalar_lea.hbm %s8, %s606
          %s609 = sshll.u32 %s601, 4
          %s610 = int_to_ptr.vmem [resolvable:$true] %s609
          %612 = dma.hbm_to_vmem [thread:$0]  %s607, 16, %s610, %s599
        $region52: #{tpu_custom_call.1} parent=19 // pred_fallthru
          _
        // Predicated region
        $region53: #{tpu_custom_call.1} parent=19 // pred_check
          %p613 = pneg %p323
        $region54: #{tpu_custom_call.1} parent=19 // pred_check_branch
          %615 = sbr.rel (%p613) target = $region56
        $region55: #{tpu_custom_call.1} parent=19 // pred_region
          %s616 = sand.u32 %s37, 1
          %s617 = scalar_lea.sflag [#allocation18], %s616
          %s618 = sand.u32 %s313, 1
          %s619 = scalar_lea.vmem [#allocation17], %s618
          %s620 = sadd.s32 %s45, %s16
          %s622 = ssub.s32 16, 16
          %623 = vsyncadd %s617, %s622
          %s624 = smul.addr %s44, 16
          %s625 = scalar_lea.hbm %s9, %s624
          %s627 = sshll.u32 %s619, 4
          %s628 = int_to_ptr.vmem [resolvable:$true] %s627
          %630 = dma.hbm_to_vmem [thread:$0]  %s625, 16, %s628, %s617
        $region56: #{tpu_custom_call.1} parent=19 // pred_fallthru
          _
        // Predicated region
        $region57: #{tpu_custom_call.1} parent=19 // pred_check
          %p631 = pneg %p351
        $region58: #{tpu_custom_call.1} parent=19 // pred_check_branch
          %633 = sbr.rel (%p631) target = $region60
        $region59: #{tpu_custom_call.1} parent=19 // pred_region
          %s634 = sadd.s32 %s45, %s16
          %p635 = scmp.lt.s32.totalorder %s44, 1
          %s636 = scalar_select %p635, %s44, 1
          %s637 = smul.addr %s636, 16
          %s638 = smul.addr %s637, 4
          %s639 = scalar_lea.vmem %s10, %s638
          %s640 = sadd.s32 %s45, %s16
        $region60: #{tpu_custom_call.1} parent=19 // pred_fallthru
          _
        // Predicated region
        $region61: #{tpu_custom_call.1} parent=19 // pred_check
          %p641 = pneg %p379
        $region62: #{tpu_custom_call.1} parent=19 // pred_check_branch
          %643 = sbr.rel (%p641) target = $region64
        $region63: #{tpu_custom_call.1} parent=19 // pred_region
          %s644 = sand.u32 %s37, 1
          %s645 = scalar_lea.sflag [#allocation18], %s644
          %s646 = sand.u32 %s369, 1
          %s647 = scalar_lea.vmem [#allocation19], %s646
          %s648 = sadd.s32 %s45, %s16
          %s650 = ssub.s32 16, 16
          %651 = vsyncadd %s645, %s650
          %s652 = smul.addr %s44, 16
          %s653 = scalar_lea.hbm %s11, %s652
          %s655 = sshll.u32 %s647, 4
          %s656 = int_to_ptr.vmem [resolvable:$true] %s655
          %658 = dma.hbm_to_vmem [thread:$0]  %s653, 16, %s656, %s645
        $region64: #{tpu_custom_call.1} parent=19 // pred_fallthru
          _
      $region20: #{tpu_custom_call.1} parent=5 // pred_fallthru
        _
      %p659 = scmp.le.s32.totalorder 1, %s37
      %p660 = scmp.lt.s32.totalorder %s37, 3
      %p661 = pnand %p659, %p660
      %p662 = pneg %p661
      // Predicated region
      $region65: #{tpu_custom_call.1} parent=5 // pred_check
        _
      $region66: #{tpu_custom_call.1} parent=5 // pred_check_branch
        %664 = sbr.rel (%p661) target = $region68
      $region67: #{tpu_custom_call.1} parent=5 // pred_region
        %s665 = ssub.s32 %s37, 1
        // Predicated region
        $region69: #{tpu_custom_call.1} parent=67 // pred_check
          %p666 = pneg %p77
        $region70: #{tpu_custom_call.1} parent=67 // pred_check_branch
          %668 = sbr.rel (%p666) target = $region72
        $region71: #{tpu_custom_call.1} parent=67 // pred_region
          %669 = dma.done [#allocation3], 512
        $region72: #{tpu_custom_call.1} parent=67 // pred_fallthru
          _
        %s670 = sand.u32 %s42, 1
        %s671 = scalar_lea.sflag [#allocation6], %s670
        %s672 = sand.u32 %s92, 1
        %s673 = smul.addr %s672, 2048
        %s674 = scalar_lea.vmem [#allocation5], %s673
        // Predicated region
        $region73: #{tpu_custom_call.1} parent=67 // pred_check
          %p675 = pneg %p105
        $region74: #{tpu_custom_call.1} parent=67 // pred_check_branch
          %677 = sbr.rel (%p675) target = $region76
        $region75: #{tpu_custom_call.1} parent=67 // pred_region
          %678 = dma.done %s671, 32768
        $region76: #{tpu_custom_call.1} parent=67 // pred_fallthru
          _
        %s679 = sand.u32 %s42, 1
        %s680 = scalar_lea.sflag [#allocation6], %s679
        %s681 = sand.u32 %s120, 1
        %s682 = smul.addr %s681, 4
        %s683 = scalar_lea.vmem [#allocation7], %s682
        // Predicated region
        $region77: #{tpu_custom_call.1} parent=67 // pred_check
          %p684 = pneg %p133
        $region78: #{tpu_custom_call.1} parent=67 // pred_check_branch
          %686 = sbr.rel (%p684) target = $region80
        $region79: #{tpu_custom_call.1} parent=67 // pred_region
          %687 = dma.done %s680, 64
        $region80: #{tpu_custom_call.1} parent=67 // pred_fallthru
          _
        %s688 = sand.u32 %s42, 1
        %s689 = scalar_lea.sflag [#allocation9], %s688
        %s690 = sand.u32 %s148, 1
        %s691 = smul.addr %s690, 4
        %s692 = scalar_lea.vmem [#allocation8], %s691
        // Predicated region
        $region81: #{tpu_custom_call.1} parent=67 // pred_check
          %p693 = pneg %p161
        $region82: #{tpu_custom_call.1} parent=67 // pred_check_branch
          %695 = sbr.rel (%p693) target = $region84
        $region83: #{tpu_custom_call.1} parent=67 // pred_region
          %696 = dma.done %s689, 64
        $region84: #{tpu_custom_call.1} parent=67 // pred_fallthru
          _
        %s697 = sand.u32 %s42, 1
        %s698 = scalar_lea.sflag [#allocation9], %s697
        %s699 = sand.u32 %s176, 1
        %s700 = smul.addr %s699, 512
        %s701 = scalar_lea.vmem [#allocation10], %s700
        // Predicated region
        $region85: #{tpu_custom_call.1} parent=67 // pred_check
          %p702 = pneg %p189
        $region86: #{tpu_custom_call.1} parent=67 // pred_check_branch
          %704 = sbr.rel (%p702) target = $region88
        $region87: #{tpu_custom_call.1} parent=67 // pred_region
          %705 = dma.done %s698, 8192
        $region88: #{tpu_custom_call.1} parent=67 // pred_fallthru
          _
        %s706 = sand.u32 %s42, 1
        %s707 = scalar_lea.sflag [#allocation12], %s706
        %s708 = sand.u32 %s204, 1
        %s709 = smul.addr %s708, 2
        %s710 = scalar_lea.vmem [#allocation11], %s709
        // Predicated region
        $region89: #{tpu_custom_call.1} parent=67 // pred_check
          %p711 = pneg %p217
        $region90: #{tpu_custom_call.1} parent=67 // pred_check_branch
          %713 = sbr.rel (%p711) target = $region92
        $region91: #{tpu_custom_call.1} parent=67 // pred_region
          %714 = dma.done %s707, 32
        $region92: #{tpu_custom_call.1} parent=67 // pred_fallthru
          _
        %s715 = sand.u32 %s42, 1
        %s716 = scalar_lea.sflag [#allocation12], %s715
        %s717 = sand.u32 %s232, 1
        %s718 = smul.addr %s717, 2
        %s719 = scalar_lea.vmem [#allocation13], %s718
        // Predicated region
        $region93: #{tpu_custom_call.1} parent=67 // pred_check
          %p720 = pneg %p245
        $region94: #{tpu_custom_call.1} parent=67 // pred_check_branch
          %722 = sbr.rel (%p720) target = $region96
        $region95: #{tpu_custom_call.1} parent=67 // pred_region
          %723 = dma.done %s716, 32
        $region96: #{tpu_custom_call.1} parent=67 // pred_fallthru
          _
        %s724 = sand.u32 %s42, 1
        %s725 = scalar_lea.sflag [#allocation15], %s724
        %s726 = sand.u32 %s260, 1
        %s727 = smul.addr %s726, 128
        %s728 = scalar_lea.vmem [#allocation14], %s727
        // Predicated region
        $region97: #{tpu_custom_call.1} parent=67 // pred_check
          %p729 = pneg %p273
        $region98: #{tpu_custom_call.1} parent=67 // pred_check_branch
          %731 = sbr.rel (%p729) target = $region100
        $region99: #{tpu_custom_call.1} parent=67 // pred_region
          %732 = dma.done %s725, 2048
        $region100: #{tpu_custom_call.1} parent=67 // pred_fallthru
          _
        %s733 = sand.u32 %s42, 1
        %s734 = scalar_lea.sflag [#allocation15], %s733
        %s735 = sand.u32 %s288, 1
        %s736 = scalar_lea.vmem [#allocation16], %s735
        // Predicated region
        $region101: #{tpu_custom_call.1} parent=67 // pred_check
          %p737 = pneg %p301
        $region102: #{tpu_custom_call.1} parent=67 // pred_check_branch
          %739 = sbr.rel (%p737) target = $region104
        $region103: #{tpu_custom_call.1} parent=67 // pred_region
          %740 = dma.done %s734, 16
        $region104: #{tpu_custom_call.1} parent=67 // pred_fallthru
          _
        %s741 = sand.u32 %s42, 1
        %s742 = scalar_lea.sflag [#allocation18], %s741
        %s743 = sand.u32 %s316, 1
        %s744 = scalar_lea.vmem [#allocation17], %s743
        // Predicated region
        $region105: #{tpu_custom_call.1} parent=67 // pred_check
          %p745 = pneg %p329
        $region106: #{tpu_custom_call.1} parent=67 // pred_check_branch
          %747 = sbr.rel (%p745) target = $region108
        $region107: #{tpu_custom_call.1} parent=67 // pred_region
          %748 = dma.done %s742, 16
        $region108: #{tpu_custom_call.1} parent=67 // pred_fallthru
          _
        %s749 = sand.u32 %s42, 1
        %s750 = scalar_lea.sflag [#allocation18], %s749
        %s751 = sand.u32 %s372, 1
        %s752 = scalar_lea.vmem [#allocation19], %s751
        // Predicated region
        $region109: #{tpu_custom_call.1} parent=67 // pred_check
          %p753 = pneg %p385
        $region110: #{tpu_custom_call.1} parent=67 // pred_check_branch
          %755 = sbr.rel (%p753) target = $region112
        $region111: #{tpu_custom_call.1} parent=67 // pred_region
          %756 = dma.done %s750, 16
        $region112: #{tpu_custom_call.1} parent=67 // pred_fallthru
          _
        %p757 = pneg %p77
        %p758 = pneg %p74
        %s759 = sand.u32 %s42, 1
        %s760 = scalar_lea.sflag [#allocation6], %s759
        %s761 = sand.u32 %s92, 1
        %s762 = smul.addr %s761, 2048
        %s763 = scalar_lea.vmem [#allocation5], %s762
        %p764 = pneg %p105
        %p765 = pneg %p102
        %s766 = sand.u32 %s42, 1
        %s767 = scalar_lea.sflag [#allocation6], %s766
        %s768 = sand.u32 %s120, 1
        %s769 = smul.addr %s768, 4
        %s770 = scalar_lea.vmem [#allocation7], %s769
        %p771 = pneg %p133
        %p772 = pneg %p130
        %s773 = sand.u32 %s42, 1
        %s774 = scalar_lea.sflag [#allocation9], %s773
        %s775 = sand.u32 %s148, 1
        %s776 = smul.addr %s775, 4
        %s777 = scalar_lea.vmem [#allocation8], %s776
        %p778 = pneg %p161
        %p779 = pneg %p158
        %s780 = sand.u32 %s42, 1
        %s781 = scalar_lea.sflag [#allocation9], %s780
        %s782 = sand.u32 %s176, 1
        %s783 = smul.addr %s782, 512
        %s784 = scalar_lea.vmem [#allocation10], %s783
        %p785 = pneg %p189
        %p786 = pneg %p186
        %s787 = sand.u32 %s42, 1
        %s788 = scalar_lea.sflag [#allocation12], %s787
        %s789 = sand.u32 %s204, 1
        %s790 = smul.addr %s789, 2
        %s791 = scalar_lea.vmem [#allocation11], %s790
        %p792 = pneg %p217
        %p793 = pneg %p214
        %s794 = sand.u32 %s42, 1
        %s795 = scalar_lea.sflag [#allocation12], %s794
        %s796 = sand.u32 %s232, 1
        %s797 = smul.addr %s796, 2
        %s798 = scalar_lea.vmem [#allocation13], %s797
        %p799 = pneg %p245
        %p800 = pneg %p242
        %s801 = sand.u32 %s42, 1
        %s802 = scalar_lea.sflag [#allocation15], %s801
        %s803 = sand.u32 %s260, 1
        %s804 = smul.addr %s803, 128
        %s805 = scalar_lea.vmem [#allocation14], %s804
        %p806 = pneg %p273
        %p807 = pneg %p270
        %s808 = sand.u32 %s42, 1
        %s809 = scalar_lea.sflag [#allocation15], %s808
        %s810 = sand.u32 %s288, 1
        %s811 = scalar_lea.vmem [#allocation16], %s810
        %p812 = pneg %p301
        %p813 = pneg %p298
        %s814 = sand.u32 %s42, 1
        %s815 = scalar_lea.sflag [#allocation18], %s814
        %s816 = sand.u32 %s316, 1
        %s817 = scalar_lea.vmem [#allocation17], %s816
        %p818 = pneg %p329
        %p819 = pneg %p326
        %s820 = sadd.s32 %s47, %s16
        %p821 = scmp.lt.s32.totalorder %s46, 1
        %s822 = scalar_select %p821, %s46, 1
        %s823 = smul.addr %s822, 16
        %s824 = smul.addr %s823, 4
        %s825 = scalar_lea.vmem %s10, %s824
        %p826 = pneg %p357
        %p827 = pneg %p354
        %s828 = sand.u32 %s42, 1
        %s829 = scalar_lea.sflag [#allocation18], %s828
        %s830 = sand.u32 %s372, 1
        %s831 = scalar_lea.vmem [#allocation19], %s830
        %p832 = pneg %p385
        %p833 = pneg %p382
        %p834 = pneg %p415
        %p835 = pneg %p412
        %s836 = sand.u32 %s402, 1
        %s837 = scalar_lea.sflag [#allocation4], %s836
        %s838 = sand.u32 %s402, 1
        %s839 = smul.addr %s838, 8
        %s840 = scalar_lea.vmem [#allocation20], %s839
        %s841 = sadd.s32 %s47, %s16
        %s842 = sadd.s32 %s47, %s16
        %s843 = sadd.s32 %s47, %s16
        %s844 = sadd.s32 %s47, %s16
        %s845 = sadd.s32 %s47, %s16
        %s846 = sadd.s32 %s47, %s16
        %s847 = sadd.s32 %s47, %s16
        %s848 = sadd.s32 %s47, %s16
        %s849 = sadd.s32 %s47, %s16
        %s850 = sadd.s32 %s47, %s16
        %s851 = sadd.s32 %s47, %s16
        %p852 = scmp.lt.s32.totalorder %s46, 1
        %s853 = scalar_select %p852, %s46, 1
        %s854 = smul.addr %s853, 16
        %s855 = smul.addr %s854, 4
        %s856 = scalar_lea.vmem %s10, %s855
        %s857 = sadd.s32 %s47, %s16
        %s858 = sadd.s32 %s47, %s16
        %s859 = sadd.s32 %s47, %s16
        %s860 = sadd.s32 %s47, %s16
        %v862 = vld [vmem:[#allocation2] sm:$0xff]
        %v863 = vld [vmem:[#allocation2 + $0x8] sm:$0xff]
        %v864 = vld [vmem:[#allocation2 + $0x10] sm:$0xff]
        %v865 = vld [vmem:[#allocation2 + $0x18] sm:$0xff]
        %v866 = vld [vmem:[%s674] sm:$0xff]
        %v867 = vld [vmem:[%s674 + $0x8] sm:$0xff]
        %v868 = vld [vmem:[%s674 + $0x10] sm:$0xff]
        %v869 = vld [vmem:[%s674 + $0x18] sm:$0xff]
        %v870 = vld [vmem:[%s674 + $0x20] sm:$0xff]
        %v871 = vld [vmem:[%s674 + $0x28] sm:$0xff]
        %v872 = vld [vmem:[%s674 + $0x30] sm:$0xff]
        %v873 = vld [vmem:[%s674 + $0x38] sm:$0xff]
        %v874 = vld [vmem:[%s674 + $0x40] sm:$0xff]
        %v875 = vld [vmem:[%s674 + $0x48] sm:$0xff]
        %v876 = vld [vmem:[%s674 + $0x50] sm:$0xff]
        %v877 = vld [vmem:[%s674 + $0x58] sm:$0xff]
        %v878 = vld [vmem:[%s674 + $0x60] sm:$0xff]
        %v879 = vld [vmem:[%s674 + $0x68] sm:$0xff]
        %v880 = vld [vmem:[%s674 + $0x70] sm:$0xff]
        %v881 = vld [vmem:[%s674 + $0x78] sm:$0xff]
        %v882 = vld [vmem:[%s674 + $0x80] sm:$0xff]
        %v883 = vld [vmem:[%s674 + $0x88] sm:$0xff]
        %v884 = vld [vmem:[%s674 + $0x90] sm:$0xff]
        %v885 = vld [vmem:[%s674 + $0x98] sm:$0xff]
        %v886 = vld [vmem:[%s674 + $0xa0] sm:$0xff]
        %v887 = vld [vmem:[%s674 + $0xa8] sm:$0xff]
        %v888 = vld [vmem:[%s674 + $0xb0] sm:$0xff]
        %v889 = vld [vmem:[%s674 + $0xb8] sm:$0xff]
        %v890 = vld [vmem:[%s674 + $0xc0] sm:$0xff]
        %v891 = vld [vmem:[%s674 + $0xc8] sm:$0xff]
        %v892 = vld [vmem:[%s674 + $0xd0] sm:$0xff]
        %v893 = vld [vmem:[%s674 + $0xd8] sm:$0xff]
        %v894 = vld [vmem:[%s674 + $0xe0] sm:$0xff]
        %v895 = vld [vmem:[%s674 + $0xe8] sm:$0xff]
        %v896 = vld [vmem:[%s674 + $0xf0] sm:$0xff]
        %v897 = vld [vmem:[%s674 + $0xf8] sm:$0xff]
        %v898 = vld [vmem:[%s674 + $0x100] sm:$0xff]
        %v899 = vld [vmem:[%s674 + $0x108] sm:$0xff]
        %v900 = vld [vmem:[%s674 + $0x110] sm:$0xff]
        %v901 = vld [vmem:[%s674 + $0x118] sm:$0xff]
        %v902 = vld [vmem:[%s674 + $0x120] sm:$0xff]
        %v903 = vld [vmem:[%s674 + $0x128] sm:$0xff]
        %v904 = vld [vmem:[%s674 + $0x130] sm:$0xff]
        %v905 = vld [vmem:[%s674 + $0x138] sm:$0xff]
        %v906 = vld [vmem:[%s674 + $0x140] sm:$0xff]
        %v907 = vld [vmem:[%s674 + $0x148] sm:$0xff]
        %v908 = vld [vmem:[%s674 + $0x150] sm:$0xff]
        %v909 = vld [vmem:[%s674 + $0x158] sm:$0xff]
        %v910 = vld [vmem:[%s674 + $0x160] sm:$0xff]
        %v911 = vld [vmem:[%s674 + $0x168] sm:$0xff]
        %v912 = vld [vmem:[%s674 + $0x170] sm:$0xff]
        %v913 = vld [vmem:[%s674 + $0x178] sm:$0xff]
        %v914 = vld [vmem:[%s674 + $0x180] sm:$0xff]
        %v915 = vld [vmem:[%s674 + $0x188] sm:$0xff]
        %v916 = vld [vmem:[%s674 + $0x190] sm:$0xff]
        %v917 = vld [vmem:[%s674 + $0x198] sm:$0xff]
        %v918 = vld [vmem:[%s674 + $0x1a0] sm:$0xff]
        %v919 = vld [vmem:[%s674 + $0x1a8] sm:$0xff]
        %v920 = vld [vmem:[%s674 + $0x1b0] sm:$0xff]
        %v921 = vld [vmem:[%s674 + $0x1b8] sm:$0xff]
        %v922 = vld [vmem:[%s674 + $0x1c0] sm:$0xff]
        %v923 = vld [vmem:[%s674 + $0x1c8] sm:$0xff]
        %v924 = vld [vmem:[%s674 + $0x1d0] sm:$0xff]
        %v925 = vld [vmem:[%s674 + $0x1d8] sm:$0xff]
        %v926 = vld [vmem:[%s674 + $0x1e0] sm:$0xff]
        %v927 = vld [vmem:[%s674 + $0x1e8] sm:$0xff]
        %v928 = vld [vmem:[%s674 + $0x1f0] sm:$0xff]
        %v929 = vld [vmem:[%s674 + $0x1f8] sm:$0xff]
        %v930 = vld [vmem:[%s674 + $0x200] sm:$0xff]
        %v931 = vld [vmem:[%s674 + $0x208] sm:$0xff]
        %v932 = vld [vmem:[%s674 + $0x210] sm:$0xff]
        %v933 = vld [vmem:[%s674 + $0x218] sm:$0xff]
        %v934 = vld [vmem:[%s674 + $0x220] sm:$0xff]
        %v935 = vld [vmem:[%s674 + $0x228] sm:$0xff]
        %v936 = vld [vmem:[%s674 + $0x230] sm:$0xff]
        %v937 = vld [vmem:[%s674 + $0x238] sm:$0xff]
        %v938 = vld [vmem:[%s674 + $0x240] sm:$0xff]
        %v939 = vld [vmem:[%s674 + $0x248] sm:$0xff]
        %v940 = vld [vmem:[%s674 + $0x250] sm:$0xff]
        %v941 = vld [vmem:[%s674 + $0x258] sm:$0xff]
        %v942 = vld [vmem:[%s674 + $0x260] sm:$0xff]
        %v943 = vld [vmem:[%s674 + $0x268] sm:$0xff]
        %v944 = vld [vmem:[%s674 + $0x270] sm:$0xff]
        %v945 = vld [vmem:[%s674 + $0x278] sm:$0xff]
        %v946 = vld [vmem:[%s674 + $0x280] sm:$0xff]
        %v947 = vld [vmem:[%s674 + $0x288] sm:$0xff]
        %v948 = vld [vmem:[%s674 + $0x290] sm:$0xff]
        %v949 = vld [vmem:[%s674 + $0x298] sm:$0xff]
        %v950 = vld [vmem:[%s674 + $0x2a0] sm:$0xff]
        %v951 = vld [vmem:[%s674 + $0x2a8] sm:$0xff]
        %v952 = vld [vmem:[%s674 + $0x2b0] sm:$0xff]
        %v953 = vld [vmem:[%s674 + $0x2b8] sm:$0xff]
        %v954 = vld [vmem:[%s674 + $0x2c0] sm:$0xff]
        %v955 = vld [vmem:[%s674 + $0x2c8] sm:$0xff]
        %v956 = vld [vmem:[%s674 + $0x2d0] sm:$0xff]
        %v957 = vld [vmem:[%s674 + $0x2d8] sm:$0xff]
        %v958 = vld [vmem:[%s674 + $0x2e0] sm:$0xff]
        %v959 = vld [vmem:[%s674 + $0x2e8] sm:$0xff]
        %v960 = vld [vmem:[%s674 + $0x2f0] sm:$0xff]
        %v961 = vld [vmem:[%s674 + $0x2f8] sm:$0xff]
        %v962 = vld [vmem:[%s674 + $0x300] sm:$0xff]
        %v963 = vld [vmem:[%s674 + $0x308] sm:$0xff]
        %v964 = vld [vmem:[%s674 + $0x310] sm:$0xff]
        %v965 = vld [vmem:[%s674 + $0x318] sm:$0xff]
        %v966 = vld [vmem:[%s674 + $0x320] sm:$0xff]
        %v967 = vld [vmem:[%s674 + $0x328] sm:$0xff]
        %v968 = vld [vmem:[%s674 + $0x330] sm:$0xff]
        %v969 = vld [vmem:[%s674 + $0x338] sm:$0xff]
        %v970 = vld [vmem:[%s674 + $0x340] sm:$0xff]
        %v971 = vld [vmem:[%s674 + $0x348] sm:$0xff]
        %v972 = vld [vmem:[%s674 + $0x350] sm:$0xff]
        %v973 = vld [vmem:[%s674 + $0x358] sm:$0xff]
        %v974 = vld [vmem:[%s674 + $0x360] sm:$0xff]
        %v975 = vld [vmem:[%s674 + $0x368] sm:$0xff]
        %v976 = vld [vmem:[%s674 + $0x370] sm:$0xff]
        %v977 = vld [vmem:[%s674 + $0x378] sm:$0xff]
        %v978 = vld [vmem:[%s674 + $0x380] sm:$0xff]
        %v979 = vld [vmem:[%s674 + $0x388] sm:$0xff]
        %v980 = vld [vmem:[%s674 + $0x390] sm:$0xff]
        %v981 = vld [vmem:[%s674 + $0x398] sm:$0xff]
        %v982 = vld [vmem:[%s674 + $0x3a0] sm:$0xff]
        %v983 = vld [vmem:[%s674 + $0x3a8] sm:$0xff]
        %v984 = vld [vmem:[%s674 + $0x3b0] sm:$0xff]
        %v985 = vld [vmem:[%s674 + $0x3b8] sm:$0xff]
        %v986 = vld [vmem:[%s674 + $0x3c0] sm:$0xff]
        %v987 = vld [vmem:[%s674 + $0x3c8] sm:$0xff]
        %v988 = vld [vmem:[%s674 + $0x3d0] sm:$0xff]
        %v989 = vld [vmem:[%s674 + $0x3d8] sm:$0xff]
        %v990 = vld [vmem:[%s674 + $0x3e0] sm:$0xff]
        %v991 = vld [vmem:[%s674 + $0x3e8] sm:$0xff]
        %v992 = vld [vmem:[%s674 + $0x3f0] sm:$0xff]
        %v993 = vld [vmem:[%s674 + $0x3f8] sm:$0xff]
        %v994 = vld [vmem:[%s674 + $0x400] sm:$0xff]
        %v995 = vld [vmem:[%s674 + $0x408] sm:$0xff]
        %v996 = vld [vmem:[%s674 + $0x410] sm:$0xff]
        %v997 = vld [vmem:[%s674 + $0x418] sm:$0xff]
        %v998 = vld [vmem:[%s674 + $0x420] sm:$0xff]
        %v999 = vld [vmem:[%s674 + $0x428] sm:$0xff]
        %v1000 = vld [vmem:[%s674 + $0x430] sm:$0xff]
        %v1001 = vld [vmem:[%s674 + $0x438] sm:$0xff]
        %v1002 = vld [vmem:[%s674 + $0x440] sm:$0xff]
        %v1003 = vld [vmem:[%s674 + $0x448] sm:$0xff]
        %v1004 = vld [vmem:[%s674 + $0x450] sm:$0xff]
        %v1005 = vld [vmem:[%s674 + $0x458] sm:$0xff]
        %v1006 = vld [vmem:[%s674 + $0x460] sm:$0xff]
        %v1007 = vld [vmem:[%s674 + $0x468] sm:$0xff]
        %v1008 = vld [vmem:[%s674 + $0x470] sm:$0xff]
        %v1009 = vld [vmem:[%s674 + $0x478] sm:$0xff]
        %v1010 = vld [vmem:[%s674 + $0x480] sm:$0xff]
        %v1011 = vld [vmem:[%s674 + $0x488] sm:$0xff]
        %v1012 = vld [vmem:[%s674 + $0x490] sm:$0xff]
        %v1013 = vld [vmem:[%s674 + $0x498] sm:$0xff]
        %v1014 = vld [vmem:[%s674 + $0x4a0] sm:$0xff]
        %v1015 = vld [vmem:[%s674 + $0x4a8] sm:$0xff]
        %v1016 = vld [vmem:[%s674 + $0x4b0] sm:$0xff]
        %v1017 = vld [vmem:[%s674 + $0x4b8] sm:$0xff]
        %v1018 = vld [vmem:[%s674 + $0x4c0] sm:$0xff]
        %v1019 = vld [vmem:[%s674 + $0x4c8] sm:$0xff]
        %v1020 = vld [vmem:[%s674 + $0x4d0] sm:$0xff]
        %v1021 = vld [vmem:[%s674 + $0x4d8] sm:$0xff]
        %v1022 = vld [vmem:[%s674 + $0x4e0] sm:$0xff]
        %v1023 = vld [vmem:[%s674 + $0x4e8] sm:$0xff]
        %v1024 = vld [vmem:[%s674 + $0x4f0] sm:$0xff]
        %v1025 = vld [vmem:[%s674 + $0x4f8] sm:$0xff]
        %v1026 = vld [vmem:[%s674 + $0x500] sm:$0xff]
        %v1027 = vld [vmem:[%s674 + $0x508] sm:$0xff]
        %v1028 = vld [vmem:[%s674 + $0x510] sm:$0xff]
        %v1029 = vld [vmem:[%s674 + $0x518] sm:$0xff]
        %v1030 = vld [vmem:[%s674 + $0x520] sm:$0xff]
        %v1031 = vld [vmem:[%s674 + $0x528] sm:$0xff]
        %v1032 = vld [vmem:[%s674 + $0x530] sm:$0xff]
        %v1033 = vld [vmem:[%s674 + $0x538] sm:$0xff]
        %v1034 = vld [vmem:[%s674 + $0x540] sm:$0xff]
        %v1035 = vld [vmem:[%s674 + $0x548] sm:$0xff]
        %v1036 = vld [vmem:[%s674 + $0x550] sm:$0xff]
        %v1037 = vld [vmem:[%s674 + $0x558] sm:$0xff]
        %v1038 = vld [vmem:[%s674 + $0x560] sm:$0xff]
        %v1039 = vld [vmem:[%s674 + $0x568] sm:$0xff]
        %v1040 = vld [vmem:[%s674 + $0x570] sm:$0xff]
        %v1041 = vld [vmem:[%s674 + $0x578] sm:$0xff]
        %v1042 = vld [vmem:[%s674 + $0x580] sm:$0xff]
        %v1043 = vld [vmem:[%s674 + $0x588] sm:$0xff]
        %v1044 = vld [vmem:[%s674 + $0x590] sm:$0xff]
        %v1045 = vld [vmem:[%s674 + $0x598] sm:$0xff]
        %v1046 = vld [vmem:[%s674 + $0x5a0] sm:$0xff]
        %v1047 = vld [vmem:[%s674 + $0x5a8] sm:$0xff]
        %v1048 = vld [vmem:[%s674 + $0x5b0] sm:$0xff]
        %v1049 = vld [vmem:[%s674 + $0x5b8] sm:$0xff]
        %v1050 = vld [vmem:[%s674 + $0x5c0] sm:$0xff]
        %v1051 = vld [vmem:[%s674 + $0x5c8] sm:$0xff]
        %v1052 = vld [vmem:[%s674 + $0x5d0] sm:$0xff]
        %v1053 = vld [vmem:[%s674 + $0x5d8] sm:$0xff]
        %v1054 = vld [vmem:[%s674 + $0x5e0] sm:$0xff]
        %v1055 = vld [vmem:[%s674 + $0x5e8] sm:$0xff]
        %v1056 = vld [vmem:[%s674 + $0x5f0] sm:$0xff]
        %v1057 = vld [vmem:[%s674 + $0x5f8] sm:$0xff]
        %v1058 = vld [vmem:[%s674 + $0x600] sm:$0xff]
        %v1059 = vld [vmem:[%s674 + $0x608] sm:$0xff]
        %v1060 = vld [vmem:[%s674 + $0x610] sm:$0xff]
        %v1061 = vld [vmem:[%s674 + $0x618] sm:$0xff]
        %v1062 = vld [vmem:[%s674 + $0x620] sm:$0xff]
        %v1063 = vld [vmem:[%s674 + $0x628] sm:$0xff]
        %v1064 = vld [vmem:[%s674 + $0x630] sm:$0xff]
        %v1065 = vld [vmem:[%s674 + $0x638] sm:$0xff]
        %v1066 = vld [vmem:[%s674 + $0x640] sm:$0xff]
        %v1067 = vld [vmem:[%s674 + $0x648] sm:$0xff]
        %v1068 = vld [vmem:[%s674 + $0x650] sm:$0xff]
        %v1069 = vld [vmem:[%s674 + $0x658] sm:$0xff]
        %v1070 = vld [vmem:[%s674 + $0x660] sm:$0xff]
        %v1071 = vld [vmem:[%s674 + $0x668] sm:$0xff]
        %v1072 = vld [vmem:[%s674 + $0x670] sm:$0xff]
        %v1073 = vld [vmem:[%s674 + $0x678] sm:$0xff]
        %v1074 = vld [vmem:[%s674 + $0x680] sm:$0xff]
        %v1075 = vld [vmem:[%s674 + $0x688] sm:$0xff]
        %v1076 = vld [vmem:[%s674 + $0x690] sm:$0xff]
        %v1077 = vld [vmem:[%s674 + $0x698] sm:$0xff]
        %v1078 = vld [vmem:[%s674 + $0x6a0] sm:$0xff]
        %v1079 = vld [vmem:[%s674 + $0x6a8] sm:$0xff]
        %v1080 = vld [vmem:[%s674 + $0x6b0] sm:$0xff]
        %v1081 = vld [vmem:[%s674 + $0x6b8] sm:$0xff]
        %v1082 = vld [vmem:[%s674 + $0x6c0] sm:$0xff]
        %v1083 = vld [vmem:[%s674 + $0x6c8] sm:$0xff]
        %v1084 = vld [vmem:[%s674 + $0x6d0] sm:$0xff]
        %v1085 = vld [vmem:[%s674 + $0x6d8] sm:$0xff]
        %v1086 = vld [vmem:[%s674 + $0x6e0] sm:$0xff]
        %v1087 = vld [vmem:[%s674 + $0x6e8] sm:$0xff]
        %v1088 = vld [vmem:[%s674 + $0x6f0] sm:$0xff]
        %v1089 = vld [vmem:[%s674 + $0x6f8] sm:$0xff]
        %v1090 = vld [vmem:[%s674 + $0x700] sm:$0xff]
        %v1091 = vld [vmem:[%s674 + $0x708] sm:$0xff]
        %v1092 = vld [vmem:[%s674 + $0x710] sm:$0xff]
        %v1093 = vld [vmem:[%s674 + $0x718] sm:$0xff]
        %v1094 = vld [vmem:[%s674 + $0x720] sm:$0xff]
        %v1095 = vld [vmem:[%s674 + $0x728] sm:$0xff]
        %v1096 = vld [vmem:[%s674 + $0x730] sm:$0xff]
        %v1097 = vld [vmem:[%s674 + $0x738] sm:$0xff]
        %v1098 = vld [vmem:[%s674 + $0x740] sm:$0xff]
        %v1099 = vld [vmem:[%s674 + $0x748] sm:$0xff]
        %v1100 = vld [vmem:[%s674 + $0x750] sm:$0xff]
        %v1101 = vld [vmem:[%s674 + $0x758] sm:$0xff]
        %v1102 = vld [vmem:[%s674 + $0x760] sm:$0xff]
        %v1103 = vld [vmem:[%s674 + $0x768] sm:$0xff]
        %v1104 = vld [vmem:[%s674 + $0x770] sm:$0xff]
        %v1105 = vld [vmem:[%s674 + $0x778] sm:$0xff]
        %v1106 = vld [vmem:[%s674 + $0x780] sm:$0xff]
        %v1107 = vld [vmem:[%s674 + $0x788] sm:$0xff]
        %v1108 = vld [vmem:[%s674 + $0x790] sm:$0xff]
        %v1109 = vld [vmem:[%s674 + $0x798] sm:$0xff]
        %v1110 = vld [vmem:[%s674 + $0x7a0] sm:$0xff]
        %v1111 = vld [vmem:[%s674 + $0x7a8] sm:$0xff]
        %v1112 = vld [vmem:[%s674 + $0x7b0] sm:$0xff]
        %v1113 = vld [vmem:[%s674 + $0x7b8] sm:$0xff]
        %v1114 = vld [vmem:[%s674 + $0x7c0] sm:$0xff]
        %v1115 = vld [vmem:[%s674 + $0x7c8] sm:$0xff]
        %v1116 = vld [vmem:[%s674 + $0x7d0] sm:$0xff]
        %v1117 = vld [vmem:[%s674 + $0x7d8] sm:$0xff]
        %v1118 = vld [vmem:[%s674 + $0x7e0] sm:$0xff]
        %v1119 = vld [vmem:[%s674 + $0x7e8] sm:$0xff]
        %v1120 = vld [vmem:[%s674 + $0x7f0] sm:$0xff]
        %v1121 = vld [vmem:[%s674 + $0x7f8] sm:$0xff]
        %v1126 = vunpack.c.l.b16 %v862
        %v1127 = vunpack.c.h.b16 %v862
        %v1128 = vunpack.c.l.b16 %v863
        %v1129 = vunpack.c.h.b16 %v863
        %v1130 = vunpack.c.l.b16 %v864
        %v1131 = vunpack.c.h.b16 %v864
        %v1132 = vunpack.c.l.b16 %v865
        %v1133 = vunpack.c.h.b16 %v865
        %v1134 = vpack.c.b16 %v1126, %v1126
        %v1135 = vpack.c.b16 %v1127, %v1127
        %v1136 = vpack.c.b16 %v1128, %v1128
        %v1137 = vpack.c.b16 %v1129, %v1129
        %v1138 = vpack.c.b16 %v1130, %v1130
        %v1139 = vpack.c.b16 %v1131, %v1131
        %v1140 = vpack.c.b16 %v1132, %v1132
        %v1141 = vpack.c.b16 %v1133, %v1133
        %v1406 = vunpack.c.l.b16 %v866
        %v1407 = vunpack.c.h.b16 %v866
        %v1408 = vunpack.c.l.b16 %v867
        %v1409 = vunpack.c.h.b16 %v867
        %v1410 = vunpack.c.l.b16 %v868
        %v1411 = vunpack.c.h.b16 %v868
        %v1412 = vunpack.c.l.b16 %v869
        %v1413 = vunpack.c.h.b16 %v869
        %v1414 = vunpack.c.l.b16 %v870
        %v1415 = vunpack.c.h.b16 %v870
        %v1416 = vunpack.c.l.b16 %v871
        %v1417 = vunpack.c.h.b16 %v871
        %v1418 = vunpack.c.l.b16 %v872
        %v1419 = vunpack.c.h.b16 %v872
        %v1420 = vunpack.c.l.b16 %v873
        %v1421 = vunpack.c.h.b16 %v873
        %v1422 = vunpack.c.l.b16 %v874
        %v1423 = vunpack.c.h.b16 %v874
        %v1424 = vunpack.c.l.b16 %v875
        %v1425 = vunpack.c.h.b16 %v875
        %v1426 = vunpack.c.l.b16 %v876
        %v1427 = vunpack.c.h.b16 %v876
        %v1428 = vunpack.c.l.b16 %v877
        %v1429 = vunpack.c.h.b16 %v877
        %v1430 = vunpack.c.l.b16 %v878
        %v1431 = vunpack.c.h.b16 %v878
        %v1432 = vunpack.c.l.b16 %v879
        %v1433 = vunpack.c.h.b16 %v879
        %v1434 = vunpack.c.l.b16 %v880
        %v1435 = vunpack.c.h.b16 %v880
        %v1436 = vunpack.c.l.b16 %v881
        %v1437 = vunpack.c.h.b16 %v881
        %v1438 = vunpack.c.l.b16 %v882
        %v1439 = vunpack.c.h.b16 %v882
        %v1440 = vunpack.c.l.b16 %v883
        %v1441 = vunpack.c.h.b16 %v883
        %v1442 = vunpack.c.l.b16 %v884
        %v1443 = vunpack.c.h.b16 %v884
        %v1444 = vunpack.c.l.b16 %v885
        %v1445 = vunpack.c.h.b16 %v885
        %v1446 = vunpack.c.l.b16 %v886
        %v1447 = vunpack.c.h.b16 %v886
        %v1448 = vunpack.c.l.b16 %v887
        %v1449 = vunpack.c.h.b16 %v887
        %v1450 = vunpack.c.l.b16 %v888
        %v1451 = vunpack.c.h.b16 %v888
        %v1452 = vunpack.c.l.b16 %v889
        %v1453 = vunpack.c.h.b16 %v889
        %v1454 = vunpack.c.l.b16 %v890
        %v1455 = vunpack.c.h.b16 %v890
        %v1456 = vunpack.c.l.b16 %v891
        %v1457 = vunpack.c.h.b16 %v891
        %v1458 = vunpack.c.l.b16 %v892
        %v1459 = vunpack.c.h.b16 %v892
        %v1460 = vunpack.c.l.b16 %v893
        %v1461 = vunpack.c.h.b16 %v893
        %v1462 = vunpack.c.l.b16 %v894
        %v1463 = vunpack.c.h.b16 %v894
        %v1464 = vunpack.c.l.b16 %v895
        %v1465 = vunpack.c.h.b16 %v895
        %v1466 = vunpack.c.l.b16 %v896
        %v1467 = vunpack.c.h.b16 %v896
        %v1468 = vunpack.c.l.b16 %v897
        %v1469 = vunpack.c.h.b16 %v897
        %v1470 = vunpack.c.l.b16 %v898
        %v1471 = vunpack.c.h.b16 %v898
        %v1472 = vunpack.c.l.b16 %v899
        %v1473 = vunpack.c.h.b16 %v899
        %v1474 = vunpack.c.l.b16 %v900
        %v1475 = vunpack.c.h.b16 %v900
        %v1476 = vunpack.c.l.b16 %v901
        %v1477 = vunpack.c.h.b16 %v901
        %v1478 = vunpack.c.l.b16 %v902
        %v1479 = vunpack.c.h.b16 %v902
        %v1480 = vunpack.c.l.b16 %v903
        %v1481 = vunpack.c.h.b16 %v903
        %v1482 = vunpack.c.l.b16 %v904
        %v1483 = vunpack.c.h.b16 %v904
        %v1484 = vunpack.c.l.b16 %v905
        %v1485 = vunpack.c.h.b16 %v905
        %v1486 = vunpack.c.l.b16 %v906
        %v1487 = vunpack.c.h.b16 %v906
        %v1488 = vunpack.c.l.b16 %v907
        %v1489 = vunpack.c.h.b16 %v907
        %v1490 = vunpack.c.l.b16 %v908
        %v1491 = vunpack.c.h.b16 %v908
        %v1492 = vunpack.c.l.b16 %v909
        %v1493 = vunpack.c.h.b16 %v909
        %v1494 = vunpack.c.l.b16 %v910
        %v1495 = vunpack.c.h.b16 %v910
        %v1496 = vunpack.c.l.b16 %v911
        %v1497 = vunpack.c.h.b16 %v911
        %v1498 = vunpack.c.l.b16 %v912
        %v1499 = vunpack.c.h.b16 %v912
        %v1500 = vunpack.c.l.b16 %v913
        %v1501 = vunpack.c.h.b16 %v913
        %v1502 = vunpack.c.l.b16 %v914
        %v1503 = vunpack.c.h.b16 %v914
        %v1504 = vunpack.c.l.b16 %v915
        %v1505 = vunpack.c.h.b16 %v915
        %v1506 = vunpack.c.l.b16 %v916
        %v1507 = vunpack.c.h.b16 %v916
        %v1508 = vunpack.c.l.b16 %v917
        %v1509 = vunpack.c.h.b16 %v917
        %v1510 = vunpack.c.l.b16 %v918
        %v1511 = vunpack.c.h.b16 %v918
        %v1512 = vunpack.c.l.b16 %v919
        %v1513 = vunpack.c.h.b16 %v919
        %v1514 = vunpack.c.l.b16 %v920
        %v1515 = vunpack.c.h.b16 %v920
        %v1516 = vunpack.c.l.b16 %v921
        %v1517 = vunpack.c.h.b16 %v921
        %v1518 = vunpack.c.l.b16 %v922
        %v1519 = vunpack.c.h.b16 %v922
        %v1520 = vunpack.c.l.b16 %v923
        %v1521 = vunpack.c.h.b16 %v923
        %v1522 = vunpack.c.l.b16 %v924
        %v1523 = vunpack.c.h.b16 %v924
        %v1524 = vunpack.c.l.b16 %v925
        %v1525 = vunpack.c.h.b16 %v925
        %v1526 = vunpack.c.l.b16 %v926
        %v1527 = vunpack.c.h.b16 %v926
        %v1528 = vunpack.c.l.b16 %v927
        %v1529 = vunpack.c.h.b16 %v927
        %v1530 = vunpack.c.l.b16 %v928
        %v1531 = vunpack.c.h.b16 %v928
        %v1532 = vunpack.c.l.b16 %v929
        %v1533 = vunpack.c.h.b16 %v929
        %v1534 = vunpack.c.l.b16 %v930
        %v1535 = vunpack.c.h.b16 %v930
        %v1536 = vunpack.c.l.b16 %v931
        %v1537 = vunpack.c.h.b16 %v931
        %v1538 = vunpack.c.l.b16 %v932
        %v1539 = vunpack.c.h.b16 %v932
        %v1540 = vunpack.c.l.b16 %v933
        %v1541 = vunpack.c.h.b16 %v933
        %v1542 = vunpack.c.l.b16 %v934
        %v1543 = vunpack.c.h.b16 %v934
        %v1544 = vunpack.c.l.b16 %v935
        %v1545 = vunpack.c.h.b16 %v935
        %v1546 = vunpack.c.l.b16 %v936
        %v1547 = vunpack.c.h.b16 %v936
        %v1548 = vunpack.c.l.b16 %v937
        %v1549 = vunpack.c.h.b16 %v937
        %v1550 = vunpack.c.l.b16 %v938
        %v1551 = vunpack.c.h.b16 %v938
        %v1552 = vunpack.c.l.b16 %v939
        %v1553 = vunpack.c.h.b16 %v939
        %v1554 = vunpack.c.l.b16 %v940
        %v1555 = vunpack.c.h.b16 %v940
        %v1556 = vunpack.c.l.b16 %v941
        %v1557 = vunpack.c.h.b16 %v941
        %v1558 = vunpack.c.l.b16 %v942
        %v1559 = vunpack.c.h.b16 %v942
        %v1560 = vunpack.c.l.b16 %v943
        %v1561 = vunpack.c.h.b16 %v943
        %v1562 = vunpack.c.l.b16 %v944
        %v1563 = vunpack.c.h.b16 %v944
        %v1564 = vunpack.c.l.b16 %v945
        %v1565 = vunpack.c.h.b16 %v945
        %v1566 = vunpack.c.l.b16 %v946
        %v1567 = vunpack.c.h.b16 %v946
        %v1568 = vunpack.c.l.b16 %v947
        %v1569 = vunpack.c.h.b16 %v947
        %v1570 = vunpack.c.l.b16 %v948
        %v1571 = vunpack.c.h.b16 %v948
        %v1572 = vunpack.c.l.b16 %v949
        %v1573 = vunpack.c.h.b16 %v949
        %v1574 = vunpack.c.l.b16 %v950
        %v1575 = vunpack.c.h.b16 %v950
        %v1576 = vunpack.c.l.b16 %v951
        %v1577 = vunpack.c.h.b16 %v951
        %v1578 = vunpack.c.l.b16 %v952
        %v1579 = vunpack.c.h.b16 %v952
        %v1580 = vunpack.c.l.b16 %v953
        %v1581 = vunpack.c.h.b16 %v953
        %v1582 = vunpack.c.l.b16 %v954
        %v1583 = vunpack.c.h.b16 %v954
        %v1584 = vunpack.c.l.b16 %v955
        %v1585 = vunpack.c.h.b16 %v955
        %v1586 = vunpack.c.l.b16 %v956
        %v1587 = vunpack.c.h.b16 %v956
        %v1588 = vunpack.c.l.b16 %v957
        %v1589 = vunpack.c.h.b16 %v957
        %v1590 = vunpack.c.l.b16 %v958
        %v1591 = vunpack.c.h.b16 %v958
        %v1592 = vunpack.c.l.b16 %v959
        %v1593 = vunpack.c.h.b16 %v959
        %v1594 = vunpack.c.l.b16 %v960
        %v1595 = vunpack.c.h.b16 %v960
        %v1596 = vunpack.c.l.b16 %v961
        %v1597 = vunpack.c.h.b16 %v961
        %v1598 = vunpack.c.l.b16 %v962
        %v1599 = vunpack.c.h.b16 %v962
        %v1600 = vunpack.c.l.b16 %v963
        %v1601 = vunpack.c.h.b16 %v963
        %v1602 = vunpack.c.l.b16 %v964
        %v1603 = vunpack.c.h.b16 %v964
        %v1604 = vunpack.c.l.b16 %v965
        %v1605 = vunpack.c.h.b16 %v965
        %v1606 = vunpack.c.l.b16 %v966
        %v1607 = vunpack.c.h.b16 %v966
        %v1608 = vunpack.c.l.b16 %v967
        %v1609 = vunpack.c.h.b16 %v967
        %v1610 = vunpack.c.l.b16 %v968
        %v1611 = vunpack.c.h.b16 %v968
        %v1612 = vunpack.c.l.b16 %v969
        %v1613 = vunpack.c.h.b16 %v969
        %v1614 = vunpack.c.l.b16 %v970
        %v1615 = vunpack.c.h.b16 %v970
        %v1616 = vunpack.c.l.b16 %v971
        %v1617 = vunpack.c.h.b16 %v971
        %v1618 = vunpack.c.l.b16 %v972
        %v1619 = vunpack.c.h.b16 %v972
        %v1620 = vunpack.c.l.b16 %v973
        %v1621 = vunpack.c.h.b16 %v973
        %v1622 = vunpack.c.l.b16 %v974
        %v1623 = vunpack.c.h.b16 %v974
        %v1624 = vunpack.c.l.b16 %v975
        %v1625 = vunpack.c.h.b16 %v975
        %v1626 = vunpack.c.l.b16 %v976
        %v1627 = vunpack.c.h.b16 %v976
        %v1628 = vunpack.c.l.b16 %v977
        %v1629 = vunpack.c.h.b16 %v977
        %v1630 = vunpack.c.l.b16 %v978
        %v1631 = vunpack.c.h.b16 %v978
        %v1632 = vunpack.c.l.b16 %v979
        %v1633 = vunpack.c.h.b16 %v979
        %v1634 = vunpack.c.l.b16 %v980
        %v1635 = vunpack.c.h.b16 %v980
        %v1636 = vunpack.c.l.b16 %v981
        %v1637 = vunpack.c.h.b16 %v981
        %v1638 = vunpack.c.l.b16 %v982
        %v1639 = vunpack.c.h.b16 %v982
        %v1640 = vunpack.c.l.b16 %v983
        %v1641 = vunpack.c.h.b16 %v983
        %v1642 = vunpack.c.l.b16 %v984
        %v1643 = vunpack.c.h.b16 %v984
        %v1644 = vunpack.c.l.b16 %v985
        %v1645 = vunpack.c.h.b16 %v985
        %v1646 = vunpack.c.l.b16 %v986
        %v1647 = vunpack.c.h.b16 %v986
        %v1648 = vunpack.c.l.b16 %v987
        %v1649 = vunpack.c.h.b16 %v987
        %v1650 = vunpack.c.l.b16 %v988
        %v1651 = vunpack.c.h.b16 %v988
        %v1652 = vunpack.c.l.b16 %v989
        %v1653 = vunpack.c.h.b16 %v989
        %v1654 = vunpack.c.l.b16 %v990
        %v1655 = vunpack.c.h.b16 %v990
        %v1656 = vunpack.c.l.b16 %v991
        %v1657 = vunpack.c.h.b16 %v991
        %v1658 = vunpack.c.l.b16 %v992
        %v1659 = vunpack.c.h.b16 %v992
        %v1660 = vunpack.c.l.b16 %v993
        %v1661 = vunpack.c.h.b16 %v993
        %v1662 = vunpack.c.l.b16 %v994
        %v1663 = vunpack.c.h.b16 %v994
        %v1664 = vunpack.c.l.b16 %v995
        %v1665 = vunpack.c.h.b16 %v995
        %v1666 = vunpack.c.l.b16 %v996
        %v1667 = vunpack.c.h.b16 %v996
        %v1668 = vunpack.c.l.b16 %v997
        %v1669 = vunpack.c.h.b16 %v997
        %v1670 = vunpack.c.l.b16 %v998
        %v1671 = vunpack.c.h.b16 %v998
        %v1672 = vunpack.c.l.b16 %v999
        %v1673 = vunpack.c.h.b16 %v999
        %v1674 = vunpack.c.l.b16 %v1000
        %v1675 = vunpack.c.h.b16 %v1000
        %v1676 = vunpack.c.l.b16 %v1001
        %v1677 = vunpack.c.h.b16 %v1001
        %v1678 = vunpack.c.l.b16 %v1002
        %v1679 = vunpack.c.h.b16 %v1002
        %v1680 = vunpack.c.l.b16 %v1003
        %v1681 = vunpack.c.h.b16 %v1003
        %v1682 = vunpack.c.l.b16 %v1004
        %v1683 = vunpack.c.h.b16 %v1004
        %v1684 = vunpack.c.l.b16 %v1005
        %v1685 = vunpack.c.h.b16 %v1005
        %v1686 = vunpack.c.l.b16 %v1006
        %v1687 = vunpack.c.h.b16 %v1006
        %v1688 = vunpack.c.l.b16 %v1007
        %v1689 = vunpack.c.h.b16 %v1007
        %v1690 = vunpack.c.l.b16 %v1008
        %v1691 = vunpack.c.h.b16 %v1008
        %v1692 = vunpack.c.l.b16 %v1009
        %v1693 = vunpack.c.h.b16 %v1009
        %v1694 = vunpack.c.l.b16 %v1010
        %v1695 = vunpack.c.h.b16 %v1010
        %v1696 = vunpack.c.l.b16 %v1011
        %v1697 = vunpack.c.h.b16 %v1011
        %v1698 = vunpack.c.l.b16 %v1012
        %v1699 = vunpack.c.h.b16 %v1012
        %v1700 = vunpack.c.l.b16 %v1013
        %v1701 = vunpack.c.h.b16 %v1013
        %v1702 = vunpack.c.l.b16 %v1014
        %v1703 = vunpack.c.h.b16 %v1014
        %v1704 = vunpack.c.l.b16 %v1015
        %v1705 = vunpack.c.h.b16 %v1015
        %v1706 = vunpack.c.l.b16 %v1016
        %v1707 = vunpack.c.h.b16 %v1016
        %v1708 = vunpack.c.l.b16 %v1017
        %v1709 = vunpack.c.h.b16 %v1017
        %v1710 = vunpack.c.l.b16 %v1018
        %v1711 = vunpack.c.h.b16 %v1018
        %v1712 = vunpack.c.l.b16 %v1019
        %v1713 = vunpack.c.h.b16 %v1019
        %v1714 = vunpack.c.l.b16 %v1020
        %v1715 = vunpack.c.h.b16 %v1020
        %v1716 = vunpack.c.l.b16 %v1021
        %v1717 = vunpack.c.h.b16 %v1021
        %v1718 = vunpack.c.l.b16 %v1022
        %v1719 = vunpack.c.h.b16 %v1022
        %v1720 = vunpack.c.l.b16 %v1023
        %v1721 = vunpack.c.h.b16 %v1023
        %v1722 = vunpack.c.l.b16 %v1024
        %v1723 = vunpack.c.h.b16 %v1024
        %v1724 = vunpack.c.l.b16 %v1025
        %v1725 = vunpack.c.h.b16 %v1025
        %v1726 = vunpack.c.l.b16 %v1026
        %v1727 = vunpack.c.h.b16 %v1026
        %v1728 = vunpack.c.l.b16 %v1027
        %v1729 = vunpack.c.h.b16 %v1027
        %v1730 = vunpack.c.l.b16 %v1028
        %v1731 = vunpack.c.h.b16 %v1028
        %v1732 = vunpack.c.l.b16 %v1029
        %v1733 = vunpack.c.h.b16 %v1029
        %v1734 = vunpack.c.l.b16 %v1030
        %v1735 = vunpack.c.h.b16 %v1030
        %v1736 = vunpack.c.l.b16 %v1031
        %v1737 = vunpack.c.h.b16 %v1031
        %v1738 = vunpack.c.l.b16 %v1032
        %v1739 = vunpack.c.h.b16 %v1032
        %v1740 = vunpack.c.l.b16 %v1033
        %v1741 = vunpack.c.h.b16 %v1033
        %v1742 = vunpack.c.l.b16 %v1034
        %v1743 = vunpack.c.h.b16 %v1034
        %v1744 = vunpack.c.l.b16 %v1035
        %v1745 = vunpack.c.h.b16 %v1035
        %v1746 = vunpack.c.l.b16 %v1036
        %v1747 = vunpack.c.h.b16 %v1036
        %v1748 = vunpack.c.l.b16 %v1037
        %v1749 = vunpack.c.h.b16 %v1037
        %v1750 = vunpack.c.l.b16 %v1038
        %v1751 = vunpack.c.h.b16 %v1038
        %v1752 = vunpack.c.l.b16 %v1039
        %v1753 = vunpack.c.h.b16 %v1039
        %v1754 = vunpack.c.l.b16 %v1040
        %v1755 = vunpack.c.h.b16 %v1040
        %v1756 = vunpack.c.l.b16 %v1041
        %v1757 = vunpack.c.h.b16 %v1041
        %v1758 = vunpack.c.l.b16 %v1042
        %v1759 = vunpack.c.h.b16 %v1042
        %v1760 = vunpack.c.l.b16 %v1043
        %v1761 = vunpack.c.h.b16 %v1043
        %v1762 = vunpack.c.l.b16 %v1044
        %v1763 = vunpack.c.h.b16 %v1044
        %v1764 = vunpack.c.l.b16 %v1045
        %v1765 = vunpack.c.h.b16 %v1045
        %v1766 = vunpack.c.l.b16 %v1046
        %v1767 = vunpack.c.h.b16 %v1046
        %v1768 = vunpack.c.l.b16 %v1047
        %v1769 = vunpack.c.h.b16 %v1047
        %v1770 = vunpack.c.l.b16 %v1048
        %v1771 = vunpack.c.h.b16 %v1048
        %v1772 = vunpack.c.l.b16 %v1049
        %v1773 = vunpack.c.h.b16 %v1049
        %v1774 = vunpack.c.l.b16 %v1050
        %v1775 = vunpack.c.h.b16 %v1050
        %v1776 = vunpack.c.l.b16 %v1051
        %v1777 = vunpack.c.h.b16 %v1051
        %v1778 = vunpack.c.l.b16 %v1052
        %v1779 = vunpack.c.h.b16 %v1052
        %v1780 = vunpack.c.l.b16 %v1053
        %v1781 = vunpack.c.h.b16 %v1053
        %v1782 = vunpack.c.l.b16 %v1054
        %v1783 = vunpack.c.h.b16 %v1054
        %v1784 = vunpack.c.l.b16 %v1055
        %v1785 = vunpack.c.h.b16 %v1055
        %v1786 = vunpack.c.l.b16 %v1056
        %v1787 = vunpack.c.h.b16 %v1056
        %v1788 = vunpack.c.l.b16 %v1057
        %v1789 = vunpack.c.h.b16 %v1057
        %v1790 = vunpack.c.l.b16 %v1058
        %v1791 = vunpack.c.h.b16 %v1058
        %v1792 = vunpack.c.l.b16 %v1059
        %v1793 = vunpack.c.h.b16 %v1059
        %v1794 = vunpack.c.l.b16 %v1060
        %v1795 = vunpack.c.h.b16 %v1060
        %v1796 = vunpack.c.l.b16 %v1061
        %v1797 = vunpack.c.h.b16 %v1061
        %v1798 = vunpack.c.l.b16 %v1062
        %v1799 = vunpack.c.h.b16 %v1062
        %v1800 = vunpack.c.l.b16 %v1063
        %v1801 = vunpack.c.h.b16 %v1063
        %v1802 = vunpack.c.l.b16 %v1064
        %v1803 = vunpack.c.h.b16 %v1064
        %v1804 = vunpack.c.l.b16 %v1065
        %v1805 = vunpack.c.h.b16 %v1065
        %v1806 = vunpack.c.l.b16 %v1066
        %v1807 = vunpack.c.h.b16 %v1066
        %v1808 = vunpack.c.l.b16 %v1067
        %v1809 = vunpack.c.h.b16 %v1067
        %v1810 = vunpack.c.l.b16 %v1068
        %v1811 = vunpack.c.h.b16 %v1068
        %v1812 = vunpack.c.l.b16 %v1069
        %v1813 = vunpack.c.h.b16 %v1069
        %v1814 = vunpack.c.l.b16 %v1070
        %v1815 = vunpack.c.h.b16 %v1070
        %v1816 = vunpack.c.l.b16 %v1071
        %v1817 = vunpack.c.h.b16 %v1071
        %v1818 = vunpack.c.l.b16 %v1072
        %v1819 = vunpack.c.h.b16 %v1072
        %v1820 = vunpack.c.l.b16 %v1073
        %v1821 = vunpack.c.h.b16 %v1073
        %v1822 = vunpack.c.l.b16 %v1074
        %v1823 = vunpack.c.h.b16 %v1074
        %v1824 = vunpack.c.l.b16 %v1075
        %v1825 = vunpack.c.h.b16 %v1075
        %v1826 = vunpack.c.l.b16 %v1076
        %v1827 = vunpack.c.h.b16 %v1076
        %v1828 = vunpack.c.l.b16 %v1077
        %v1829 = vunpack.c.h.b16 %v1077
        %v1830 = vunpack.c.l.b16 %v1078
        %v1831 = vunpack.c.h.b16 %v1078
        %v1832 = vunpack.c.l.b16 %v1079
        %v1833 = vunpack.c.h.b16 %v1079
        %v1834 = vunpack.c.l.b16 %v1080
        %v1835 = vunpack.c.h.b16 %v1080
        %v1836 = vunpack.c.l.b16 %v1081
        %v1837 = vunpack.c.h.b16 %v1081
        %v1838 = vunpack.c.l.b16 %v1082
        %v1839 = vunpack.c.h.b16 %v1082
        %v1840 = vunpack.c.l.b16 %v1083
        %v1841 = vunpack.c.h.b16 %v1083
        %v1842 = vunpack.c.l.b16 %v1084
        %v1843 = vunpack.c.h.b16 %v1084
        %v1844 = vunpack.c.l.b16 %v1085
        %v1845 = vunpack.c.h.b16 %v1085
        %v1846 = vunpack.c.l.b16 %v1086
        %v1847 = vunpack.c.h.b16 %v1086
        %v1848 = vunpack.c.l.b16 %v1087
        %v1849 = vunpack.c.h.b16 %v1087
        %v1850 = vunpack.c.l.b16 %v1088
        %v1851 = vunpack.c.h.b16 %v1088
        %v1852 = vunpack.c.l.b16 %v1089
        %v1853 = vunpack.c.h.b16 %v1089
        %v1854 = vunpack.c.l.b16 %v1090
        %v1855 = vunpack.c.h.b16 %v1090
        %v1856 = vunpack.c.l.b16 %v1091
        %v1857 = vunpack.c.h.b16 %v1091
        %v1858 = vunpack.c.l.b16 %v1092
        %v1859 = vunpack.c.h.b16 %v1092
        %v1860 = vunpack.c.l.b16 %v1093
        %v1861 = vunpack.c.h.b16 %v1093
        %v1862 = vunpack.c.l.b16 %v1094
        %v1863 = vunpack.c.h.b16 %v1094
        %v1864 = vunpack.c.l.b16 %v1095
        %v1865 = vunpack.c.h.b16 %v1095
        %v1866 = vunpack.c.l.b16 %v1096
        %v1867 = vunpack.c.h.b16 %v1096
        %v1868 = vunpack.c.l.b16 %v1097
        %v1869 = vunpack.c.h.b16 %v1097
        %v1870 = vunpack.c.l.b16 %v1098
        %v1871 = vunpack.c.h.b16 %v1098
        %v1872 = vunpack.c.l.b16 %v1099
        %v1873 = vunpack.c.h.b16 %v1099
        %v1874 = vunpack.c.l.b16 %v1100
        %v1875 = vunpack.c.h.b16 %v1100
        %v1876 = vunpack.c.l.b16 %v1101
        %v1877 = vunpack.c.h.b16 %v1101
        %v1878 = vunpack.c.l.b16 %v1102
        %v1879 = vunpack.c.h.b16 %v1102
        %v1880 = vunpack.c.l.b16 %v1103
        %v1881 = vunpack.c.h.b16 %v1103
        %v1882 = vunpack.c.l.b16 %v1104
        %v1883 = vunpack.c.h.b16 %v1104
        %v1884 = vunpack.c.l.b16 %v1105
        %v1885 = vunpack.c.h.b16 %v1105
        %v1886 = vunpack.c.l.b16 %v1106
        %v1887 = vunpack.c.h.b16 %v1106
        %v1888 = vunpack.c.l.b16 %v1107
        %v1889 = vunpack.c.h.b16 %v1107
        %v1890 = vunpack.c.l.b16 %v1108
        %v1891 = vunpack.c.h.b16 %v1108
        %v1892 = vunpack.c.l.b16 %v1109
        %v1893 = vunpack.c.h.b16 %v1109
        %v1894 = vunpack.c.l.b16 %v1110
        %v1895 = vunpack.c.h.b16 %v1110
        %v1896 = vunpack.c.l.b16 %v1111
        %v1897 = vunpack.c.h.b16 %v1111
        %v1898 = vunpack.c.l.b16 %v1112
        %v1899 = vunpack.c.h.b16 %v1112
        %v1900 = vunpack.c.l.b16 %v1113
        %v1901 = vunpack.c.h.b16 %v1113
        %v1902 = vunpack.c.l.b16 %v1114
        %v1903 = vunpack.c.h.b16 %v1114
        %v1904 = vunpack.c.l.b16 %v1115
        %v1905 = vunpack.c.h.b16 %v1115
        %v1906 = vunpack.c.l.b16 %v1116
        %v1907 = vunpack.c.h.b16 %v1116
        %v1908 = vunpack.c.l.b16 %v1117
        %v1909 = vunpack.c.h.b16 %v1117
        %v1910 = vunpack.c.l.b16 %v1118
        %v1911 = vunpack.c.h.b16 %v1118
        %v1912 = vunpack.c.l.b16 %v1119
        %v1913 = vunpack.c.h.b16 %v1119
        %v1914 = vunpack.c.l.b16 %v1120
        %v1915 = vunpack.c.h.b16 %v1120
        %v1916 = vunpack.c.l.b16 %v1121
        %v1917 = vunpack.c.h.b16 %v1121
        %v1918 = vpack.c.b16 %v1410, %v1406
        %v1919 = vpack.c.b16 %v1411, %v1407
        %v1920 = vpack.c.b16 %v1412, %v1408
        %v1921 = vpack.c.b16 %v1413, %v1409
        %v1922 = vpack.c.b16 %v1418, %v1414
        %v1923 = vpack.c.b16 %v1419, %v1415
        %v1924 = vpack.c.b16 %v1420, %v1416
        %v1925 = vpack.c.b16 %v1421, %v1417
        %v1926 = vpack.c.b16 %v1426, %v1422
        %v1927 = vpack.c.b16 %v1427, %v1423
        %v1928 = vpack.c.b16 %v1428, %v1424
        %v1929 = vpack.c.b16 %v1429, %v1425
        %v1930 = vpack.c.b16 %v1434, %v1430
        %v1931 = vpack.c.b16 %v1435, %v1431
        %v1932 = vpack.c.b16 %v1436, %v1432
        %v1933 = vpack.c.b16 %v1437, %v1433
        %v1934 = vpack.c.b16 %v1442, %v1438
        %v1935 = vpack.c.b16 %v1443, %v1439
        %v1936 = vpack.c.b16 %v1444, %v1440
        %v1937 = vpack.c.b16 %v1445, %v1441
        %v1938 = vpack.c.b16 %v1450, %v1446
        %v1939 = vpack.c.b16 %v1451, %v1447
        %v1940 = vpack.c.b16 %v1452, %v1448
        %v1941 = vpack.c.b16 %v1453, %v1449
        %v1942 = vpack.c.b16 %v1458, %v1454
        %v1943 = vpack.c.b16 %v1459, %v1455
        %v1944 = vpack.c.b16 %v1460, %v1456
        %v1945 = vpack.c.b16 %v1461, %v1457
        %v1946 = vpack.c.b16 %v1466, %v1462
        %v1947 = vpack.c.b16 %v1467, %v1463
        %v1948 = vpack.c.b16 %v1468, %v1464
        %v1949 = vpack.c.b16 %v1469, %v1465
        %v1950 = vpack.c.b16 %v1474, %v1470
        %v1951 = vpack.c.b16 %v1475, %v1471
        %v1952 = vpack.c.b16 %v1476, %v1472
        %v1953 = vpack.c.b16 %v1477, %v1473
        %v1954 = vpack.c.b16 %v1482, %v1478
        %v1955 = vpack.c.b16 %v1483, %v1479
        %v1956 = vpack.c.b16 %v1484, %v1480
        %v1957 = vpack.c.b16 %v1485, %v1481
        %v1958 = vpack.c.b16 %v1490, %v1486
        %v1959 = vpack.c.b16 %v1491, %v1487
        %v1960 = vpack.c.b16 %v1492, %v1488
        %v1961 = vpack.c.b16 %v1493, %v1489
        %v1962 = vpack.c.b16 %v1498, %v1494
        %v1963 = vpack.c.b16 %v1499, %v1495
        %v1964 = vpack.c.b16 %v1500, %v1496
        %v1965 = vpack.c.b16 %v1501, %v1497
        %v1966 = vpack.c.b16 %v1506, %v1502
        %v1967 = vpack.c.b16 %v1507, %v1503
        %v1968 = vpack.c.b16 %v1508, %v1504
        %v1969 = vpack.c.b16 %v1509, %v1505
        %v1970 = vpack.c.b16 %v1514, %v1510
        %v1971 = vpack.c.b16 %v1515, %v1511
        %v1972 = vpack.c.b16 %v1516, %v1512
        %v1973 = vpack.c.b16 %v1517, %v1513
        %v1974 = vpack.c.b16 %v1522, %v1518
        %v1975 = vpack.c.b16 %v1523, %v1519
        %v1976 = vpack.c.b16 %v1524, %v1520
        %v1977 = vpack.c.b16 %v1525, %v1521
        %v1978 = vpack.c.b16 %v1530, %v1526
        %v1979 = vpack.c.b16 %v1531, %v1527
        %v1980 = vpack.c.b16 %v1532, %v1528
        %v1981 = vpack.c.b16 %v1533, %v1529
        %v1982 = vpack.c.b16 %v1538, %v1534
        %v1983 = vpack.c.b16 %v1539, %v1535
        %v1984 = vpack.c.b16 %v1540, %v1536
        %v1985 = vpack.c.b16 %v1541, %v1537
        %v1986 = vpack.c.b16 %v1546, %v1542
        %v1987 = vpack.c.b16 %v1547, %v1543
        %v1988 = vpack.c.b16 %v1548, %v1544
        %v1989 = vpack.c.b16 %v1549, %v1545
        %v1990 = vpack.c.b16 %v1554, %v1550
        %v1991 = vpack.c.b16 %v1555, %v1551
        %v1992 = vpack.c.b16 %v1556, %v1552
        %v1993 = vpack.c.b16 %v1557, %v1553
        %v1994 = vpack.c.b16 %v1562, %v1558
        %v1995 = vpack.c.b16 %v1563, %v1559
        %v1996 = vpack.c.b16 %v1564, %v1560
        %v1997 = vpack.c.b16 %v1565, %v1561
        %v1998 = vpack.c.b16 %v1570, %v1566
        %v1999 = vpack.c.b16 %v1571, %v1567
        %v2000 = vpack.c.b16 %v1572, %v1568
        %v2001 = vpack.c.b16 %v1573, %v1569
        %v2002 = vpack.c.b16 %v1578, %v1574
        %v2003 = vpack.c.b16 %v1579, %v1575
        %v2004 = vpack.c.b16 %v1580, %v1576
        %v2005 = vpack.c.b16 %v1581, %v1577
        %v2006 = vpack.c.b16 %v1586, %v1582
        %v2007 = vpack.c.b16 %v1587, %v1583
        %v2008 = vpack.c.b16 %v1588, %v1584
        %v2009 = vpack.c.b16 %v1589, %v1585
        %v2010 = vpack.c.b16 %v1594, %v1590
        %v2011 = vpack.c.b16 %v1595, %v1591
        %v2012 = vpack.c.b16 %v1596, %v1592
        %v2013 = vpack.c.b16 %v1597, %v1593
        %v2014 = vpack.c.b16 %v1602, %v1598
        %v2015 = vpack.c.b16 %v1603, %v1599
        %v2016 = vpack.c.b16 %v1604, %v1600
        %v2017 = vpack.c.b16 %v1605, %v1601
        %v2018 = vpack.c.b16 %v1610, %v1606
        %v2019 = vpack.c.b16 %v1611, %v1607
        %v2020 = vpack.c.b16 %v1612, %v1608
        %v2021 = vpack.c.b16 %v1613, %v1609
        %v2022 = vpack.c.b16 %v1618, %v1614
        %v2023 = vpack.c.b16 %v1619, %v1615
        %v2024 = vpack.c.b16 %v1620, %v1616
        %v2025 = vpack.c.b16 %v1621, %v1617
        %v2026 = vpack.c.b16 %v1626, %v1622
        %v2027 = vpack.c.b16 %v1627, %v1623
        %v2028 = vpack.c.b16 %v1628, %v1624
        %v2029 = vpack.c.b16 %v1629, %v1625
        %v2030 = vpack.c.b16 %v1634, %v1630
        %v2031 = vpack.c.b16 %v1635, %v1631
        %v2032 = vpack.c.b16 %v1636, %v1632
        %v2033 = vpack.c.b16 %v1637, %v1633
        %v2034 = vpack.c.b16 %v1642, %v1638
        %v2035 = vpack.c.b16 %v1643, %v1639
        %v2036 = vpack.c.b16 %v1644, %v1640
        %v2037 = vpack.c.b16 %v1645, %v1641
        %v2038 = vpack.c.b16 %v1650, %v1646
        %v2039 = vpack.c.b16 %v1651, %v1647
        %v2040 = vpack.c.b16 %v1652, %v1648
        %v2041 = vpack.c.b16 %v1653, %v1649
        %v2042 = vpack.c.b16 %v1658, %v1654
        %v2043 = vpack.c.b16 %v1659, %v1655
        %v2044 = vpack.c.b16 %v1660, %v1656
        %v2045 = vpack.c.b16 %v1661, %v1657
        %v2046 = vpack.c.b16 %v1666, %v1662
        %v2047 = vpack.c.b16 %v1667, %v1663
        %v2048 = vpack.c.b16 %v1668, %v1664
        %v2049 = vpack.c.b16 %v1669, %v1665
        %v2050 = vpack.c.b16 %v1674, %v1670
        %v2051 = vpack.c.b16 %v1675, %v1671
        %v2052 = vpack.c.b16 %v1676, %v1672
        %v2053 = vpack.c.b16 %v1677, %v1673
        %v2054 = vpack.c.b16 %v1682, %v1678
        %v2055 = vpack.c.b16 %v1683, %v1679
        %v2056 = vpack.c.b16 %v1684, %v1680
        %v2057 = vpack.c.b16 %v1685, %v1681
        %v2058 = vpack.c.b16 %v1690, %v1686
        %v2059 = vpack.c.b16 %v1691, %v1687
        %v2060 = vpack.c.b16 %v1692, %v1688
        %v2061 = vpack.c.b16 %v1693, %v1689
        %v2062 = vpack.c.b16 %v1698, %v1694
        %v2063 = vpack.c.b16 %v1699, %v1695
        %v2064 = vpack.c.b16 %v1700, %v1696
        %v2065 = vpack.c.b16 %v1701, %v1697
        %v2066 = vpack.c.b16 %v1706, %v1702
        %v2067 = vpack.c.b16 %v1707, %v1703
        %v2068 = vpack.c.b16 %v1708, %v1704
        %v2069 = vpack.c.b16 %v1709, %v1705
        %v2070 = vpack.c.b16 %v1714, %v1710
        %v2071 = vpack.c.b16 %v1715, %v1711
        %v2072 = vpack.c.b16 %v1716, %v1712
        %v2073 = vpack.c.b16 %v1717, %v1713
        %v2074 = vpack.c.b16 %v1722, %v1718
        %v2075 = vpack.c.b16 %v1723, %v1719
        %v2076 = vpack.c.b16 %v1724, %v1720
        %v2077 = vpack.c.b16 %v1725, %v1721
        %v2078 = vpack.c.b16 %v1730, %v1726
        %v2079 = vpack.c.b16 %v1731, %v1727
        %v2080 = vpack.c.b16 %v1732, %v1728
        %v2081 = vpack.c.b16 %v1733, %v1729
        %v2082 = vpack.c.b16 %v1738, %v1734
        %v2083 = vpack.c.b16 %v1739, %v1735
        %v2084 = vpack.c.b16 %v1740, %v1736
        %v2085 = vpack.c.b16 %v1741, %v1737
        %v2086 = vpack.c.b16 %v1746, %v1742
        %v2087 = vpack.c.b16 %v1747, %v1743
        %v2088 = vpack.c.b16 %v1748, %v1744
        %v2089 = vpack.c.b16 %v1749, %v1745
        %v2090 = vpack.c.b16 %v1754, %v1750
        %v2091 = vpack.c.b16 %v1755, %v1751
        %v2092 = vpack.c.b16 %v1756, %v1752
        %v2093 = vpack.c.b16 %v1757, %v1753
        %v2094 = vpack.c.b16 %v1762, %v1758
        %v2095 = vpack.c.b16 %v1763, %v1759
        %v2096 = vpack.c.b16 %v1764, %v1760
        %v2097 = vpack.c.b16 %v1765, %v1761
        %v2098 = vpack.c.b16 %v1770, %v1766
        %v2099 = vpack.c.b16 %v1771, %v1767
        %v2100 = vpack.c.b16 %v1772, %v1768
        %v2101 = vpack.c.b16 %v1773, %v1769
        %v2102 = vpack.c.b16 %v1778, %v1774
        %v2103 = vpack.c.b16 %v1779, %v1775
        %v2104 = vpack.c.b16 %v1780, %v1776
        %v2105 = vpack.c.b16 %v1781, %v1777
        %v2106 = vpack.c.b16 %v1786, %v1782
        %v2107 = vpack.c.b16 %v1787, %v1783
        %v2108 = vpack.c.b16 %v1788, %v1784
        %v2109 = vpack.c.b16 %v1789, %v1785
        %v2110 = vpack.c.b16 %v1794, %v1790
        %v2111 = vpack.c.b16 %v1795, %v1791
        %v2112 = vpack.c.b16 %v1796, %v1792
        %v2113 = vpack.c.b16 %v1797, %v1793
        %v2114 = vpack.c.b16 %v1802, %v1798
        %v2115 = vpack.c.b16 %v1803, %v1799
        %v2116 = vpack.c.b16 %v1804, %v1800
        %v2117 = vpack.c.b16 %v1805, %v1801
        %v2118 = vpack.c.b16 %v1810, %v1806
        %v2119 = vpack.c.b16 %v1811, %v1807
        %v2120 = vpack.c.b16 %v1812, %v1808
        %v2121 = vpack.c.b16 %v1813, %v1809
        %v2122 = vpack.c.b16 %v1818, %v1814
        %v2123 = vpack.c.b16 %v1819, %v1815
        %v2124 = vpack.c.b16 %v1820, %v1816
        %v2125 = vpack.c.b16 %v1821, %v1817
        %v2126 = vpack.c.b16 %v1826, %v1822
        %v2127 = vpack.c.b16 %v1827, %v1823
        %v2128 = vpack.c.b16 %v1828, %v1824
        %v2129 = vpack.c.b16 %v1829, %v1825
        %v2130 = vpack.c.b16 %v1834, %v1830
        %v2131 = vpack.c.b16 %v1835, %v1831
        %v2132 = vpack.c.b16 %v1836, %v1832
        %v2133 = vpack.c.b16 %v1837, %v1833
        %v2134 = vpack.c.b16 %v1842, %v1838
        %v2135 = vpack.c.b16 %v1843, %v1839
        %v2136 = vpack.c.b16 %v1844, %v1840
        %v2137 = vpack.c.b16 %v1845, %v1841
        %v2138 = vpack.c.b16 %v1850, %v1846
        %v2139 = vpack.c.b16 %v1851, %v1847
        %v2140 = vpack.c.b16 %v1852, %v1848
        %v2141 = vpack.c.b16 %v1853, %v1849
        %v2142 = vpack.c.b16 %v1858, %v1854
        %v2143 = vpack.c.b16 %v1859, %v1855
        %v2144 = vpack.c.b16 %v1860, %v1856
        %v2145 = vpack.c.b16 %v1861, %v1857
        %v2146 = vpack.c.b16 %v1866, %v1862
        %v2147 = vpack.c.b16 %v1867, %v1863
        %v2148 = vpack.c.b16 %v1868, %v1864
        %v2149 = vpack.c.b16 %v1869, %v1865
        %v2150 = vpack.c.b16 %v1874, %v1870
        %v2151 = vpack.c.b16 %v1875, %v1871
        %v2152 = vpack.c.b16 %v1876, %v1872
        %v2153 = vpack.c.b16 %v1877, %v1873
        %v2154 = vpack.c.b16 %v1882, %v1878
        %v2155 = vpack.c.b16 %v1883, %v1879
        %v2156 = vpack.c.b16 %v1884, %v1880
        %v2157 = vpack.c.b16 %v1885, %v1881
        %v2158 = vpack.c.b16 %v1890, %v1886
        %v2159 = vpack.c.b16 %v1891, %v1887
        %v2160 = vpack.c.b16 %v1892, %v1888
        %v2161 = vpack.c.b16 %v1893, %v1889
        %v2162 = vpack.c.b16 %v1898, %v1894
        %v2163 = vpack.c.b16 %v1899, %v1895
        %v2164 = vpack.c.b16 %v1900, %v1896
        %v2165 = vpack.c.b16 %v1901, %v1897
        %v2166 = vpack.c.b16 %v1906, %v1902
        %v2167 = vpack.c.b16 %v1907, %v1903
        %v2168 = vpack.c.b16 %v1908, %v1904
        %v2169 = vpack.c.b16 %v1909, %v1905
        %v2170 = vpack.c.b16 %v1914, %v1910
        %v2171 = vpack.c.b16 %v1915, %v1911
        %v2172 = vpack.c.b16 %v1916, %v1912
        %v2173 = vpack.c.b16 %v1917, %v1913
        %2430 = vmatprep.subr.bf16.mxu0 %v1919
        %2431 = vmatpush1.bf16.msra.mxu0 %v1918
        %2432 = vmatprep.subr.bf16.mxu0 %v1923
        %2433 = vmatpush1.bf16.msra.mxu0 %v1922
        %2434 = vmatprep.subr.bf16.mxu0 %v1927
        %2435 = vmatpush1.bf16.msra.mxu0 %v1926
        %2436 = vmatprep.subr.bf16.mxu0 %v1931
        %2437 = vmatpush1.bf16.msra.mxu0 %v1930
        %2438 = vmatprep.subr.bf16.mxu0 %v1935
        %2439 = vmatpush1.bf16.msra.mxu0 %v1934
        %2440 = vmatprep.subr.bf16.mxu0 %v1939
        %2441 = vmatpush1.bf16.msra.mxu0 %v1938
        %2442 = vmatprep.subr.bf16.mxu0 %v1943
        %2443 = vmatpush1.bf16.msra.mxu0 %v1942
        %2444 = vmatprep.subr.bf16.mxu0 %v1947
        %2445 = vmatpush1.bf16.msra.mxu0 %v1946
        %2446 = vmatprep.subr.bf16.mxu0 %v1951
        %2447 = vmatpush1.bf16.msra.mxu0 %v1950
        %2448 = vmatprep.subr.bf16.mxu0 %v1955
        %2449 = vmatpush1.bf16.msra.mxu0 %v1954
        %2450 = vmatprep.subr.bf16.mxu0 %v1959
        %2451 = vmatpush1.bf16.msra.mxu0 %v1958
        %2452 = vmatprep.subr.bf16.mxu0 %v1963
        %2453 = vmatpush1.bf16.msra.mxu0 %v1962
        %2454 = vmatprep.subr.bf16.mxu0 %v1967
        %2455 = vmatpush1.bf16.msra.mxu0 %v1966
        %2456 = vmatprep.subr.bf16.mxu0 %v1971
        %2457 = vmatpush1.bf16.msra.mxu0 %v1970
        %2458 = vmatprep.subr.bf16.mxu0 %v1975
        %2459 = vmatpush1.bf16.msra.mxu0 %v1974
        %2460 = vmatprep.subr.bf16.mxu0 %v1979
        %2461 = vmatpush1.bf16.msra.mxu0 %v1978
        %2462 = vmatprep.mubr.bf16.mxu0 %v1135
        %2463 = vmatmul.mubr.bf16.gmra.mrb[0].mxu0 %v1134
        %v2464 = vpop.f32.mrb[0].mxu0
        %v2465 = vadd.f32 0.0, %v2464
        %v2466 = vpop.f32.mrb[0].mxu0
        %v2467 = vadd.f32 0.0, %v2466
        %v2468 = vpop.f32.mrb[0].mxu0
        %v2469 = vpop.f32.mrb[0].mxu0
        %2470 = vdwg.mxu0
        %2471 = vmatprep.subr.bf16.mxu0 %v1983
        %2472 = vmatpush1.bf16.msra.mxu0 %v1982
        %2473 = vmatprep.subr.bf16.mxu0 %v1987
        %2474 = vmatpush1.bf16.msra.mxu0 %v1986
        %2475 = vmatprep.subr.bf16.mxu0 %v1991
        %2476 = vmatpush1.bf16.msra.mxu0 %v1990
        %2477 = vmatprep.subr.bf16.mxu0 %v1995
        %2478 = vmatpush1.bf16.msra.mxu0 %v1994
        %2479 = vmatprep.subr.bf16.mxu0 %v1999
        %2480 = vmatpush1.bf16.msra.mxu0 %v1998
        %2481 = vmatprep.subr.bf16.mxu0 %v2003
        %2482 = vmatpush1.bf16.msra.mxu0 %v2002
        %2483 = vmatprep.subr.bf16.mxu0 %v2007
        %2484 = vmatpush1.bf16.msra.mxu0 %v2006
        %2485 = vmatprep.subr.bf16.mxu0 %v2011
        %2486 = vmatpush1.bf16.msra.mxu0 %v2010
        %2487 = vmatprep.subr.bf16.mxu0 %v2015
        %2488 = vmatpush1.bf16.msra.mxu0 %v2014
        %2489 = vmatprep.subr.bf16.mxu0 %v2019
        %2490 = vmatpush1.bf16.msra.mxu0 %v2018
        %2491 = vmatprep.subr.bf16.mxu0 %v2023
        %2492 = vmatpush1.bf16.msra.mxu0 %v2022
        %2493 = vmatprep.subr.bf16.mxu0 %v2027
        %2494 = vmatpush1.bf16.msra.mxu0 %v2026
        %2495 = vmatprep.subr.bf16.mxu0 %v2031
        %2496 = vmatpush1.bf16.msra.mxu0 %v2030
        %2497 = vmatprep.subr.bf16.mxu0 %v2035
        %2498 = vmatpush1.bf16.msra.mxu0 %v2034
        %2499 = vmatprep.subr.bf16.mxu0 %v2039
        %2500 = vmatpush1.bf16.msra.mxu0 %v2038
        %2501 = vmatprep.subr.bf16.mxu0 %v2043
        %2502 = vmatpush1.bf16.msra.mxu0 %v2042
        %2503 = vmatprep.mubr.bf16.mxu0 %v1137
        %2504 = vmatmul.mubr.bf16.gmra.mrb[0].mxu0 %v1136
        %v2505 = vpop.f32.mrb[0].mxu0
        %v2506 = vadd.f32 %v2465, %v2505
        %v2507 = vpop.f32.mrb[0].mxu0
        %v2508 = vadd.f32 %v2467, %v2507
        %v2509 = vpop.f32.mrb[0].mxu0
        %v2510 = vpop.f32.mrb[0].mxu0
        %2511 = vdwg.mxu0
        %2512 = vmatprep.subr.bf16.mxu0 %v2047
        %2513 = vmatpush1.bf16.msra.mxu0 %v2046
        %2514 = vmatprep.subr.bf16.mxu0 %v2051
        %2515 = vmatpush1.bf16.msra.mxu0 %v2050
        %2516 = vmatprep.subr.bf16.mxu0 %v2055
        %2517 = vmatpush1.bf16.msra.mxu0 %v2054
        %2518 = vmatprep.subr.bf16.mxu0 %v2059
        %2519 = vmatpush1.bf16.msra.mxu0 %v2058
        %2520 = vmatprep.subr.bf16.mxu0 %v2063
        %2521 = vmatpush1.bf16.msra.mxu0 %v2062
        %2522 = vmatprep.subr.bf16.mxu0 %v2067
        %2523 = vmatpush1.bf16.msra.mxu0 %v2066
        %2524 = vmatprep.subr.bf16.mxu0 %v2071
        %2525 = vmatpush1.bf16.msra.mxu0 %v2070
        %2526 = vmatprep.subr.bf16.mxu0 %v2075
        %2527 = vmatpush1.bf16.msra.mxu0 %v2074
        %2528 = vmatprep.subr.bf16.mxu0 %v2079
        %2529 = vmatpush1.bf16.msra.mxu0 %v2078
        %2530 = vmatprep.subr.bf16.mxu0 %v2083
        %2531 = vmatpush1.bf16.msra.mxu0 %v2082
        %2532 = vmatprep.subr.bf16.mxu0 %v2087
        %2533 = vmatpush1.bf16.msra.mxu0 %v2086
        %2534 = vmatprep.subr.bf16.mxu0 %v2091
        %2535 = vmatpush1.bf16.msra.mxu0 %v2090
        %2536 = vmatprep.subr.bf16.mxu0 %v2095
        %2537 = vmatpush1.bf16.msra.mxu0 %v2094
        %2538 = vmatprep.subr.bf16.mxu0 %v2099
        %2539 = vmatpush1.bf16.msra.mxu0 %v2098
        %2540 = vmatprep.subr.bf16.mxu0 %v2103
        %2541 = vmatpush1.bf16.msra.mxu0 %v2102
        %2542 = vmatprep.subr.bf16.mxu0 %v2107
        %2543 = vmatpush1.bf16.msra.mxu0 %v2106
        %2544 = vmatprep.mubr.bf16.mxu0 %v1139
        %2545 = vmatmul.mubr.bf16.gmra.mrb[0].mxu0 %v1138
        %v2546 = vpop.f32.mrb[0].mxu0
        %v2547 = vadd.f32 %v2506, %v2546
        %v2548 = vpop.f32.mrb[0].mxu0
        %v2549 = vadd.f32 %v2508, %v2548
        %v2550 = vpop.f32.mrb[0].mxu0
        %v2551 = vpop.f32.mrb[0].mxu0
        %2552 = vdwg.mxu0
        %2553 = vmatprep.subr.bf16.mxu0 %v2111
        %2554 = vmatpush1.bf16.msra.mxu0 %v2110
        %2555 = vmatprep.subr.bf16.mxu0 %v2115
        %2556 = vmatpush1.bf16.msra.mxu0 %v2114
        %2557 = vmatprep.subr.bf16.mxu0 %v2119
        %2558 = vmatpush1.bf16.msra.mxu0 %v2118
        %2559 = vmatprep.subr.bf16.mxu0 %v2123
        %2560 = vmatpush1.bf16.msra.mxu0 %v2122
        %2561 = vmatprep.subr.bf16.mxu0 %v2127
        %2562 = vmatpush1.bf16.msra.mxu0 %v2126
        %2563 = vmatprep.subr.bf16.mxu0 %v2131
        %2564 = vmatpush1.bf16.msra.mxu0 %v2130
        %2565 = vmatprep.subr.bf16.mxu0 %v2135
        %2566 = vmatpush1.bf16.msra.mxu0 %v2134
        %2567 = vmatprep.subr.bf16.mxu0 %v2139
        %2568 = vmatpush1.bf16.msra.mxu0 %v2138
        %2569 = vmatprep.subr.bf16.mxu0 %v2143
        %2570 = vmatpush1.bf16.msra.mxu0 %v2142
        %2571 = vmatprep.subr.bf16.mxu0 %v2147
        %2572 = vmatpush1.bf16.msra.mxu0 %v2146
        %2573 = vmatprep.subr.bf16.mxu0 %v2151
        %2574 = vmatpush1.bf16.msra.mxu0 %v2150
        %2575 = vmatprep.subr.bf16.mxu0 %v2155
        %2576 = vmatpush1.bf16.msra.mxu0 %v2154
        %2577 = vmatprep.subr.bf16.mxu0 %v2159
        %2578 = vmatpush1.bf16.msra.mxu0 %v2158
        %2579 = vmatprep.subr.bf16.mxu0 %v2163
        %2580 = vmatpush1.bf16.msra.mxu0 %v2162
        %2581 = vmatprep.subr.bf16.mxu0 %v2167
        %2582 = vmatpush1.bf16.msra.mxu0 %v2166
        %2583 = vmatprep.subr.bf16.mxu0 %v2171
        %2584 = vmatpush1.bf16.msra.mxu0 %v2170
        %2585 = vmatprep.mubr.bf16.mxu0 %v1141
        %2586 = vmatmul.mubr.bf16.gmra.mrb[0].mxu0 %v1140
        %v2587 = vpop.f32.mrb[0].mxu0
        %v2588 = vadd.f32 %v2547, %v2587
        %v2589 = vpop.f32.mrb[0].mxu0
        %v2590 = vadd.f32 %v2549, %v2589
        %v2591 = vpop.f32.mrb[0].mxu0
        %v2592 = vpop.f32.mrb[0].mxu0
        %2593 = vdwg.mxu0
        %2594 = vmatprep.subr.bf16.mxu0 %v1921
        %2595 = vmatpush1.bf16.msra.mxu0 %v1920
        %2596 = vmatprep.subr.bf16.mxu0 %v1925
        %2597 = vmatpush1.bf16.msra.mxu0 %v1924
        %2598 = vmatprep.subr.bf16.mxu0 %v1929
        %2599 = vmatpush1.bf16.msra.mxu0 %v1928
        %2600 = vmatprep.subr.bf16.mxu0 %v1933
        %2601 = vmatpush1.bf16.msra.mxu0 %v1932
        %2602 = vmatprep.subr.bf16.mxu0 %v1937
        %2603 = vmatpush1.bf16.msra.mxu0 %v1936
        %2604 = vmatprep.subr.bf16.mxu0 %v1941
        %2605 = vmatpush1.bf16.msra.mxu0 %v1940
        %2606 = vmatprep.subr.bf16.mxu0 %v1945
        %2607 = vmatpush1.bf16.msra.mxu0 %v1944
        %2608 = vmatprep.subr.bf16.mxu0 %v1949
        %2609 = vmatpush1.bf16.msra.mxu0 %v1948
        %2610 = vmatprep.subr.bf16.mxu0 %v1953
        %2611 = vmatpush1.bf16.msra.mxu0 %v1952
        %2612 = vmatprep.subr.bf16.mxu0 %v1957
        %2613 = vmatpush1.bf16.msra.mxu0 %v1956
        %2614 = vmatprep.subr.bf16.mxu0 %v1961
        %2615 = vmatpush1.bf16.msra.mxu0 %v1960
        %2616 = vmatprep.subr.bf16.mxu0 %v1965
        %2617 = vmatpush1.bf16.msra.mxu0 %v1964
        %2618 = vmatprep.subr.bf16.mxu0 %v1969
        %2619 = vmatpush1.bf16.msra.mxu0 %v1968
        %2620 = vmatprep.subr.bf16.mxu0 %v1973
        %2621 = vmatpush1.bf16.msra.mxu0 %v1972
        %2622 = vmatprep.subr.bf16.mxu0 %v1977
        %2623 = vmatpush1.bf16.msra.mxu0 %v1976
        %2624 = vmatprep.subr.bf16.mxu0 %v1981
        %2625 = vmatpush1.bf16.msra.mxu0 %v1980
        %2626 = vmatprep.mubr.bf16.mxu0 %v1135
        %2627 = vmatmul.mubr.bf16.gmra.mrb[0].mxu0 %v1134
        %v2628 = vpop.f32.mrb[0].mxu0
        %v2629 = vadd.f32 0.0, %v2628
        %v2630 = vpop.f32.mrb[0].mxu0
        %v2631 = vadd.f32 0.0, %v2630
        %v2632 = vpop.f32.mrb[0].mxu0
        %v2633 = vpop.f32.mrb[0].mxu0
        %2634 = vdwg.mxu0
        %2635 = vmatprep.subr.bf16.mxu0 %v1985
        %2636 = vmatpush1.bf16.msra.mxu0 %v1984
        %2637 = vmatprep.subr.bf16.mxu0 %v1989
        %2638 = vmatpush1.bf16.msra.mxu0 %v1988
        %2639 = vmatprep.subr.bf16.mxu0 %v1993
        %2640 = vmatpush1.bf16.msra.mxu0 %v1992
        %2641 = vmatprep.subr.bf16.mxu0 %v1997
        %2642 = vmatpush1.bf16.msra.mxu0 %v1996
        %2643 = vmatprep.subr.bf16.mxu0 %v2001
        %2644 = vmatpush1.bf16.msra.mxu0 %v2000
        %2645 = vmatprep.subr.bf16.mxu0 %v2005
        %2646 = vmatpush1.bf16.msra.mxu0 %v2004
        %2647 = vmatprep.subr.bf16.mxu0 %v2009
        %2648 = vmatpush1.bf16.msra.mxu0 %v2008
        %2649 = vmatprep.subr.bf16.mxu0 %v2013
        %2650 = vmatpush1.bf16.msra.mxu0 %v2012
        %2651 = vmatprep.subr.bf16.mxu0 %v2017
        %2652 = vmatpush1.bf16.msra.mxu0 %v2016
        %2653 = vmatprep.subr.bf16.mxu0 %v2021
        %2654 = vmatpush1.bf16.msra.mxu0 %v2020
        %2655 = vmatprep.subr.bf16.mxu0 %v2025
        %2656 = vmatpush1.bf16.msra.mxu0 %v2024
        %2657 = vmatprep.subr.bf16.mxu0 %v2029
        %2658 = vmatpush1.bf16.msra.mxu0 %v2028
        %2659 = vmatprep.subr.bf16.mxu0 %v2033
        %2660 = vmatpush1.bf16.msra.mxu0 %v2032
        %2661 = vmatprep.subr.bf16.mxu0 %v2037
        %2662 = vmatpush1.bf16.msra.mxu0 %v2036
        %2663 = vmatprep.subr.bf16.mxu0 %v2041
        %2664 = vmatpush1.bf16.msra.mxu0 %v2040
        %2665 = vmatprep.subr.bf16.mxu0 %v2045
        %2666 = vmatpush1.bf16.msra.mxu0 %v2044
        %2667 = vmatprep.mubr.bf16.mxu0 %v1137
        %2668 = vmatmul.mubr.bf16.gmra.mrb[0].mxu0 %v1136
        %v2669 = vpop.f32.mrb[0].mxu0
        %v2670 = vadd.f32 %v2629, %v2669
        %v2671 = vpop.f32.mrb[0].mxu0
        %v2672 = vadd.f32 %v2631, %v2671
        %v2673 = vpop.f32.mrb[0].mxu0
        %v2674 = vpop.f32.mrb[0].mxu0
        %2675 = vdwg.mxu0
        %2676 = vmatprep.subr.bf16.mxu0 %v2049
        %2677 = vmatpush1.bf16.msra.mxu0 %v2048
        %2678 = vmatprep.subr.bf16.mxu0 %v2053
        %2679 = vmatpush1.bf16.msra.mxu0 %v2052
        %2680 = vmatprep.subr.bf16.mxu0 %v2057
        %2681 = vmatpush1.bf16.msra.mxu0 %v2056
        %2682 = vmatprep.subr.bf16.mxu0 %v2061
        %2683 = vmatpush1.bf16.msra.mxu0 %v2060
        %2684 = vmatprep.subr.bf16.mxu0 %v2065
        %2685 = vmatpush1.bf16.msra.mxu0 %v2064
        %2686 = vmatprep.subr.bf16.mxu0 %v2069
        %2687 = vmatpush1.bf16.msra.mxu0 %v2068
        %2688 = vmatprep.subr.bf16.mxu0 %v2073
        %2689 = vmatpush1.bf16.msra.mxu0 %v2072
        %2690 = vmatprep.subr.bf16.mxu0 %v2077
        %2691 = vmatpush1.bf16.msra.mxu0 %v2076
        %2692 = vmatprep.subr.bf16.mxu0 %v2081
        %2693 = vmatpush1.bf16.msra.mxu0 %v2080
        %2694 = vmatprep.subr.bf16.mxu0 %v2085
        %2695 = vmatpush1.bf16.msra.mxu0 %v2084
        %2696 = vmatprep.subr.bf16.mxu0 %v2089
        %2697 = vmatpush1.bf16.msra.mxu0 %v2088
        %2698 = vmatprep.subr.bf16.mxu0 %v2093
        %2699 = vmatpush1.bf16.msra.mxu0 %v2092
        %2700 = vmatprep.subr.bf16.mxu0 %v2097
        %2701 = vmatpush1.bf16.msra.mxu0 %v2096
        %2702 = vmatprep.subr.bf16.mxu0 %v2101
        %2703 = vmatpush1.bf16.msra.mxu0 %v2100
        %2704 = vmatprep.subr.bf16.mxu0 %v2105
        %2705 = vmatpush1.bf16.msra.mxu0 %v2104
        %2706 = vmatprep.subr.bf16.mxu0 %v2109
        %2707 = vmatpush1.bf16.msra.mxu0 %v2108
        %2708 = vmatprep.mubr.bf16.mxu0 %v1139
        %2709 = vmatmul.mubr.bf16.gmra.mrb[0].mxu0 %v1138
        %v2710 = vpop.f32.mrb[0].mxu0
        %v2711 = vadd.f32 %v2670, %v2710
        %v2712 = vpop.f32.mrb[0].mxu0
        %v2713 = vadd.f32 %v2672, %v2712
        %v2714 = vpop.f32.mrb[0].mxu0
        %v2715 = vpop.f32.mrb[0].mxu0
        %2716 = vdwg.mxu0
        %2717 = vmatprep.subr.bf16.mxu0 %v2113
        %2718 = vmatpush1.bf16.msra.mxu0 %v2112
        %2719 = vmatprep.subr.bf16.mxu0 %v2117
        %2720 = vmatpush1.bf16.msra.mxu0 %v2116
        %2721 = vmatprep.subr.bf16.mxu0 %v2121
        %2722 = vmatpush1.bf16.msra.mxu0 %v2120
        %2723 = vmatprep.subr.bf16.mxu0 %v2125
        %2724 = vmatpush1.bf16.msra.mxu0 %v2124
        %2725 = vmatprep.subr.bf16.mxu0 %v2129
        %2726 = vmatpush1.bf16.msra.mxu0 %v2128
        %2727 = vmatprep.subr.bf16.mxu0 %v2133
        %2728 = vmatpush1.bf16.msra.mxu0 %v2132
        %2729 = vmatprep.subr.bf16.mxu0 %v2137
        %2730 = vmatpush1.bf16.msra.mxu0 %v2136
        %2731 = vmatprep.subr.bf16.mxu0 %v2141
        %2732 = vmatpush1.bf16.msra.mxu0 %v2140
        %2733 = vmatprep.subr.bf16.mxu0 %v2145
        %2734 = vmatpush1.bf16.msra.mxu0 %v2144
        %2735 = vmatprep.subr.bf16.mxu0 %v2149
        %2736 = vmatpush1.bf16.msra.mxu0 %v2148
        %2737 = vmatprep.subr.bf16.mxu0 %v2153
        %2738 = vmatpush1.bf16.msra.mxu0 %v2152
        %2739 = vmatprep.subr.bf16.mxu0 %v2157
        %2740 = vmatpush1.bf16.msra.mxu0 %v2156
        %2741 = vmatprep.subr.bf16.mxu0 %v2161
        %2742 = vmatpush1.bf16.msra.mxu0 %v2160
        %2743 = vmatprep.subr.bf16.mxu0 %v2165
        %2744 = vmatpush1.bf16.msra.mxu0 %v2164
        %2745 = vmatprep.subr.bf16.mxu0 %v2169
        %2746 = vmatpush1.bf16.msra.mxu0 %v2168
        %2747 = vmatprep.subr.bf16.mxu0 %v2173
        %2748 = vmatpush1.bf16.msra.mxu0 %v2172
        %2749 = vmatprep.mubr.bf16.mxu0 %v1141
        %2750 = vmatmul.mubr.bf16.gmra.mrb[0].mxu0 %v1140
        %v2751 = vpop.f32.mrb[0].mxu0
        %v2752 = vadd.f32 %v2711, %v2751
        %v2753 = vpop.f32.mrb[0].mxu0
        %v2754 = vadd.f32 %v2713, %v2753
        %v2755 = vpop.f32.mrb[0].mxu0
        %v2756 = vpop.f32.mrb[0].mxu0
        %2757 = vdwg.mxu0
        %v2758 = vld [vmem:[%s683] sm:$0xf]
        %v2760 = vlaneseq
        %v2761 = vshrl.u32 %v2760, 7
        %v2762 = vsub.s32 0, %v2761
        %v2763 = vrot.slane %v2758, %v2762
        %v2764 = vlaneseq
        %v2765 = vshrl.u32 %v2764, 7
        %v2766 = vsub.s32 1, %v2765
        %v2767 = vrot.slane %v2758, %v2766
        %v2768 = vlaneseq
        %v2769 = vshrl.u32 %v2768, 7
        %v2770 = vsub.s32 2, %v2769
        %v2771 = vrot.slane %v2758, %v2770
        %v2772 = vlaneseq
        %v2773 = vshrl.u32 %v2772, 7
        %v2774 = vsub.s32 3, %v2773
        %v2775 = vrot.slane %v2758, %v2774
        %v2780 = vmul.f32 %v2588, %v2763
        %v2781 = vmul.f32 %v2590, %v2767
        %v2782 = vmul.f32 %v2752, %v2771
        %v2783 = vmul.f32 %v2754, %v2775
        %v2784 = vld [vmem:[%s692] sm:$0xf]
        %v2786 = vlaneseq
        %v2787 = vshrl.u32 %v2786, 7
        %v2788 = vsub.s32 0, %v2787
        %v2789 = vrot.slane %v2784, %v2788
        %v2790 = vlaneseq
        %v2791 = vshrl.u32 %v2790, 7
        %v2792 = vsub.s32 1, %v2791
        %v2793 = vrot.slane %v2784, %v2792
        %v2794 = vlaneseq
        %v2795 = vshrl.u32 %v2794, 7
        %v2796 = vsub.s32 2, %v2795
        %v2797 = vrot.slane %v2784, %v2796
        %v2798 = vlaneseq
        %v2799 = vshrl.u32 %v2798, 7
        %v2800 = vsub.s32 3, %v2799
        %v2801 = vrot.slane %v2784, %v2800
        %v2806 = vadd.f32 %v2780, %v2789
        %v2807 = vadd.f32 %v2781, %v2793
        %v2808 = vadd.f32 %v2782, %v2797
        %v2809 = vadd.f32 %v2783, %v2801
        %v2810 = vmax.f32 %v2806, 0.0
        %v2811 = vmax.f32 %v2807, 0.0
        %v2812 = vmax.f32 %v2808, 0.0
        %v2813 = vmax.f32 %v2809, 0.0
        %v2814 = vpack.c.bf16 %v2810, %v2810
        %v2815 = vpack.c.bf16 %v2811, %v2811
        %v2816 = vpack.c.bf16 %v2812, %v2812
        %v2817 = vpack.c.bf16 %v2813, %v2813
        %v2818 = vld [vmem:[%s701] sm:$0xff]
        %v2819 = vld [vmem:[%s701 + $0x8] sm:$0xff]
        %v2820 = vld [vmem:[%s701 + $0x10] sm:$0xff]
        %v2821 = vld [vmem:[%s701 + $0x18] sm:$0xff]
        %v2822 = vld [vmem:[%s701 + $0x20] sm:$0xff]
        %v2823 = vld [vmem:[%s701 + $0x28] sm:$0xff]
        %v2824 = vld [vmem:[%s701 + $0x30] sm:$0xff]
        %v2825 = vld [vmem:[%s701 + $0x38] sm:$0xff]
        %v2826 = vld [vmem:[%s701 + $0x40] sm:$0xff]
        %v2827 = vld [vmem:[%s701 + $0x48] sm:$0xff]
        %v2828 = vld [vmem:[%s701 + $0x50] sm:$0xff]
        %v2829 = vld [vmem:[%s701 + $0x58] sm:$0xff]
        %v2830 = vld [vmem:[%s701 + $0x60] sm:$0xff]
        %v2831 = vld [vmem:[%s701 + $0x68] sm:$0xff]
        %v2832 = vld [vmem:[%s701 + $0x70] sm:$0xff]
        %v2833 = vld [vmem:[%s701 + $0x78] sm:$0xff]
        %v2834 = vld [vmem:[%s701 + $0x80] sm:$0xff]
        %v2835 = vld [vmem:[%s701 + $0x88] sm:$0xff]
        %v2836 = vld [vmem:[%s701 + $0x90] sm:$0xff]
        %v2837 = vld [vmem:[%s701 + $0x98] sm:$0xff]
        %v2838 = vld [vmem:[%s701 + $0xa0] sm:$0xff]
        %v2839 = vld [vmem:[%s701 + $0xa8] sm:$0xff]
        %v2840 = vld [vmem:[%s701 + $0xb0] sm:$0xff]
        %v2841 = vld [vmem:[%s701 + $0xb8] sm:$0xff]
        %v2842 = vld [vmem:[%s701 + $0xc0] sm:$0xff]
        %v2843 = vld [vmem:[%s701 + $0xc8] sm:$0xff]
        %v2844 = vld [vmem:[%s701 + $0xd0] sm:$0xff]
        %v2845 = vld [vmem:[%s701 + $0xd8] sm:$0xff]
        %v2846 = vld [vmem:[%s701 + $0xe0] sm:$0xff]
        %v2847 = vld [vmem:[%s701 + $0xe8] sm:$0xff]
        %v2848 = vld [vmem:[%s701 + $0xf0] sm:$0xff]
        %v2849 = vld [vmem:[%s701 + $0xf8] sm:$0xff]
        %v2850 = vld [vmem:[%s701 + $0x100] sm:$0xff]
        %v2851 = vld [vmem:[%s701 + $0x108] sm:$0xff]
        %v2852 = vld [vmem:[%s701 + $0x110] sm:$0xff]
        %v2853 = vld [vmem:[%s701 + $0x118] sm:$0xff]
        %v2854 = vld [vmem:[%s701 + $0x120] sm:$0xff]
        %v2855 = vld [vmem:[%s701 + $0x128] sm:$0xff]
        %v2856 = vld [vmem:[%s701 + $0x130] sm:$0xff]
        %v2857 = vld [vmem:[%s701 + $0x138] sm:$0xff]
        %v2858 = vld [vmem:[%s701 + $0x140] sm:$0xff]
        %v2859 = vld [vmem:[%s701 + $0x148] sm:$0xff]
        %v2860 = vld [vmem:[%s701 + $0x150] sm:$0xff]
        %v2861 = vld [vmem:[%s701 + $0x158] sm:$0xff]
        %v2862 = vld [vmem:[%s701 + $0x160] sm:$0xff]
        %v2863 = vld [vmem:[%s701 + $0x168] sm:$0xff]
        %v2864 = vld [vmem:[%s701 + $0x170] sm:$0xff]
        %v2865 = vld [vmem:[%s701 + $0x178] sm:$0xff]
        %v2866 = vld [vmem:[%s701 + $0x180] sm:$0xff]
        %v2867 = vld [vmem:[%s701 + $0x188] sm:$0xff]
        %v2868 = vld [vmem:[%s701 + $0x190] sm:$0xff]
        %v2869 = vld [vmem:[%s701 + $0x198] sm:$0xff]
        %v2870 = vld [vmem:[%s701 + $0x1a0] sm:$0xff]
        %v2871 = vld [vmem:[%s701 + $0x1a8] sm:$0xff]
        %v2872 = vld [vmem:[%s701 + $0x1b0] sm:$0xff]
        %v2873 = vld [vmem:[%s701 + $0x1b8] sm:$0xff]
        %v2874 = vld [vmem:[%s701 + $0x1c0] sm:$0xff]
        %v2875 = vld [vmem:[%s701 + $0x1c8] sm:$0xff]
        %v2876 = vld [vmem:[%s701 + $0x1d0] sm:$0xff]
        %v2877 = vld [vmem:[%s701 + $0x1d8] sm:$0xff]
        %v2878 = vld [vmem:[%s701 + $0x1e0] sm:$0xff]
        %v2879 = vld [vmem:[%s701 + $0x1e8] sm:$0xff]
        %v2880 = vld [vmem:[%s701 + $0x1f0] sm:$0xff]
        %v2881 = vld [vmem:[%s701 + $0x1f8] sm:$0xff]
        %v2946 = vunpack.c.l.b16 %v2818
        %v2947 = vunpack.c.h.b16 %v2818
        %v2948 = vunpack.c.l.b16 %v2819
        %v2949 = vunpack.c.h.b16 %v2819
        %v2950 = vunpack.c.l.b16 %v2820
        %v2951 = vunpack.c.h.b16 %v2820
        %v2952 = vunpack.c.l.b16 %v2821
        %v2953 = vunpack.c.h.b16 %v2821
        %v2954 = vunpack.c.l.b16 %v2822
        %v2955 = vunpack.c.h.b16 %v2822
        %v2956 = vunpack.c.l.b16 %v2823
        %v2957 = vunpack.c.h.b16 %v2823
        %v2958 = vunpack.c.l.b16 %v2824
        %v2959 = vunpack.c.h.b16 %v2824
        %v2960 = vunpack.c.l.b16 %v2825
        %v2961 = vunpack.c.h.b16 %v2825
        %v2962 = vunpack.c.l.b16 %v2826
        %v2963 = vunpack.c.h.b16 %v2826
        %v2964 = vunpack.c.l.b16 %v2827
        %v2965 = vunpack.c.h.b16 %v2827
        %v2966 = vunpack.c.l.b16 %v2828
        %v2967 = vunpack.c.h.b16 %v2828
        %v2968 = vunpack.c.l.b16 %v2829
        %v2969 = vunpack.c.h.b16 %v2829
        %v2970 = vunpack.c.l.b16 %v2830
        %v2971 = vunpack.c.h.b16 %v2830
        %v2972 = vunpack.c.l.b16 %v2831
        %v2973 = vunpack.c.h.b16 %v2831
        %v2974 = vunpack.c.l.b16 %v2832
        %v2975 = vunpack.c.h.b16 %v2832
        %v2976 = vunpack.c.l.b16 %v2833
        %v2977 = vunpack.c.h.b16 %v2833
        %v2978 = vunpack.c.l.b16 %v2834
        %v2979 = vunpack.c.h.b16 %v2834
        %v2980 = vunpack.c.l.b16 %v2835
        %v2981 = vunpack.c.h.b16 %v2835
        %v2982 = vunpack.c.l.b16 %v2836
        %v2983 = vunpack.c.h.b16 %v2836
        %v2984 = vunpack.c.l.b16 %v2837
        %v2985 = vunpack.c.h.b16 %v2837
        %v2986 = vunpack.c.l.b16 %v2838
        %v2987 = vunpack.c.h.b16 %v2838
        %v2988 = vunpack.c.l.b16 %v2839
        %v2989 = vunpack.c.h.b16 %v2839
        %v2990 = vunpack.c.l.b16 %v2840
        %v2991 = vunpack.c.h.b16 %v2840
        %v2992 = vunpack.c.l.b16 %v2841
        %v2993 = vunpack.c.h.b16 %v2841
        %v2994 = vunpack.c.l.b16 %v2842
        %v2995 = vunpack.c.h.b16 %v2842
        %v2996 = vunpack.c.l.b16 %v2843
        %v2997 = vunpack.c.h.b16 %v2843
        %v2998 = vunpack.c.l.b16 %v2844
        %v2999 = vunpack.c.h.b16 %v2844
        %v3000 = vunpack.c.l.b16 %v2845
        %v3001 = vunpack.c.h.b16 %v2845
        %v3002 = vunpack.c.l.b16 %v2846
        %v3003 = vunpack.c.h.b16 %v2846
        %v3004 = vunpack.c.l.b16 %v2847
        %v3005 = vunpack.c.h.b16 %v2847
        %v3006 = vunpack.c.l.b16 %v2848
        %v3007 = vunpack.c.h.b16 %v2848
        %v3008 = vunpack.c.l.b16 %v2849
        %v3009 = vunpack.c.h.b16 %v2849
        %v3010 = vunpack.c.l.b16 %v2850
        %v3011 = vunpack.c.h.b16 %v2850
        %v3012 = vunpack.c.l.b16 %v2851
        %v3013 = vunpack.c.h.b16 %v2851
        %v3014 = vunpack.c.l.b16 %v2852
        %v3015 = vunpack.c.h.b16 %v2852
        %v3016 = vunpack.c.l.b16 %v2853
        %v3017 = vunpack.c.h.b16 %v2853
        %v3018 = vunpack.c.l.b16 %v2854
        %v3019 = vunpack.c.h.b16 %v2854
        %v3020 = vunpack.c.l.b16 %v2855
        %v3021 = vunpack.c.h.b16 %v2855
        %v3022 = vunpack.c.l.b16 %v2856
        %v3023 = vunpack.c.h.b16 %v2856
        %v3024 = vunpack.c.l.b16 %v2857
        %v3025 = vunpack.c.h.b16 %v2857
        %v3026 = vunpack.c.l.b16 %v2858
        %v3027 = vunpack.c.h.b16 %v2858
        %v3028 = vunpack.c.l.b16 %v2859
        %v3029 = vunpack.c.h.b16 %v2859
        %v3030 = vunpack.c.l.b16 %v2860
        %v3031 = vunpack.c.h.b16 %v2860
        %v3032 = vunpack.c.l.b16 %v2861
        %v3033 = vunpack.c.h.b16 %v2861
        %v3034 = vunpack.c.l.b16 %v2862
        %v3035 = vunpack.c.h.b16 %v2862
        %v3036 = vunpack.c.l.b16 %v2863
        %v3037 = vunpack.c.h.b16 %v2863
        %v3038 = vunpack.c.l.b16 %v2864
        %v3039 = vunpack.c.h.b16 %v2864
        %v3040 = vunpack.c.l.b16 %v2865
        %v3041 = vunpack.c.h.b16 %v2865
        %v3042 = vunpack.c.l.b16 %v2866
        %v3043 = vunpack.c.h.b16 %v2866
        %v3044 = vunpack.c.l.b16 %v2867
        %v3045 = vunpack.c.h.b16 %v2867
        %v3046 = vunpack.c.l.b16 %v2868
        %v3047 = vunpack.c.h.b16 %v2868
        %v3048 = vunpack.c.l.b16 %v2869
        %v3049 = vunpack.c.h.b16 %v2869
        %v3050 = vunpack.c.l.b16 %v2870
        %v3051 = vunpack.c.h.b16 %v2870
        %v3052 = vunpack.c.l.b16 %v2871
        %v3053 = vunpack.c.h.b16 %v2871
        %v3054 = vunpack.c.l.b16 %v2872
        %v3055 = vunpack.c.h.b16 %v2872
        %v3056 = vunpack.c.l.b16 %v2873
        %v3057 = vunpack.c.h.b16 %v2873
        %v3058 = vunpack.c.l.b16 %v2874
        %v3059 = vunpack.c.h.b16 %v2874
        %v3060 = vunpack.c.l.b16 %v2875
        %v3061 = vunpack.c.h.b16 %v2875
        %v3062 = vunpack.c.l.b16 %v2876
        %v3063 = vunpack.c.h.b16 %v2876
        %v3064 = vunpack.c.l.b16 %v2877
        %v3065 = vunpack.c.h.b16 %v2877
        %v3066 = vunpack.c.l.b16 %v2878
        %v3067 = vunpack.c.h.b16 %v2878
        %v3068 = vunpack.c.l.b16 %v2879
        %v3069 = vunpack.c.h.b16 %v2879
        %v3070 = vunpack.c.l.b16 %v2880
        %v3071 = vunpack.c.h.b16 %v2880
        %v3072 = vunpack.c.l.b16 %v2881
        %v3073 = vunpack.c.h.b16 %v2881
        %v3074 = vpack.c.b16 %v2948, %v2946
        %v3075 = vpack.c.b16 %v2949, %v2947
        %v3076 = vpack.c.b16 %v2952, %v2950
        %v3077 = vpack.c.b16 %v2953, %v2951
        %v3078 = vpack.c.b16 %v2956, %v2954
        %v3079 = vpack.c.b16 %v2957, %v2955
        %v3080 = vpack.c.b16 %v2960, %v2958
        %v3081 = vpack.c.b16 %v2961, %v2959
        %v3082 = vpack.c.b16 %v2964, %v2962
        %v3083 = vpack.c.b16 %v2965, %v2963
        %v3084 = vpack.c.b16 %v2968, %v2966
        %v3085 = vpack.c.b16 %v2969, %v2967
        %v3086 = vpack.c.b16 %v2972, %v2970
        %v3087 = vpack.c.b16 %v2973, %v2971
        %v3088 = vpack.c.b16 %v2976, %v2974
        %v3089 = vpack.c.b16 %v2977, %v2975
        %v3090 = vpack.c.b16 %v2980, %v2978
        %v3091 = vpack.c.b16 %v2981, %v2979
        %v3092 = vpack.c.b16 %v2984, %v2982
        %v3093 = vpack.c.b16 %v2985, %v2983
        %v3094 = vpack.c.b16 %v2988, %v2986
        %v3095 = vpack.c.b16 %v2989, %v2987
        %v3096 = vpack.c.b16 %v2992, %v2990
        %v3097 = vpack.c.b16 %v2993, %v2991
        %v3098 = vpack.c.b16 %v2996, %v2994
        %v3099 = vpack.c.b16 %v2997, %v2995
        %v3100 = vpack.c.b16 %v3000, %v2998
        %v3101 = vpack.c.b16 %v3001, %v2999
        %v3102 = vpack.c.b16 %v3004, %v3002
        %v3103 = vpack.c.b16 %v3005, %v3003
        %v3104 = vpack.c.b16 %v3008, %v3006
        %v3105 = vpack.c.b16 %v3009, %v3007
        %v3106 = vpack.c.b16 %v3012, %v3010
        %v3107 = vpack.c.b16 %v3013, %v3011
        %v3108 = vpack.c.b16 %v3016, %v3014
        %v3109 = vpack.c.b16 %v3017, %v3015
        %v3110 = vpack.c.b16 %v3020, %v3018
        %v3111 = vpack.c.b16 %v3021, %v3019
        %v3112 = vpack.c.b16 %v3024, %v3022
        %v3113 = vpack.c.b16 %v3025, %v3023
        %v3114 = vpack.c.b16 %v3028, %v3026
        %v3115 = vpack.c.b16 %v3029, %v3027
        %v3116 = vpack.c.b16 %v3032, %v3030
        %v3117 = vpack.c.b16 %v3033, %v3031
        %v3118 = vpack.c.b16 %v3036, %v3034
        %v3119 = vpack.c.b16 %v3037, %v3035
        %v3120 = vpack.c.b16 %v3040, %v3038
        %v3121 = vpack.c.b16 %v3041, %v3039
        %v3122 = vpack.c.b16 %v3044, %v3042
        %v3123 = vpack.c.b16 %v3045, %v3043
        %v3124 = vpack.c.b16 %v3048, %v3046
        %v3125 = vpack.c.b16 %v3049, %v3047
        %v3126 = vpack.c.b16 %v3052, %v3050
        %v3127 = vpack.c.b16 %v3053, %v3051
        %v3128 = vpack.c.b16 %v3056, %v3054
        %v3129 = vpack.c.b16 %v3057, %v3055
        %v3130 = vpack.c.b16 %v3060, %v3058
        %v3131 = vpack.c.b16 %v3061, %v3059
        %v3132 = vpack.c.b16 %v3064, %v3062
        %v3133 = vpack.c.b16 %v3065, %v3063
        %v3134 = vpack.c.b16 %v3068, %v3066
        %v3135 = vpack.c.b16 %v3069, %v3067
        %v3136 = vpack.c.b16 %v3072, %v3070
        %v3137 = vpack.c.b16 %v3073, %v3071
        %3202 = vmatprep.subr.bf16.mxu0 %v3075
        %3203 = vmatpush1.bf16.msra.mxu0 %v3074
        %3204 = vmatprep.subr.bf16.mxu0 %v3077
        %3205 = vmatpush1.bf16.msra.mxu0 %v3076
        %3206 = vmatprep.subr.bf16.mxu0 %v3079
        %3207 = vmatpush1.bf16.msra.mxu0 %v3078
        %3208 = vmatprep.subr.bf16.mxu0 %v3081
        %3209 = vmatpush1.bf16.msra.mxu0 %v3080
        %3210 = vmatprep.subr.bf16.mxu0 %v3083
        %3211 = vmatpush1.bf16.msra.mxu0 %v3082
        %3212 = vmatprep.subr.bf16.mxu0 %v3085
        %3213 = vmatpush1.bf16.msra.mxu0 %v3084
        %3214 = vmatprep.subr.bf16.mxu0 %v3087
        %3215 = vmatpush1.bf16.msra.mxu0 %v3086
        %3216 = vmatprep.subr.bf16.mxu0 %v3089
        %3217 = vmatpush1.bf16.msra.mxu0 %v3088
        %3218 = vmatprep.subr.bf16.mxu0 %v3091
        %3219 = vmatpush1.bf16.msra.mxu0 %v3090
        %3220 = vmatprep.subr.bf16.mxu0 %v3093
        %3221 = vmatpush1.bf16.msra.mxu0 %v3092
        %3222 = vmatprep.subr.bf16.mxu0 %v3095
        %3223 = vmatpush1.bf16.msra.mxu0 %v3094
        %3224 = vmatprep.subr.bf16.mxu0 %v3097
        %3225 = vmatpush1.bf16.msra.mxu0 %v3096
        %3226 = vmatprep.subr.bf16.mxu0 %v3099
        %3227 = vmatpush1.bf16.msra.mxu0 %v3098
        %3228 = vmatprep.subr.bf16.mxu0 %v3101
        %3229 = vmatpush1.bf16.msra.mxu0 %v3100
        %3230 = vmatprep.subr.bf16.mxu0 %v3103
        %3231 = vmatpush1.bf16.msra.mxu0 %v3102
        %3232 = vmatprep.subr.bf16.mxu0 %v3105
        %3233 = vmatpush1.bf16.msra.mxu0 %v3104
        %3234 = vmatprep.mubr.bf16.mxu0 %v2815
        %3235 = vmatmul.mubr.bf16.gmra.mrb[0].mxu0 %v2814
        %v3236 = vpop.f32.mrb[0].mxu0
        %v3237 = vadd.f32 0.0, %v3236
        %v3238 = vpop.f32.mrb[0].mxu0
        %v3239 = vadd.f32 0.0, %v3238
        %v3240 = vpop.f32.mrb[0].mxu0
        %v3241 = vpop.f32.mrb[0].mxu0
        %3242 = vdwg.mxu0
        %3243 = vmatprep.subr.bf16.mxu0 %v3107
        %3244 = vmatpush1.bf16.msra.mxu0 %v3106
        %3245 = vmatprep.subr.bf16.mxu0 %v3109
        %3246 = vmatpush1.bf16.msra.mxu0 %v3108
        %3247 = vmatprep.subr.bf16.mxu0 %v3111
        %3248 = vmatpush1.bf16.msra.mxu0 %v3110
        %3249 = vmatprep.subr.bf16.mxu0 %v3113
        %3250 = vmatpush1.bf16.msra.mxu0 %v3112
        %3251 = vmatprep.subr.bf16.mxu0 %v3115
        %3252 = vmatpush1.bf16.msra.mxu0 %v3114
        %3253 = vmatprep.subr.bf16.mxu0 %v3117
        %3254 = vmatpush1.bf16.msra.mxu0 %v3116
        %3255 = vmatprep.subr.bf16.mxu0 %v3119
        %3256 = vmatpush1.bf16.msra.mxu0 %v3118
        %3257 = vmatprep.subr.bf16.mxu0 %v3121
        %3258 = vmatpush1.bf16.msra.mxu0 %v3120
        %3259 = vmatprep.subr.bf16.mxu0 %v3123
        %3260 = vmatpush1.bf16.msra.mxu0 %v3122
        %3261 = vmatprep.subr.bf16.mxu0 %v3125
        %3262 = vmatpush1.bf16.msra.mxu0 %v3124
        %3263 = vmatprep.subr.bf16.mxu0 %v3127
        %3264 = vmatpush1.bf16.msra.mxu0 %v3126
        %3265 = vmatprep.subr.bf16.mxu0 %v3129
        %3266 = vmatpush1.bf16.msra.mxu0 %v3128
        %3267 = vmatprep.subr.bf16.mxu0 %v3131
        %3268 = vmatpush1.bf16.msra.mxu0 %v3130
        %3269 = vmatprep.subr.bf16.mxu0 %v3133
        %3270 = vmatpush1.bf16.msra.mxu0 %v3132
        %3271 = vmatprep.subr.bf16.mxu0 %v3135
        %3272 = vmatpush1.bf16.msra.mxu0 %v3134
        %3273 = vmatprep.subr.bf16.mxu0 %v3137
        %3274 = vmatpush1.bf16.msra.mxu0 %v3136
        %3275 = vmatprep.mubr.bf16.mxu0 %v2817
        %3276 = vmatmul.mubr.bf16.gmra.mrb[0].mxu0 %v2816
        %v3277 = vpop.f32.mrb[0].mxu0
        %v3278 = vadd.f32 %v3237, %v3277
        %v3279 = vpop.f32.mrb[0].mxu0
        %v3280 = vadd.f32 %v3239, %v3279
        %v3281 = vpop.f32.mrb[0].mxu0
        %v3282 = vpop.f32.mrb[0].mxu0
        %3283 = vdwg.mxu0
        %v3284 = vld [vmem:[%s710] sm:$0x3]
        %v3286 = vlaneseq
        %v3287 = vshrl.u32 %v3286, 7
        %v3288 = vsub.s32 0, %v3287
        %v3289 = vrot.slane %v3284, %v3288
        %v3290 = vlaneseq
        %v3291 = vshrl.u32 %v3290, 7
        %v3292 = vsub.s32 1, %v3291
        %v3293 = vrot.slane %v3284, %v3292
        %v3296 = vmul.f32 %v3278, %v3289
        %v3297 = vmul.f32 %v3280, %v3293
        %v3298 = vld [vmem:[%s719] sm:$0x3]
        %v3300 = vlaneseq
        %v3301 = vshrl.u32 %v3300, 7
        %v3302 = vsub.s32 0, %v3301
        %v3303 = vrot.slane %v3298, %v3302
        %v3304 = vlaneseq
        %v3305 = vshrl.u32 %v3304, 7
        %v3306 = vsub.s32 1, %v3305
        %v3307 = vrot.slane %v3298, %v3306
        %v3310 = vadd.f32 %v3296, %v3303
        %v3311 = vadd.f32 %v3297, %v3307
        %v3312 = vmax.f32 %v3310, 0.0
        %v3313 = vmax.f32 %v3311, 0.0
        %v3314 = vpack.c.bf16 %v3312, %v3312
        %v3315 = vpack.c.bf16 %v3313, %v3313
        %v3316 = vld [vmem:[%s728] sm:$0xf]
        %v3317 = vld [vmem:[%s728 + $0x4] sm:$0xf]
        %v3318 = vld [vmem:[%s728 + $0x8] sm:$0xf]
        %v3319 = vld [vmem:[%s728 + $0xc] sm:$0xf]
        %v3320 = vld [vmem:[%s728 + $0x10] sm:$0xf]
        %v3321 = vld [vmem:[%s728 + $0x14] sm:$0xf]
        %v3322 = vld [vmem:[%s728 + $0x18] sm:$0xf]
        %v3323 = vld [vmem:[%s728 + $0x1c] sm:$0xf]
        %v3324 = vld [vmem:[%s728 + $0x20] sm:$0xf]
        %v3325 = vld [vmem:[%s728 + $0x24] sm:$0xf]
        %v3326 = vld [vmem:[%s728 + $0x28] sm:$0xf]
        %v3327 = vld [vmem:[%s728 + $0x2c] sm:$0xf]
        %v3328 = vld [vmem:[%s728 + $0x30] sm:$0xf]
        %v3329 = vld [vmem:[%s728 + $0x34] sm:$0xf]
        %v3330 = vld [vmem:[%s728 + $0x38] sm:$0xf]
        %v3331 = vld [vmem:[%s728 + $0x3c] sm:$0xf]
        %v3332 = vld [vmem:[%s728 + $0x40] sm:$0xf]
        %v3333 = vld [vmem:[%s728 + $0x44] sm:$0xf]
        %v3334 = vld [vmem:[%s728 + $0x48] sm:$0xf]
        %v3335 = vld [vmem:[%s728 + $0x4c] sm:$0xf]
        %v3336 = vld [vmem:[%s728 + $0x50] sm:$0xf]
        %v3337 = vld [vmem:[%s728 + $0x54] sm:$0xf]
        %v3338 = vld [vmem:[%s728 + $0x58] sm:$0xf]
        %v3339 = vld [vmem:[%s728 + $0x5c] sm:$0xf]
        %v3340 = vld [vmem:[%s728 + $0x60] sm:$0xf]
        %v3341 = vld [vmem:[%s728 + $0x64] sm:$0xf]
        %v3342 = vld [vmem:[%s728 + $0x68] sm:$0xf]
        %v3343 = vld [vmem:[%s728 + $0x6c] sm:$0xf]
        %v3344 = vld [vmem:[%s728 + $0x70] sm:$0xf]
        %v3345 = vld [vmem:[%s728 + $0x74] sm:$0xf]
        %v3346 = vld [vmem:[%s728 + $0x78] sm:$0xf]
        %v3347 = vld [vmem:[%s728 + $0x7c] sm:$0xf]
        %v3380 = vunpack.c.l.b16 %v3316
        %v3381 = vunpack.c.l.b16 %v3317
        %v3382 = vunpack.c.l.b16 %v3318
        %v3383 = vunpack.c.l.b16 %v3319
        %v3384 = vunpack.c.l.b16 %v3320
        %v3385 = vunpack.c.l.b16 %v3321
        %v3386 = vunpack.c.l.b16 %v3322
        %v3387 = vunpack.c.l.b16 %v3323
        %v3388 = vunpack.c.l.b16 %v3324
        %v3389 = vunpack.c.l.b16 %v3325
        %v3390 = vunpack.c.l.b16 %v3326
        %v3391 = vunpack.c.l.b16 %v3327
        %v3392 = vunpack.c.l.b16 %v3328
        %v3393 = vunpack.c.l.b16 %v3329
        %v3394 = vunpack.c.l.b16 %v3330
        %v3395 = vunpack.c.l.b16 %v3331
        %v3396 = vunpack.c.l.b16 %v3332
        %v3397 = vunpack.c.l.b16 %v3333
        %v3398 = vunpack.c.l.b16 %v3334
        %v3399 = vunpack.c.l.b16 %v3335
        %v3400 = vunpack.c.l.b16 %v3336
        %v3401 = vunpack.c.l.b16 %v3337
        %v3402 = vunpack.c.l.b16 %v3338
        %v3403 = vunpack.c.l.b16 %v3339
        %v3404 = vunpack.c.l.b16 %v3340
        %v3405 = vunpack.c.l.b16 %v3341
        %v3406 = vunpack.c.l.b16 %v3342
        %v3407 = vunpack.c.l.b16 %v3343
        %v3408 = vunpack.c.l.b16 %v3344
        %v3409 = vunpack.c.l.b16 %v3345
        %v3410 = vunpack.c.l.b16 %v3346
        %v3411 = vunpack.c.l.b16 %v3347
        %v3412 = vpack.c.b16 %v3381, %v3380
        %v3413 = vpack.c.b16 %v3383, %v3382
        %v3414 = vpack.c.b16 %v3385, %v3384
        %v3415 = vpack.c.b16 %v3387, %v3386
        %v3416 = vpack.c.b16 %v3389, %v3388
        %v3417 = vpack.c.b16 %v3391, %v3390
        %v3418 = vpack.c.b16 %v3393, %v3392
        %v3419 = vpack.c.b16 %v3395, %v3394
        %v3420 = vpack.c.b16 %v3397, %v3396
        %v3421 = vpack.c.b16 %v3399, %v3398
        %v3422 = vpack.c.b16 %v3401, %v3400
        %v3423 = vpack.c.b16 %v3403, %v3402
        %v3424 = vpack.c.b16 %v3405, %v3404
        %v3425 = vpack.c.b16 %v3407, %v3406
        %v3426 = vpack.c.b16 %v3409, %v3408
        %v3427 = vpack.c.b16 %v3411, %v3410
        %3444 = vmatprep.subr.bf16.mxu0 0
        %3445 = vmatpush1.bf16.msra.mxu0 %v3412
        %3446 = vmatprep.subr.bf16.mxu0 0
        %3447 = vmatpush1.bf16.msra.mxu0 %v3413
        %3448 = vmatprep.subr.bf16.mxu0 0
        %3449 = vmatpush1.bf16.msra.mxu0 %v3414
        %3450 = vmatprep.subr.bf16.mxu0 0
        %3451 = vmatpush1.bf16.msra.mxu0 %v3415
        %3452 = vmatprep.subr.bf16.mxu0 0
        %3453 = vmatpush1.bf16.msra.mxu0 %v3416
        %3454 = vmatprep.subr.bf16.mxu0 0
        %3455 = vmatpush1.bf16.msra.mxu0 %v3417
        %3456 = vmatprep.subr.bf16.mxu0 0
        %3457 = vmatpush1.bf16.msra.mxu0 %v3418
        %3458 = vmatprep.subr.bf16.mxu0 0
        %3459 = vmatpush1.bf16.msra.mxu0 %v3419
        %3460 = vmatprep.subr.bf16.mxu0 0
        %3461 = vmatpush1.bf16.msra.mxu0 %v3420
        %3462 = vmatprep.subr.bf16.mxu0 0
        %3463 = vmatpush1.bf16.msra.mxu0 %v3421
        %3464 = vmatprep.subr.bf16.mxu0 0
        %3465 = vmatpush1.bf16.msra.mxu0 %v3422
        %3466 = vmatprep.subr.bf16.mxu0 0
        %3467 = vmatpush1.bf16.msra.mxu0 %v3423
        %3468 = vmatprep.subr.bf16.mxu0 0
        %3469 = vmatpush1.bf16.msra.mxu0 %v3424
        %3470 = vmatprep.subr.bf16.mxu0 0
        %3471 = vmatpush1.bf16.msra.mxu0 %v3425
        %3472 = vmatprep.subr.bf16.mxu0 0
        %3473 = vmatpush1.bf16.msra.mxu0 %v3426
        %3474 = vmatprep.subr.bf16.mxu0 0
        %3475 = vmatpush1.bf16.msra.mxu0 %v3427
        %3476 = vmatprep.mubr.bf16.mxu0 %v3315
        %3477 = vmatmul.mubr.bf16.gmra.mrb[0].mxu0 %v3314
        %v3478 = vpop.f32.mrb[0].mxu0
        %v3479 = vadd.f32 0.0, %v3478
        %v3480 = vpop.f32.mrb[0].mxu0
        %v3481 = vpop.f32.mrb[0].mxu0
        %v3482 = vpop.f32.mrb[0].mxu0
        %3483 = vdwg.mxu0
        %v3484 = vld [vmem:[%s736] sm:$0x1]
        %v3486 = vlaneseq
        %v3487 = vshrl.u32 %v3486, 7
        %v3488 = vsub.s32 0, %v3487
        %v3489 = vrot.slane %v3484, %v3488
        %v3491 = vmul.f32 %v3479, %v3489
        %v3492 = vld [vmem:[%s744] sm:$0x1]
        %v3494 = vlaneseq
        %v3495 = vshrl.u32 %v3494, 7
        %v3496 = vsub.s32 0, %v3495
        %v3497 = vrot.slane %v3492, %v3496
        %v3499 = vadd.f32 %v3491, %v3497
        %v3500 = vmax.f32 %v3499, 0.0
        %v3501 = vpack.c.bf16 %v3500, %v3500
        %v3502 = vld [vmem:[%s856] sm:$0xf]
        %v3503 = vld [vmem:[%s856 + $0x4] sm:$0xf]
        %v3504 = vld [vmem:[%s856 + $0x8] sm:$0xf]
        %v3505 = vld [vmem:[%s856 + $0xc] sm:$0xf]
        %v3506 = vld [vmem:[%s856 + $0x10] sm:$0xf]
        %v3507 = vld [vmem:[%s856 + $0x14] sm:$0xf]
        %v3508 = vld [vmem:[%s856 + $0x18] sm:$0xf]
        %v3509 = vld [vmem:[%s856 + $0x1c] sm:$0xf]
        %v3510 = vld [vmem:[%s856 + $0x20] sm:$0xf]
        %v3511 = vld [vmem:[%s856 + $0x24] sm:$0xf]
        %v3512 = vld [vmem:[%s856 + $0x28] sm:$0xf]
        %v3513 = vld [vmem:[%s856 + $0x2c] sm:$0xf]
        %v3514 = vld [vmem:[%s856 + $0x30] sm:$0xf]
        %v3515 = vld [vmem:[%s856 + $0x34] sm:$0xf]
        %v3516 = vld [vmem:[%s856 + $0x38] sm:$0xf]
        %v3517 = vld [vmem:[%s856 + $0x3c] sm:$0xf]
        %v3518 = vld [vmem:[%s752] sm:$0x1]
        %v3520 = vlaneseq
        %v3521 = vshrl.u32 %v3520, 7
        %v3522 = vsub.s32 0, %v3521
        %v3523 = vrot.slane %v3518, %v3522
        %v3541 = vunpack.c.l.b16 %v3502
        %v3542 = vunpack.c.l.b16 %v3503
        %v3543 = vunpack.c.l.b16 %v3504
        %v3544 = vunpack.c.l.b16 %v3505
        %v3545 = vunpack.c.l.b16 %v3506
        %v3546 = vunpack.c.l.b16 %v3507
        %v3547 = vunpack.c.l.b16 %v3508
        %v3548 = vunpack.c.l.b16 %v3509
        %v3549 = vunpack.c.l.b16 %v3510
        %v3550 = vunpack.c.l.b16 %v3511
        %v3551 = vunpack.c.l.b16 %v3512
        %v3552 = vunpack.c.l.b16 %v3513
        %v3553 = vunpack.c.l.b16 %v3514
        %v3554 = vunpack.c.l.b16 %v3515
        %v3555 = vunpack.c.l.b16 %v3516
        %v3556 = vunpack.c.l.b16 %v3517
        %v3557 = vpack.c.b16 %v3542, %v3541
        %v3558 = vpack.c.b16 %v3544, %v3543
        %v3559 = vpack.c.b16 %v3546, %v3545
        %v3560 = vpack.c.b16 %v3548, %v3547
        %v3561 = vpack.c.b16 %v3550, %v3549
        %v3562 = vpack.c.b16 %v3552, %v3551
        %v3563 = vpack.c.b16 %v3554, %v3553
        %v3564 = vpack.c.b16 %v3556, %v3555
        %3573 = vmatprep.subr.bf16.mxu0 0
        %3574 = vmatpush1.bf16.msra.mxu0 %v3557
        %3575 = vmatprep.subr.bf16.mxu0 0
        %3576 = vmatpush1.bf16.msra.mxu0 %v3558
        %3577 = vmatprep.subr.bf16.mxu0 0
        %3578 = vmatpush1.bf16.msra.mxu0 %v3559
        %3579 = vmatprep.subr.bf16.mxu0 0
        %3580 = vmatpush1.bf16.msra.mxu0 %v3560
        %3581 = vmatprep.subr.bf16.mxu0 0
        %3582 = vmatpush1.bf16.msra.mxu0 %v3561
        %3583 = vmatprep.subr.bf16.mxu0 0
        %3584 = vmatpush1.bf16.msra.mxu0 %v3562
        %3585 = vmatprep.subr.bf16.mxu0 0
        %3586 = vmatpush1.bf16.msra.mxu0 %v3563
        %3587 = vmatprep.subr.bf16.mxu0 0
        %3588 = vmatpush1.bf16.msra.mxu0 %v3564
        %3589 = vmatprep.subr.bf16.mxu0 0
        %3590 = vmatpush1.bf16.msra.mxu0 0
        %3591 = vmatprep.subr.bf16.mxu0 0
        %3592 = vmatpush1.bf16.msra.mxu0 0
        %3593 = vmatprep.subr.bf16.mxu0 0
        %3594 = vmatpush1.bf16.msra.mxu0 0
        %3595 = vmatprep.subr.bf16.mxu0 0
        %3596 = vmatpush1.bf16.msra.mxu0 0
        %3597 = vmatprep.subr.bf16.mxu0 0
        %3598 = vmatpush1.bf16.msra.mxu0 0
        %3599 = vmatprep.subr.bf16.mxu0 0
        %3600 = vmatpush1.bf16.msra.mxu0 0
        %3601 = vmatprep.subr.bf16.mxu0 0
        %3602 = vmatpush1.bf16.msra.mxu0 0
        %3603 = vmatprep.subr.bf16.mxu0 0
        %3604 = vmatpush1.bf16.msra.mxu0 0
        %3605 = vmatprep.mubr.bf16.mxu0 0
        %3606 = vmatmul.mubr.bf16.gmra.mrb[0].mxu0 %v3501
        %v3607 = vpop.f32.mrb[0].mxu0
        %v3608 = vadd.f32 %v3523, %v3607
        %v3609 = vpop.f32.mrb[0].mxu0
        %v3610 = vpop.f32.mrb[0].mxu0
        %v3611 = vpop.f32.mrb[0].mxu0
        %3612 = vdwg.mxu0
        %vm3613 = vcmask 64512
        %3614 = vst.msk [vmem:[%s840] sm:$0xff] %vm3613, %v3608
        %s3615 = sand.u32 %s402, 1
        %s3616 = scalar_lea.sflag [#allocation4], %s3615
        %s3617 = sand.u32 %s402, 1
        %s3618 = smul.addr %s3617, 8
        %s3619 = scalar_lea.vmem [#allocation20], %s3618
        // Predicated region
        $region113: #{tpu_custom_call.1} parent=67 // pred_check
          %p3620 = pneg %p412
        $region114: #{tpu_custom_call.1} parent=67 // pred_check_branch
          %3622 = sbr.rel (%p3620) target = $region116
        $region115: #{tpu_custom_call.1} parent=67 // pred_region
          %s3623 = sadd.s32 %s47, %s16
          %s3625 = ssub.s32 128, 128
          %3626 = vsyncadd %s3616, %s3625
          %s3627 = sadd.s32 %s3623, %s46
          %s3628 = smul.addr %s3627, 128
          %s3629 = scalar_lea.hbm %s12, %s3628
          %s3631 = sshll.u32 %s3619, 4
          %s3632 = int_to_ptr.vmem [resolvable:$true] %s3631
          %3634 = dma.vmem_to_hbm [thread:$0]  %s3632, 128, %s3629, %s3616
        $region116: #{tpu_custom_call.1} parent=67 // pred_fallthru
          _
      $region68: #{tpu_custom_call.1} parent=5 // pred_fallthru
        _
      %p3635 = scmp.le.s32.totalorder 2, %s37
      // Predicated region
      $region117: #{tpu_custom_call.1} parent=5 // pred_check
        %p3636 = pneg %p3635
      $region118: #{tpu_custom_call.1} parent=5 // pred_check_branch
        %3638 = sbr.rel (%p3636) target = $region120
      $region119: #{tpu_custom_call.1} parent=5 // pred_region
        %s3639 = ssub.s32 %s37, 2
        // Predicated region
        $region121: #{tpu_custom_call.1} parent=119 // pred_check
          %p3640 = pneg %p418
        $region122: #{tpu_custom_call.1} parent=119 // pred_check_branch
          %3642 = sbr.rel (%p3640) target = $region124
        $region123: #{tpu_custom_call.1} parent=119 // pred_region
          %s3643 = sand.u32 %s403, 1
          %s3644 = scalar_lea.sflag [#allocation4], %s3643
          %s3645 = sand.u32 %s403, 1
          %s3646 = smul.addr %s3645, 8
          %s3647 = scalar_lea.vmem [#allocation20], %s3646
          %3648 = dma.done %s3644, 128
        $region124: #{tpu_custom_call.1} parent=119 // pred_fallthru
          _
      $region120: #{tpu_custom_call.1} parent=5 // pred_fallthru
        _
    $region6: #{tpu_custom_call.1} parent=1 // loop_footer
      %s41 = sadd.s32 1, %s37
    $region7: #{tpu_custom_call.1} parent=1 // loop_footer_branch
      %36 = sbr.rel target = $region3
    $region8: #{tpu_custom_call.1} parent=1 // loop_exit
      _
    %3649 = vsyncpa [#allocation3], 1
    %s3650 = scalar_lea.sflag [#allocation3], 1
    %3651 = vsyncpa %s3650, 1
    %3652 = vsyncpa [#allocation6], 1
    %s3653 = scalar_lea.sflag [#allocation6], 1
    %3654 = vsyncpa %s3653, 1
    %3655 = vsyncpa [#allocation9], 1
    %s3656 = scalar_lea.sflag [#allocation9], 1
    %3657 = vsyncpa %s3656, 1
    %3658 = vsyncpa [#allocation12], 1
    %s3659 = scalar_lea.sflag [#allocation12], 1
    %3660 = vsyncpa %s3659, 1
    %3661 = vsyncpa [#allocation15], 1
    %s3662 = scalar_lea.sflag [#allocation15], 1
    %3663 = vsyncpa %s3662, 1
    %3664 = vsyncpa [#allocation18], 1
    %s3665 = scalar_lea.sflag [#allocation18], 1
    %3666 = vsyncpa %s3665, 1
    %3667 = vsyncpa [#allocation4], 1
    %s3668 = scalar_lea.sflag [#allocation4], 1
    %3669 = vsyncpa %s3668, 1

// kernel: tpu_custom_call.1
$region0: #{tpu_custom_call.1}
  #allocation0 [shape = 'u32[]', space=smem, size = 0x4, offset = 0x4, fixed_abs, tag = 'smem constant byte address 0x4 - core index']
  #allocation1 [shape = 'u32[144,128]{1,0:T(1,128)}', space=vmem, size = 0x12000, scoped, tag = 'internal scratch']
  %s0 = inlined_call_operand.hbm [shape: bf16[8,1024], index: 0, kind: input, shape index: {}]
  %s1 = inlined_call_operand.hbm [shape: bf16[2,1024,512], index: 1, kind: input, shape index: {}]
  %s2 = inlined_call_operand.hbm [shape: f32[2,1,512], index: 2, kind: input, shape index: {}]
  %s3 = inlined_call_operand.hbm [shape: f32[2,1,512], index: 3, kind: input, shape index: {}]
  %s4 = inlined_call_operand.hbm [shape: bf16[2,512,256], index: 4, kind: input, shape index: {}]
  %s5 = inlined_call_operand.hbm [shape: f32[2,1,256], index: 5, kind: input, shape index: {}]
  %s6 = inlined_call_operand.hbm [shape: f32[2,1,256], index: 6, kind: input, shape index: {}]
  %s7 = inlined_call_operand.hbm [shape: bf16[2,256,128], index: 7, kind: input, shape index: {}]
  %s8 = inlined_call_operand.hbm [shape: f32[2,1,128], index: 8, kind: input, shape index: {}]
  %s9 = inlined_call_operand.hbm [shape: f32[2,1,128], index: 9, kind: input, shape index: {}]
  %s10 = inlined_call_operand.vmem [shape: bf16[2,128,8], index: 10, kind: input, shape index: {}]
  %s11 = inlined_call_operand.hbm [shape: f32[2,1,8], index: 11, kind: input, shape index: {}]
  %s12 = inlined_call_operand.hbm [shape: f32[2,8,8], index: 12, kind: output, shape index: {}]
  %s13 = sld [smem:[#allocation0]]
  $region125: #{tpu_custom_call.1} parent=0
    _
  %s15 = ssub.s32 1, %s13
  %s16 = scalar_select 0, %s15, %s13
  $region1: #{tpu_custom_call.1} parent=0
    #allocation2 [shape = 'u8[16384]{0}', space=vmem, size = 0x4000, scoped, tag = 'input window, operand 0, single buffered']
    #allocation3 [shape = 's32[2]{0}', space=sflag, size = 0x8, scoped, tag = 'scoped memory for tpu_custom_call.1']
    #allocation4 [shape = 's32[2]{0}', space=sflag, size = 0x8, scoped, tag = 'scoped memory for tpu_custom_call.1']
    #allocation5 [shape = 'u8[2097152]{0}', space=vmem, size = 0x200000, scoped, tag = 'input window, operand 1']
    #allocation6 [shape = 's32[2]{0}', space=sflag, size = 0x8, scoped, tag = 'scoped memory for tpu_custom_call.1']
    #allocation7 [shape = 'u8[4096]{0}', space=vmem, size = 0x1000, scoped, tag = 'input window, operand 2']
    #allocation8 [shape = 'u8[4096]{0}', space=vmem, size = 0x1000, scoped, tag = 'input window, operand 3']
    #allocation9 [shape = 's32[2]{0}', space=sflag, size = 0x8, scoped, tag = 'scoped memory for tpu_custom_call.1']
    #allocation10 [shape = 'u8[524288]{0}', space=vmem, size = 0x80000, scoped, tag = 'input window, operand 4']
    #allocation11 [shape = 'u8[2048]{0}', space=vmem, size = 0x800, scoped, tag = 'input window, operand 5']
    #allocation12 [shape = 's32[2]{0}', space=sflag, size = 0x8, scoped, tag = 'scoped memory for tpu_custom_call.1']
    #allocation13 [shape = 'u8[2048]{0}', space=vmem, size = 0x800, scoped, tag = 'input window, operand 6']
    #allocation14 [shape = 'u8[131072]{0}', space=vmem, size = 0x20000, scoped, tag = 'input window, operand 7']
    #allocation15 [shape = 's32[2]{0}', space=sflag, size = 0x8, scoped, tag = 'scoped memory for tpu_custom_call.1']
    #allocation16 [shape = 'u8[1024]{0}', space=vmem, size = 0x400, scoped, tag = 'input window, operand 8']
    #allocation17 [shape = 'u8[1024]{0}', space=vmem, size = 0x400, scoped, tag = 'input window, operand 9']
    #allocation18 [shape = 's32[2]{0}', space=sflag, size = 0x8, scoped, tag = 'scoped memory for tpu_custom_call.1']
    #allocation19 [shape = 'u8[1024]{0}', space=vmem, size = 0x400, scoped, tag = 'input window, operand 11']
    #allocation20 [shape = 'u8[8192]{0}', space=vmem, size = 0x2000, scoped, tag = 'output window, operand 0']
    %17 = vsyncpa [#allocation3], 0
    %18 = vsyncpa [#allocation6], 0
    %s19 = scalar_lea.sflag [#allocation6], 1
    %20 = vsyncpa %s19, 0
    %21 = vsyncpa [#allocation9], 0
    %s22 = scalar_lea.sflag [#allocation9], 1
    %23 = vsyncpa %s22, 0
    %24 = vsyncpa [#allocation12], 0
    %s25 = scalar_lea.sflag [#allocation12], 1
    %26 = vsyncpa %s25, 0
    %27 = vsyncpa [#allocation15], 0
    %s28 = scalar_lea.sflag [#allocation15], 1
    %29 = vsyncpa %s28, 0
    %30 = vsyncpa [#allocation18], 0
    %s31 = scalar_lea.sflag [#allocation18], 1
    %32 = vsyncpa %s31, 0
    %33 = vsyncpa [#allocation4], 0
    %s34 = scalar_lea.sflag [#allocation4], 1
    %35 = vsyncpa %s34, 0
    loop: start=0, step=1, limit=4
    $region2: #{tpu_custom_call.1} parent=1 // loop_pre_header
      _
    $region3: #{tpu_custom_call.1} parent=1 // loop_header
      %s37 = sphi 0, %s41
      %p38 = scmp.ge.s32.totalorder %s37, 4
      %s44 = sphi 0, %s56
      %s45 = sphi 0, %s52
      %s46 = sphi 0, %s44
      %s47 = sphi 0, %s45
      %s48 = sphi 0, %s46
      %s49 = sphi 0, %s47
      %s59 = sphi 0, %s61
      %s62 = sphi 0, %s59
      %s63 = sphi 0, %s62
      %s79 = sphi 0, %s63
      %s85 = sphi 0, %s87
      %s88 = sphi 0, %s85
      %s89 = sphi 0, %s88
      %s105 = sphi 0, %s89
      %s111 = sphi 0, %s113
      %s114 = sphi 0, %s111
      %s115 = sphi 0, %s114
      %s131 = sphi 0, %s115
      %s137 = sphi 0, %s139
      %s140 = sphi 0, %s137
      %s141 = sphi 0, %s140
      %s157 = sphi 0, %s141
      %s163 = sphi 0, %s165
      %s166 = sphi 0, %s163
      %s167 = sphi 0, %s166
      %s183 = sphi 0, %s167
      %s189 = sphi 0, %s191
      %s192 = sphi 0, %s189
      %s193 = sphi 0, %s192
      %s209 = sphi 0, %s193
      %s215 = sphi 0, %s217
      %s218 = sphi 0, %s215
      %s219 = sphi 0, %s218
      %s235 = sphi 0, %s219
      %s241 = sphi 0, %s243
      %s244 = sphi 0, %s241
      %s245 = sphi 0, %s244
      %s261 = sphi 0, %s245
      %s267 = sphi 0, %s269
      %s270 = sphi 0, %s267
      %s271 = sphi 0, %s270
      %s287 = sphi 0, %s271
      %s293 = sphi 0, %s295
      %s296 = sphi 0, %s293
      %s297 = sphi 0, %s296
      %s313 = sphi 0, %s297
      %s319 = sphi 0, %s321
      %s322 = sphi 0, %s319
      %s323 = sphi 0, %s322
      %s339 = sphi 0, %s323
      %s345 = sphi 0, %s347
      %s348 = sphi 0, %s345
      %s349 = sphi 0, %s348
      %s365 = sphi 0, %s349
      %s373 = sphi 0, %s375
      %s376 = sphi 0, %s373
      %s377 = sphi 0, %s376
      %s393 = sphi 0, %s377
    $region4: #{tpu_custom_call.1} parent=1 // loop_header_branch
      %40 = sbr.rel (%p38) target = $region8
    $region5: #{tpu_custom_call.1} parent=1 // loop_body
      %s42 = ssub.s32 %s37, 1
      %s43 = ssub.s32 %s37, 2
      %s50 = sadd.s32 1, %s45
      %p51 = scmp.ge.s32.totalorder %s50, 1
      %s52 = scalar_select %p51, 0, %s50
      %s53 = sadd.s32 1, %s44
      %s54 = scalar_select %p51, %s53, %s44
      %p55 = scmp.ge.s32.totalorder %s54, 2
      %s56 = scalar_select %p55, 0, %s54
      %s57 = ssub.s32 %s45, %s52
      %p58 = scmp.eq.s32.totalorder %s57, 0
      %s60 = sadd.s32 %s59, 1
      %s61 = scalar_select %p58, %s59, %s60
      %p64 = pneg %p58
      %p65 = scmp.eq.s32.totalorder %s37, 1
      %p66 = por %p64, %p65
      %p67 = scmp.ne.s32.totalorder %s59, %s62
      %p68 = scmp.eq.s32.totalorder %s37, 0
      %p69 = por %p67, %p68
      %p70 = scmp.ne.s32.totalorder %s59, %s62
      %p71 = scmp.eq.s32.totalorder %s42, 1
      %p72 = por %p70, %p71
      %p73 = scmp.ne.s32.totalorder %s62, %s63
      %p74 = scmp.eq.s32.totalorder %s42, 0
      %p75 = por %p73, %p74
      %p76 = scmp.ne.s32.totalorder %s62, %s63
      %p77 = scmp.eq.s32.totalorder %s43, 1
      %p78 = por %p76, %p77
      %p80 = scmp.ne.s32.totalorder %s63, %s79
      %p81 = scmp.eq.s32.totalorder %s43, 0
      %p82 = por %p80, %p81
      %s83 = ssub.s32 %s44, %s56
      %p84 = scmp.eq.s32.totalorder %s83, 0
      %s86 = sadd.s32 %s85, 1
      %s87 = scalar_select %p84, %s85, %s86
      %p90 = pneg %p84
      %p91 = scmp.eq.s32.totalorder %s37, 1
      %p92 = por %p90, %p91
      %p93 = scmp.ne.s32.totalorder %s85, %s88
      %p94 = scmp.eq.s32.totalorder %s37, 0
      %p95 = por %p93, %p94
      %p96 = scmp.ne.s32.totalorder %s85, %s88
      %p97 = scmp.eq.s32.totalorder %s42, 1
      %p98 = por %p96, %p97
      %p99 = scmp.ne.s32.totalorder %s88, %s89
      %p100 = scmp.eq.s32.totalorder %s42, 0
      %p101 = por %p99, %p100
      %p102 = scmp.ne.s32.totalorder %s88, %s89
      %p103 = scmp.eq.s32.totalorder %s43, 1
      %p104 = por %p102, %p103
      %p106 = scmp.ne.s32.totalorder %s89, %s105
      %p107 = scmp.eq.s32.totalorder %s43, 0
      %p108 = por %p106, %p107
      %s109 = ssub.s32 %s44, %s56
      %p110 = scmp.eq.s32.totalorder %s109, 0
      %s112 = sadd.s32 %s111, 1
      %s113 = scalar_select %p110, %s111, %s112
      %p116 = pneg %p110
      %p117 = scmp.eq.s32.totalorder %s37, 1
      %p118 = por %p116, %p117
      %p119 = scmp.ne.s32.totalorder %s111, %s114
      %p120 = scmp.eq.s32.totalorder %s37, 0
      %p121 = por %p119, %p120
      %p122 = scmp.ne.s32.totalorder %s111, %s114
      %p123 = scmp.eq.s32.totalorder %s42, 1
      %p124 = por %p122, %p123
      %p125 = scmp.ne.s32.totalorder %s114, %s115
      %p126 = scmp.eq.s32.totalorder %s42, 0
      %p127 = por %p125, %p126
      %p128 = scmp.ne.s32.totalorder %s114, %s115
      %p129 = scmp.eq.s32.totalorder %s43, 1
      %p130 = por %p128, %p129
      %p132 = scmp.ne.s32.totalorder %s115, %s131
      %p133 = scmp.eq.s32.totalorder %s43, 0
      %p134 = por %p132, %p133
      %s135 = ssub.s32 %s44, %s56
      %p136 = scmp.eq.s32.totalorder %s135, 0
      %s138 = sadd.s32 %s137, 1
      %s139 = scalar_select %p136, %s137, %s138
      %p142 = pneg %p136
      %p143 = scmp.eq.s32.totalorder %s37, 1
      %p144 = por %p142, %p143
      %p145 = scmp.ne.s32.totalorder %s137, %s140
      %p146 = scmp.eq.s32.totalorder %s37, 0
      %p147 = por %p145, %p146
      %p148 = scmp.ne.s32.totalorder %s137, %s140
      %p149 = scmp.eq.s32.totalorder %s42, 1
      %p150 = por %p148, %p149
      %p151 = scmp.ne.s32.totalorder %s140, %s141
      %p152 = scmp.eq.s32.totalorder %s42, 0
      %p153 = por %p151, %p152
      %p154 = scmp.ne.s32.totalorder %s140, %s141
      %p155 = scmp.eq.s32.totalorder %s43, 1
      %p156 = por %p154, %p155
      %p158 = scmp.ne.s32.totalorder %s141, %s157
      %p159 = scmp.eq.s32.totalorder %s43, 0
      %p160 = por %p158, %p159
      %s161 = ssub.s32 %s44, %s56
      %p162 = scmp.eq.s32.totalorder %s161, 0
      %s164 = sadd.s32 %s163, 1
      %s165 = scalar_select %p162, %s163, %s164
      %p168 = pneg %p162
      %p169 = scmp.eq.s32.totalorder %s37, 1
      %p170 = por %p168, %p169
      %p171 = scmp.ne.s32.totalorder %s163, %s166
      %p172 = scmp.eq.s32.totalorder %s37, 0
      %p173 = por %p171, %p172
      %p174 = scmp.ne.s32.totalorder %s163, %s166
      %p175 = scmp.eq.s32.totalorder %s42, 1
      %p176 = por %p174, %p175
      %p177 = scmp.ne.s32.totalorder %s166, %s167
      %p178 = scmp.eq.s32.totalorder %s42, 0
      %p179 = por %p177, %p178
      %p180 = scmp.ne.s32.totalorder %s166, %s167
      %p181 = scmp.eq.s32.totalorder %s43, 1
      %p182 = por %p180, %p181
      %p184 = scmp.ne.s32.totalorder %s167, %s183
      %p185 = scmp.eq.s32.totalorder %s43, 0
      %p186 = por %p184, %p185
      %s187 = ssub.s32 %s44, %s56
      %p188 = scmp.eq.s32.totalorder %s187, 0
      %s190 = sadd.s32 %s189, 1
      %s191 = scalar_select %p188, %s189, %s190
      %p194 = pneg %p188
      %p195 = scmp.eq.s32.totalorder %s37, 1
      %p196 = por %p194, %p195
      %p197 = scmp.ne.s32.totalorder %s189, %s192
      %p198 = scmp.eq.s32.totalorder %s37, 0
      %p199 = por %p197, %p198
      %p200 = scmp.ne.s32.totalorder %s189, %s192
      %p201 = scmp.eq.s32.totalorder %s42, 1
      %p202 = por %p200, %p201
      %p203 = scmp.ne.s32.totalorder %s192, %s193
      %p204 = scmp.eq.s32.totalorder %s42, 0
      %p205 = por %p203, %p204
      %p206 = scmp.ne.s32.totalorder %s192, %s193
      %p207 = scmp.eq.s32.totalorder %s43, 1
      %p208 = por %p206, %p207
      %p210 = scmp.ne.s32.totalorder %s193, %s209
      %p211 = scmp.eq.s32.totalorder %s43, 0
      %p212 = por %p210, %p211
      %s213 = ssub.s32 %s44, %s56
      %p214 = scmp.eq.s32.totalorder %s213, 0
      %s216 = sadd.s32 %s215, 1
      %s217 = scalar_select %p214, %s215, %s216
      %p220 = pneg %p214
      %p221 = scmp.eq.s32.totalorder %s37, 1
      %p222 = por %p220, %p221
      %p223 = scmp.ne.s32.totalorder %s215, %s218
      %p224 = scmp.eq.s32.totalorder %s37, 0
      %p225 = por %p223, %p224
      %p226 = scmp.ne.s32.totalorder %s215, %s218
      %p227 = scmp.eq.s32.totalorder %s42, 1
      %p228 = por %p226, %p227
      %p229 = scmp.ne.s32.totalorder %s218, %s219
      %p230 = scmp.eq.s32.totalorder %s42, 0
      %p231 = por %p229, %p230
      %p232 = scmp.ne.s32.totalorder %s218, %s219
      %p233 = scmp.eq.s32.totalorder %s43, 1
      %p234 = por %p232, %p233
      %p236 = scmp.ne.s32.totalorder %s219, %s235
      %p237 = scmp.eq.s32.totalorder %s43, 0
      %p238 = por %p236, %p237
      %s239 = ssub.s32 %s44, %s56
      %p240 = scmp.eq.s32.totalorder %s239, 0
      %s242 = sadd.s32 %s241, 1
      %s243 = scalar_select %p240, %s241, %s242
      %p246 = pneg %p240
      %p247 = scmp.eq.s32.totalorder %s37, 1
      %p248 = por %p246, %p247
      %p249 = scmp.ne.s32.totalorder %s241, %s244
      %p250 = scmp.eq.s32.totalorder %s37, 0
      %p251 = por %p249, %p250
      %p252 = scmp.ne.s32.totalorder %s241, %s244
      %p253 = scmp.eq.s32.totalorder %s42, 1
      %p254 = por %p252, %p253
      %p255 = scmp.ne.s32.totalorder %s244, %s245
      %p256 = scmp.eq.s32.totalorder %s42, 0
      %p257 = por %p255, %p256
      %p258 = scmp.ne.s32.totalorder %s244, %s245
      %p259 = scmp.eq.s32.totalorder %s43, 1
      %p260 = por %p258, %p259
      %p262 = scmp.ne.s32.totalorder %s245, %s261
      %p263 = scmp.eq.s32.totalorder %s43, 0
      %p264 = por %p262, %p263
      %s265 = ssub.s32 %s44, %s56
      %p266 = scmp.eq.s32.totalorder %s265, 0
      %s268 = sadd.s32 %s267, 1
      %s269 = scalar_select %p266, %s267, %s268
      %p272 = pneg %p266
      %p273 = scmp.eq.s32.totalorder %s37, 1
      %p274 = por %p272, %p273
      %p275 = scmp.ne.s32.totalorder %s267, %s270
      %p276 = scmp.eq.s32.totalorder %s37, 0
      %p277 = por %p275, %p276
      %p278 = scmp.ne.s32.totalorder %s267, %s270
      %p279 = scmp.eq.s32.totalorder %s42, 1
      %p280 = por %p278, %p279
      %p281 = scmp.ne.s32.totalorder %s270, %s271
      %p282 = scmp.eq.s32.totalorder %s42, 0
      %p283 = por %p281, %p282
      %p284 = scmp.ne.s32.totalorder %s270, %s271
      %p285 = scmp.eq.s32.totalorder %s43, 1
      %p286 = por %p284, %p285
      %p288 = scmp.ne.s32.totalorder %s271, %s287
      %p289 = scmp.eq.s32.totalorder %s43, 0
      %p290 = por %p288, %p289
      %s291 = ssub.s32 %s44, %s56
      %p292 = scmp.eq.s32.totalorder %s291, 0
      %s294 = sadd.s32 %s293, 1
      %s295 = scalar_select %p292, %s293, %s294
      %p298 = pneg %p292
      %p299 = scmp.eq.s32.totalorder %s37, 1
      %p300 = por %p298, %p299
      %p301 = scmp.ne.s32.totalorder %s293, %s296
      %p302 = scmp.eq.s32.totalorder %s37, 0
      %p303 = por %p301, %p302
      %p304 = scmp.ne.s32.totalorder %s293, %s296
      %p305 = scmp.eq.s32.totalorder %s42, 1
      %p306 = por %p304, %p305
      %p307 = scmp.ne.s32.totalorder %s296, %s297
      %p308 = scmp.eq.s32.totalorder %s42, 0
      %p309 = por %p307, %p308
      %p310 = scmp.ne.s32.totalorder %s296, %s297
      %p311 = scmp.eq.s32.totalorder %s43, 1
      %p312 = por %p310, %p311
      %p314 = scmp.ne.s32.totalorder %s297, %s313
      %p315 = scmp.eq.s32.totalorder %s43, 0
      %p316 = por %p314, %p315
      %s317 = ssub.s32 %s44, %s56
      %p318 = scmp.eq.s32.totalorder %s317, 0
      %s320 = sadd.s32 %s319, 1
      %s321 = scalar_select %p318, %s319, %s320
      %p324 = pneg %p318
      %p325 = scmp.eq.s32.totalorder %s37, 1
      %p326 = por %p324, %p325
      %p327 = scmp.ne.s32.totalorder %s319, %s322
      %p328 = scmp.eq.s32.totalorder %s37, 0
      %p329 = por %p327, %p328
      %p330 = scmp.ne.s32.totalorder %s319, %s322
      %p331 = scmp.eq.s32.totalorder %s42, 1
      %p332 = por %p330, %p331
      %p333 = scmp.ne.s32.totalorder %s322, %s323
      %p334 = scmp.eq.s32.totalorder %s42, 0
      %p335 = por %p333, %p334
      %p336 = scmp.ne.s32.totalorder %s322, %s323
      %p337 = scmp.eq.s32.totalorder %s43, 1
      %p338 = por %p336, %p337
      %p340 = scmp.ne.s32.totalorder %s323, %s339
      %p341 = scmp.eq.s32.totalorder %s43, 0
      %p342 = por %p340, %p341
      %s343 = ssub.s32 %s44, %s56
      %p344 = scmp.eq.s32.totalorder %s343, 0
      %s346 = sadd.s32 %s345, 1
      %s347 = scalar_select %p344, %s345, %s346
      %p350 = pneg %p344
      %p351 = scmp.eq.s32.totalorder %s37, 1
      %p352 = por %p350, %p351
      %p353 = scmp.ne.s32.totalorder %s345, %s348
      %p354 = scmp.eq.s32.totalorder %s37, 0
      %p355 = por %p353, %p354
      %p356 = scmp.ne.s32.totalorder %s345, %s348
      %p357 = scmp.eq.s32.totalorder %s42, 1
      %p358 = por %p356, %p357
      %p359 = scmp.ne.s32.totalorder %s348, %s349
      %p360 = scmp.eq.s32.totalorder %s42, 0
      %p361 = por %p359, %p360
      %p362 = scmp.ne.s32.totalorder %s348, %s349
      %p363 = scmp.eq.s32.totalorder %s43, 1
      %p364 = por %p362, %p363
      %p366 = scmp.ne.s32.totalorder %s349, %s365
      %p367 = scmp.eq.s32.totalorder %s43, 0
      %p368 = por %p366, %p367
      %s369 = ssub.s32 %s44, %s56
      %s370 = ssub.s32 %s45, %s52
      %s371 = sor.u32 %s369, %s370
      %p372 = scmp.eq.s32.totalorder %s371, 0
      %s374 = sadd.s32 %s373, 1
      %s375 = scalar_select %p372, %s373, %s374
      %p378 = pneg %p372
      %p379 = scmp.eq.s32.totalorder %s37, 1
      %p380 = por %p378, %p379
      %p381 = scmp.ne.s32.totalorder %s373, %s376
      %p382 = scmp.eq.s32.totalorder %s37, 0
      %p383 = por %p381, %p382
      %p384 = scmp.ne.s32.totalorder %s373, %s376
      %p385 = scmp.eq.s32.totalorder %s42, 1
      %p386 = por %p384, %p385
      %p387 = scmp.ne.s32.totalorder %s376, %s377
      %p388 = scmp.eq.s32.totalorder %s42, 0
      %p389 = por %p387, %p388
      %p390 = scmp.ne.s32.totalorder %s376, %s377
      %p391 = scmp.eq.s32.totalorder %s43, 1
      %p392 = por %p390, %p391
      %p394 = scmp.ne.s32.totalorder %s377, %s393
      %p395 = scmp.eq.s32.totalorder %s43, 0
      %p396 = por %p394, %p395
      %p397 = scmp.le.s32.totalorder 1, %s37
      %p398 = scmp.lt.s32.totalorder %s37, 3
      %p399 = pnand %p397, %p398
      %p400 = pneg %p399
      // Predicated region
      $region9: #{tpu_custom_call.1} parent=5 // pred_check
        _
      $region10: #{tpu_custom_call.1} parent=5 // pred_check_branch
        %402 = sbr.rel (%p399) target = $region12
      $region11: #{tpu_custom_call.1} parent=5 // pred_region
        %s403 = ssub.s32 %s37, 1
        // Predicated region
        $region13: #{tpu_custom_call.1} parent=11 // pred_check
          %p404 = pneg %p75
        $region14: #{tpu_custom_call.1} parent=11 // pred_check_branch
          %406 = sbr.rel (%p404) target = $region16
        $region15: #{tpu_custom_call.1} parent=11 // pred_region
          %s408 = ssub.s32 512, 512
          %409 = vsyncadd [#allocation3], %s408
          %s410 = smul.addr %s47, 8
          %s411 = smul.addr %s410, 64
          %s412 = scalar_lea.hbm %s0, %s411
          %s414 = sshll.u32 [#allocation2], 4
          %s415 = int_to_ptr.vmem [resolvable:$true] %s414
          %417 = dma.hbm_to_vmem [thread:$0]  %s412, 512, %s415, [#allocation3]
        $region16: #{tpu_custom_call.1} parent=11 // pred_fallthru
          _
      $region12: #{tpu_custom_call.1} parent=5 // pred_fallthru
        _
      %p418 = scmp.lt.s32.totalorder %s37, 2
      // Predicated region
      $region17: #{tpu_custom_call.1} parent=5 // pred_check
        %p419 = pneg %p418
      $region18: #{tpu_custom_call.1} parent=5 // pred_check_branch
        %421 = sbr.rel (%p419) target = $region20
      $region19: #{tpu_custom_call.1} parent=5 // pred_region
        // Predicated region
        $region21: #{tpu_custom_call.1} parent=19 // pred_check
          %p422 = pneg %p95
        $region22: #{tpu_custom_call.1} parent=19 // pred_check_branch
          %424 = sbr.rel (%p422) target = $region24
        $region23: #{tpu_custom_call.1} parent=19 // pred_region
          %s425 = sand.u32 %s37, 1
          %s426 = scalar_lea.sflag [#allocation6], %s425
          %s427 = sand.u32 %s85, 1
          %s428 = smul.addr %s427, 2048
          %s429 = scalar_lea.vmem [#allocation5], %s428
          %s431 = ssub.s32 32768, 32768
          %432 = vsyncadd %s426, %s431
          %s433 = smul.addr %s44, 512
          %s434 = smul.addr %s433, 64
          %s435 = scalar_lea.hbm %s1, %s434
          %s436 = sshll.u32 %s429, 4
          %s437 = int_to_ptr.vmem [resolvable:$true] %s436
          %442 = dma.hbm_to_vmem [thread:$0]  %s435, 32768, %s437, %s426, 256, 256, 16
        $region24: #{tpu_custom_call.1} parent=19 // pred_fallthru
          _
        // Predicated region
        $region25: #{tpu_custom_call.1} parent=19 // pred_check
          %p443 = pneg %p121
        $region26: #{tpu_custom_call.1} parent=19 // pred_check_branch
          %445 = sbr.rel (%p443) target = $region28
        $region27: #{tpu_custom_call.1} parent=19 // pred_region
          %s446 = sand.u32 %s37, 1
          %s447 = scalar_lea.sflag [#allocation6], %s446
          %s448 = sand.u32 %s111, 1
          %s449 = smul.addr %s448, 4
          %s450 = scalar_lea.vmem [#allocation7], %s449
          %s452 = ssub.s32 64, 64
          %453 = vsyncadd %s447, %s452
          %s454 = smul.addr %s44, 4
          %s455 = smul.addr %s454, 16
          %s456 = scalar_lea.hbm %s2, %s455
          %s458 = sshll.u32 %s450, 4
          %s459 = int_to_ptr.vmem [resolvable:$true] %s458
          %461 = dma.hbm_to_vmem [thread:$0]  %s456, 64, %s459, %s447
        $region28: #{tpu_custom_call.1} parent=19 // pred_fallthru
          _
        // Predicated region
        $region29: #{tpu_custom_call.1} parent=19 // pred_check
          %p462 = pneg %p147
        $region30: #{tpu_custom_call.1} parent=19 // pred_check_branch
          %464 = sbr.rel (%p462) target = $region32
        $region31: #{tpu_custom_call.1} parent=19 // pred_region
          %s465 = sand.u32 %s37, 1
          %s466 = scalar_lea.sflag [#allocation9], %s465
          %s467 = sand.u32 %s137, 1
          %s468 = smul.addr %s467, 4
          %s469 = scalar_lea.vmem [#allocation8], %s468
          %s471 = ssub.s32 64, 64
          %472 = vsyncadd %s466, %s471
          %s473 = smul.addr %s44, 4
          %s474 = smul.addr %s473, 16
          %s475 = scalar_lea.hbm %s3, %s474
          %s477 = sshll.u32 %s469, 4
          %s478 = int_to_ptr.vmem [resolvable:$true] %s477
          %480 = dma.hbm_to_vmem [thread:$0]  %s475, 64, %s478, %s466
        $region32: #{tpu_custom_call.1} parent=19 // pred_fallthru
          _
        // Predicated region
        $region33: #{tpu_custom_call.1} parent=19 // pred_check
          %p481 = pneg %p173
        $region34: #{tpu_custom_call.1} parent=19 // pred_check_branch
          %483 = sbr.rel (%p481) target = $region36
        $region35: #{tpu_custom_call.1} parent=19 // pred_region
          %s484 = sand.u32 %s37, 1
          %s485 = scalar_lea.sflag [#allocation9], %s484
          %s486 = sand.u32 %s163, 1
          %s487 = smul.addr %s486, 512
          %s488 = scalar_lea.vmem [#allocation10], %s487
          %s490 = ssub.s32 8192, 8192
          %491 = vsyncadd %s485, %s490
          %s492 = smul.addr %s44, 128
          %s493 = smul.addr %s492, 64
          %s494 = scalar_lea.hbm %s4, %s493
          %s495 = sshll.u32 %s488, 4
          %s496 = int_to_ptr.vmem [resolvable:$true] %s495
          %501 = dma.hbm_to_vmem [thread:$0]  %s494, 8192, %s496, %s485, 128, 128, 8
        $region36: #{tpu_custom_call.1} parent=19 // pred_fallthru
          _
        // Predicated region
        $region37: #{tpu_custom_call.1} parent=19 // pred_check
          %p502 = pneg %p199
        $region38: #{tpu_custom_call.1} parent=19 // pred_check_branch
          %504 = sbr.rel (%p502) target = $region40
        $region39: #{tpu_custom_call.1} parent=19 // pred_region
          %s505 = sand.u32 %s37, 1
          %s506 = scalar_lea.sflag [#allocation12], %s505
          %s507 = sand.u32 %s189, 1
          %s508 = smul.addr %s507, 2
          %s509 = scalar_lea.vmem [#allocation11], %s508
          %s511 = ssub.s32 32, 32
          %512 = vsyncadd %s506, %s511
          %s513 = smul.addr %s44, 2
          %s514 = smul.addr %s513, 16
          %s515 = scalar_lea.hbm %s5, %s514
          %s517 = sshll.u32 %s509, 4
          %s518 = int_to_ptr.vmem [resolvable:$true] %s517
          %520 = dma.hbm_to_vmem [thread:$0]  %s515, 32, %s518, %s506
        $region40: #{tpu_custom_call.1} parent=19 // pred_fallthru
          _
        // Predicated region
        $region41: #{tpu_custom_call.1} parent=19 // pred_check
          %p521 = pneg %p225
        $region42: #{tpu_custom_call.1} parent=19 // pred_check_branch
          %523 = sbr.rel (%p521) target = $region44
        $region43: #{tpu_custom_call.1} parent=19 // pred_region
          %s524 = sand.u32 %s37, 1
          %s525 = scalar_lea.sflag [#allocation12], %s524
          %s526 = sand.u32 %s215, 1
          %s527 = smul.addr %s526, 2
          %s528 = scalar_lea.vmem [#allocation13], %s527
          %s530 = ssub.s32 32, 32
          %531 = vsyncadd %s525, %s530
          %s532 = smul.addr %s44, 2
          %s533 = smul.addr %s532, 16
          %s534 = scalar_lea.hbm %s6, %s533
          %s536 = sshll.u32 %s528, 4
          %s537 = int_to_ptr.vmem [resolvable:$true] %s536
          %539 = dma.hbm_to_vmem [thread:$0]  %s534, 32, %s537, %s525
        $region44: #{tpu_custom_call.1} parent=19 // pred_fallthru
          _
        // Predicated region
        $region45: #{tpu_custom_call.1} parent=19 // pred_check
          %p540 = pneg %p251
        $region46: #{tpu_custom_call.1} parent=19 // pred_check_branch
          %542 = sbr.rel (%p540) target = $region48
        $region47: #{tpu_custom_call.1} parent=19 // pred_region
          %s543 = sand.u32 %s37, 1
          %s544 = scalar_lea.sflag [#allocation15], %s543
          %s545 = sand.u32 %s241, 1
          %s546 = smul.addr %s545, 128
          %s547 = scalar_lea.vmem [#allocation14], %s546
          %s549 = ssub.s32 2048, 2048
          %550 = vsyncadd %s544, %s549
          %s551 = smul.addr %s44, 32
          %s552 = smul.addr %s551, 64
          %s553 = scalar_lea.hbm %s7, %s552
          %s554 = sshll.u32 %s547, 4
          %s555 = int_to_ptr.vmem [resolvable:$true] %s554
          %560 = dma.hbm_to_vmem [thread:$0]  %s553, 2048, %s555, %s544, 64, 64, 4
        $region48: #{tpu_custom_call.1} parent=19 // pred_fallthru
          _
        // Predicated region
        $region49: #{tpu_custom_call.1} parent=19 // pred_check
          %p561 = pneg %p277
        $region50: #{tpu_custom_call.1} parent=19 // pred_check_branch
          %563 = sbr.rel (%p561) target = $region52
        $region51: #{tpu_custom_call.1} parent=19 // pred_region
          %s564 = sand.u32 %s37, 1
          %s565 = scalar_lea.sflag [#allocation15], %s564
          %s566 = sand.u32 %s267, 1
          %s567 = scalar_lea.vmem [#allocation16], %s566
          %s569 = ssub.s32 16, 16
          %570 = vsyncadd %s565, %s569
          %s571 = smul.addr %s44, 16
          %s572 = scalar_lea.hbm %s8, %s571
          %s574 = sshll.u32 %s567, 4
          %s575 = int_to_ptr.vmem [resolvable:$true] %s574
          %577 = dma.hbm_to_vmem [thread:$0]  %s572, 16, %s575, %s565
        $region52: #{tpu_custom_call.1} parent=19 // pred_fallthru
          _
        // Predicated region
        $region53: #{tpu_custom_call.1} parent=19 // pred_check
          %p578 = pneg %p303
        $region54: #{tpu_custom_call.1} parent=19 // pred_check_branch
          %580 = sbr.rel (%p578) target = $region56
        $region55: #{tpu_custom_call.1} parent=19 // pred_region
          %s581 = sand.u32 %s37, 1
          %s582 = scalar_lea.sflag [#allocation18], %s581
          %s583 = sand.u32 %s293, 1
          %s584 = scalar_lea.vmem [#allocation17], %s583
          %s586 = ssub.s32 16, 16
          %587 = vsyncadd %s582, %s586
          %s588 = smul.addr %s44, 16
          %s589 = scalar_lea.hbm %s9, %s588
          %s591 = sshll.u32 %s584, 4
          %s592 = int_to_ptr.vmem [resolvable:$true] %s591
          %594 = dma.hbm_to_vmem [thread:$0]  %s589, 16, %s592, %s582
        $region56: #{tpu_custom_call.1} parent=19 // pred_fallthru
          _
        // Predicated region
        $region57: #{tpu_custom_call.1} parent=19 // pred_check
          %p595 = pneg %p329
        $region58: #{tpu_custom_call.1} parent=19 // pred_check_branch
          %597 = sbr.rel (%p595) target = $region60
        $region59: #{tpu_custom_call.1} parent=19 // pred_region
          %p598 = scmp.lt.s32.totalorder %s44, 1
          %s599 = scalar_select %p598, %s44, 1
          %s600 = smul.addr %s599, 16
          %s601 = smul.addr %s600, 4
          %s602 = scalar_lea.vmem %s10, %s601
        $region60: #{tpu_custom_call.1} parent=19 // pred_fallthru
          _
        // Predicated region
        $region61: #{tpu_custom_call.1} parent=19 // pred_check
          %p603 = pneg %p355
        $region62: #{tpu_custom_call.1} parent=19 // pred_check_branch
          %605 = sbr.rel (%p603) target = $region64
        $region63: #{tpu_custom_call.1} parent=19 // pred_region
          %s606 = sand.u32 %s37, 1
          %s607 = scalar_lea.sflag [#allocation18], %s606
          %s608 = sand.u32 %s345, 1
          %s609 = scalar_lea.vmem [#allocation19], %s608
          %s611 = ssub.s32 16, 16
          %612 = vsyncadd %s607, %s611
          %s613 = smul.addr %s44, 16
          %s614 = scalar_lea.hbm %s11, %s613
          %s616 = sshll.u32 %s609, 4
          %s617 = int_to_ptr.vmem [resolvable:$true] %s616
          %619 = dma.hbm_to_vmem [thread:$0]  %s614, 16, %s617, %s607
        $region64: #{tpu_custom_call.1} parent=19 // pred_fallthru
          _
      $region20: #{tpu_custom_call.1} parent=5 // pred_fallthru
        _
      %p620 = scmp.le.s32.totalorder 1, %s37
      %p621 = scmp.lt.s32.totalorder %s37, 3
      %p622 = pnand %p620, %p621
      %p623 = pneg %p622
      // Predicated region
      $region65: #{tpu_custom_call.1} parent=5 // pred_check
        _
      $region66: #{tpu_custom_call.1} parent=5 // pred_check_branch
        %625 = sbr.rel (%p622) target = $region68
      $region67: #{tpu_custom_call.1} parent=5 // pred_region
        %s626 = ssub.s32 %s37, 1
        // Predicated region
        $region69: #{tpu_custom_call.1} parent=67 // pred_check
          %p627 = pneg %p75
        $region70: #{tpu_custom_call.1} parent=67 // pred_check_branch
          %629 = sbr.rel (%p627) target = $region72
        $region71: #{tpu_custom_call.1} parent=67 // pred_region
          %630 = dma.done [#allocation3], 512
        $region72: #{tpu_custom_call.1} parent=67 // pred_fallthru
          _
        %s631 = sand.u32 %s42, 1
        %s632 = scalar_lea.sflag [#allocation6], %s631
        %s633 = sand.u32 %s88, 1
        %s634 = smul.addr %s633, 2048
        %s635 = scalar_lea.vmem [#allocation5], %s634
        // Predicated region
        $region73: #{tpu_custom_call.1} parent=67 // pred_check
          %p636 = pneg %p101
        $region74: #{tpu_custom_call.1} parent=67 // pred_check_branch
          %638 = sbr.rel (%p636) target = $region76
        $region75: #{tpu_custom_call.1} parent=67 // pred_region
          %639 = dma.done %s632, 32768
        $region76: #{tpu_custom_call.1} parent=67 // pred_fallthru
          _
        %s640 = sand.u32 %s42, 1
        %s641 = scalar_lea.sflag [#allocation6], %s640
        %s642 = sand.u32 %s114, 1
        %s643 = smul.addr %s642, 4
        %s644 = scalar_lea.vmem [#allocation7], %s643
        // Predicated region
        $region77: #{tpu_custom_call.1} parent=67 // pred_check
          %p645 = pneg %p127
        $region78: #{tpu_custom_call.1} parent=67 // pred_check_branch
          %647 = sbr.rel (%p645) target = $region80
        $region79: #{tpu_custom_call.1} parent=67 // pred_region
          %648 = dma.done %s641, 64
        $region80: #{tpu_custom_call.1} parent=67 // pred_fallthru
          _
        %s649 = sand.u32 %s42, 1
        %s650 = scalar_lea.sflag [#allocation9], %s649
        %s651 = sand.u32 %s140, 1
        %s652 = smul.addr %s651, 4
        %s653 = scalar_lea.vmem [#allocation8], %s652
        // Predicated region
        $region81: #{tpu_custom_call.1} parent=67 // pred_check
          %p654 = pneg %p153
        $region82: #{tpu_custom_call.1} parent=67 // pred_check_branch
          %656 = sbr.rel (%p654) target = $region84
        $region83: #{tpu_custom_call.1} parent=67 // pred_region
          %657 = dma.done %s650, 64
        $region84: #{tpu_custom_call.1} parent=67 // pred_fallthru
          _
        %s658 = sand.u32 %s42, 1
        %s659 = scalar_lea.sflag [#allocation9], %s658
        %s660 = sand.u32 %s166, 1
        %s661 = smul.addr %s660, 512
        %s662 = scalar_lea.vmem [#allocation10], %s661
        // Predicated region
        $region85: #{tpu_custom_call.1} parent=67 // pred_check
          %p663 = pneg %p179
        $region86: #{tpu_custom_call.1} parent=67 // pred_check_branch
          %665 = sbr.rel (%p663) target = $region88
        $region87: #{tpu_custom_call.1} parent=67 // pred_region
          %666 = dma.done %s659, 8192
        $region88: #{tpu_custom_call.1} parent=67 // pred_fallthru
          _
        %s667 = sand.u32 %s42, 1
        %s668 = scalar_lea.sflag [#allocation12], %s667
        %s669 = sand.u32 %s192, 1
        %s670 = smul.addr %s669, 2
        %s671 = scalar_lea.vmem [#allocation11], %s670
        // Predicated region
        $region89: #{tpu_custom_call.1} parent=67 // pred_check
          %p672 = pneg %p205
        $region90: #{tpu_custom_call.1} parent=67 // pred_check_branch
          %674 = sbr.rel (%p672) target = $region92
        $region91: #{tpu_custom_call.1} parent=67 // pred_region
          %675 = dma.done %s668, 32
        $region92: #{tpu_custom_call.1} parent=67 // pred_fallthru
          _
        %s676 = sand.u32 %s42, 1
        %s677 = scalar_lea.sflag [#allocation12], %s676
        %s678 = sand.u32 %s218, 1
        %s679 = smul.addr %s678, 2
        %s680 = scalar_lea.vmem [#allocation13], %s679
        // Predicated region
        $region93: #{tpu_custom_call.1} parent=67 // pred_check
          %p681 = pneg %p231
        $region94: #{tpu_custom_call.1} parent=67 // pred_check_branch
          %683 = sbr.rel (%p681) target = $region96
        $region95: #{tpu_custom_call.1} parent=67 // pred_region
          %684 = dma.done %s677, 32
        $region96: #{tpu_custom_call.1} parent=67 // pred_fallthru
          _
        %s685 = sand.u32 %s42, 1
        %s686 = scalar_lea.sflag [#allocation15], %s685
        %s687 = sand.u32 %s244, 1
        %s688 = smul.addr %s687, 128
        %s689 = scalar_lea.vmem [#allocation14], %s688
        // Predicated region
        $region97: #{tpu_custom_call.1} parent=67 // pred_check
          %p690 = pneg %p257
        $region98: #{tpu_custom_call.1} parent=67 // pred_check_branch
          %692 = sbr.rel (%p690) target = $region100
        $region99: #{tpu_custom_call.1} parent=67 // pred_region
          %693 = dma.done %s686, 2048
        $region100: #{tpu_custom_call.1} parent=67 // pred_fallthru
          _
        %s694 = sand.u32 %s42, 1
        %s695 = scalar_lea.sflag [#allocation15], %s694
        %s696 = sand.u32 %s270, 1
        %s697 = scalar_lea.vmem [#allocation16], %s696
        // Predicated region
        $region101: #{tpu_custom_call.1} parent=67 // pred_check
          %p698 = pneg %p283
        $region102: #{tpu_custom_call.1} parent=67 // pred_check_branch
          %700 = sbr.rel (%p698) target = $region104
        $region103: #{tpu_custom_call.1} parent=67 // pred_region
          %701 = dma.done %s695, 16
        $region104: #{tpu_custom_call.1} parent=67 // pred_fallthru
          _
        %s702 = sand.u32 %s42, 1
        %s703 = scalar_lea.sflag [#allocation18], %s702
        %s704 = sand.u32 %s296, 1
        %s705 = scalar_lea.vmem [#allocation17], %s704
        // Predicated region
        $region105: #{tpu_custom_call.1} parent=67 // pred_check
          %p706 = pneg %p309
        $region106: #{tpu_custom_call.1} parent=67 // pred_check_branch
          %708 = sbr.rel (%p706) target = $region108
        $region107: #{tpu_custom_call.1} parent=67 // pred_region
          %709 = dma.done %s703, 16
        $region108: #{tpu_custom_call.1} parent=67 // pred_fallthru
          _
        %s710 = sand.u32 %s42, 1
        %s711 = scalar_lea.sflag [#allocation18], %s710
        %s712 = sand.u32 %s348, 1
        %s713 = scalar_lea.vmem [#allocation19], %s712
        // Predicated region
        $region109: #{tpu_custom_call.1} parent=67 // pred_check
          %p714 = pneg %p361
        $region110: #{tpu_custom_call.1} parent=67 // pred_check_branch
          %716 = sbr.rel (%p714) target = $region112
        $region111: #{tpu_custom_call.1} parent=67 // pred_region
          %717 = dma.done %s711, 16
        $region112: #{tpu_custom_call.1} parent=67 // pred_fallthru
          _
        %p718 = pneg %p75
        %p719 = pneg %p72
        %s720 = sand.u32 %s42, 1
        %s721 = scalar_lea.sflag [#allocation6], %s720
        %s722 = sand.u32 %s88, 1
        %s723 = smul.addr %s722, 2048
        %s724 = scalar_lea.vmem [#allocation5], %s723
        %p725 = pneg %p101
        %p726 = pneg %p98
        %s727 = sand.u32 %s42, 1
        %s728 = scalar_lea.sflag [#allocation6], %s727
        %s729 = sand.u32 %s114, 1
        %s730 = smul.addr %s729, 4
        %s731 = scalar_lea.vmem [#allocation7], %s730
        %p732 = pneg %p127
        %p733 = pneg %p124
        %s734 = sand.u32 %s42, 1
        %s735 = scalar_lea.sflag [#allocation9], %s734
        %s736 = sand.u32 %s140, 1
        %s737 = smul.addr %s736, 4
        %s738 = scalar_lea.vmem [#allocation8], %s737
        %p739 = pneg %p153
        %p740 = pneg %p150
        %s741 = sand.u32 %s42, 1
        %s742 = scalar_lea.sflag [#allocation9], %s741
        %s743 = sand.u32 %s166, 1
        %s744 = smul.addr %s743, 512
        %s745 = scalar_lea.vmem [#allocation10], %s744
        %p746 = pneg %p179
        %p747 = pneg %p176
        %s748 = sand.u32 %s42, 1
        %s749 = scalar_lea.sflag [#allocation12], %s748
        %s750 = sand.u32 %s192, 1
        %s751 = smul.addr %s750, 2
        %s752 = scalar_lea.vmem [#allocation11], %s751
        %p753 = pneg %p205
        %p754 = pneg %p202
        %s755 = sand.u32 %s42, 1
        %s756 = scalar_lea.sflag [#allocation12], %s755
        %s757 = sand.u32 %s218, 1
        %s758 = smul.addr %s757, 2
        %s759 = scalar_lea.vmem [#allocation13], %s758
        %p760 = pneg %p231
        %p761 = pneg %p228
        %s762 = sand.u32 %s42, 1
        %s763 = scalar_lea.sflag [#allocation15], %s762
        %s764 = sand.u32 %s244, 1
        %s765 = smul.addr %s764, 128
        %s766 = scalar_lea.vmem [#allocation14], %s765
        %p767 = pneg %p257
        %p768 = pneg %p254
        %s769 = sand.u32 %s42, 1
        %s770 = scalar_lea.sflag [#allocation15], %s769
        %s771 = sand.u32 %s270, 1
        %s772 = scalar_lea.vmem [#allocation16], %s771
        %p773 = pneg %p283
        %p774 = pneg %p280
        %s775 = sand.u32 %s42, 1
        %s776 = scalar_lea.sflag [#allocation18], %s775
        %s777 = sand.u32 %s296, 1
        %s778 = scalar_lea.vmem [#allocation17], %s777
        %p779 = pneg %p309
        %p780 = pneg %p306
        %p781 = scmp.lt.s32.totalorder %s46, 1
        %s782 = scalar_select %p781, %s46, 1
        %s783 = smul.addr %s782, 16
        %s784 = smul.addr %s783, 4
        %s785 = scalar_lea.vmem %s10, %s784
        %p786 = pneg %p335
        %p787 = pneg %p332
        %s788 = sand.u32 %s42, 1
        %s789 = scalar_lea.sflag [#allocation18], %s788
        %s790 = sand.u32 %s348, 1
        %s791 = scalar_lea.vmem [#allocation19], %s790
        %p792 = pneg %p361
        %p793 = pneg %p358
        %p794 = pneg %p389
        %p795 = pneg %p386
        %s796 = sand.u32 %s376, 1
        %s797 = scalar_lea.sflag [#allocation4], %s796
        %s798 = sand.u32 %s376, 1
        %s799 = smul.addr %s798, 8
        %s800 = scalar_lea.vmem [#allocation20], %s799
        %p801 = scmp.lt.s32.totalorder %s46, 1
        %s802 = scalar_select %p801, %s46, 1
        %s803 = smul.addr %s802, 16
        %s804 = smul.addr %s803, 4
        %s805 = scalar_lea.vmem %s10, %s804
        %v807 = vld [vmem:[#allocation2] sm:$0xff]
        %v808 = vld [vmem:[#allocation2 + $0x8] sm:$0xff]
        %v809 = vld [vmem:[#allocation2 + $0x10] sm:$0xff]
        %v810 = vld [vmem:[#allocation2 + $0x18] sm:$0xff]
        %v811 = vld [vmem:[%s635] sm:$0xff]
        %v812 = vld [vmem:[%s635 + $0x8] sm:$0xff]
        %v813 = vld [vmem:[%s635 + $0x10] sm:$0xff]
        %v814 = vld [vmem:[%s635 + $0x18] sm:$0xff]
        %v815 = vld [vmem:[%s635 + $0x20] sm:$0xff]
        %v816 = vld [vmem:[%s635 + $0x28] sm:$0xff]
        %v817 = vld [vmem:[%s635 + $0x30] sm:$0xff]
        %v818 = vld [vmem:[%s635 + $0x38] sm:$0xff]
        %v819 = vld [vmem:[%s635 + $0x40] sm:$0xff]
        %v820 = vld [vmem:[%s635 + $0x48] sm:$0xff]
        %v821 = vld [vmem:[%s635 + $0x50] sm:$0xff]
        %v822 = vld [vmem:[%s635 + $0x58] sm:$0xff]
        %v823 = vld [vmem:[%s635 + $0x60] sm:$0xff]
        %v824 = vld [vmem:[%s635 + $0x68] sm:$0xff]
        %v825 = vld [vmem:[%s635 + $0x70] sm:$0xff]
        %v826 = vld [vmem:[%s635 + $0x78] sm:$0xff]
        %v827 = vld [vmem:[%s635 + $0x80] sm:$0xff]
        %v828 = vld [vmem:[%s635 + $0x88] sm:$0xff]
        %v829 = vld [vmem:[%s635 + $0x90] sm:$0xff]
        %v830 = vld [vmem:[%s635 + $0x98] sm:$0xff]
        %v831 = vld [vmem:[%s635 + $0xa0] sm:$0xff]
        %v832 = vld [vmem:[%s635 + $0xa8] sm:$0xff]
        %v833 = vld [vmem:[%s635 + $0xb0] sm:$0xff]
        %v834 = vld [vmem:[%s635 + $0xb8] sm:$0xff]
        %v835 = vld [vmem:[%s635 + $0xc0] sm:$0xff]
        %v836 = vld [vmem:[%s635 + $0xc8] sm:$0xff]
        %v837 = vld [vmem:[%s635 + $0xd0] sm:$0xff]
        %v838 = vld [vmem:[%s635 + $0xd8] sm:$0xff]
        %v839 = vld [vmem:[%s635 + $0xe0] sm:$0xff]
        %v840 = vld [vmem:[%s635 + $0xe8] sm:$0xff]
        %v841 = vld [vmem:[%s635 + $0xf0] sm:$0xff]
        %v842 = vld [vmem:[%s635 + $0xf8] sm:$0xff]
        %v843 = vld [vmem:[%s635 + $0x100] sm:$0xff]
        %v844 = vld [vmem:[%s635 + $0x108] sm:$0xff]
        %v845 = vld [vmem:[%s635 + $0x110] sm:$0xff]
        %v846 = vld [vmem:[%s635 + $0x118] sm:$0xff]
        %v847 = vld [vmem:[%s635 + $0x120] sm:$0xff]
        %v848 = vld [vmem:[%s635 + $0x128] sm:$0xff]
        %v849 = vld [vmem:[%s635 + $0x130] sm:$0xff]
        %v850 = vld [vmem:[%s635 + $0x138] sm:$0xff]
        %v851 = vld [vmem:[%s635 + $0x140] sm:$0xff]
        %v852 = vld [vmem:[%s635 + $0x148] sm:$0xff]
        %v853 = vld [vmem:[%s635 + $0x150] sm:$0xff]
        %v854 = vld [vmem:[%s635 + $0x158] sm:$0xff]
        %v855 = vld [vmem:[%s635 + $0x160] sm:$0xff]
        %v856 = vld [vmem:[%s635 + $0x168] sm:$0xff]
        %v857 = vld [vmem:[%s635 + $0x170] sm:$0xff]
        %v858 = vld [vmem:[%s635 + $0x178] sm:$0xff]
        %v859 = vld [vmem:[%s635 + $0x180] sm:$0xff]
        %v860 = vld [vmem:[%s635 + $0x188] sm:$0xff]
        %v861 = vld [vmem:[%s635 + $0x190] sm:$0xff]
        %v862 = vld [vmem:[%s635 + $0x198] sm:$0xff]
        %v863 = vld [vmem:[%s635 + $0x1a0] sm:$0xff]
        %v864 = vld [vmem:[%s635 + $0x1a8] sm:$0xff]
        %v865 = vld [vmem:[%s635 + $0x1b0] sm:$0xff]
        %v866 = vld [vmem:[%s635 + $0x1b8] sm:$0xff]
        %v867 = vld [vmem:[%s635 + $0x1c0] sm:$0xff]
        %v868 = vld [vmem:[%s635 + $0x1c8] sm:$0xff]
        %v869 = vld [vmem:[%s635 + $0x1d0] sm:$0xff]
        %v870 = vld [vmem:[%s635 + $0x1d8] sm:$0xff]
        %v871 = vld [vmem:[%s635 + $0x1e0] sm:$0xff]
        %v872 = vld [vmem:[%s635 + $0x1e8] sm:$0xff]
        %v873 = vld [vmem:[%s635 + $0x1f0] sm:$0xff]
        %v874 = vld [vmem:[%s635 + $0x1f8] sm:$0xff]
        %v875 = vld [vmem:[%s635 + $0x200] sm:$0xff]
        %v876 = vld [vmem:[%s635 + $0x208] sm:$0xff]
        %v877 = vld [vmem:[%s635 + $0x210] sm:$0xff]
        %v878 = vld [vmem:[%s635 + $0x218] sm:$0xff]
        %v879 = vld [vmem:[%s635 + $0x220] sm:$0xff]
        %v880 = vld [vmem:[%s635 + $0x228] sm:$0xff]
        %v881 = vld [vmem:[%s635 + $0x230] sm:$0xff]
        %v882 = vld [vmem:[%s635 + $0x238] sm:$0xff]
        %v883 = vld [vmem:[%s635 + $0x240] sm:$0xff]
        %v884 = vld [vmem:[%s635 + $0x248] sm:$0xff]
        %v885 = vld [vmem:[%s635 + $0x250] sm:$0xff]
        %v886 = vld [vmem:[%s635 + $0x258] sm:$0xff]
        %v887 = vld [vmem:[%s635 + $0x260] sm:$0xff]
        %v888 = vld [vmem:[%s635 + $0x268] sm:$0xff]
        %v889 = vld [vmem:[%s635 + $0x270] sm:$0xff]
        %v890 = vld [vmem:[%s635 + $0x278] sm:$0xff]
        %v891 = vld [vmem:[%s635 + $0x280] sm:$0xff]
        %v892 = vld [vmem:[%s635 + $0x288] sm:$0xff]
        %v893 = vld [vmem:[%s635 + $0x290] sm:$0xff]
        %v894 = vld [vmem:[%s635 + $0x298] sm:$0xff]
        %v895 = vld [vmem:[%s635 + $0x2a0] sm:$0xff]
        %v896 = vld [vmem:[%s635 + $0x2a8] sm:$0xff]
        %v897 = vld [vmem:[%s635 + $0x2b0] sm:$0xff]
        %v898 = vld [vmem:[%s635 + $0x2b8] sm:$0xff]
        %v899 = vld [vmem:[%s635 + $0x2c0] sm:$0xff]
        %v900 = vld [vmem:[%s635 + $0x2c8] sm:$0xff]
        %v901 = vld [vmem:[%s635 + $0x2d0] sm:$0xff]
        %v902 = vld [vmem:[%s635 + $0x2d8] sm:$0xff]
        %v903 = vld [vmem:[%s635 + $0x2e0] sm:$0xff]
        %v904 = vld [vmem:[%s635 + $0x2e8] sm:$0xff]
        %v905 = vld [vmem:[%s635 + $0x2f0] sm:$0xff]
        %v906 = vld [vmem:[%s635 + $0x2f8] sm:$0xff]
        %v907 = vld [vmem:[%s635 + $0x300] sm:$0xff]
        %v908 = vld [vmem:[%s635 + $0x308] sm:$0xff]
        %v909 = vld [vmem:[%s635 + $0x310] sm:$0xff]
        %v910 = vld [vmem:[%s635 + $0x318] sm:$0xff]
        %v911 = vld [vmem:[%s635 + $0x320] sm:$0xff]
        %v912 = vld [vmem:[%s635 + $0x328] sm:$0xff]
        %v913 = vld [vmem:[%s635 + $0x330] sm:$0xff]
        %v914 = vld [vmem:[%s635 + $0x338] sm:$0xff]
        %v915 = vld [vmem:[%s635 + $0x340] sm:$0xff]
        %v916 = vld [vmem:[%s635 + $0x348] sm:$0xff]
        %v917 = vld [vmem:[%s635 + $0x350] sm:$0xff]
        %v918 = vld [vmem:[%s635 + $0x358] sm:$0xff]
        %v919 = vld [vmem:[%s635 + $0x360] sm:$0xff]
        %v920 = vld [vmem:[%s635 + $0x368] sm:$0xff]
        %v921 = vld [vmem:[%s635 + $0x370] sm:$0xff]
        %v922 = vld [vmem:[%s635 + $0x378] sm:$0xff]
        %v923 = vld [vmem:[%s635 + $0x380] sm:$0xff]
        %v924 = vld [vmem:[%s635 + $0x388] sm:$0xff]
        %v925 = vld [vmem:[%s635 + $0x390] sm:$0xff]
        %v926 = vld [vmem:[%s635 + $0x398] sm:$0xff]
        %v927 = vld [vmem:[%s635 + $0x3a0] sm:$0xff]
        %v928 = vld [vmem:[%s635 + $0x3a8] sm:$0xff]
        %v929 = vld [vmem:[%s635 + $0x3b0] sm:$0xff]
        %v930 = vld [vmem:[%s635 + $0x3b8] sm:$0xff]
        %v931 = vld [vmem:[%s635 + $0x3c0] sm:$0xff]
        %v932 = vld [vmem:[%s635 + $0x3c8] sm:$0xff]
        %v933 = vld [vmem:[%s635 + $0x3d0] sm:$0xff]
        %v934 = vld [vmem:[%s635 + $0x3d8] sm:$0xff]
        %v935 = vld [vmem:[%s635 + $0x3e0] sm:$0xff]
        %v936 = vld [vmem:[%s635 + $0x3e8] sm:$0xff]
        %v937 = vld [vmem:[%s635 + $0x3f0] sm:$0xff]
        %v938 = vld [vmem:[%s635 + $0x3f8] sm:$0xff]
        %v939 = vld [vmem:[%s635 + $0x400] sm:$0xff]
        %v940 = vld [vmem:[%s635 + $0x408] sm:$0xff]
        %v941 = vld [vmem:[%s635 + $0x410] sm:$0xff]
        %v942 = vld [vmem:[%s635 + $0x418] sm:$0xff]
        %v943 = vld [vmem:[%s635 + $0x420] sm:$0xff]
        %v944 = vld [vmem:[%s635 + $0x428] sm:$0xff]
        %v945 = vld [vmem:[%s635 + $0x430] sm:$0xff]
        %v946 = vld [vmem:[%s635 + $0x438] sm:$0xff]
        %v947 = vld [vmem:[%s635 + $0x440] sm:$0xff]
        %v948 = vld [vmem:[%s635 + $0x448] sm:$0xff]
        %v949 = vld [vmem:[%s635 + $0x450] sm:$0xff]
        %v950 = vld [vmem:[%s635 + $0x458] sm:$0xff]
        %v951 = vld [vmem:[%s635 + $0x460] sm:$0xff]
        %v952 = vld [vmem:[%s635 + $0x468] sm:$0xff]
        %v953 = vld [vmem:[%s635 + $0x470] sm:$0xff]
        %v954 = vld [vmem:[%s635 + $0x478] sm:$0xff]
        %v955 = vld [vmem:[%s635 + $0x480] sm:$0xff]
        %v956 = vld [vmem:[%s635 + $0x488] sm:$0xff]
        %v957 = vld [vmem:[%s635 + $0x490] sm:$0xff]
        %v958 = vld [vmem:[%s635 + $0x498] sm:$0xff]
        %v959 = vld [vmem:[%s635 + $0x4a0] sm:$0xff]
        %v960 = vld [vmem:[%s635 + $0x4a8] sm:$0xff]
        %v961 = vld [vmem:[%s635 + $0x4b0] sm:$0xff]
        %v962 = vld [vmem:[%s635 + $0x4b8] sm:$0xff]
        %v963 = vld [vmem:[%s635 + $0x4c0] sm:$0xff]
        %v964 = vld [vmem:[%s635 + $0x4c8] sm:$0xff]
        %v965 = vld [vmem:[%s635 + $0x4d0] sm:$0xff]
        %v966 = vld [vmem:[%s635 + $0x4d8] sm:$0xff]
        %v967 = vld [vmem:[%s635 + $0x4e0] sm:$0xff]
        %v968 = vld [vmem:[%s635 + $0x4e8] sm:$0xff]
        %v969 = vld [vmem:[%s635 + $0x4f0] sm:$0xff]
        %v970 = vld [vmem:[%s635 + $0x4f8] sm:$0xff]
        %v971 = vld [vmem:[%s635 + $0x500] sm:$0xff]
        %v972 = vld [vmem:[%s635 + $0x508] sm:$0xff]
        %v973 = vld [vmem:[%s635 + $0x510] sm:$0xff]
        %v974 = vld [vmem:[%s635 + $0x518] sm:$0xff]
        %v975 = vld [vmem:[%s635 + $0x520] sm:$0xff]
        %v976 = vld [vmem:[%s635 + $0x528] sm:$0xff]
        %v977 = vld [vmem:[%s635 + $0x530] sm:$0xff]
        %v978 = vld [vmem:[%s635 + $0x538] sm:$0xff]
        %v979 = vld [vmem:[%s635 + $0x540] sm:$0xff]
        %v980 = vld [vmem:[%s635 + $0x548] sm:$0xff]
        %v981 = vld [vmem:[%s635 + $0x550] sm:$0xff]
        %v982 = vld [vmem:[%s635 + $0x558] sm:$0xff]
        %v983 = vld [vmem:[%s635 + $0x560] sm:$0xff]
        %v984 = vld [vmem:[%s635 + $0x568] sm:$0xff]
        %v985 = vld [vmem:[%s635 + $0x570] sm:$0xff]
        %v986 = vld [vmem:[%s635 + $0x578] sm:$0xff]
        %v987 = vld [vmem:[%s635 + $0x580] sm:$0xff]
        %v988 = vld [vmem:[%s635 + $0x588] sm:$0xff]
        %v989 = vld [vmem:[%s635 + $0x590] sm:$0xff]
        %v990 = vld [vmem:[%s635 + $0x598] sm:$0xff]
        %v991 = vld [vmem:[%s635 + $0x5a0] sm:$0xff]
        %v992 = vld [vmem:[%s635 + $0x5a8] sm:$0xff]
        %v993 = vld [vmem:[%s635 + $0x5b0] sm:$0xff]
        %v994 = vld [vmem:[%s635 + $0x5b8] sm:$0xff]
        %v995 = vld [vmem:[%s635 + $0x5c0] sm:$0xff]
        %v996 = vld [vmem:[%s635 + $0x5c8] sm:$0xff]
        %v997 = vld [vmem:[%s635 + $0x5d0] sm:$0xff]
        %v998 = vld [vmem:[%s635 + $0x5d8] sm:$0xff]
        %v999 = vld [vmem:[%s635 + $0x5e0] sm:$0xff]
        %v1000 = vld [vmem:[%s635 + $0x5e8] sm:$0xff]
        %v1001 = vld [vmem:[%s635 + $0x5f0] sm:$0xff]
        %v1002 = vld [vmem:[%s635 + $0x5f8] sm:$0xff]
        %v1003 = vld [vmem:[%s635 + $0x600] sm:$0xff]
        %v1004 = vld [vmem:[%s635 + $0x608] sm:$0xff]
        %v1005 = vld [vmem:[%s635 + $0x610] sm:$0xff]
        %v1006 = vld [vmem:[%s635 + $0x618] sm:$0xff]
        %v1007 = vld [vmem:[%s635 + $0x620] sm:$0xff]
        %v1008 = vld [vmem:[%s635 + $0x628] sm:$0xff]
        %v1009 = vld [vmem:[%s635 + $0x630] sm:$0xff]
        %v1010 = vld [vmem:[%s635 + $0x638] sm:$0xff]
        %v1011 = vld [vmem:[%s635 + $0x640] sm:$0xff]
        %v1012 = vld [vmem:[%s635 + $0x648] sm:$0xff]
        %v1013 = vld [vmem:[%s635 + $0x650] sm:$0xff]
        %v1014 = vld [vmem:[%s635 + $0x658] sm:$0xff]
        %v1015 = vld [vmem:[%s635 + $0x660] sm:$0xff]
        %v1016 = vld [vmem:[%s635 + $0x668] sm:$0xff]
        %v1017 = vld [vmem:[%s635 + $0x670] sm:$0xff]
        %v1018 = vld [vmem:[%s635 + $0x678] sm:$0xff]
        %v1019 = vld [vmem:[%s635 + $0x680] sm:$0xff]
        %v1020 = vld [vmem:[%s635 + $0x688] sm:$0xff]
        %v1021 = vld [vmem:[%s635 + $0x690] sm:$0xff]
        %v1022 = vld [vmem:[%s635 + $0x698] sm:$0xff]
        %v1023 = vld [vmem:[%s635 + $0x6a0] sm:$0xff]
        %v1024 = vld [vmem:[%s635 + $0x6a8] sm:$0xff]
        %v1025 = vld [vmem:[%s635 + $0x6b0] sm:$0xff]
        %v1026 = vld [vmem:[%s635 + $0x6b8] sm:$0xff]
        %v1027 = vld [vmem:[%s635 + $0x6c0] sm:$0xff]
        %v1028 = vld [vmem:[%s635 + $0x6c8] sm:$0xff]
        %v1029 = vld [vmem:[%s635 + $0x6d0] sm:$0xff]
        %v1030 = vld [vmem:[%s635 + $0x6d8] sm:$0xff]
        %v1031 = vld [vmem:[%s635 + $0x6e0] sm:$0xff]
        %v1032 = vld [vmem:[%s635 + $0x6e8] sm:$0xff]
        %v1033 = vld [vmem:[%s635 + $0x6f0] sm:$0xff]
        %v1034 = vld [vmem:[%s635 + $0x6f8] sm:$0xff]
        %v1035 = vld [vmem:[%s635 + $0x700] sm:$0xff]
        %v1036 = vld [vmem:[%s635 + $0x708] sm:$0xff]
        %v1037 = vld [vmem:[%s635 + $0x710] sm:$0xff]
        %v1038 = vld [vmem:[%s635 + $0x718] sm:$0xff]
        %v1039 = vld [vmem:[%s635 + $0x720] sm:$0xff]
        %v1040 = vld [vmem:[%s635 + $0x728] sm:$0xff]
        %v1041 = vld [vmem:[%s635 + $0x730] sm:$0xff]
        %v1042 = vld [vmem:[%s635 + $0x738] sm:$0xff]
        %v1043 = vld [vmem:[%s635 + $0x740] sm:$0xff]
        %v1044 = vld [vmem:[%s635 + $0x748] sm:$0xff]
        %v1045 = vld [vmem:[%s635 + $0x750] sm:$0xff]
        %v1046 = vld [vmem:[%s635 + $0x758] sm:$0xff]
        %v1047 = vld [vmem:[%s635 + $0x760] sm:$0xff]
        %v1048 = vld [vmem:[%s635 + $0x768] sm:$0xff]
        %v1049 = vld [vmem:[%s635 + $0x770] sm:$0xff]
        %v1050 = vld [vmem:[%s635 + $0x778] sm:$0xff]
        %v1051 = vld [vmem:[%s635 + $0x780] sm:$0xff]
        %v1052 = vld [vmem:[%s635 + $0x788] sm:$0xff]
        %v1053 = vld [vmem:[%s635 + $0x790] sm:$0xff]
        %v1054 = vld [vmem:[%s635 + $0x798] sm:$0xff]
        %v1055 = vld [vmem:[%s635 + $0x7a0] sm:$0xff]
        %v1056 = vld [vmem:[%s635 + $0x7a8] sm:$0xff]
        %v1057 = vld [vmem:[%s635 + $0x7b0] sm:$0xff]
        %v1058 = vld [vmem:[%s635 + $0x7b8] sm:$0xff]
        %v1059 = vld [vmem:[%s635 + $0x7c0] sm:$0xff]
        %v1060 = vld [vmem:[%s635 + $0x7c8] sm:$0xff]
        %v1061 = vld [vmem:[%s635 + $0x7d0] sm:$0xff]
        %v1062 = vld [vmem:[%s635 + $0x7d8] sm:$0xff]
        %v1063 = vld [vmem:[%s635 + $0x7e0] sm:$0xff]
        %v1064 = vld [vmem:[%s635 + $0x7e8] sm:$0xff]
        %v1065 = vld [vmem:[%s635 + $0x7f0] sm:$0xff]
        %v1066 = vld [vmem:[%s635 + $0x7f8] sm:$0xff]
        %v1071 = vunpack.c.l.b16 %v807
        %v1072 = vunpack.c.h.b16 %v807
        %v1073 = vunpack.c.l.b16 %v808
        %v1074 = vunpack.c.h.b16 %v808
        %v1075 = vunpack.c.l.b16 %v809
        %v1076 = vunpack.c.h.b16 %v809
        %v1077 = vunpack.c.l.b16 %v810
        %v1078 = vunpack.c.h.b16 %v810
        %v1079 = vpack.c.b16 %v1071, %v1071
        %v1080 = vpack.c.b16 %v1072, %v1072
        %v1081 = vpack.c.b16 %v1073, %v1073
        %v1082 = vpack.c.b16 %v1074, %v1074
        %v1083 = vpack.c.b16 %v1075, %v1075
        %v1084 = vpack.c.b16 %v1076, %v1076
        %v1085 = vpack.c.b16 %v1077, %v1077
        %v1086 = vpack.c.b16 %v1078, %v1078
        %v1351 = vunpack.c.l.b16 %v811
        %v1352 = vunpack.c.h.b16 %v811
        %v1353 = vunpack.c.l.b16 %v812
        %v1354 = vunpack.c.h.b16 %v812
        %v1355 = vunpack.c.l.b16 %v813
        %v1356 = vunpack.c.h.b16 %v813
        %v1357 = vunpack.c.l.b16 %v814
        %v1358 = vunpack.c.h.b16 %v814
        %v1359 = vunpack.c.l.b16 %v815
        %v1360 = vunpack.c.h.b16 %v815
        %v1361 = vunpack.c.l.b16 %v816
        %v1362 = vunpack.c.h.b16 %v816
        %v1363 = vunpack.c.l.b16 %v817
        %v1364 = vunpack.c.h.b16 %v817
        %v1365 = vunpack.c.l.b16 %v818
        %v1366 = vunpack.c.h.b16 %v818
        %v1367 = vunpack.c.l.b16 %v819
        %v1368 = vunpack.c.h.b16 %v819
        %v1369 = vunpack.c.l.b16 %v820
        %v1370 = vunpack.c.h.b16 %v820
        %v1371 = vunpack.c.l.b16 %v821
        %v1372 = vunpack.c.h.b16 %v821
        %v1373 = vunpack.c.l.b16 %v822
        %v1374 = vunpack.c.h.b16 %v822
        %v1375 = vunpack.c.l.b16 %v823
        %v1376 = vunpack.c.h.b16 %v823
        %v1377 = vunpack.c.l.b16 %v824
        %v1378 = vunpack.c.h.b16 %v824
        %v1379 = vunpack.c.l.b16 %v825
        %v1380 = vunpack.c.h.b16 %v825
        %v1381 = vunpack.c.l.b16 %v826
        %v1382 = vunpack.c.h.b16 %v826
        %v1383 = vunpack.c.l.b16 %v827
        %v1384 = vunpack.c.h.b16 %v827
        %v1385 = vunpack.c.l.b16 %v828
        %v1386 = vunpack.c.h.b16 %v828
        %v1387 = vunpack.c.l.b16 %v829
        %v1388 = vunpack.c.h.b16 %v829
        %v1389 = vunpack.c.l.b16 %v830
        %v1390 = vunpack.c.h.b16 %v830
        %v1391 = vunpack.c.l.b16 %v831
        %v1392 = vunpack.c.h.b16 %v831
        %v1393 = vunpack.c.l.b16 %v832
        %v1394 = vunpack.c.h.b16 %v832
        %v1395 = vunpack.c.l.b16 %v833
        %v1396 = vunpack.c.h.b16 %v833
        %v1397 = vunpack.c.l.b16 %v834
        %v1398 = vunpack.c.h.b16 %v834
        %v1399 = vunpack.c.l.b16 %v835
        %v1400 = vunpack.c.h.b16 %v835
        %v1401 = vunpack.c.l.b16 %v836
        %v1402 = vunpack.c.h.b16 %v836
        %v1403 = vunpack.c.l.b16 %v837
        %v1404 = vunpack.c.h.b16 %v837
        %v1405 = vunpack.c.l.b16 %v838
        %v1406 = vunpack.c.h.b16 %v838
        %v1407 = vunpack.c.l.b16 %v839
        %v1408 = vunpack.c.h.b16 %v839
        %v1409 = vunpack.c.l.b16 %v840
        %v1410 = vunpack.c.h.b16 %v840
        %v1411 = vunpack.c.l.b16 %v841
        %v1412 = vunpack.c.h.b16 %v841
        %v1413 = vunpack.c.l.b16 %v842
        %v1414 = vunpack.c.h.b16 %v842
        %v1415 = vunpack.c.l.b16 %v843
        %v1416 = vunpack.c.h.b16 %v843
        %v1417 = vunpack.c.l.b16 %v844
        %v1418 = vunpack.c.h.b16 %v844
        %v1419 = vunpack.c.l.b16 %v845
        %v1420 = vunpack.c.h.b16 %v845
        %v1421 = vunpack.c.l.b16 %v846
        %v1422 = vunpack.c.h.b16 %v846
        %v1423 = vunpack.c.l.b16 %v847
        %v1424 = vunpack.c.h.b16 %v847
        %v1425 = vunpack.c.l.b16 %v848
        %v1426 = vunpack.c.h.b16 %v848
        %v1427 = vunpack.c.l.b16 %v849
        %v1428 = vunpack.c.h.b16 %v849
        %v1429 = vunpack.c.l.b16 %v850
        %v1430 = vunpack.c.h.b16 %v850
        %v1431 = vunpack.c.l.b16 %v851
        %v1432 = vunpack.c.h.b16 %v851
        %v1433 = vunpack.c.l.b16 %v852
        %v1434 = vunpack.c.h.b16 %v852
        %v1435 = vunpack.c.l.b16 %v853
        %v1436 = vunpack.c.h.b16 %v853
        %v1437 = vunpack.c.l.b16 %v854
        %v1438 = vunpack.c.h.b16 %v854
        %v1439 = vunpack.c.l.b16 %v855
        %v1440 = vunpack.c.h.b16 %v855
        %v1441 = vunpack.c.l.b16 %v856
        %v1442 = vunpack.c.h.b16 %v856
        %v1443 = vunpack.c.l.b16 %v857
        %v1444 = vunpack.c.h.b16 %v857
        %v1445 = vunpack.c.l.b16 %v858
        %v1446 = vunpack.c.h.b16 %v858
        %v1447 = vunpack.c.l.b16 %v859
        %v1448 = vunpack.c.h.b16 %v859
        %v1449 = vunpack.c.l.b16 %v860
        %v1450 = vunpack.c.h.b16 %v860
        %v1451 = vunpack.c.l.b16 %v861
        %v1452 = vunpack.c.h.b16 %v861
        %v1453 = vunpack.c.l.b16 %v862
        %v1454 = vunpack.c.h.b16 %v862
        %v1455 = vunpack.c.l.b16 %v863
        %v1456 = vunpack.c.h.b16 %v863
        %v1457 = vunpack.c.l.b16 %v864
        %v1458 = vunpack.c.h.b16 %v864
        %v1459 = vunpack.c.l.b16 %v865
        %v1460 = vunpack.c.h.b16 %v865
        %v1461 = vunpack.c.l.b16 %v866
        %v1462 = vunpack.c.h.b16 %v866
        %v1463 = vunpack.c.l.b16 %v867
        %v1464 = vunpack.c.h.b16 %v867
        %v1465 = vunpack.c.l.b16 %v868
        %v1466 = vunpack.c.h.b16 %v868
        %v1467 = vunpack.c.l.b16 %v869
        %v1468 = vunpack.c.h.b16 %v869
        %v1469 = vunpack.c.l.b16 %v870
        %v1470 = vunpack.c.h.b16 %v870
        %v1471 = vunpack.c.l.b16 %v871
        %v1472 = vunpack.c.h.b16 %v871
        %v1473 = vunpack.c.l.b16 %v872
        %v1474 = vunpack.c.h.b16 %v872
        %v1475 = vunpack.c.l.b16 %v873
        %v1476 = vunpack.c.h.b16 %v873
        %v1477 = vunpack.c.l.b16 %v874
        %v1478 = vunpack.c.h.b16 %v874
        %v1479 = vunpack.c.l.b16 %v875
        %v1480 = vunpack.c.h.b16 %v875
        %v1481 = vunpack.c.l.b16 %v876
        %v1482 = vunpack.c.h.b16 %v876
        %v1483 = vunpack.c.l.b16 %v877
        %v1484 = vunpack.c.h.b16 %v877
        %v1485 = vunpack.c.l.b16 %v878
        %v1486 = vunpack.c.h.b16 %v878
        %v1487 = vunpack.c.l.b16 %v879
        %v1488 = vunpack.c.h.b16 %v879
        %v1489 = vunpack.c.l.b16 %v880
        %v1490 = vunpack.c.h.b16 %v880
        %v1491 = vunpack.c.l.b16 %v881
        %v1492 = vunpack.c.h.b16 %v881
        %v1493 = vunpack.c.l.b16 %v882
        %v1494 = vunpack.c.h.b16 %v882
        %v1495 = vunpack.c.l.b16 %v883
        %v1496 = vunpack.c.h.b16 %v883
        %v1497 = vunpack.c.l.b16 %v884
        %v1498 = vunpack.c.h.b16 %v884
        %v1499 = vunpack.c.l.b16 %v885
        %v1500 = vunpack.c.h.b16 %v885
        %v1501 = vunpack.c.l.b16 %v886
        %v1502 = vunpack.c.h.b16 %v886
        %v1503 = vunpack.c.l.b16 %v887
        %v1504 = vunpack.c.h.b16 %v887
        %v1505 = vunpack.c.l.b16 %v888
        %v1506 = vunpack.c.h.b16 %v888
        %v1507 = vunpack.c.l.b16 %v889
        %v1508 = vunpack.c.h.b16 %v889
        %v1509 = vunpack.c.l.b16 %v890
        %v1510 = vunpack.c.h.b16 %v890
        %v1511 = vunpack.c.l.b16 %v891
        %v1512 = vunpack.c.h.b16 %v891
        %v1513 = vunpack.c.l.b16 %v892
        %v1514 = vunpack.c.h.b16 %v892
        %v1515 = vunpack.c.l.b16 %v893
        %v1516 = vunpack.c.h.b16 %v893
        %v1517 = vunpack.c.l.b16 %v894
        %v1518 = vunpack.c.h.b16 %v894
        %v1519 = vunpack.c.l.b16 %v895
        %v1520 = vunpack.c.h.b16 %v895
        %v1521 = vunpack.c.l.b16 %v896
        %v1522 = vunpack.c.h.b16 %v896
        %v1523 = vunpack.c.l.b16 %v897
        %v1524 = vunpack.c.h.b16 %v897
        %v1525 = vunpack.c.l.b16 %v898
        %v1526 = vunpack.c.h.b16 %v898
        %v1527 = vunpack.c.l.b16 %v899
        %v1528 = vunpack.c.h.b16 %v899
        %v1529 = vunpack.c.l.b16 %v900
        %v1530 = vunpack.c.h.b16 %v900
        %v1531 = vunpack.c.l.b16 %v901
        %v1532 = vunpack.c.h.b16 %v901
        %v1533 = vunpack.c.l.b16 %v902
        %v1534 = vunpack.c.h.b16 %v902
        %v1535 = vunpack.c.l.b16 %v903
        %v1536 = vunpack.c.h.b16 %v903
        %v1537 = vunpack.c.l.b16 %v904
        %v1538 = vunpack.c.h.b16 %v904
        %v1539 = vunpack.c.l.b16 %v905
        %v1540 = vunpack.c.h.b16 %v905
        %v1541 = vunpack.c.l.b16 %v906
        %v1542 = vunpack.c.h.b16 %v906
        %v1543 = vunpack.c.l.b16 %v907
        %v1544 = vunpack.c.h.b16 %v907
        %v1545 = vunpack.c.l.b16 %v908
        %v1546 = vunpack.c.h.b16 %v908
        %v1547 = vunpack.c.l.b16 %v909
        %v1548 = vunpack.c.h.b16 %v909
        %v1549 = vunpack.c.l.b16 %v910
        %v1550 = vunpack.c.h.b16 %v910
        %v1551 = vunpack.c.l.b16 %v911
        %v1552 = vunpack.c.h.b16 %v911
        %v1553 = vunpack.c.l.b16 %v912
        %v1554 = vunpack.c.h.b16 %v912
        %v1555 = vunpack.c.l.b16 %v913
        %v1556 = vunpack.c.h.b16 %v913
        %v1557 = vunpack.c.l.b16 %v914
        %v1558 = vunpack.c.h.b16 %v914
        %v1559 = vunpack.c.l.b16 %v915
        %v1560 = vunpack.c.h.b16 %v915
        %v1561 = vunpack.c.l.b16 %v916
        %v1562 = vunpack.c.h.b16 %v916
        %v1563 = vunpack.c.l.b16 %v917
        %v1564 = vunpack.c.h.b16 %v917
        %v1565 = vunpack.c.l.b16 %v918
        %v1566 = vunpack.c.h.b16 %v918
        %v1567 = vunpack.c.l.b16 %v919
        %v1568 = vunpack.c.h.b16 %v919
        %v1569 = vunpack.c.l.b16 %v920
        %v1570 = vunpack.c.h.b16 %v920
        %v1571 = vunpack.c.l.b16 %v921
        %v1572 = vunpack.c.h.b16 %v921
        %v1573 = vunpack.c.l.b16 %v922
        %v1574 = vunpack.c.h.b16 %v922
        %v1575 = vunpack.c.l.b16 %v923
        %v1576 = vunpack.c.h.b16 %v923
        %v1577 = vunpack.c.l.b16 %v924
        %v1578 = vunpack.c.h.b16 %v924
        %v1579 = vunpack.c.l.b16 %v925
        %v1580 = vunpack.c.h.b16 %v925
        %v1581 = vunpack.c.l.b16 %v926
        %v1582 = vunpack.c.h.b16 %v926
        %v1583 = vunpack.c.l.b16 %v927
        %v1584 = vunpack.c.h.b16 %v927
        %v1585 = vunpack.c.l.b16 %v928
        %v1586 = vunpack.c.h.b16 %v928
        %v1587 = vunpack.c.l.b16 %v929
        %v1588 = vunpack.c.h.b16 %v929
        %v1589 = vunpack.c.l.b16 %v930
        %v1590 = vunpack.c.h.b16 %v930
        %v1591 = vunpack.c.l.b16 %v931
        %v1592 = vunpack.c.h.b16 %v931
        %v1593 = vunpack.c.l.b16 %v932
        %v1594 = vunpack.c.h.b16 %v932
        %v1595 = vunpack.c.l.b16 %v933
        %v1596 = vunpack.c.h.b16 %v933
        %v1597 = vunpack.c.l.b16 %v934
        %v1598 = vunpack.c.h.b16 %v934
        %v1599 = vunpack.c.l.b16 %v935
        %v1600 = vunpack.c.h.b16 %v935
        %v1601 = vunpack.c.l.b16 %v936
        %v1602 = vunpack.c.h.b16 %v936
        %v1603 = vunpack.c.l.b16 %v937
        %v1604 = vunpack.c.h.b16 %v937
        %v1605 = vunpack.c.l.b16 %v938
        %v1606 = vunpack.c.h.b16 %v938
        %v1607 = vunpack.c.l.b16 %v939
        %v1608 = vunpack.c.h.b16 %v939
        %v1609 = vunpack.c.l.b16 %v940
        %v1610 = vunpack.c.h.b16 %v940
        %v1611 = vunpack.c.l.b16 %v941
        %v1612 = vunpack.c.h.b16 %v941
        %v1613 = vunpack.c.l.b16 %v942
        %v1614 = vunpack.c.h.b16 %v942
        %v1615 = vunpack.c.l.b16 %v943
        %v1616 = vunpack.c.h.b16 %v943
        %v1617 = vunpack.c.l.b16 %v944
        %v1618 = vunpack.c.h.b16 %v944
        %v1619 = vunpack.c.l.b16 %v945
        %v1620 = vunpack.c.h.b16 %v945
        %v1621 = vunpack.c.l.b16 %v946
        %v1622 = vunpack.c.h.b16 %v946
        %v1623 = vunpack.c.l.b16 %v947
        %v1624 = vunpack.c.h.b16 %v947
        %v1625 = vunpack.c.l.b16 %v948
        %v1626 = vunpack.c.h.b16 %v948
        %v1627 = vunpack.c.l.b16 %v949
        %v1628 = vunpack.c.h.b16 %v949
        %v1629 = vunpack.c.l.b16 %v950
        %v1630 = vunpack.c.h.b16 %v950
        %v1631 = vunpack.c.l.b16 %v951
        %v1632 = vunpack.c.h.b16 %v951
        %v1633 = vunpack.c.l.b16 %v952
        %v1634 = vunpack.c.h.b16 %v952
        %v1635 = vunpack.c.l.b16 %v953
        %v1636 = vunpack.c.h.b16 %v953
        %v1637 = vunpack.c.l.b16 %v954
        %v1638 = vunpack.c.h.b16 %v954
        %v1639 = vunpack.c.l.b16 %v955
        %v1640 = vunpack.c.h.b16 %v955
        %v1641 = vunpack.c.l.b16 %v956
        %v1642 = vunpack.c.h.b16 %v956
        %v1643 = vunpack.c.l.b16 %v957
        %v1644 = vunpack.c.h.b16 %v957
        %v1645 = vunpack.c.l.b16 %v958
        %v1646 = vunpack.c.h.b16 %v958
        %v1647 = vunpack.c.l.b16 %v959
        %v1648 = vunpack.c.h.b16 %v959
        %v1649 = vunpack.c.l.b16 %v960
        %v1650 = vunpack.c.h.b16 %v960
        %v1651 = vunpack.c.l.b16 %v961
        %v1652 = vunpack.c.h.b16 %v961
        %v1653 = vunpack.c.l.b16 %v962
        %v1654 = vunpack.c.h.b16 %v962
        %v1655 = vunpack.c.l.b16 %v963
        %v1656 = vunpack.c.h.b16 %v963
        %v1657 = vunpack.c.l.b16 %v964
        %v1658 = vunpack.c.h.b16 %v964
        %v1659 = vunpack.c.l.b16 %v965
        %v1660 = vunpack.c.h.b16 %v965
        %v1661 = vunpack.c.l.b16 %v966
        %v1662 = vunpack.c.h.b16 %v966
        %v1663 = vunpack.c.l.b16 %v967
        %v1664 = vunpack.c.h.b16 %v967
        %v1665 = vunpack.c.l.b16 %v968
        %v1666 = vunpack.c.h.b16 %v968
        %v1667 = vunpack.c.l.b16 %v969
        %v1668 = vunpack.c.h.b16 %v969
        %v1669 = vunpack.c.l.b16 %v970
        %v1670 = vunpack.c.h.b16 %v970
        %v1671 = vunpack.c.l.b16 %v971
        %v1672 = vunpack.c.h.b16 %v971
        %v1673 = vunpack.c.l.b16 %v972
        %v1674 = vunpack.c.h.b16 %v972
        %v1675 = vunpack.c.l.b16 %v973
        %v1676 = vunpack.c.h.b16 %v973
        %v1677 = vunpack.c.l.b16 %v974
        %v1678 = vunpack.c.h.b16 %v974
        %v1679 = vunpack.c.l.b16 %v975
        %v1680 = vunpack.c.h.b16 %v975
        %v1681 = vunpack.c.l.b16 %v976
        %v1682 = vunpack.c.h.b16 %v976
        %v1683 = vunpack.c.l.b16 %v977
        %v1684 = vunpack.c.h.b16 %v977
        %v1685 = vunpack.c.l.b16 %v978
        %v1686 = vunpack.c.h.b16 %v978
        %v1687 = vunpack.c.l.b16 %v979
        %v1688 = vunpack.c.h.b16 %v979
        %v1689 = vunpack.c.l.b16 %v980
        %v1690 = vunpack.c.h.b16 %v980
        %v1691 = vunpack.c.l.b16 %v981
        %v1692 = vunpack.c.h.b16 %v981
        %v1693 = vunpack.c.l.b16 %v982
        %v1694 = vunpack.c.h.b16 %v982
        %v1695 = vunpack.c.l.b16 %v983
        %v1696 = vunpack.c.h.b16 %v983
        %v1697 = vunpack.c.l.b16 %v984
        %v1698 = vunpack.c.h.b16 %v984
        %v1699 = vunpack.c.l.b16 %v985
        %v1700 = vunpack.c.h.b16 %v985
        %v1701 = vunpack.c.l.b16 %v986
        %v1702 = vunpack.c.h.b16 %v986
        %v1703 = vunpack.c.l.b16 %v987
        %v1704 = vunpack.c.h.b16 %v987
        %v1705 = vunpack.c.l.b16 %v988
        %v1706 = vunpack.c.h.b16 %v988
        %v1707 = vunpack.c.l.b16 %v989
        %v1708 = vunpack.c.h.b16 %v989
        %v1709 = vunpack.c.l.b16 %v990
        %v1710 = vunpack.c.h.b16 %v990
        %v1711 = vunpack.c.l.b16 %v991
        %v1712 = vunpack.c.h.b16 %v991
        %v1713 = vunpack.c.l.b16 %v992
        %v1714 = vunpack.c.h.b16 %v992
        %v1715 = vunpack.c.l.b16 %v993
        %v1716 = vunpack.c.h.b16 %v993
        %v1717 = vunpack.c.l.b16 %v994
        %v1718 = vunpack.c.h.b16 %v994
        %v1719 = vunpack.c.l.b16 %v995
        %v1720 = vunpack.c.h.b16 %v995
        %v1721 = vunpack.c.l.b16 %v996
        %v1722 = vunpack.c.h.b16 %v996
        %v1723 = vunpack.c.l.b16 %v997
        %v1724 = vunpack.c.h.b16 %v997
        %v1725 = vunpack.c.l.b16 %v998
        %v1726 = vunpack.c.h.b16 %v998
        %v1727 = vunpack.c.l.b16 %v999
        %v1728 = vunpack.c.h.b16 %v999
        %v1729 = vunpack.c.l.b16 %v1000
        %v1730 = vunpack.c.h.b16 %v1000
        %v1731 = vunpack.c.l.b16 %v1001
        %v1732 = vunpack.c.h.b16 %v1001
        %v1733 = vunpack.c.l.b16 %v1002
        %v1734 = vunpack.c.h.b16 %v1002
        %v1735 = vunpack.c.l.b16 %v1003
        %v1736 = vunpack.c.h.b16 %v1003
        %v1737 = vunpack.c.l.b16 %v1004
        %v1738 = vunpack.c.h.b16 %v1004
        %v1739 = vunpack.c.l.b16 %v1005
        %v1740 = vunpack.c.h.b16 %v1005
        %v1741 = vunpack.c.l.b16 %v1006
        %v1742 = vunpack.c.h.b16 %v1006
        %v1743 = vunpack.c.l.b16 %v1007
        %v1744 = vunpack.c.h.b16 %v1007
        %v1745 = vunpack.c.l.b16 %v1008
        %v1746 = vunpack.c.h.b16 %v1008
        %v1747 = vunpack.c.l.b16 %v1009
        %v1748 = vunpack.c.h.b16 %v1009
        %v1749 = vunpack.c.l.b16 %v1010
        %v1750 = vunpack.c.h.b16 %v1010
        %v1751 = vunpack.c.l.b16 %v1011
        %v1752 = vunpack.c.h.b16 %v1011
        %v1753 = vunpack.c.l.b16 %v1012
        %v1754 = vunpack.c.h.b16 %v1012
        %v1755 = vunpack.c.l.b16 %v1013
        %v1756 = vunpack.c.h.b16 %v1013
        %v1757 = vunpack.c.l.b16 %v1014
        %v1758 = vunpack.c.h.b16 %v1014
        %v1759 = vunpack.c.l.b16 %v1015
        %v1760 = vunpack.c.h.b16 %v1015
        %v1761 = vunpack.c.l.b16 %v1016
        %v1762 = vunpack.c.h.b16 %v1016
        %v1763 = vunpack.c.l.b16 %v1017
        %v1764 = vunpack.c.h.b16 %v1017
        %v1765 = vunpack.c.l.b16 %v1018
        %v1766 = vunpack.c.h.b16 %v1018
        %v1767 = vunpack.c.l.b16 %v1019
        %v1768 = vunpack.c.h.b16 %v1019
        %v1769 = vunpack.c.l.b16 %v1020
        %v1770 = vunpack.c.h.b16 %v1020
        %v1771 = vunpack.c.l.b16 %v1021
        %v1772 = vunpack.c.h.b16 %v1021
        %v1773 = vunpack.c.l.b16 %v1022
        %v1774 = vunpack.c.h.b16 %v1022
        %v1775 = vunpack.c.l.b16 %v1023
        %v1776 = vunpack.c.h.b16 %v1023
        %v1777 = vunpack.c.l.b16 %v1024
        %v1778 = vunpack.c.h.b16 %v1024
        %v1779 = vunpack.c.l.b16 %v1025
        %v1780 = vunpack.c.h.b16 %v1025
        %v1781 = vunpack.c.l.b16 %v1026
        %v1782 = vunpack.c.h.b16 %v1026
        %v1783 = vunpack.c.l.b16 %v1027
        %v1784 = vunpack.c.h.b16 %v1027
        %v1785 = vunpack.c.l.b16 %v1028
        %v1786 = vunpack.c.h.b16 %v1028
        %v1787 = vunpack.c.l.b16 %v1029
        %v1788 = vunpack.c.h.b16 %v1029
        %v1789 = vunpack.c.l.b16 %v1030
        %v1790 = vunpack.c.h.b16 %v1030
        %v1791 = vunpack.c.l.b16 %v1031
        %v1792 = vunpack.c.h.b16 %v1031
        %v1793 = vunpack.c.l.b16 %v1032
        %v1794 = vunpack.c.h.b16 %v1032
        %v1795 = vunpack.c.l.b16 %v1033
        %v1796 = vunpack.c.h.b16 %v1033
        %v1797 = vunpack.c.l.b16 %v1034
        %v1798 = vunpack.c.h.b16 %v1034
        %v1799 = vunpack.c.l.b16 %v1035
        %v1800 = vunpack.c.h.b16 %v1035
        %v1801 = vunpack.c.l.b16 %v1036
        %v1802 = vunpack.c.h.b16 %v1036
        %v1803 = vunpack.c.l.b16 %v1037
        %v1804 = vunpack.c.h.b16 %v1037
        %v1805 = vunpack.c.l.b16 %v1038
        %v1806 = vunpack.c.h.b16 %v1038
        %v1807 = vunpack.c.l.b16 %v1039
        %v1808 = vunpack.c.h.b16 %v1039
        %v1809 = vunpack.c.l.b16 %v1040
        %v1810 = vunpack.c.h.b16 %v1040
        %v1811 = vunpack.c.l.b16 %v1041
        %v1812 = vunpack.c.h.b16 %v1041
        %v1813 = vunpack.c.l.b16 %v1042
        %v1814 = vunpack.c.h.b16 %v1042
        %v1815 = vunpack.c.l.b16 %v1043
        %v1816 = vunpack.c.h.b16 %v1043
        %v1817 = vunpack.c.l.b16 %v1044
        %v1818 = vunpack.c.h.b16 %v1044
        %v1819 = vunpack.c.l.b16 %v1045
        %v1820 = vunpack.c.h.b16 %v1045
        %v1821 = vunpack.c.l.b16 %v1046
        %v1822 = vunpack.c.h.b16 %v1046
        %v1823 = vunpack.c.l.b16 %v1047
        %v1824 = vunpack.c.h.b16 %v1047
        %v1825 = vunpack.c.l.b16 %v1048
        %v1826 = vunpack.c.h.b16 %v1048
        %v1827 = vunpack.c.l.b16 %v1049
        %v1828 = vunpack.c.h.b16 %v1049
        %v1829 = vunpack.c.l.b16 %v1050
        %v1830 = vunpack.c.h.b16 %v1050
        %v1831 = vunpack.c.l.b16 %v1051
        %v1832 = vunpack.c.h.b16 %v1051
        %v1833 = vunpack.c.l.b16 %v1052
        %v1834 = vunpack.c.h.b16 %v1052
        %v1835 = vunpack.c.l.b16 %v1053
        %v1836 = vunpack.c.h.b16 %v1053
        %v1837 = vunpack.c.l.b16 %v1054
        %v1838 = vunpack.c.h.b16 %v1054
        %v1839 = vunpack.c.l.b16 %v1055
        %v1840 = vunpack.c.h.b16 %v1055
        %v1841 = vunpack.c.l.b16 %v1056
        %v1842 = vunpack.c.h.b16 %v1056
        %v1843 = vunpack.c.l.b16 %v1057
        %v1844 = vunpack.c.h.b16 %v1057
        %v1845 = vunpack.c.l.b16 %v1058
        %v1846 = vunpack.c.h.b16 %v1058
        %v1847 = vunpack.c.l.b16 %v1059
        %v1848 = vunpack.c.h.b16 %v1059
        %v1849 = vunpack.c.l.b16 %v1060
        %v1850 = vunpack.c.h.b16 %v1060
        %v1851 = vunpack.c.l.b16 %v1061
        %v1852 = vunpack.c.h.b16 %v1061
        %v1853 = vunpack.c.l.b16 %v1062
        %v1854 = vunpack.c.h.b16 %v1062
        %v1855 = vunpack.c.l.b16 %v1063
        %v1856 = vunpack.c.h.b16 %v1063
        %v1857 = vunpack.c.l.b16 %v1064
        %v1858 = vunpack.c.h.b16 %v1064
        %v1859 = vunpack.c.l.b16 %v1065
        %v1860 = vunpack.c.h.b16 %v1065
        %v1861 = vunpack.c.l.b16 %v1066
        %v1862 = vunpack.c.h.b16 %v1066
        %v1863 = vpack.c.b16 %v1355, %v1351
        %v1864 = vpack.c.b16 %v1356, %v1352
        %v1865 = vpack.c.b16 %v1357, %v1353
        %v1866 = vpack.c.b16 %v1358, %v1354
        %v1867 = vpack.c.b16 %v1363, %v1359
        %v1868 = vpack.c.b16 %v1364, %v1360
        %v1869 = vpack.c.b16 %v1365, %v1361
        %v1870 = vpack.c.b16 %v1366, %v1362
        %v1871 = vpack.c.b16 %v1371, %v1367
        %v1872 = vpack.c.b16 %v1372, %v1368
        %v1873 = vpack.c.b16 %v1373, %v1369
        %v1874 = vpack.c.b16 %v1374, %v1370
        %v1875 = vpack.c.b16 %v1379, %v1375
        %v1876 = vpack.c.b16 %v1380, %v1376
        %v1877 = vpack.c.b16 %v1381, %v1377
        %v1878 = vpack.c.b16 %v1382, %v1378
        %v1879 = vpack.c.b16 %v1387, %v1383
        %v1880 = vpack.c.b16 %v1388, %v1384
        %v1881 = vpack.c.b16 %v1389, %v1385
        %v1882 = vpack.c.b16 %v1390, %v1386
        %v1883 = vpack.c.b16 %v1395, %v1391
        %v1884 = vpack.c.b16 %v1396, %v1392
        %v1885 = vpack.c.b16 %v1397, %v1393
        %v1886 = vpack.c.b16 %v1398, %v1394
        %v1887 = vpack.c.b16 %v1403, %v1399
        %v1888 = vpack.c.b16 %v1404, %v1400
        %v1889 = vpack.c.b16 %v1405, %v1401
        %v1890 = vpack.c.b16 %v1406, %v1402
        %v1891 = vpack.c.b16 %v1411, %v1407
        %v1892 = vpack.c.b16 %v1412, %v1408
        %v1893 = vpack.c.b16 %v1413, %v1409
        %v1894 = vpack.c.b16 %v1414, %v1410
        %v1895 = vpack.c.b16 %v1419, %v1415
        %v1896 = vpack.c.b16 %v1420, %v1416
        %v1897 = vpack.c.b16 %v1421, %v1417
        %v1898 = vpack.c.b16 %v1422, %v1418
        %v1899 = vpack.c.b16 %v1427, %v1423
        %v1900 = vpack.c.b16 %v1428, %v1424
        %v1901 = vpack.c.b16 %v1429, %v1425
        %v1902 = vpack.c.b16 %v1430, %v1426
        %v1903 = vpack.c.b16 %v1435, %v1431
        %v1904 = vpack.c.b16 %v1436, %v1432
        %v1905 = vpack.c.b16 %v1437, %v1433
        %v1906 = vpack.c.b16 %v1438, %v1434
        %v1907 = vpack.c.b16 %v1443, %v1439
        %v1908 = vpack.c.b16 %v1444, %v1440
        %v1909 = vpack.c.b16 %v1445, %v1441
        %v1910 = vpack.c.b16 %v1446, %v1442
        %v1911 = vpack.c.b16 %v1451, %v1447
        %v1912 = vpack.c.b16 %v1452, %v1448
        %v1913 = vpack.c.b16 %v1453, %v1449
        %v1914 = vpack.c.b16 %v1454, %v1450
        %v1915 = vpack.c.b16 %v1459, %v1455
        %v1916 = vpack.c.b16 %v1460, %v1456
        %v1917 = vpack.c.b16 %v1461, %v1457
        %v1918 = vpack.c.b16 %v1462, %v1458
        %v1919 = vpack.c.b16 %v1467, %v1463
        %v1920 = vpack.c.b16 %v1468, %v1464
        %v1921 = vpack.c.b16 %v1469, %v1465
        %v1922 = vpack.c.b16 %v1470, %v1466
        %v1923 = vpack.c.b16 %v1475, %v1471
        %v1924 = vpack.c.b16 %v1476, %v1472
        %v1925 = vpack.c.b16 %v1477, %v1473
        %v1926 = vpack.c.b16 %v1478, %v1474
        %v1927 = vpack.c.b16 %v1483, %v1479
        %v1928 = vpack.c.b16 %v1484, %v1480
        %v1929 = vpack.c.b16 %v1485, %v1481
        %v1930 = vpack.c.b16 %v1486, %v1482
        %v1931 = vpack.c.b16 %v1491, %v1487
        %v1932 = vpack.c.b16 %v1492, %v1488
        %v1933 = vpack.c.b16 %v1493, %v1489
        %v1934 = vpack.c.b16 %v1494, %v1490
        %v1935 = vpack.c.b16 %v1499, %v1495
        %v1936 = vpack.c.b16 %v1500, %v1496
        %v1937 = vpack.c.b16 %v1501, %v1497
        %v1938 = vpack.c.b16 %v1502, %v1498
        %v1939 = vpack.c.b16 %v1507, %v1503
        %v1940 = vpack.c.b16 %v1508, %v1504
        %v1941 = vpack.c.b16 %v1509, %v1505
        %v1942 = vpack.c.b16 %v1510, %v1506
        %v1943 = vpack.c.b16 %v1515, %v1511
        %v1944 = vpack.c.b16 %v1516, %v1512
        %v1945 = vpack.c.b16 %v1517, %v1513
        %v1946 = vpack.c.b16 %v1518, %v1514
        %v1947 = vpack.c.b16 %v1523, %v1519
        %v1948 = vpack.c.b16 %v1524, %v1520
        %v1949 = vpack.c.b16 %v1525, %v1521
        %v1950 = vpack.c.b16 %v1526, %v1522
        %v1951 = vpack.c.b16 %v1531, %v1527
        %v1952 = vpack.c.b16 %v1532, %v1528
        %v1953 = vpack.c.b16 %v1533, %v1529
        %v1954 = vpack.c.b16 %v1534, %v1530
        %v1955 = vpack.c.b16 %v1539, %v1535
        %v1956 = vpack.c.b16 %v1540, %v1536
        %v1957 = vpack.c.b16 %v1541, %v1537
        %v1958 = vpack.c.b16 %v1542, %v1538
        %v1959 = vpack.c.b16 %v1547, %v1543
        %v1960 = vpack.c.b16 %v1548, %v1544
        %v1961 = vpack.c.b16 %v1549, %v1545
        %v1962 = vpack.c.b16 %v1550, %v1546
        %v1963 = vpack.c.b16 %v1555, %v1551
        %v1964 = vpack.c.b16 %v1556, %v1552
        %v1965 = vpack.c.b16 %v1557, %v1553
        %v1966 = vpack.c.b16 %v1558, %v1554
        %v1967 = vpack.c.b16 %v1563, %v1559
        %v1968 = vpack.c.b16 %v1564, %v1560
        %v1969 = vpack.c.b16 %v1565, %v1561
        %v1970 = vpack.c.b16 %v1566, %v1562
        %v1971 = vpack.c.b16 %v1571, %v1567
        %v1972 = vpack.c.b16 %v1572, %v1568
        %v1973 = vpack.c.b16 %v1573, %v1569
        %v1974 = vpack.c.b16 %v1574, %v1570
        %v1975 = vpack.c.b16 %v1579, %v1575
        %v1976 = vpack.c.b16 %v1580, %v1576
        %v1977 = vpack.c.b16 %v1581, %v1577
        %v1978 = vpack.c.b16 %v1582, %v1578
        %v1979 = vpack.c.b16 %v1587, %v1583
        %v1980 = vpack.c.b16 %v1588, %v1584
        %v1981 = vpack.c.b16 %v1589, %v1585
        %v1982 = vpack.c.b16 %v1590, %v1586
        %v1983 = vpack.c.b16 %v1595, %v1591
        %v1984 = vpack.c.b16 %v1596, %v1592
        %v1985 = vpack.c.b16 %v1597, %v1593
        %v1986 = vpack.c.b16 %v1598, %v1594
        %v1987 = vpack.c.b16 %v1603, %v1599
        %v1988 = vpack.c.b16 %v1604, %v1600
        %v1989 = vpack.c.b16 %v1605, %v1601
        %v1990 = vpack.c.b16 %v1606, %v1602
        %v1991 = vpack.c.b16 %v1611, %v1607
        %v1992 = vpack.c.b16 %v1612, %v1608
        %v1993 = vpack.c.b16 %v1613, %v1609
        %v1994 = vpack.c.b16 %v1614, %v1610
        %v1995 = vpack.c.b16 %v1619, %v1615
        %v1996 = vpack.c.b16 %v1620, %v1616
        %v1997 = vpack.c.b16 %v1621, %v1617
        %v1998 = vpack.c.b16 %v1622, %v1618
        %v1999 = vpack.c.b16 %v1627, %v1623
        %v2000 = vpack.c.b16 %v1628, %v1624
        %v2001 = vpack.c.b16 %v1629, %v1625
        %v2002 = vpack.c.b16 %v1630, %v1626
        %v2003 = vpack.c.b16 %v1635, %v1631
        %v2004 = vpack.c.b16 %v1636, %v1632
        %v2005 = vpack.c.b16 %v1637, %v1633
        %v2006 = vpack.c.b16 %v1638, %v1634
        %v2007 = vpack.c.b16 %v1643, %v1639
        %v2008 = vpack.c.b16 %v1644, %v1640
        %v2009 = vpack.c.b16 %v1645, %v1641
        %v2010 = vpack.c.b16 %v1646, %v1642
        %v2011 = vpack.c.b16 %v1651, %v1647
        %v2012 = vpack.c.b16 %v1652, %v1648
        %v2013 = vpack.c.b16 %v1653, %v1649
        %v2014 = vpack.c.b16 %v1654, %v1650
        %v2015 = vpack.c.b16 %v1659, %v1655
        %v2016 = vpack.c.b16 %v1660, %v1656
        %v2017 = vpack.c.b16 %v1661, %v1657
        %v2018 = vpack.c.b16 %v1662, %v1658
        %v2019 = vpack.c.b16 %v1667, %v1663
        %v2020 = vpack.c.b16 %v1668, %v1664
        %v2021 = vpack.c.b16 %v1669, %v1665
        %v2022 = vpack.c.b16 %v1670, %v1666
        %v2023 = vpack.c.b16 %v1675, %v1671
        %v2024 = vpack.c.b16 %v1676, %v1672
        %v2025 = vpack.c.b16 %v1677, %v1673
        %v2026 = vpack.c.b16 %v1678, %v1674
        %v2027 = vpack.c.b16 %v1683, %v1679
        %v2028 = vpack.c.b16 %v1684, %v1680
        %v2029 = vpack.c.b16 %v1685, %v1681
        %v2030 = vpack.c.b16 %v1686, %v1682
        %v2031 = vpack.c.b16 %v1691, %v1687
        %v2032 = vpack.c.b16 %v1692, %v1688
        %v2033 = vpack.c.b16 %v1693, %v1689
        %v2034 = vpack.c.b16 %v1694, %v1690
        %v2035 = vpack.c.b16 %v1699, %v1695
        %v2036 = vpack.c.b16 %v1700, %v1696
        %v2037 = vpack.c.b16 %v1701, %v1697
        %v2038 = vpack.c.b16 %v1702, %v1698
        %v2039 = vpack.c.b16 %v1707, %v1703
        %v2040 = vpack.c.b16 %v1708, %v1704
        %v2041 = vpack.c.b16 %v1709, %v1705
        %v2042 = vpack.c.b16 %v1710, %v1706
        %v2043 = vpack.c.b16 %v1715, %v1711
        %v2044 = vpack.c.b16 %v1716, %v1712
        %v2045 = vpack.c.b16 %v1717, %v1713
        %v2046 = vpack.c.b16 %v1718, %v1714
        %v2047 = vpack.c.b16 %v1723, %v1719
        %v2048 = vpack.c.b16 %v1724, %v1720
        %v2049 = vpack.c.b16 %v1725, %v1721
        %v2050 = vpack.c.b16 %v1726, %v1722
        %v2051 = vpack.c.b16 %v1731, %v1727
        %v2052 = vpack.c.b16 %v1732, %v1728
        %v2053 = vpack.c.b16 %v1733, %v1729
        %v2054 = vpack.c.b16 %v1734, %v1730
        %v2055 = vpack.c.b16 %v1739, %v1735
        %v2056 = vpack.c.b16 %v1740, %v1736
        %v2057 = vpack.c.b16 %v1741, %v1737
        %v2058 = vpack.c.b16 %v1742, %v1738
        %v2059 = vpack.c.b16 %v1747, %v1743
        %v2060 = vpack.c.b16 %v1748, %v1744
        %v2061 = vpack.c.b16 %v1749, %v1745
        %v2062 = vpack.c.b16 %v1750, %v1746
        %v2063 = vpack.c.b16 %v1755, %v1751
        %v2064 = vpack.c.b16 %v1756, %v1752
        %v2065 = vpack.c.b16 %v1757, %v1753
        %v2066 = vpack.c.b16 %v1758, %v1754
        %v2067 = vpack.c.b16 %v1763, %v1759
        %v2068 = vpack.c.b16 %v1764, %v1760
        %v2069 = vpack.c.b16 %v1765, %v1761
        %v2070 = vpack.c.b16 %v1766, %v1762
        %v2071 = vpack.c.b16 %v1771, %v1767
        %v2072 = vpack.c.b16 %v1772, %v1768
        %v2073 = vpack.c.b16 %v1773, %v1769
        %v2074 = vpack.c.b16 %v1774, %v1770
        %v2075 = vpack.c.b16 %v1779, %v1775
        %v2076 = vpack.c.b16 %v1780, %v1776
        %v2077 = vpack.c.b16 %v1781, %v1777
        %v2078 = vpack.c.b16 %v1782, %v1778
        %v2079 = vpack.c.b16 %v1787, %v1783
        %v2080 = vpack.c.b16 %v1788, %v1784
        %v2081 = vpack.c.b16 %v1789, %v1785
        %v2082 = vpack.c.b16 %v1790, %v1786
        %v2083 = vpack.c.b16 %v1795, %v1791
        %v2084 = vpack.c.b16 %v1796, %v1792
        %v2085 = vpack.c.b16 %v1797, %v1793
        %v2086 = vpack.c.b16 %v1798, %v1794
        %v2087 = vpack.c.b16 %v1803, %v1799
        %v2088 = vpack.c.b16 %v1804, %v1800
        %v2089 = vpack.c.b16 %v1805, %v1801
        %v2090 = vpack.c.b16 %v1806, %v1802
        %v2091 = vpack.c.b16 %v1811, %v1807
        %v2092 = vpack.c.b16 %v1812, %v1808
        %v2093 = vpack.c.b16 %v1813, %v1809
        %v2094 = vpack.c.b16 %v1814, %v1810
        %v2095 = vpack.c.b16 %v1819, %v1815
        %v2096 = vpack.c.b16 %v1820, %v1816
        %v2097 = vpack.c.b16 %v1821, %v1817
        %v2098 = vpack.c.b16 %v1822, %v1818
        %v2099 = vpack.c.b16 %v1827, %v1823
        %v2100 = vpack.c.b16 %v1828, %v1824
        %v2101 = vpack.c.b16 %v1829, %v1825
        %v2102 = vpack.c.b16 %v1830, %v1826
        %v2103 = vpack.c.b16 %v1835, %v1831
        %v2104 = vpack.c.b16 %v1836, %v1832
        %v2105 = vpack.c.b16 %v1837, %v1833
        %v2106 = vpack.c.b16 %v1838, %v1834
        %v2107 = vpack.c.b16 %v1843, %v1839
        %v2108 = vpack.c.b16 %v1844, %v1840
        %v2109 = vpack.c.b16 %v1845, %v1841
        %v2110 = vpack.c.b16 %v1846, %v1842
        %v2111 = vpack.c.b16 %v1851, %v1847
        %v2112 = vpack.c.b16 %v1852, %v1848
        %v2113 = vpack.c.b16 %v1853, %v1849
        %v2114 = vpack.c.b16 %v1854, %v1850
        %v2115 = vpack.c.b16 %v1859, %v1855
        %v2116 = vpack.c.b16 %v1860, %v1856
        %v2117 = vpack.c.b16 %v1861, %v1857
        %v2118 = vpack.c.b16 %v1862, %v1858
        %2375 = vmatprep.subr.bf16.mxu0 %v1864
        %2376 = vmatpush1.bf16.msra.mxu0 %v1863
        %2377 = vmatprep.subr.bf16.mxu0 %v1868
        %2378 = vmatpush1.bf16.msra.mxu0 %v1867
        %2379 = vmatprep.subr.bf16.mxu0 %v1872
        %2380 = vmatpush1.bf16.msra.mxu0 %v1871
        %2381 = vmatprep.subr.bf16.mxu0 %v1876
        %2382 = vmatpush1.bf16.msra.mxu0 %v1875
        %2383 = vmatprep.subr.bf16.mxu0 %v1880
        %2384 = vmatpush1.bf16.msra.mxu0 %v1879
        %2385 = vmatprep.subr.bf16.mxu0 %v1884
        %2386 = vmatpush1.bf16.msra.mxu0 %v1883
        %2387 = vmatprep.subr.bf16.mxu0 %v1888
        %2388 = vmatpush1.bf16.msra.mxu0 %v1887
        %2389 = vmatprep.subr.bf16.mxu0 %v1892
        %2390 = vmatpush1.bf16.msra.mxu0 %v1891
        %2391 = vmatprep.subr.bf16.mxu0 %v1896
        %2392 = vmatpush1.bf16.msra.mxu0 %v1895
        %2393 = vmatprep.subr.bf16.mxu0 %v1900
        %2394 = vmatpush1.bf16.msra.mxu0 %v1899
        %2395 = vmatprep.subr.bf16.mxu0 %v1904
        %2396 = vmatpush1.bf16.msra.mxu0 %v1903
        %2397 = vmatprep.subr.bf16.mxu0 %v1908
        %2398 = vmatpush1.bf16.msra.mxu0 %v1907
        %2399 = vmatprep.subr.bf16.mxu0 %v1912
        %2400 = vmatpush1.bf16.msra.mxu0 %v1911
        %2401 = vmatprep.subr.bf16.mxu0 %v1916
        %2402 = vmatpush1.bf16.msra.mxu0 %v1915
        %2403 = vmatprep.subr.bf16.mxu0 %v1920
        %2404 = vmatpush1.bf16.msra.mxu0 %v1919
        %2405 = vmatprep.subr.bf16.mxu0 %v1924
        %2406 = vmatpush1.bf16.msra.mxu0 %v1923
        %2407 = vmatprep.mubr.bf16.mxu0 %v1080
        %2408 = vmatmul.mubr.bf16.gmra.mrb[0].mxu0 %v1079
        %v2409 = vpop.f32.mrb[0].mxu0
        %v2410 = vadd.f32 0.0, %v2409
        %v2411 = vpop.f32.mrb[0].mxu0
        %v2412 = vadd.f32 0.0, %v2411
        %v2413 = vpop.f32.mrb[0].mxu0
        %v2414 = vpop.f32.mrb[0].mxu0
        %2415 = vdwg.mxu0
        %2416 = vmatprep.subr.bf16.mxu0 %v1928
        %2417 = vmatpush1.bf16.msra.mxu0 %v1927
        %2418 = vmatprep.subr.bf16.mxu0 %v1932
        %2419 = vmatpush1.bf16.msra.mxu0 %v1931
        %2420 = vmatprep.subr.bf16.mxu0 %v1936
        %2421 = vmatpush1.bf16.msra.mxu0 %v1935
        %2422 = vmatprep.subr.bf16.mxu0 %v1940
        %2423 = vmatpush1.bf16.msra.mxu0 %v1939
        %2424 = vmatprep.subr.bf16.mxu0 %v1944
        %2425 = vmatpush1.bf16.msra.mxu0 %v1943
        %2426 = vmatprep.subr.bf16.mxu0 %v1948
        %2427 = vmatpush1.bf16.msra.mxu0 %v1947
        %2428 = vmatprep.subr.bf16.mxu0 %v1952
        %2429 = vmatpush1.bf16.msra.mxu0 %v1951
        %2430 = vmatprep.subr.bf16.mxu0 %v1956
        %2431 = vmatpush1.bf16.msra.mxu0 %v1955
        %2432 = vmatprep.subr.bf16.mxu0 %v1960
        %2433 = vmatpush1.bf16.msra.mxu0 %v1959
        %2434 = vmatprep.subr.bf16.mxu0 %v1964
        %2435 = vmatpush1.bf16.msra.mxu0 %v1963
        %2436 = vmatprep.subr.bf16.mxu0 %v1968
        %2437 = vmatpush1.bf16.msra.mxu0 %v1967
        %2438 = vmatprep.subr.bf16.mxu0 %v1972
        %2439 = vmatpush1.bf16.msra.mxu0 %v1971
        %2440 = vmatprep.subr.bf16.mxu0 %v1976
        %2441 = vmatpush1.bf16.msra.mxu0 %v1975
        %2442 = vmatprep.subr.bf16.mxu0 %v1980
        %2443 = vmatpush1.bf16.msra.mxu0 %v1979
        %2444 = vmatprep.subr.bf16.mxu0 %v1984
        %2445 = vmatpush1.bf16.msra.mxu0 %v1983
        %2446 = vmatprep.subr.bf16.mxu0 %v1988
        %2447 = vmatpush1.bf16.msra.mxu0 %v1987
        %2448 = vmatprep.mubr.bf16.mxu0 %v1082
        %2449 = vmatmul.mubr.bf16.gmra.mrb[0].mxu0 %v1081
        %v2450 = vpop.f32.mrb[0].mxu0
        %v2451 = vadd.f32 %v2410, %v2450
        %v2452 = vpop.f32.mrb[0].mxu0
        %v2453 = vadd.f32 %v2412, %v2452
        %v2454 = vpop.f32.mrb[0].mxu0
        %v2455 = vpop.f32.mrb[0].mxu0
        %2456 = vdwg.mxu0
        %2457 = vmatprep.subr.bf16.mxu0 %v1992
        %2458 = vmatpush1.bf16.msra.mxu0 %v1991
        %2459 = vmatprep.subr.bf16.mxu0 %v1996
        %2460 = vmatpush1.bf16.msra.mxu0 %v1995
        %2461 = vmatprep.subr.bf16.mxu0 %v2000
        %2462 = vmatpush1.bf16.msra.mxu0 %v1999
        %2463 = vmatprep.subr.bf16.mxu0 %v2004
        %2464 = vmatpush1.bf16.msra.mxu0 %v2003
        %2465 = vmatprep.subr.bf16.mxu0 %v2008
        %2466 = vmatpush1.bf16.msra.mxu0 %v2007
        %2467 = vmatprep.subr.bf16.mxu0 %v2012
        %2468 = vmatpush1.bf16.msra.mxu0 %v2011
        %2469 = vmatprep.subr.bf16.mxu0 %v2016
        %2470 = vmatpush1.bf16.msra.mxu0 %v2015
        %2471 = vmatprep.subr.bf16.mxu0 %v2020
        %2472 = vmatpush1.bf16.msra.mxu0 %v2019
        %2473 = vmatprep.subr.bf16.mxu0 %v2024
        %2474 = vmatpush1.bf16.msra.mxu0 %v2023
        %2475 = vmatprep.subr.bf16.mxu0 %v2028
        %2476 = vmatpush1.bf16.msra.mxu0 %v2027
        %2477 = vmatprep.subr.bf16.mxu0 %v2032
        %2478 = vmatpush1.bf16.msra.mxu0 %v2031
        %2479 = vmatprep.subr.bf16.mxu0 %v2036
        %2480 = vmatpush1.bf16.msra.mxu0 %v2035
        %2481 = vmatprep.subr.bf16.mxu0 %v2040
        %2482 = vmatpush1.bf16.msra.mxu0 %v2039
        %2483 = vmatprep.subr.bf16.mxu0 %v2044
        %2484 = vmatpush1.bf16.msra.mxu0 %v2043
        %2485 = vmatprep.subr.bf16.mxu0 %v2048
        %2486 = vmatpush1.bf16.msra.mxu0 %v2047
        %2487 = vmatprep.subr.bf16.mxu0 %v2052
        %2488 = vmatpush1.bf16.msra.mxu0 %v2051
        %2489 = vmatprep.mubr.bf16.mxu0 %v1084
        %2490 = vmatmul.mubr.bf16.gmra.mrb[0].mxu0 %v1083
        %v2491 = vpop.f32.mrb[0].mxu0
        %v2492 = vadd.f32 %v2451, %v2491
        %v2493 = vpop.f32.mrb[0].mxu0
        %v2494 = vadd.f32 %v2453, %v2493
        %v2495 = vpop.f32.mrb[0].mxu0
        %v2496 = vpop.f32.mrb[0].mxu0
        %2497 = vdwg.mxu0
        %2498 = vmatprep.subr.bf16.mxu0 %v2056
        %2499 = vmatpush1.bf16.msra.mxu0 %v2055
        %2500 = vmatprep.subr.bf16.mxu0 %v2060
        %2501 = vmatpush1.bf16.msra.mxu0 %v2059
        %2502 = vmatprep.subr.bf16.mxu0 %v2064
        %2503 = vmatpush1.bf16.msra.mxu0 %v2063
        %2504 = vmatprep.subr.bf16.mxu0 %v2068
        %2505 = vmatpush1.bf16.msra.mxu0 %v2067
        %2506 = vmatprep.subr.bf16.mxu0 %v2072
        %2507 = vmatpush1.bf16.msra.mxu0 %v2071
        %2508 = vmatprep.subr.bf16.mxu0 %v2076
        %2509 = vmatpush1.bf16.msra.mxu0 %v2075
        %2510 = vmatprep.subr.bf16.mxu0 %v2080
        %2511 = vmatpush1.bf16.msra.mxu0 %v2079
        %2512 = vmatprep.subr.bf16.mxu0 %v2084
        %2513 = vmatpush1.bf16.msra.mxu0 %v2083
        %2514 = vmatprep.subr.bf16.mxu0 %v2088
        %2515 = vmatpush1.bf16.msra.mxu0 %v2087
        %2516 = vmatprep.subr.bf16.mxu0 %v2092
        %2517 = vmatpush1.bf16.msra.mxu0 %v2091
        %2518 = vmatprep.subr.bf16.mxu0 %v2096
        %2519 = vmatpush1.bf16.msra.mxu0 %v2095
        %2520 = vmatprep.subr.bf16.mxu0 %v2100
        %2521 = vmatpush1.bf16.msra.mxu0 %v2099
        %2522 = vmatprep.subr.bf16.mxu0 %v2104
        %2523 = vmatpush1.bf16.msra.mxu0 %v2103
        %2524 = vmatprep.subr.bf16.mxu0 %v2108
        %2525 = vmatpush1.bf16.msra.mxu0 %v2107
        %2526 = vmatprep.subr.bf16.mxu0 %v2112
        %2527 = vmatpush1.bf16.msra.mxu0 %v2111
        %2528 = vmatprep.subr.bf16.mxu0 %v2116
        %2529 = vmatpush1.bf16.msra.mxu0 %v2115
        %2530 = vmatprep.mubr.bf16.mxu0 %v1086
        %2531 = vmatmul.mubr.bf16.gmra.mrb[0].mxu0 %v1085
        %v2532 = vpop.f32.mrb[0].mxu0
        %v2533 = vadd.f32 %v2492, %v2532
        %v2534 = vpop.f32.mrb[0].mxu0
        %v2535 = vadd.f32 %v2494, %v2534
        %v2536 = vpop.f32.mrb[0].mxu0
        %v2537 = vpop.f32.mrb[0].mxu0
        %2538 = vdwg.mxu0
        %2539 = vmatprep.subr.bf16.mxu0 %v1866
        %2540 = vmatpush1.bf16.msra.mxu0 %v1865
        %2541 = vmatprep.subr.bf16.mxu0 %v1870
        %2542 = vmatpush1.bf16.msra.mxu0 %v1869
        %2543 = vmatprep.subr.bf16.mxu0 %v1874
        %2544 = vmatpush1.bf16.msra.mxu0 %v1873
        %2545 = vmatprep.subr.bf16.mxu0 %v1878
        %2546 = vmatpush1.bf16.msra.mxu0 %v1877
        %2547 = vmatprep.subr.bf16.mxu0 %v1882
        %2548 = vmatpush1.bf16.msra.mxu0 %v1881
        %2549 = vmatprep.subr.bf16.mxu0 %v1886
        %2550 = vmatpush1.bf16.msra.mxu0 %v1885
        %2551 = vmatprep.subr.bf16.mxu0 %v1890
        %2552 = vmatpush1.bf16.msra.mxu0 %v1889
        %2553 = vmatprep.subr.bf16.mxu0 %v1894
        %2554 = vmatpush1.bf16.msra.mxu0 %v1893
        %2555 = vmatprep.subr.bf16.mxu0 %v1898
        %2556 = vmatpush1.bf16.msra.mxu0 %v1897
        %2557 = vmatprep.subr.bf16.mxu0 %v1902
        %2558 = vmatpush1.bf16.msra.mxu0 %v1901
        %2559 = vmatprep.subr.bf16.mxu0 %v1906
        %2560 = vmatpush1.bf16.msra.mxu0 %v1905
        %2561 = vmatprep.subr.bf16.mxu0 %v1910
        %2562 = vmatpush1.bf16.msra.mxu0 %v1909
        %2563 = vmatprep.subr.bf16.mxu0 %v1914
        %2564 = vmatpush1.bf16.msra.mxu0 %v1913
        %2565 = vmatprep.subr.bf16.mxu0 %v1918
        %2566 = vmatpush1.bf16.msra.mxu0 %v1917
        %2567 = vmatprep.subr.bf16.mxu0 %v1922
        %2568 = vmatpush1.bf16.msra.mxu0 %v1921
        %2569 = vmatprep.subr.bf16.mxu0 %v1926
        %2570 = vmatpush1.bf16.msra.mxu0 %v1925
        %2571 = vmatprep.mubr.bf16.mxu0 %v1080
        %2572 = vmatmul.mubr.bf16.gmra.mrb[0].mxu0 %v1079
        %v2573 = vpop.f32.mrb[0].mxu0
        %v2574 = vadd.f32 0.0, %v2573
        %v2575 = vpop.f32.mrb[0].mxu0
        %v2576 = vadd.f32 0.0, %v2575
        %v2577 = vpop.f32.mrb[0].mxu0
        %v2578 = vpop.f32.mrb[0].mxu0
        %2579 = vdwg.mxu0
        %2580 = vmatprep.subr.bf16.mxu0 %v1930
        %2581 = vmatpush1.bf16.msra.mxu0 %v1929
        %2582 = vmatprep.subr.bf16.mxu0 %v1934
        %2583 = vmatpush1.bf16.msra.mxu0 %v1933
        %2584 = vmatprep.subr.bf16.mxu0 %v1938
        %2585 = vmatpush1.bf16.msra.mxu0 %v1937
        %2586 = vmatprep.subr.bf16.mxu0 %v1942
        %2587 = vmatpush1.bf16.msra.mxu0 %v1941
        %2588 = vmatprep.subr.bf16.mxu0 %v1946
        %2589 = vmatpush1.bf16.msra.mxu0 %v1945
        %2590 = vmatprep.subr.bf16.mxu0 %v1950
        %2591 = vmatpush1.bf16.msra.mxu0 %v1949
        %2592 = vmatprep.subr.bf16.mxu0 %v1954
        %2593 = vmatpush1.bf16.msra.mxu0 %v1953
        %2594 = vmatprep.subr.bf16.mxu0 %v1958
        %2595 = vmatpush1.bf16.msra.mxu0 %v1957
        %2596 = vmatprep.subr.bf16.mxu0 %v1962
        %2597 = vmatpush1.bf16.msra.mxu0 %v1961
        %2598 = vmatprep.subr.bf16.mxu0 %v1966
        %2599 = vmatpush1.bf16.msra.mxu0 %v1965
        %2600 = vmatprep.subr.bf16.mxu0 %v1970
        %2601 = vmatpush1.bf16.msra.mxu0 %v1969
        %2602 = vmatprep.subr.bf16.mxu0 %v1974
        %2603 = vmatpush1.bf16.msra.mxu0 %v1973
        %2604 = vmatprep.subr.bf16.mxu0 %v1978
        %2605 = vmatpush1.bf16.msra.mxu0 %v1977
        %2606 = vmatprep.subr.bf16.mxu0 %v1982
        %2607 = vmatpush1.bf16.msra.mxu0 %v1981
        %2608 = vmatprep.subr.bf16.mxu0 %v1986
        %2609 = vmatpush1.bf16.msra.mxu0 %v1985
        %2610 = vmatprep.subr.bf16.mxu0 %v1990
        %2611 = vmatpush1.bf16.msra.mxu0 %v1989
        %2612 = vmatprep.mubr.bf16.mxu0 %v1082
        %2613 = vmatmul.mubr.bf16.gmra.mrb[0].mxu0 %v1081
        %v2614 = vpop.f32.mrb[0].mxu0
        %v2615 = vadd.f32 %v2574, %v2614
        %v2616 = vpop.f32.mrb[0].mxu0
        %v2617 = vadd.f32 %v2576, %v2616
        %v2618 = vpop.f32.mrb[0].mxu0
        %v2619 = vpop.f32.mrb[0].mxu0
        %2620 = vdwg.mxu0
        %2621 = vmatprep.subr.bf16.mxu0 %v1994
        %2622 = vmatpush1.bf16.msra.mxu0 %v1993
        %2623 = vmatprep.subr.bf16.mxu0 %v1998
        %2624 = vmatpush1.bf16.msra.mxu0 %v1997
        %2625 = vmatprep.subr.bf16.mxu0 %v2002
        %2626 = vmatpush1.bf16.msra.mxu0 %v2001
        %2627 = vmatprep.subr.bf16.mxu0 %v2006
        %2628 = vmatpush1.bf16.msra.mxu0 %v2005
        %2629 = vmatprep.subr.bf16.mxu0 %v2010
        %2630 = vmatpush1.bf16.msra.mxu0 %v2009
        %2631 = vmatprep.subr.bf16.mxu0 %v2014
        %2632 = vmatpush1.bf16.msra.mxu0 %v2013
        %2633 = vmatprep.subr.bf16.mxu0 %v2018
        %2634 = vmatpush1.bf16.msra.mxu0 %v2017
        %2635 = vmatprep.subr.bf16.mxu0 %v2022
        %2636 = vmatpush1.bf16.msra.mxu0 %v2021
        %2637 = vmatprep.subr.bf16.mxu0 %v2026
        %2638 = vmatpush1.bf16.msra.mxu0 %v2025
        %2639 = vmatprep.subr.bf16.mxu0 %v2030
        %2640 = vmatpush1.bf16.msra.mxu0 %v2029
        %2641 = vmatprep.subr.bf16.mxu0 %v2034
        %2642 = vmatpush1.bf16.msra.mxu0 %v2033
        %2643 = vmatprep.subr.bf16.mxu0 %v2038
        %2644 = vmatpush1.bf16.msra.mxu0 %v2037
        %2645 = vmatprep.subr.bf16.mxu0 %v2042
        %2646 = vmatpush1.bf16.msra.mxu0 %v2041
        %2647 = vmatprep.subr.bf16.mxu0 %v2046
        %2648 = vmatpush1.bf16.msra.mxu0 %v2045
        %2649 = vmatprep.subr.bf16.mxu0 %v2050
        %2650 = vmatpush1.bf16.msra.mxu0 %v2049
        %2651 = vmatprep.subr.bf16.mxu0 %v2054
        %2652 = vmatpush1.bf16.msra.mxu0 %v2053
        %2653 = vmatprep.mubr.bf16.mxu0 %v1084
        %2654 = vmatmul.mubr.bf16.gmra.mrb[0].mxu0 %v1083
        %v2655 = vpop.f32.mrb[0].mxu0
        %v2656 = vadd.f32 %v2615, %v2655
        %v2657 = vpop.f32.mrb[0].mxu0
        %v2658 = vadd.f32 %v2617, %v2657
        %v2659 = vpop.f32.mrb[0].mxu0
        %v2660 = vpop.f32.mrb[0].mxu0
        %2661 = vdwg.mxu0
        %2662 = vmatprep.subr.bf16.mxu0 %v2058
        %2663 = vmatpush1.bf16.msra.mxu0 %v2057
        %2664 = vmatprep.subr.bf16.mxu0 %v2062
        %2665 = vmatpush1.bf16.msra.mxu0 %v2061
        %2666 = vmatprep.subr.bf16.mxu0 %v2066
        %2667 = vmatpush1.bf16.msra.mxu0 %v2065
        %2668 = vmatprep.subr.bf16.mxu0 %v2070
        %2669 = vmatpush1.bf16.msra.mxu0 %v2069
        %2670 = vmatprep.subr.bf16.mxu0 %v2074
        %2671 = vmatpush1.bf16.msra.mxu0 %v2073
        %2672 = vmatprep.subr.bf16.mxu0 %v2078
        %2673 = vmatpush1.bf16.msra.mxu0 %v2077
        %2674 = vmatprep.subr.bf16.mxu0 %v2082
        %2675 = vmatpush1.bf16.msra.mxu0 %v2081
        %2676 = vmatprep.subr.bf16.mxu0 %v2086
        %2677 = vmatpush1.bf16.msra.mxu0 %v2085
        %2678 = vmatprep.subr.bf16.mxu0 %v2090
        %2679 = vmatpush1.bf16.msra.mxu0 %v2089
        %2680 = vmatprep.subr.bf16.mxu0 %v2094
        %2681 = vmatpush1.bf16.msra.mxu0 %v2093
        %2682 = vmatprep.subr.bf16.mxu0 %v2098
        %2683 = vmatpush1.bf16.msra.mxu0 %v2097
        %2684 = vmatprep.subr.bf16.mxu0 %v2102
        %2685 = vmatpush1.bf16.msra.mxu0 %v2101
        %2686 = vmatprep.subr.bf16.mxu0 %v2106
        %2687 = vmatpush1.bf16.msra.mxu0 %v2105
        %2688 = vmatprep.subr.bf16.mxu0 %v2110
        %2689 = vmatpush1.bf16.msra.mxu0 %v2109
        %2690 = vmatprep.subr.bf16.mxu0 %v2114
        %2691 = vmatpush1.bf16.msra.mxu0 %v2113
        %2692 = vmatprep.subr.bf16.mxu0 %v2118
        %2693 = vmatpush1.bf16.msra.mxu0 %v2117
        %2694 = vmatprep.mubr.bf16.mxu0 %v1086
        %2695 = vmatmul.mubr.bf16.gmra.mrb[0].mxu0 %v1085
        %v2696 = vpop.f32.mrb[0].mxu0
        %v2697 = vadd.f32 %v2656, %v2696
        %v2698 = vpop.f32.mrb[0].mxu0
        %v2699 = vadd.f32 %v2658, %v2698
        %v2700 = vpop.f32.mrb[0].mxu0
        %v2701 = vpop.f32.mrb[0].mxu0
        %2702 = vdwg.mxu0
        %v2703 = vld [vmem:[%s644] sm:$0xf]
        %v2705 = vlaneseq
        %v2706 = vshrl.u32 %v2705, 7
        %v2707 = vsub.s32 0, %v2706
        %v2708 = vrot.slane %v2703, %v2707
        %v2709 = vlaneseq
        %v2710 = vshrl.u32 %v2709, 7
        %v2711 = vsub.s32 1, %v2710
        %v2712 = vrot.slane %v2703, %v2711
        %v2713 = vlaneseq
        %v2714 = vshrl.u32 %v2713, 7
        %v2715 = vsub.s32 2, %v2714
        %v2716 = vrot.slane %v2703, %v2715
        %v2717 = vlaneseq
        %v2718 = vshrl.u32 %v2717, 7
        %v2719 = vsub.s32 3, %v2718
        %v2720 = vrot.slane %v2703, %v2719
        %v2725 = vmul.f32 %v2533, %v2708
        %v2726 = vmul.f32 %v2535, %v2712
        %v2727 = vmul.f32 %v2697, %v2716
        %v2728 = vmul.f32 %v2699, %v2720
        %v2729 = vld [vmem:[%s653] sm:$0xf]
        %v2731 = vlaneseq
        %v2732 = vshrl.u32 %v2731, 7
        %v2733 = vsub.s32 0, %v2732
        %v2734 = vrot.slane %v2729, %v2733
        %v2735 = vlaneseq
        %v2736 = vshrl.u32 %v2735, 7
        %v2737 = vsub.s32 1, %v2736
        %v2738 = vrot.slane %v2729, %v2737
        %v2739 = vlaneseq
        %v2740 = vshrl.u32 %v2739, 7
        %v2741 = vsub.s32 2, %v2740
        %v2742 = vrot.slane %v2729, %v2741
        %v2743 = vlaneseq
        %v2744 = vshrl.u32 %v2743, 7
        %v2745 = vsub.s32 3, %v2744
        %v2746 = vrot.slane %v2729, %v2745
        %v2751 = vadd.f32 %v2725, %v2734
        %v2752 = vadd.f32 %v2726, %v2738
        %v2753 = vadd.f32 %v2727, %v2742
        %v2754 = vadd.f32 %v2728, %v2746
        %v2755 = vmax.f32 %v2751, 0.0
        %v2756 = vmax.f32 %v2752, 0.0
        %v2757 = vmax.f32 %v2753, 0.0
        %v2758 = vmax.f32 %v2754, 0.0
        %v2759 = vpack.c.bf16 %v2755, %v2755
        %v2760 = vpack.c.bf16 %v2756, %v2756
        %v2761 = vpack.c.bf16 %v2757, %v2757
        %v2762 = vpack.c.bf16 %v2758, %v2758
        %v2763 = vld [vmem:[%s662] sm:$0xff]
        %v2764 = vld [vmem:[%s662 + $0x8] sm:$0xff]
        %v2765 = vld [vmem:[%s662 + $0x10] sm:$0xff]
        %v2766 = vld [vmem:[%s662 + $0x18] sm:$0xff]
        %v2767 = vld [vmem:[%s662 + $0x20] sm:$0xff]
        %v2768 = vld [vmem:[%s662 + $0x28] sm:$0xff]
        %v2769 = vld [vmem:[%s662 + $0x30] sm:$0xff]
        %v2770 = vld [vmem:[%s662 + $0x38] sm:$0xff]
        %v2771 = vld [vmem:[%s662 + $0x40] sm:$0xff]
        %v2772 = vld [vmem:[%s662 + $0x48] sm:$0xff]
        %v2773 = vld [vmem:[%s662 + $0x50] sm:$0xff]
        %v2774 = vld [vmem:[%s662 + $0x58] sm:$0xff]
        %v2775 = vld [vmem:[%s662 + $0x60] sm:$0xff]
        %v2776 = vld [vmem:[%s662 + $0x68] sm:$0xff]
        %v2777 = vld [vmem:[%s662 + $0x70] sm:$0xff]
        %v2778 = vld [vmem:[%s662 + $0x78] sm:$0xff]
        %v2779 = vld [vmem:[%s662 + $0x80] sm:$0xff]
        %v2780 = vld [vmem:[%s662 + $0x88] sm:$0xff]
        %v2781 = vld [vmem:[%s662 + $0x90] sm:$0xff]
        %v2782 = vld [vmem:[%s662 + $0x98] sm:$0xff]
        %v2783 = vld [vmem:[%s662 + $0xa0] sm:$0xff]
        %v2784 = vld [vmem:[%s662 + $0xa8] sm:$0xff]
        %v2785 = vld [vmem:[%s662 + $0xb0] sm:$0xff]
        %v2786 = vld [vmem:[%s662 + $0xb8] sm:$0xff]
        %v2787 = vld [vmem:[%s662 + $0xc0] sm:$0xff]
        %v2788 = vld [vmem:[%s662 + $0xc8] sm:$0xff]
        %v2789 = vld [vmem:[%s662 + $0xd0] sm:$0xff]
        %v2790 = vld [vmem:[%s662 + $0xd8] sm:$0xff]
        %v2791 = vld [vmem:[%s662 + $0xe0] sm:$0xff]
        %v2792 = vld [vmem:[%s662 + $0xe8] sm:$0xff]
        %v2793 = vld [vmem:[%s662 + $0xf0] sm:$0xff]
        %v2794 = vld [vmem:[%s662 + $0xf8] sm:$0xff]
        %v2795 = vld [vmem:[%s662 + $0x100] sm:$0xff]
        %v2796 = vld [vmem:[%s662 + $0x108] sm:$0xff]
        %v2797 = vld [vmem:[%s662 + $0x110] sm:$0xff]
        %v2798 = vld [vmem:[%s662 + $0x118] sm:$0xff]
        %v2799 = vld [vmem:[%s662 + $0x120] sm:$0xff]
        %v2800 = vld [vmem:[%s662 + $0x128] sm:$0xff]
        %v2801 = vld [vmem:[%s662 + $0x130] sm:$0xff]
        %v2802 = vld [vmem:[%s662 + $0x138] sm:$0xff]
        %v2803 = vld [vmem:[%s662 + $0x140] sm:$0xff]
        %v2804 = vld [vmem:[%s662 + $0x148] sm:$0xff]
        %v2805 = vld [vmem:[%s662 + $0x150] sm:$0xff]
        %v2806 = vld [vmem:[%s662 + $0x158] sm:$0xff]
        %v2807 = vld [vmem:[%s662 + $0x160] sm:$0xff]
        %v2808 = vld [vmem:[%s662 + $0x168] sm:$0xff]
        %v2809 = vld [vmem:[%s662 + $0x170] sm:$0xff]
        %v2810 = vld [vmem:[%s662 + $0x178] sm:$0xff]
        %v2811 = vld [vmem:[%s662 + $0x180] sm:$0xff]
        %v2812 = vld [vmem:[%s662 + $0x188] sm:$0xff]
        %v2813 = vld [vmem:[%s662 + $0x190] sm:$0xff]
        %v2814 = vld [vmem:[%s662 + $0x198] sm:$0xff]
        %v2815 = vld [vmem:[%s662 + $0x1a0] sm:$0xff]
        %v2816 = vld [vmem:[%s662 + $0x1a8] sm:$0xff]
        %v2817 = vld [vmem:[%s662 + $0x1b0] sm:$0xff]
        %v2818 = vld [vmem:[%s662 + $0x1b8] sm:$0xff]
        %v2819 = vld [vmem:[%s662 + $0x1c0] sm:$0xff]
        %v2820 = vld [vmem:[%s662 + $0x1c8] sm:$0xff]
        %v2821 = vld [vmem:[%s662 + $0x1d0] sm:$0xff]
        %v2822 = vld [vmem:[%s662 + $0x1d8] sm:$0xff]
        %v2823 = vld [vmem:[%s662 + $0x1e0] sm:$0xff]
        %v2824 = vld [vmem:[%s662 + $0x1e8] sm:$0xff]
        %v2825 = vld [vmem:[%s662 + $0x1f0] sm:$0xff]
        %v2826 = vld [vmem:[%s662 + $0x1f8] sm:$0xff]
        %v2891 = vunpack.c.l.b16 %v2763
        %v2892 = vunpack.c.h.b16 %v2763
        %v2893 = vunpack.c.l.b16 %v2764
        %v2894 = vunpack.c.h.b16 %v2764
        %v2895 = vunpack.c.l.b16 %v2765
        %v2896 = vunpack.c.h.b16 %v2765
        %v2897 = vunpack.c.l.b16 %v2766
        %v2898 = vunpack.c.h.b16 %v2766
        %v2899 = vunpack.c.l.b16 %v2767
        %v2900 = vunpack.c.h.b16 %v2767
        %v2901 = vunpack.c.l.b16 %v2768
        %v2902 = vunpack.c.h.b16 %v2768
        %v2903 = vunpack.c.l.b16 %v2769
        %v2904 = vunpack.c.h.b16 %v2769
        %v2905 = vunpack.c.l.b16 %v2770
        %v2906 = vunpack.c.h.b16 %v2770
        %v2907 = vunpack.c.l.b16 %v2771
        %v2908 = vunpack.c.h.b16 %v2771
        %v2909 = vunpack.c.l.b16 %v2772
        %v2910 = vunpack.c.h.b16 %v2772
        %v2911 = vunpack.c.l.b16 %v2773
        %v2912 = vunpack.c.h.b16 %v2773
        %v2913 = vunpack.c.l.b16 %v2774
        %v2914 = vunpack.c.h.b16 %v2774
        %v2915 = vunpack.c.l.b16 %v2775
        %v2916 = vunpack.c.h.b16 %v2775
        %v2917 = vunpack.c.l.b16 %v2776
        %v2918 = vunpack.c.h.b16 %v2776
        %v2919 = vunpack.c.l.b16 %v2777
        %v2920 = vunpack.c.h.b16 %v2777
        %v2921 = vunpack.c.l.b16 %v2778
        %v2922 = vunpack.c.h.b16 %v2778
        %v2923 = vunpack.c.l.b16 %v2779
        %v2924 = vunpack.c.h.b16 %v2779
        %v2925 = vunpack.c.l.b16 %v2780
        %v2926 = vunpack.c.h.b16 %v2780
        %v2927 = vunpack.c.l.b16 %v2781
        %v2928 = vunpack.c.h.b16 %v2781
        %v2929 = vunpack.c.l.b16 %v2782
        %v2930 = vunpack.c.h.b16 %v2782
        %v2931 = vunpack.c.l.b16 %v2783
        %v2932 = vunpack.c.h.b16 %v2783
        %v2933 = vunpack.c.l.b16 %v2784
        %v2934 = vunpack.c.h.b16 %v2784
        %v2935 = vunpack.c.l.b16 %v2785
        %v2936 = vunpack.c.h.b16 %v2785
        %v2937 = vunpack.c.l.b16 %v2786
        %v2938 = vunpack.c.h.b16 %v2786
        %v2939 = vunpack.c.l.b16 %v2787
        %v2940 = vunpack.c.h.b16 %v2787
        %v2941 = vunpack.c.l.b16 %v2788
        %v2942 = vunpack.c.h.b16 %v2788
        %v2943 = vunpack.c.l.b16 %v2789
        %v2944 = vunpack.c.h.b16 %v2789
        %v2945 = vunpack.c.l.b16 %v2790
        %v2946 = vunpack.c.h.b16 %v2790
        %v2947 = vunpack.c.l.b16 %v2791
        %v2948 = vunpack.c.h.b16 %v2791
        %v2949 = vunpack.c.l.b16 %v2792
        %v2950 = vunpack.c.h.b16 %v2792
        %v2951 = vunpack.c.l.b16 %v2793
        %v2952 = vunpack.c.h.b16 %v2793
        %v2953 = vunpack.c.l.b16 %v2794
        %v2954 = vunpack.c.h.b16 %v2794
        %v2955 = vunpack.c.l.b16 %v2795
        %v2956 = vunpack.c.h.b16 %v2795
        %v2957 = vunpack.c.l.b16 %v2796
        %v2958 = vunpack.c.h.b16 %v2796
        %v2959 = vunpack.c.l.b16 %v2797
        %v2960 = vunpack.c.h.b16 %v2797
        %v2961 = vunpack.c.l.b16 %v2798
        %v2962 = vunpack.c.h.b16 %v2798
        %v2963 = vunpack.c.l.b16 %v2799
        %v2964 = vunpack.c.h.b16 %v2799
        %v2965 = vunpack.c.l.b16 %v2800
        %v2966 = vunpack.c.h.b16 %v2800
        %v2967 = vunpack.c.l.b16 %v2801
        %v2968 = vunpack.c.h.b16 %v2801
        %v2969 = vunpack.c.l.b16 %v2802
        %v2970 = vunpack.c.h.b16 %v2802
        %v2971 = vunpack.c.l.b16 %v2803
        %v2972 = vunpack.c.h.b16 %v2803
        %v2973 = vunpack.c.l.b16 %v2804
        %v2974 = vunpack.c.h.b16 %v2804
        %v2975 = vunpack.c.l.b16 %v2805
        %v2976 = vunpack.c.h.b16 %v2805
        %v2977 = vunpack.c.l.b16 %v2806
        %v2978 = vunpack.c.h.b16 %v2806
        %v2979 = vunpack.c.l.b16 %v2807
        %v2980 = vunpack.c.h.b16 %v2807
        %v2981 = vunpack.c.l.b16 %v2808
        %v2982 = vunpack.c.h.b16 %v2808
        %v2983 = vunpack.c.l.b16 %v2809
        %v2984 = vunpack.c.h.b16 %v2809
        %v2985 = vunpack.c.l.b16 %v2810
        %v2986 = vunpack.c.h.b16 %v2810
        %v2987 = vunpack.c.l.b16 %v2811
        %v2988 = vunpack.c.h.b16 %v2811
        %v2989 = vunpack.c.l.b16 %v2812
        %v2990 = vunpack.c.h.b16 %v2812
        %v2991 = vunpack.c.l.b16 %v2813
        %v2992 = vunpack.c.h.b16 %v2813
        %v2993 = vunpack.c.l.b16 %v2814
        %v2994 = vunpack.c.h.b16 %v2814
        %v2995 = vunpack.c.l.b16 %v2815
        %v2996 = vunpack.c.h.b16 %v2815
        %v2997 = vunpack.c.l.b16 %v2816
        %v2998 = vunpack.c.h.b16 %v2816
        %v2999 = vunpack.c.l.b16 %v2817
        %v3000 = vunpack.c.h.b16 %v2817
        %v3001 = vunpack.c.l.b16 %v2818
        %v3002 = vunpack.c.h.b16 %v2818
        %v3003 = vunpack.c.l.b16 %v2819
        %v3004 = vunpack.c.h.b16 %v2819
        %v3005 = vunpack.c.l.b16 %v2820
        %v3006 = vunpack.c.h.b16 %v2820
        %v3007 = vunpack.c.l.b16 %v2821
        %v3008 = vunpack.c.h.b16 %v2821
        %v3009 = vunpack.c.l.b16 %v2822
        %v3010 = vunpack.c.h.b16 %v2822
        %v3011 = vunpack.c.l.b16 %v2823
        %v3012 = vunpack.c.h.b16 %v2823
        %v3013 = vunpack.c.l.b16 %v2824
        %v3014 = vunpack.c.h.b16 %v2824
        %v3015 = vunpack.c.l.b16 %v2825
        %v3016 = vunpack.c.h.b16 %v2825
        %v3017 = vunpack.c.l.b16 %v2826
        %v3018 = vunpack.c.h.b16 %v2826
        %v3019 = vpack.c.b16 %v2893, %v2891
        %v3020 = vpack.c.b16 %v2894, %v2892
        %v3021 = vpack.c.b16 %v2897, %v2895
        %v3022 = vpack.c.b16 %v2898, %v2896
        %v3023 = vpack.c.b16 %v2901, %v2899
        %v3024 = vpack.c.b16 %v2902, %v2900
        %v3025 = vpack.c.b16 %v2905, %v2903
        %v3026 = vpack.c.b16 %v2906, %v2904
        %v3027 = vpack.c.b16 %v2909, %v2907
        %v3028 = vpack.c.b16 %v2910, %v2908
        %v3029 = vpack.c.b16 %v2913, %v2911
        %v3030 = vpack.c.b16 %v2914, %v2912
        %v3031 = vpack.c.b16 %v2917, %v2915
        %v3032 = vpack.c.b16 %v2918, %v2916
        %v3033 = vpack.c.b16 %v2921, %v2919
        %v3034 = vpack.c.b16 %v2922, %v2920
        %v3035 = vpack.c.b16 %v2925, %v2923
        %v3036 = vpack.c.b16 %v2926, %v2924
        %v3037 = vpack.c.b16 %v2929, %v2927
        %v3038 = vpack.c.b16 %v2930, %v2928
        %v3039 = vpack.c.b16 %v2933, %v2931
        %v3040 = vpack.c.b16 %v2934, %v2932
        %v3041 = vpack.c.b16 %v2937, %v2935
        %v3042 = vpack.c.b16 %v2938, %v2936
        %v3043 = vpack.c.b16 %v2941, %v2939
        %v3044 = vpack.c.b16 %v2942, %v2940
        %v3045 = vpack.c.b16 %v2945, %v2943
        %v3046 = vpack.c.b16 %v2946, %v2944
        %v3047 = vpack.c.b16 %v2949, %v2947
        %v3048 = vpack.c.b16 %v2950, %v2948
        %v3049 = vpack.c.b16 %v2953, %v2951
        %v3050 = vpack.c.b16 %v2954, %v2952
        %v3051 = vpack.c.b16 %v2957, %v2955
        %v3052 = vpack.c.b16 %v2958, %v2956
        %v3053 = vpack.c.b16 %v2961, %v2959
        %v3054 = vpack.c.b16 %v2962, %v2960
        %v3055 = vpack.c.b16 %v2965, %v2963
        %v3056 = vpack.c.b16 %v2966, %v2964
        %v3057 = vpack.c.b16 %v2969, %v2967
        %v3058 = vpack.c.b16 %v2970, %v2968
        %v3059 = vpack.c.b16 %v2973, %v2971
        %v3060 = vpack.c.b16 %v2974, %v2972
        %v3061 = vpack.c.b16 %v2977, %v2975
        %v3062 = vpack.c.b16 %v2978, %v2976
        %v3063 = vpack.c.b16 %v2981, %v2979
        %v3064 = vpack.c.b16 %v2982, %v2980
        %v3065 = vpack.c.b16 %v2985, %v2983
        %v3066 = vpack.c.b16 %v2986, %v2984
        %v3067 = vpack.c.b16 %v2989, %v2987
        %v3068 = vpack.c.b16 %v2990, %v2988
        %v3069 = vpack.c.b16 %v2993, %v2991
        %v3070 = vpack.c.b16 %v2994, %v2992
        %v3071 = vpack.c.b16 %v2997, %v2995
        %v3072 = vpack.c.b16 %v2998, %v2996
        %v3073 = vpack.c.b16 %v3001, %v2999
        %v3074 = vpack.c.b16 %v3002, %v3000
        %v3075 = vpack.c.b16 %v3005, %v3003
        %v3076 = vpack.c.b16 %v3006, %v3004
        %v3077 = vpack.c.b16 %v3009, %v3007
        %v3078 = vpack.c.b16 %v3010, %v3008
        %v3079 = vpack.c.b16 %v3013, %v3011
        %v3080 = vpack.c.b16 %v3014, %v3012
        %v3081 = vpack.c.b16 %v3017, %v3015
        %v3082 = vpack.c.b16 %v3018, %v3016
        %3147 = vmatprep.subr.bf16.mxu0 %v3020
        %3148 = vmatpush1.bf16.msra.mxu0 %v3019
        %3149 = vmatprep.subr.bf16.mxu0 %v3022
        %3150 = vmatpush1.bf16.msra.mxu0 %v3021
        %3151 = vmatprep.subr.bf16.mxu0 %v3024
        %3152 = vmatpush1.bf16.msra.mxu0 %v3023
        %3153 = vmatprep.subr.bf16.mxu0 %v3026
        %3154 = vmatpush1.bf16.msra.mxu0 %v3025
        %3155 = vmatprep.subr.bf16.mxu0 %v3028
        %3156 = vmatpush1.bf16.msra.mxu0 %v3027
        %3157 = vmatprep.subr.bf16.mxu0 %v3030
        %3158 = vmatpush1.bf16.msra.mxu0 %v3029
        %3159 = vmatprep.subr.bf16.mxu0 %v3032
        %3160 = vmatpush1.bf16.msra.mxu0 %v3031
        %3161 = vmatprep.subr.bf16.mxu0 %v3034
        %3162 = vmatpush1.bf16.msra.mxu0 %v3033
        %3163 = vmatprep.subr.bf16.mxu0 %v3036
        %3164 = vmatpush1.bf16.msra.mxu0 %v3035
        %3165 = vmatprep.subr.bf16.mxu0 %v3038
        %3166 = vmatpush1.bf16.msra.mxu0 %v3037
        %3167 = vmatprep.subr.bf16.mxu0 %v3040
        %3168 = vmatpush1.bf16.msra.mxu0 %v3039
        %3169 = vmatprep.subr.bf16.mxu0 %v3042
        %3170 = vmatpush1.bf16.msra.mxu0 %v3041
        %3171 = vmatprep.subr.bf16.mxu0 %v3044
        %3172 = vmatpush1.bf16.msra.mxu0 %v3043
        %3173 = vmatprep.subr.bf16.mxu0 %v3046
        %3174 = vmatpush1.bf16.msra.mxu0 %v3045
        %3175 = vmatprep.subr.bf16.mxu0 %v3048
        %3176 = vmatpush1.bf16.msra.mxu0 %v3047
        %3177 = vmatprep.subr.bf16.mxu0 %v3050
        %3178 = vmatpush1.bf16.msra.mxu0 %v3049
        %3179 = vmatprep.mubr.bf16.mxu0 %v2760
        %3180 = vmatmul.mubr.bf16.gmra.mrb[0].mxu0 %v2759
        %v3181 = vpop.f32.mrb[0].mxu0
        %v3182 = vadd.f32 0.0, %v3181
        %v3183 = vpop.f32.mrb[0].mxu0
        %v3184 = vadd.f32 0.0, %v3183
        %v3185 = vpop.f32.mrb[0].mxu0
        %v3186 = vpop.f32.mrb[0].mxu0
        %3187 = vdwg.mxu0
        %3188 = vmatprep.subr.bf16.mxu0 %v3052
        %3189 = vmatpush1.bf16.msra.mxu0 %v3051
        %3190 = vmatprep.subr.bf16.mxu0 %v3054
        %3191 = vmatpush1.bf16.msra.mxu0 %v3053
        %3192 = vmatprep.subr.bf16.mxu0 %v3056
        %3193 = vmatpush1.bf16.msra.mxu0 %v3055
        %3194 = vmatprep.subr.bf16.mxu0 %v3058
        %3195 = vmatpush1.bf16.msra.mxu0 %v3057
        %3196 = vmatprep.subr.bf16.mxu0 %v3060
        %3197 = vmatpush1.bf16.msra.mxu0 %v3059
        %3198 = vmatprep.subr.bf16.mxu0 %v3062
        %3199 = vmatpush1.bf16.msra.mxu0 %v3061
        %3200 = vmatprep.subr.bf16.mxu0 %v3064
        %3201 = vmatpush1.bf16.msra.mxu0 %v3063
        %3202 = vmatprep.subr.bf16.mxu0 %v3066
        %3203 = vmatpush1.bf16.msra.mxu0 %v3065
        %3204 = vmatprep.subr.bf16.mxu0 %v3068
        %3205 = vmatpush1.bf16.msra.mxu0 %v3067
        %3206 = vmatprep.subr.bf16.mxu0 %v3070
        %3207 = vmatpush1.bf16.msra.mxu0 %v3069
        %3208 = vmatprep.subr.bf16.mxu0 %v3072
        %3209 = vmatpush1.bf16.msra.mxu0 %v3071
        %3210 = vmatprep.subr.bf16.mxu0 %v3074
        %3211 = vmatpush1.bf16.msra.mxu0 %v3073
        %3212 = vmatprep.subr.bf16.mxu0 %v3076
        %3213 = vmatpush1.bf16.msra.mxu0 %v3075
        %3214 = vmatprep.subr.bf16.mxu0 %v3078
        %3215 = vmatpush1.bf16.msra.mxu0 %v3077
        %3216 = vmatprep.subr.bf16.mxu0 %v3080
        %3217 = vmatpush1.bf16.msra.mxu0 %v3079
        %3218 = vmatprep.subr.bf16.mxu0 %v3082
        %3219 = vmatpush1.bf16.msra.mxu0 %v3081
        %3220 = vmatprep.mubr.bf16.mxu0 %v2762
        %3221 = vmatmul.mubr.bf16.gmra.mrb[0].mxu0 %v2761
        %v3222 = vpop.f32.mrb[0].mxu0
        %v3223 = vadd.f32 %v3182, %v3222
        %v3224 = vpop.f32.mrb[0].mxu0
        %v3225 = vadd.f32 %v3184, %v3224
        %v3226 = vpop.f32.mrb[0].mxu0
        %v3227 = vpop.f32.mrb[0].mxu0
        %3228 = vdwg.mxu0
        %v3229 = vld [vmem:[%s671] sm:$0x3]
        %v3231 = vlaneseq
        %v3232 = vshrl.u32 %v3231, 7
        %v3233 = vsub.s32 0, %v3232
        %v3234 = vrot.slane %v3229, %v3233
        %v3235 = vlaneseq
        %v3236 = vshrl.u32 %v3235, 7
        %v3237 = vsub.s32 1, %v3236
        %v3238 = vrot.slane %v3229, %v3237
        %v3241 = vmul.f32 %v3223, %v3234
        %v3242 = vmul.f32 %v3225, %v3238
        %v3243 = vld [vmem:[%s680] sm:$0x3]
        %v3245 = vlaneseq
        %v3246 = vshrl.u32 %v3245, 7
        %v3247 = vsub.s32 0, %v3246
        %v3248 = vrot.slane %v3243, %v3247
        %v3249 = vlaneseq
        %v3250 = vshrl.u32 %v3249, 7
        %v3251 = vsub.s32 1, %v3250
        %v3252 = vrot.slane %v3243, %v3251
        %v3255 = vadd.f32 %v3241, %v3248
        %v3256 = vadd.f32 %v3242, %v3252
        %v3257 = vmax.f32 %v3255, 0.0
        %v3258 = vmax.f32 %v3256, 0.0
        %v3259 = vpack.c.bf16 %v3257, %v3257
        %v3260 = vpack.c.bf16 %v3258, %v3258
        %v3261 = vld [vmem:[%s689] sm:$0xf]
        %v3262 = vld [vmem:[%s689 + $0x4] sm:$0xf]
        %v3263 = vld [vmem:[%s689 + $0x8] sm:$0xf]
        %v3264 = vld [vmem:[%s689 + $0xc] sm:$0xf]
        %v3265 = vld [vmem:[%s689 + $0x10] sm:$0xf]
        %v3266 = vld [vmem:[%s689 + $0x14] sm:$0xf]
        %v3267 = vld [vmem:[%s689 + $0x18] sm:$0xf]
        %v3268 = vld [vmem:[%s689 + $0x1c] sm:$0xf]
        %v3269 = vld [vmem:[%s689 + $0x20] sm:$0xf]
        %v3270 = vld [vmem:[%s689 + $0x24] sm:$0xf]
        %v3271 = vld [vmem:[%s689 + $0x28] sm:$0xf]
        %v3272 = vld [vmem:[%s689 + $0x2c] sm:$0xf]
        %v3273 = vld [vmem:[%s689 + $0x30] sm:$0xf]
        %v3274 = vld [vmem:[%s689 + $0x34] sm:$0xf]
        %v3275 = vld [vmem:[%s689 + $0x38] sm:$0xf]
        %v3276 = vld [vmem:[%s689 + $0x3c] sm:$0xf]
        %v3277 = vld [vmem:[%s689 + $0x40] sm:$0xf]
        %v3278 = vld [vmem:[%s689 + $0x44] sm:$0xf]
        %v3279 = vld [vmem:[%s689 + $0x48] sm:$0xf]
        %v3280 = vld [vmem:[%s689 + $0x4c] sm:$0xf]
        %v3281 = vld [vmem:[%s689 + $0x50] sm:$0xf]
        %v3282 = vld [vmem:[%s689 + $0x54] sm:$0xf]
        %v3283 = vld [vmem:[%s689 + $0x58] sm:$0xf]
        %v3284 = vld [vmem:[%s689 + $0x5c] sm:$0xf]
        %v3285 = vld [vmem:[%s689 + $0x60] sm:$0xf]
        %v3286 = vld [vmem:[%s689 + $0x64] sm:$0xf]
        %v3287 = vld [vmem:[%s689 + $0x68] sm:$0xf]
        %v3288 = vld [vmem:[%s689 + $0x6c] sm:$0xf]
        %v3289 = vld [vmem:[%s689 + $0x70] sm:$0xf]
        %v3290 = vld [vmem:[%s689 + $0x74] sm:$0xf]
        %v3291 = vld [vmem:[%s689 + $0x78] sm:$0xf]
        %v3292 = vld [vmem:[%s689 + $0x7c] sm:$0xf]
        %v3325 = vunpack.c.l.b16 %v3261
        %v3326 = vunpack.c.l.b16 %v3262
        %v3327 = vunpack.c.l.b16 %v3263
        %v3328 = vunpack.c.l.b16 %v3264
        %v3329 = vunpack.c.l.b16 %v3265
        %v3330 = vunpack.c.l.b16 %v3266
        %v3331 = vunpack.c.l.b16 %v3267
        %v3332 = vunpack.c.l.b16 %v3268
        %v3333 = vunpack.c.l.b16 %v3269
        %v3334 = vunpack.c.l.b16 %v3270
        %v3335 = vunpack.c.l.b16 %v3271
        %v3336 = vunpack.c.l.b16 %v3272
        %v3337 = vunpack.c.l.b16 %v3273
        %v3338 = vunpack.c.l.b16 %v3274
        %v3339 = vunpack.c.l.b16 %v3275
        %v3340 = vunpack.c.l.b16 %v3276
        %v3341 = vunpack.c.l.b16 %v3277
        %v3342 = vunpack.c.l.b16 %v3278
        %v3343 = vunpack.c.l.b16 %v3279
        %v3344 = vunpack.c.l.b16 %v3280
        %v3345 = vunpack.c.l.b16 %v3281
        %v3346 = vunpack.c.l.b16 %v3282
        %v3347 = vunpack.c.l.b16 %v3283
        %v3348 = vunpack.c.l.b16 %v3284
        %v3349 = vunpack.c.l.b16 %v3285
        %v3350 = vunpack.c.l.b16 %v3286
        %v3351 = vunpack.c.l.b16 %v3287
        %v3352 = vunpack.c.l.b16 %v3288
        %v3353 = vunpack.c.l.b16 %v3289
        %v3354 = vunpack.c.l.b16 %v3290
        %v3355 = vunpack.c.l.b16 %v3291
        %v3356 = vunpack.c.l.b16 %v3292
        %v3357 = vpack.c.b16 %v3326, %v3325
        %v3358 = vpack.c.b16 %v3328, %v3327
        %v3359 = vpack.c.b16 %v3330, %v3329
        %v3360 = vpack.c.b16 %v3332, %v3331
        %v3361 = vpack.c.b16 %v3334, %v3333
        %v3362 = vpack.c.b16 %v3336, %v3335
        %v3363 = vpack.c.b16 %v3338, %v3337
        %v3364 = vpack.c.b16 %v3340, %v3339
        %v3365 = vpack.c.b16 %v3342, %v3341
        %v3366 = vpack.c.b16 %v3344, %v3343
        %v3367 = vpack.c.b16 %v3346, %v3345
        %v3368 = vpack.c.b16 %v3348, %v3347
        %v3369 = vpack.c.b16 %v3350, %v3349
        %v3370 = vpack.c.b16 %v3352, %v3351
        %v3371 = vpack.c.b16 %v3354, %v3353
        %v3372 = vpack.c.b16 %v3356, %v3355
        %3389 = vmatprep.subr.bf16.mxu0 0
        %3390 = vmatpush1.bf16.msra.mxu0 %v3357
        %3391 = vmatprep.subr.bf16.mxu0 0
        %3392 = vmatpush1.bf16.msra.mxu0 %v3358
        %3393 = vmatprep.subr.bf16.mxu0 0
        %3394 = vmatpush1.bf16.msra.mxu0 %v3359
        %3395 = vmatprep.subr.bf16.mxu0 0
        %3396 = vmatpush1.bf16.msra.mxu0 %v3360
        %3397 = vmatprep.subr.bf16.mxu0 0
        %3398 = vmatpush1.bf16.msra.mxu0 %v3361
        %3399 = vmatprep.subr.bf16.mxu0 0
        %3400 = vmatpush1.bf16.msra.mxu0 %v3362
        %3401 = vmatprep.subr.bf16.mxu0 0
        %3402 = vmatpush1.bf16.msra.mxu0 %v3363
        %3403 = vmatprep.subr.bf16.mxu0 0
        %3404 = vmatpush1.bf16.msra.mxu0 %v3364
        %3405 = vmatprep.subr.bf16.mxu0 0
        %3406 = vmatpush1.bf16.msra.mxu0 %v3365
        %3407 = vmatprep.subr.bf16.mxu0 0
        %3408 = vmatpush1.bf16.msra.mxu0 %v3366
        %3409 = vmatprep.subr.bf16.mxu0 0
        %3410 = vmatpush1.bf16.msra.mxu0 %v3367
        %3411 = vmatprep.subr.bf16.mxu0 0
        %3412 = vmatpush1.bf16.msra.mxu0 %v3368
        %3413 = vmatprep.subr.bf16.mxu0 0
        %3414 = vmatpush1.bf16.msra.mxu0 %v3369
        %3415 = vmatprep.subr.bf16.mxu0 0
        %3416 = vmatpush1.bf16.msra.mxu0 %v3370
        %3417 = vmatprep.subr.bf16.mxu0 0
        %3418 = vmatpush1.bf16.msra.mxu0 %v3371
        %3419 = vmatprep.subr.bf16.mxu0 0
        %3420 = vmatpush1.bf16.msra.mxu0 %v3372
        %3421 = vmatprep.mubr.bf16.mxu0 %v3260
        %3422 = vmatmul.mubr.bf16.gmra.mrb[0].mxu0 %v3259
        %v3423 = vpop.f32.mrb[0].mxu0
        %v3424 = vadd.f32 0.0, %v3423
        %v3425 = vpop.f32.mrb[0].mxu0
        %v3426 = vpop.f32.mrb[0].mxu0
        %v3427 = vpop.f32.mrb[0].mxu0
        %3428 = vdwg.mxu0
        %v3429 = vld [vmem:[%s697] sm:$0x1]
        %v3431 = vlaneseq
        %v3432 = vshrl.u32 %v3431, 7
        %v3433 = vsub.s32 0, %v3432
        %v3434 = vrot.slane %v3429, %v3433
        %v3436 = vmul.f32 %v3424, %v3434
        %v3437 = vld [vmem:[%s705] sm:$0x1]
        %v3439 = vlaneseq
        %v3440 = vshrl.u32 %v3439, 7
        %v3441 = vsub.s32 0, %v3440
        %v3442 = vrot.slane %v3437, %v3441
        %v3444 = vadd.f32 %v3436, %v3442
        %v3445 = vmax.f32 %v3444, 0.0
        %v3446 = vpack.c.bf16 %v3445, %v3445
        %v3447 = vld [vmem:[%s805] sm:$0xf]
        %v3448 = vld [vmem:[%s805 + $0x4] sm:$0xf]
        %v3449 = vld [vmem:[%s805 + $0x8] sm:$0xf]
        %v3450 = vld [vmem:[%s805 + $0xc] sm:$0xf]
        %v3451 = vld [vmem:[%s805 + $0x10] sm:$0xf]
        %v3452 = vld [vmem:[%s805 + $0x14] sm:$0xf]
        %v3453 = vld [vmem:[%s805 + $0x18] sm:$0xf]
        %v3454 = vld [vmem:[%s805 + $0x1c] sm:$0xf]
        %v3455 = vld [vmem:[%s805 + $0x20] sm:$0xf]
        %v3456 = vld [vmem:[%s805 + $0x24] sm:$0xf]
        %v3457 = vld [vmem:[%s805 + $0x28] sm:$0xf]
        %v3458 = vld [vmem:[%s805 + $0x2c] sm:$0xf]
        %v3459 = vld [vmem:[%s805 + $0x30] sm:$0xf]
        %v3460 = vld [vmem:[%s805 + $0x34] sm:$0xf]
        %v3461 = vld [vmem:[%s805 + $0x38] sm:$0xf]
        %v3462 = vld [vmem:[%s805 + $0x3c] sm:$0xf]
        %v3463 = vld [vmem:[%s713] sm:$0x1]
        %v3465 = vlaneseq
        %v3466 = vshrl.u32 %v3465, 7
        %v3467 = vsub.s32 0, %v3466
        %v3468 = vrot.slane %v3463, %v3467
        %v3486 = vunpack.c.l.b16 %v3447
        %v3487 = vunpack.c.l.b16 %v3448
        %v3488 = vunpack.c.l.b16 %v3449
        %v3489 = vunpack.c.l.b16 %v3450
        %v3490 = vunpack.c.l.b16 %v3451
        %v3491 = vunpack.c.l.b16 %v3452
        %v3492 = vunpack.c.l.b16 %v3453
        %v3493 = vunpack.c.l.b16 %v3454
        %v3494 = vunpack.c.l.b16 %v3455
        %v3495 = vunpack.c.l.b16 %v3456
        %v3496 = vunpack.c.l.b16 %v3457
        %v3497 = vunpack.c.l.b16 %v3458
        %v3498 = vunpack.c.l.b16 %v3459
        %v3499 = vunpack.c.l.b16 %v3460
        %v3500 = vunpack.c.l.b16 %v3461
        %v3501 = vunpack.c.l.b16 %v3462
        %v3502 = vpack.c.b16 %v3487, %v3486
        %v3503 = vpack.c.b16 %v3489, %v3488
        %v3504 = vpack.c.b16 %v3491, %v3490
        %v3505 = vpack.c.b16 %v3493, %v3492
        %v3506 = vpack.c.b16 %v3495, %v3494
        %v3507 = vpack.c.b16 %v3497, %v3496
        %v3508 = vpack.c.b16 %v3499, %v3498
        %v3509 = vpack.c.b16 %v3501, %v3500
        %3518 = vmatprep.subr.bf16.mxu0 0
        %3519 = vmatpush1.bf16.msra.mxu0 %v3502
        %3520 = vmatprep.subr.bf16.mxu0 0
        %3521 = vmatpush1.bf16.msra.mxu0 %v3503
        %3522 = vmatprep.subr.bf16.mxu0 0
        %3523 = vmatpush1.bf16.msra.mxu0 %v3504
        %3524 = vmatprep.subr.bf16.mxu0 0
        %3525 = vmatpush1.bf16.msra.mxu0 %v3505
        %3526 = vmatprep.subr.bf16.mxu0 0
        %3527 = vmatpush1.bf16.msra.mxu0 %v3506
        %3528 = vmatprep.subr.bf16.mxu0 0
        %3529 = vmatpush1.bf16.msra.mxu0 %v3507
        %3530 = vmatprep.subr.bf16.mxu0 0
        %3531 = vmatpush1.bf16.msra.mxu0 %v3508
        %3532 = vmatprep.subr.bf16.mxu0 0
        %3533 = vmatpush1.bf16.msra.mxu0 %v3509
        %3534 = vmatprep.subr.bf16.mxu0 0
        %3535 = vmatpush1.bf16.msra.mxu0 0
        %3536 = vmatprep.subr.bf16.mxu0 0
        %3537 = vmatpush1.bf16.msra.mxu0 0
        %3538 = vmatprep.subr.bf16.mxu0 0
        %3539 = vmatpush1.bf16.msra.mxu0 0
        %3540 = vmatprep.subr.bf16.mxu0 0
        %3541 = vmatpush1.bf16.msra.mxu0 0
        %3542 = vmatprep.subr.bf16.mxu0 0
        %3543 = vmatpush1.bf16.msra.mxu0 0
        %3544 = vmatprep.subr.bf16.mxu0 0
        %3545 = vmatpush1.bf16.msra.mxu0 0
        %3546 = vmatprep.subr.bf16.mxu0 0
        %3547 = vmatpush1.bf16.msra.mxu0 0
        %3548 = vmatprep.subr.bf16.mxu0 0
        %3549 = vmatpush1.bf16.msra.mxu0 0
        %3550 = vmatprep.mubr.bf16.mxu0 0
        %3551 = vmatmul.mubr.bf16.gmra.mrb[0].mxu0 %v3446
        %v3552 = vpop.f32.mrb[0].mxu0
        %v3553 = vadd.f32 %v3468, %v3552
        %v3554 = vpop.f32.mrb[0].mxu0
        %v3555 = vpop.f32.mrb[0].mxu0
        %v3556 = vpop.f32.mrb[0].mxu0
        %3557 = vdwg.mxu0
        %vm3558 = vcmask 64512
        %3559 = vst.msk [vmem:[%s800] sm:$0xff] %vm3558, %v3553
        %s3560 = sand.u32 %s376, 1
        %s3561 = scalar_lea.sflag [#allocation4], %s3560
        %s3562 = sand.u32 %s376, 1
        %s3563 = smul.addr %s3562, 8
        %s3564 = scalar_lea.vmem [#allocation20], %s3563
        // Predicated region
        $region113: #{tpu_custom_call.1} parent=67 // pred_check
          %p3565 = pneg %p386
        $region114: #{tpu_custom_call.1} parent=67 // pred_check_branch
          %3567 = sbr.rel (%p3565) target = $region116
        $region115: #{tpu_custom_call.1} parent=67 // pred_region
          %s3569 = ssub.s32 128, 128
          %3570 = vsyncadd %s3561, %s3569
          %s3571 = sadd.s32 %s47, %s46
          %s3572 = smul.addr %s3571, 128
          %s3573 = scalar_lea.hbm %s12, %s3572
          %s3575 = sshll.u32 %s3564, 4
          %s3576 = int_to_ptr.vmem [resolvable:$true] %s3575
          %3578 = dma.vmem_to_hbm [thread:$0]  %s3576, 128, %s3573, %s3561
        $region116: #{tpu_custom_call.1} parent=67 // pred_fallthru
          _
      $region68: #{tpu_custom_call.1} parent=5 // pred_fallthru
        _
      %p3579 = scmp.le.s32.totalorder 2, %s37
      // Predicated region
      $region117: #{tpu_custom_call.1} parent=5 // pred_check
        %p3580 = pneg %p3579
      $region118: #{tpu_custom_call.1} parent=5 // pred_check_branch
        %3582 = sbr.rel (%p3580) target = $region120
      $region119: #{tpu_custom_call.1} parent=5 // pred_region
        %s3583 = ssub.s32 %s37, 2
        // Predicated region
        $region121: #{tpu_custom_call.1} parent=119 // pred_check
          %p3584 = pneg %p392
        $region122: #{tpu_custom_call.1} parent=119 // pred_check_branch
          %3586 = sbr.rel (%p3584) target = $region124
        $region123: #{tpu_custom_call.1} parent=119 // pred_region
          %s3587 = sand.u32 %s377, 1
          %s3588 = scalar_lea.sflag [#allocation4], %s3587
          %s3589 = sand.u32 %s377, 1
          %s3590 = smul.addr %s3589, 8
          %s3591 = scalar_lea.vmem [#allocation20], %s3590
          %3592 = dma.done %s3588, 128
        $region124: #{tpu_custom_call.1} parent=119 // pred_fallthru
          _
      $region120: #{tpu_custom_call.1} parent=5 // pred_fallthru
        _
    $region6: #{tpu_custom_call.1} parent=1 // loop_footer
      %s41 = sadd.s32 1, %s37
    $region7: #{tpu_custom_call.1} parent=1 // loop_footer_branch
      %36 = sbr.rel target = $region3
    $region8: #{tpu_custom_call.1} parent=1 // loop_exit
      _
    %3593 = vsyncpa [#allocation3], 1
    %s3594 = scalar_lea.sflag [#allocation3], 1
    %3595 = vsyncpa %s3594, 1
    %3596 = vsyncpa [#allocation6], 1
    %s3597 = scalar_lea.sflag [#allocation6], 1
    %3598 = vsyncpa %s3597, 1
    %3599 = vsyncpa [#allocation9], 1
    %s3600 = scalar_lea.sflag [#allocation9], 1
    %3601 = vsyncpa %s3600, 1
    %3602 = vsyncpa [#allocation12], 1
    %s3603 = scalar_lea.sflag [#allocation12], 1
    %3604 = vsyncpa %s3603, 1
    %3605 = vsyncpa [#allocation15], 1
    %s3606 = scalar_lea.sflag [#allocation15], 1
    %3607 = vsyncpa %s3606, 1
    %3608 = vsyncpa [#allocation18], 1
    %s3609 = scalar_lea.sflag [#allocation18], 1
    %3610 = vsyncpa %s3609, 1
    %3611 = vsyncpa [#allocation4], 1
    %s3612 = scalar_lea.sflag [#allocation4], 1
    %3613 = vsyncpa %s3612, 1

</llo_original>
